<compile_context>
chip_gen: v7x
topology: tpu7x:2x2x1
jax: 0.10.0
libtpu: 0.0.40
codegen_flags: <defaults>
</compile_context>

<pallas_src>
import functools

import numpy as np
import jax
import jax.numpy as jnp
from jax import lax
from jax.experimental import pallas as pl
from jax.experimental.pallas import tpu as pltpu

# ----------------------- small, module-consistent config -----------------------
BATCH = 2
HEIGHT = 32
WIDTH = 32
MIN_DEPTH = 0.1
MAX_DEPTH = 100.0
OGM_SIZE = 16          # module default 128, small for the demo
NUM_SUBGRIDS = 4       # module default 8
MEDIAN_SCALE = 4.0     # module default 16, scaled down with the grid


# ===================== batch-invariant constants (hoisted) =====================
def _build_constants(G, S):
    """Sub-grid point coordinates (lane-dense (2, NPTS/128, 128)) and the
    point->OGM-cell one-hot membership matrix (NPTS, G*G), both precomputed
    on host and DMA'd once (constant index_map -> resident across the grid)."""
    GS = G * S
    NPTS = GS * GS
    assert NPTS % 128 == 0, "demo sizes must flatten to whole 128-lane rows"
    NP = NPTS // 128
    p = np.arange(NPTS)
    ax = p // GS                      # ogm_x * S + sub_x
    az = p % GS                       # ogm_z * S + sub_z
    x = (ax + 0.5) / S                # OGM.create_grid_coords: sub-cell centers, y = 0
    z = (az + 0.5) / S
    coords = np.stack([x, z]).astype(np.float32).reshape(2, NP, 128)
    cell = (ax // S) * G + (az // S)  # row-major cell index, matches ogm.view(B,1,G*G)
    member = np.zeros((NPTS, G * G), np.float32)
    member[p, cell] = 1.0
    return jnp.asarray(coords), jnp.asarray(member)


# ============================== fused Pallas kernel =============================
def _fused_kernel(T_ref, K_ref, depth_ref, ogm_ref, coords_ref, member_ref,
                  disp_out_ref, ogm_out_ref, *, G, S, H, W, min_depth, max_depth):
    b = pl.program_id(0)
    GS = G * S
    NPTS = GS * GS
    NP = NPTS // 128
    eps = 1e-7

    # --- fused depth_to_disp on the VMEM-resident (H, W) plane-depth tile ---
    min_disp = 1.0 / max_depth
    max_disp = 1.0 / min_depth
    depth = depth_ref[0]                                    # (H, W)
    disp_img = (1.0 / depth - min_disp) / (max_disp - min_disp)
    disp_out_ref[0] = disp_img

    # --- per-point math, lane-dense (NP, 128): transform_point_cloud + project_to_2d ---
    x = coords_ref[0]                                       # (NP, 128)
    z = coords_ref[1]
    cx = T_ref[b, 0, 0] * x + T_ref[b, 0, 2] * z + T_ref[b, 0, 3]
    cy = T_ref[b, 1, 0] * x + T_ref[b, 1, 2] * z + T_ref[b, 1, 3]
    cz = T_ref[b, 2, 0] * x + T_ref[b, 2, 2] * z + T_ref[b, 2, 3]
    px = K_ref[b, 0, 0] * cx + K_ref[b, 0, 1] * cy + K_ref[b, 0, 2] * cz
    py = K_ref[b, 1, 0] * cx + K_ref[b, 1, 1] * cy + K_ref[b, 1, 2] * cz
    pz = K_ref[b, 2, 0] * cx + K_ref[b, 2, 1] * cy + K_ref[b, 2, 2] * cz
    u = px / (pz + eps)          # exact division kept so nearest-pixel indices match the ref
    v = py / (pz + eps)

    # --- convert_to_sampler: nearest pixel + image-range mask ---
    ui = jnp.floor(u + 0.5)
    vi = jnp.floor(v + 0.5)
    in_range = (ui >= 0.0) & (ui <= W - 1.0) & (vi >= 0.0) & (vi <= H - 1.0)
    maskf = in_range.astype(jnp.float32)
    uidx = jnp.clip(ui, 0.0, W - 1.0).astype(jnp.int32)
    vidx = jnp.clip(vi, 0.0, H - 1.0).astype(jnp.int32)

    # --- put the point index on the lane axis: (NP, 128) -> (1, NPTS) via slice+concat ---
    def rows_to_lane_vector(a):
        return jnp.concatenate([a[r:r + 1, :] for r in range(NP)], axis=1)

    u_row = rows_to_lane_vector(uidx)                       # (1, NPTS) int32
    v_row = rows_to_lane_vector(vidx)                       # (1, NPTS) int32
    m_row = rows_to_lane_vector(maskf)                      # (1, NPTS) f32

    # --- batch_masked_sampling: vectorised two-stage gather ---
    # stage 1: column one-hot + MXU matmul -> each point's image column values
    # stage 2: row one-hot * column values, reduce over the image-row (sublane) axis
    w_iota = lax.broadcasted_iota(jnp.int32, (W, NPTS), 0)
    h_iota = lax.broadcasted_iota(jnp.int32, (H, NPTS), 0)
    onehot_u = (u_row == w_iota).astype(jnp.float32)        # (W, NPTS)
    onehot_v = (v_row == h_iota).astype(jnp.float32)        # (H, NPTS)
    colvals = jnp.dot(disp_img, onehot_u,
                      preferred_element_type=jnp.float32)   # (H, NPTS) = disp[:, u[p]]
    samp_row = jnp.sum(onehot_v * colvals, axis=0,
                       keepdims=True)                       # (1, NPTS) = disp[v[p], u[p]]
    samp_row = samp_row * m_row

    # --- sub-grid aggregation: cellsum & count in ONE MXU membership matmul ---
    y2 = jnp.concatenate([samp_row, m_row], axis=0)         # (2, NPTS)
    cells = jnp.dot(y2, member_ref[...],
                    preferred_element_type=jnp.float32)     # (2, G*G)
    cellsum = cells[0:1, :]
    count = cells[1:2, :]
    sample_disp = cellsum / jnp.maximum(count, 1.0)         # subcell_num.clamp(min=1)

    # --- min/max normalisation and in-place style OGM update (lane-dense 256-wide store) ---
    min_d = jnp.min(sample_disp)
    max_d = jnp.max(sample_disp)
    z_conf = (sample_disp - min_d) / jnp.maximum(max_d - min_d, 1e-10)
    ogm_out_ref[0] = ogm_ref[0] * z_conf                    # (1, G*G)


def ogm_confidence_forward(ogm_data, plane_depth, K, T_ogm2cam,
                           num_subgrids=NUM_SUBGRIDS,
                           min_depth=MIN_DEPTH, max_depth=MAX_DEPTH):
    """Fused depth_to_disp + multiply_confidence. Returns (plane_disp, updated_ogm)."""
    B, _, G, _ = ogm_data.shape
    _, _, H, W = plane_depth.shape
    S = num_subgrids
    GS = G * S
    NPTS = GS * GS
    NP = NPTS // 128
    coords, member = _build_constants(G, S)

    depth3 = plane_depth.reshape(B, H, W)
    ogm3 = ogm_data.reshape(B, 1, G * G)                    # lane-dense (256-wide) OGM layout

    kernel = functools.partial(_fused_kernel, G=G, S=S, H=H, W=W,
                               min_depth=min_depth, max_depth=max_depth)
    disp3, ogm_out3 = pl.pallas_call(
        kernel,
        out_shape=(jax.ShapeDtypeStruct((B, H, W), jnp.float32),
                   jax.ShapeDtypeStruct((B, 1, G * G), jnp.float32)),
        grid=(B,),
        in_specs=[
            pl.BlockSpec(memory_space=pltpu.MemorySpace.SMEM),    # T_ogm2cam (B,4,4)
            pl.BlockSpec(memory_space=pltpu.MemorySpace.SMEM),    # K         (B,4,4)
            pl.BlockSpec((1, H, W), lambda b: (b, 0, 0)),         # plane depth (VMEM)
            pl.BlockSpec((1, 1, G * G), lambda b: (b, 0, 0)),     # ogm.data (VMEM, aliased)
            pl.BlockSpec((2, NP, 128), lambda b: (0, 0, 0)),      # sub-grid coords (resident)
            pl.BlockSpec((NPTS, G * G), lambda b: (0, 0)),        # cell membership (resident)
        ],
        out_specs=(
            pl.BlockSpec((1, H, W), lambda b: (b, 0, 0)),         # plane_disp
            pl.BlockSpec((1, 1, G * G), lambda b: (b, 0, 0)),     # updated OGM
        ),
        input_output_aliases={3: 1},                              # ogm.data *= z_confidence
        compiler_params=pltpu.CompilerParams(
            dimension_semantics=("parallel",),                    # batches independent (v7x 2x)
            vmem_limit_bytes=32 * 1024 * 1024),
    )(T_ogm2cam, K, depth3, ogm3, coords, member)

    return disp3.reshape(B, 1, H, W), ogm_out3.reshape(B, 1, G, G)


# ================================ plain-JAX glue ================================
def make_R_y_invert(batch_size):
    # nn.Parameter buffer from __init__ (requires_grad=False)
    R = jnp.array([1, 0, 0, 0, 0, -1, 0, 0, 0, 0, 1, 0, 0, 0, 0, 1],
                  dtype=jnp.float32).reshape(1, 4, 4)
    return jnp.broadcast_to(R, (batch_size, 4, 4))


def compute_T_norm2cam(T_ogm2cam, ogm_size):
    # glue from forward(): tiny 4x4 matmul, kept in plain JAX
    T_norm2ogm = jnp.eye(4, dtype=T_ogm2cam.dtype)
    T_norm2ogm = T_norm2ogm.at[:3, :3].multiply(float(ogm_size))
    return jnp.matmul(T_ogm2cam, T_norm2ogm.reshape(1, 4, 4))


# ============================ pure-JAX references ==============================
def depth_to_disp_ref(depth, min_depth=MIN_DEPTH, max_depth=MAX_DEPTH):
    min_disp, max_disp = 1.0 / max_depth, 1.0 / min_depth
    return (1.0 / depth - min_disp) / (max_disp - min_disp)


def multiply_confidence_ref(ogm_data, plane_disp, K, T, S):
    B, _, G, _ = ogm_data.shape
    _, _, H, W = plane_disp.shape
    GS = G * S
    ax, az = jnp.meshgrid(jnp.arange(GS, dtype=jnp.float32),
                          jnp.arange(GS, dtype=jnp.float32), indexing="ij")
    x = (ax + 0.5) / S
    z = (az + 0.5) / S
    outs = []
    for b in range(B):
        Tb, Kb = T[b], K[b]
        cx = Tb[0, 0] * x + Tb[0, 2] * z + Tb[0, 3]
        cy = Tb[1, 0] * x + Tb[1, 2] * z + Tb[1, 3]
        cz = Tb[2, 0] * x + Tb[2, 2] * z + Tb[2, 3]
        px = Kb[0, 0] * cx + Kb[0, 1] * cy + Kb[0, 2] * cz
        py = Kb[1, 0] * cx + Kb[1, 1] * cy + Kb[1, 2] * cz
        pz = Kb[2, 0] * cx + Kb[2, 1] * cy + Kb[2, 2] * cz
        u, v = px / (pz + 1e-7), py / (pz + 1e-7)
        ui, vi = jnp.floor(u + 0.5), jnp.floor(v + 0.5)
        mask = (ui >= 0) & (ui <= W - 1) & (vi >= 0) & (vi <= H - 1)
        uidx = jnp.clip(ui, 0, W - 1).astype(jnp.int32)
        vidx = jnp.clip(vi, 0, H - 1).astype(jnp.int32)
        flat = vidx * W + uidx
        dflat = plane_disp[b, 0].reshape(-1)
        sampled = jnp.where(mask, jnp.take(dflat, flat), 0.0)
        maskf = mask.astype(jnp.float32)
        cellsum = sampled.reshape(G, S, G, S).sum(axis=(1, 3))
        count = maskf.reshape(G, S, G, S).sum(axis=(1, 3))
        sd = cellsum / jnp.maximum(count, 1.0)
        zc = (sd - sd.min()) / jnp.maximum(sd.max() - sd.min(), 1e-10)
        outs.append(ogm_data[b, 0] * zc)
    return jnp.stack(outs)[:, None]


# ==================================== main =====================================
if __name__ == "__main__":
    key = jax.random.PRNGKey(0)
    k1, k2 = jax.random.split(key)
    B, H, W, G, S = BATCH, HEIGHT, WIDTH, OGM_SIZE, NUM_SUBGRIDS

    # synthetic ground-plane depth (metres) and OGM occupancy probabilities
    plane_depth = jax.random.uniform(k1, (B, 1, H, W), jnp.float32, 2.0, 20.0)
    ogm_data = jax.random.uniform(k2, (B, 1, G, G), jnp.float32, 0.0, 1.0)

    # deterministic camera intrinsics / OGM->camera extrinsics (synthetic "checkpoint")
    cell = MEDIAN_SCALE / G
    T_place = jnp.array([[cell, 0.0, 0.0, -0.5 * G * cell],
                         [0.0, 1.0, 0.0, 1.0],
                         [0.0, 0.0, cell, 1.0],
                         [0.0, 0.0, 0.0, 1.0]], jnp.float32)
    R_y_invert = make_R_y_invert(B)
    T_ogm2cam = jnp.matmul(jnp.broadcast_to(T_place, (B, 4, 4)), R_y_invert)
    K = jnp.array([[0.8 * W, 0.0, 0.5 * W, 0.0],
                   [0.0, 0.8 * H, 0.5 * H, 0.0],
                   [0.0, 0.0, 1.0, 0.0],
                   [0.0, 0.0, 0.0, 1.0]], jnp.float32)
    K = jnp.broadcast_to(K, (B, 4, 4))

    # ---- fused Pallas kernel: depth_to_disp + multiply_confidence ----
    plane_disp, ogm_out = ogm_confidence_forward(ogm_data, plane_depth, K, T_ogm2cam, S)
    jax.block_until_ready(ogm_out)

    # forward() glue: T_norm2cam (4x4, plain JAX)
    T_norm2cam = compute_T_norm2cam(T_ogm2cam, G)
    jax.block_until_ready(T_norm2cam)

    # ---- correctness checks vs pure-JAX references ----
    disp_ref = depth_to_disp_ref(plane_depth)
    ogm_ref = multiply_confidence_ref(ogm_data, plane_disp, K, T_ogm2cam, S)
    np.testing.assert_allclose(np.asarray(plane_disp), np.asarray(disp_ref),
                               rtol=1e-5, atol=1e-6)
    np.testing.assert_allclose(np.asarray(ogm_out), np.asarray(ogm_ref),
                               rtol=1e-4, atol=1e-5)

    print("KERNEL_OK")
</pallas_src>

<mosaic_0001>
module attributes {stable_mosaic.version = 11 : i64} {
  func.func @_fused_kernel(%arg0: i32, %arg1: memref<2x4x4xf32, #tpu.memory_space<smem>>, %arg2: memref<2x4x4xf32, #tpu.memory_space<smem>>, %arg3: memref<1x32x32xf32, #tpu.memory_space<vmem>>, %arg4: memref<1x1x256xf32, #tpu.memory_space<vmem>>, %arg5: memref<2x32x128xf32, #tpu.memory_space<vmem>>, %arg6: memref<4096x256xf32, #tpu.memory_space<vmem>>, %arg7: memref<1x32x32xf32, #tpu.memory_space<vmem>>, %arg8: memref<1x1x256xf32, #tpu.memory_space<vmem>>) attributes {dimension_semantics = [#tpu.dimension_semantics<parallel>], iteration_bounds = array<i64: 2>, scalar_prefetch = 0 : i64, scratch_operands = 0 : i64, tpu.core_type = #tpu.core_type<tc>, window_params = [{transform_indices = @transform_0, window_bounds = array<i64: 2, 4, 4>}, {transform_indices = @transform_1, window_bounds = array<i64: 2, 4, 4>}, {transform_indices = @transform_2, window_bounds = array<i64: 1, 32, 32>}, {transform_indices = @transform_3, window_bounds = array<i64: 1, 1, 256>}, {pipeline_mode = #tpu.pipeline_mode<synchronous>, transform_indices = @transform_4, window_bounds = array<i64: 2, 32, 128>}, {pipeline_mode = #tpu.pipeline_mode<synchronous>, transform_indices = @transform_5, window_bounds = array<i64: 4096, 256>}, {transform_indices = @transform_6, window_bounds = array<i64: 1, 32, 32>}, {transform_indices = @transform_7, window_bounds = array<i64: 1, 1, 256>}]} {
    %c0 = arith.constant 0 : index
    %c0_0 = arith.constant 0 : index
    %c0_1 = arith.constant 0 : index
    %0 = vector.load %arg3[%c0, %c0_0, %c0_1] : memref<1x32x32xf32, #tpu.memory_space<vmem>>, vector<1x32x32xf32>
    %1 = vector.shape_cast %0 : vector<1x32x32xf32> to vector<32x32xf32>
    %cst = arith.constant 1.000000e+00 : f32
    %2 = vector.broadcast %cst : f32 to vector<32x32xf32>
    %3 = arith.divf %2, %1 : vector<32x32xf32>
    %cst_2 = arith.constant 0.00999999977 : f32
    %4 = vector.broadcast %cst_2 : f32 to vector<32x32xf32>
    %5 = arith.subf %3, %4 : vector<32x32xf32>
    %cst_3 = arith.constant 9.98999977 : f32
    %6 = vector.broadcast %cst_3 : f32 to vector<32x32xf32>
    %7 = arith.divf %5, %6 : vector<32x32xf32>
    %c0_4 = arith.constant 0 : index
    %c0_5 = arith.constant 0 : index
    %c0_6 = arith.constant 0 : index
    %8 = vector.load %arg7[%c0_4, %c0_5, %c0_6] : memref<1x32x32xf32, #tpu.memory_space<vmem>>, vector<1x32x32xf32>
    %9 = vector.shape_cast %8 : vector<1x32x32xf32> to vector<32x32xf32>
    %10 = vector.shape_cast %7 : vector<32x32xf32> to vector<1x32x32xf32>
    tpu.vector_store %arg7[%c0_4, %c0_5, %c0_6], %10 {strides = array<i32>} : memref<1x32x32xf32, #tpu.memory_space<vmem>>, vector<1x32x32xf32>,
    %c0_7 = arith.constant 0 : index
    %c0_8 = arith.constant 0 : index
    %c0_9 = arith.constant 0 : index
    %11 = vector.load %arg5[%c0_7, %c0_8, %c0_9] : memref<2x32x128xf32, #tpu.memory_space<vmem>>, vector<1x32x128xf32>
    %12 = vector.shape_cast %11 : vector<1x32x128xf32> to vector<32x128xf32>
    %c1 = arith.constant 1 : index
    %c0_10 = arith.constant 0 : index
    %c0_11 = arith.constant 0 : index
    %13 = vector.load %arg5[%c1, %c0_10, %c0_11] : memref<2x32x128xf32, #tpu.memory_space<vmem>>, vector<1x32x128xf32>
    %14 = vector.shape_cast %13 : vector<1x32x128xf32> to vector<32x128xf32>
    %15 = arith.index_cast %arg0 : i32 to index
    %c0_12 = arith.constant 0 : index
    %c0_13 = arith.constant 0 : index
    %16 = memref.load %arg1[%15, %c0_12, %c0_13] : memref<2x4x4xf32, #tpu.memory_space<smem>>
    %17 = vector.broadcast %16 : f32 to vector<32x128xf32>
    %18 = arith.mulf %17, %12 : vector<32x128xf32>
    %19 = arith.index_cast %arg0 : i32 to index
    %c0_14 = arith.constant 0 : index
    %c2 = arith.constant 2 : index
    %20 = memref.load %arg1[%19, %c0_14, %c2] : memref<2x4x4xf32, #tpu.memory_space<smem>>
    %21 = vector.broadcast %20 : f32 to vector<32x128xf32>
    %22 = arith.mulf %21, %14 : vector<32x128xf32>
    %23 = arith.addf %18, %22 : vector<32x128xf32>
    %24 = arith.index_cast %arg0 : i32 to index
    %c0_15 = arith.constant 0 : index
    %c3 = arith.constant 3 : index
    %25 = memref.load %arg1[%24, %c0_15, %c3] : memref<2x4x4xf32, #tpu.memory_space<smem>>
    %26 = vector.broadcast %25 : f32 to vector<32x128xf32>
    %27 = arith.addf %23, %26 : vector<32x128xf32>
    %28 = arith.index_cast %arg0 : i32 to index
    %c1_16 = arith.constant 1 : index
    %c0_17 = arith.constant 0 : index
    %29 = memref.load %arg1[%28, %c1_16, %c0_17] : memref<2x4x4xf32, #tpu.memory_space<smem>>
    %30 = vector.broadcast %29 : f32 to vector<32x128xf32>
    %31 = arith.mulf %30, %12 : vector<32x128xf32>
    %32 = arith.index_cast %arg0 : i32 to index
    %c1_18 = arith.constant 1 : index
    %c2_19 = arith.constant 2 : index
    %33 = memref.load %arg1[%32, %c1_18, %c2_19] : memref<2x4x4xf32, #tpu.memory_space<smem>>
    %34 = vector.broadcast %33 : f32 to vector<32x128xf32>
    %35 = arith.mulf %34, %14 : vector<32x128xf32>
    %36 = arith.addf %31, %35 : vector<32x128xf32>
    %37 = arith.index_cast %arg0 : i32 to index
    %c1_20 = arith.constant 1 : index
    %c3_21 = arith.constant 3 : index
    %38 = memref.load %arg1[%37, %c1_20, %c3_21] : memref<2x4x4xf32, #tpu.memory_space<smem>>
    %39 = vector.broadcast %38 : f32 to vector<32x128xf32>
    %40 = arith.addf %36, %39 : vector<32x128xf32>
    %41 = arith.index_cast %arg0 : i32 to index
    %c2_22 = arith.constant 2 : index
    %c0_23 = arith.constant 0 : index
    %42 = memref.load %arg1[%41, %c2_22, %c0_23] : memref<2x4x4xf32, #tpu.memory_space<smem>>
    %43 = vector.broadcast %42 : f32 to vector<32x128xf32>
    %44 = arith.mulf %43, %12 : vector<32x128xf32>
    %45 = arith.index_cast %arg0 : i32 to index
    %c2_24 = arith.constant 2 : index
    %c2_25 = arith.constant 2 : index
    %46 = memref.load %arg1[%45, %c2_24, %c2_25] : memref<2x4x4xf32, #tpu.memory_space<smem>>
    %47 = vector.broadcast %46 : f32 to vector<32x128xf32>
    %48 = arith.mulf %47, %14 : vector<32x128xf32>
    %49 = arith.addf %44, %48 : vector<32x128xf32>
    %50 = arith.index_cast %arg0 : i32 to index
    %c2_26 = arith.constant 2 : index
    %c3_27 = arith.constant 3 : index
    %51 = memref.load %arg1[%50, %c2_26, %c3_27] : memref<2x4x4xf32, #tpu.memory_space<smem>>
    %52 = vector.broadcast %51 : f32 to vector<32x128xf32>
    %53 = arith.addf %49, %52 : vector<32x128xf32>
    %54 = arith.index_cast %arg0 : i32 to index
    %c0_28 = arith.constant 0 : index
    %c0_29 = arith.constant 0 : index
    %55 = memref.load %arg2[%54, %c0_28, %c0_29] : memref<2x4x4xf32, #tpu.memory_space<smem>>
    %56 = vector.broadcast %55 : f32 to vector<32x128xf32>
    %57 = arith.mulf %56, %27 : vector<32x128xf32>
    %58 = arith.index_cast %arg0 : i32 to index
    %c0_30 = arith.constant 0 : index
    %c1_31 = arith.constant 1 : index
    %59 = memref.load %arg2[%58, %c0_30, %c1_31] : memref<2x4x4xf32, #tpu.memory_space<smem>>
    %60 = vector.broadcast %59 : f32 to vector<32x128xf32>
    %61 = arith.mulf %60, %40 : vector<32x128xf32>
    %62 = arith.addf %57, %61 : vector<32x128xf32>
    %63 = arith.index_cast %arg0 : i32 to index
    %c0_32 = arith.constant 0 : index
    %c2_33 = arith.constant 2 : index
    %64 = memref.load %arg2[%63, %c0_32, %c2_33] : memref<2x4x4xf32, #tpu.memory_space<smem>>
    %65 = vector.broadcast %64 : f32 to vector<32x128xf32>
    %66 = arith.mulf %65, %53 : vector<32x128xf32>
    %67 = arith.addf %62, %66 : vector<32x128xf32>
    %68 = arith.index_cast %arg0 : i32 to index
    %c1_34 = arith.constant 1 : index
    %c0_35 = arith.constant 0 : index
    %69 = memref.load %arg2[%68, %c1_34, %c0_35] : memref<2x4x4xf32, #tpu.memory_space<smem>>
    %70 = vector.broadcast %69 : f32 to vector<32x128xf32>
    %71 = arith.mulf %70, %27 : vector<32x128xf32>
    %72 = arith.index_cast %arg0 : i32 to index
    %c1_36 = arith.constant 1 : index
    %c1_37 = arith.constant 1 : index
    %73 = memref.load %arg2[%72, %c1_36, %c1_37] : memref<2x4x4xf32, #tpu.memory_space<smem>>
    %74 = vector.broadcast %73 : f32 to vector<32x128xf32>
    %75 = arith.mulf %74, %40 : vector<32x128xf32>
    %76 = arith.addf %71, %75 : vector<32x128xf32>
    %77 = arith.index_cast %arg0 : i32 to index
    %c1_38 = arith.constant 1 : index
    %c2_39 = arith.constant 2 : index
    %78 = memref.load %arg2[%77, %c1_38, %c2_39] : memref<2x4x4xf32, #tpu.memory_space<smem>>
    %79 = vector.broadcast %78 : f32 to vector<32x128xf32>
    %80 = arith.mulf %79, %53 : vector<32x128xf32>
    %81 = arith.addf %76, %80 : vector<32x128xf32>
    %82 = arith.index_cast %arg0 : i32 to index
    %c2_40 = arith.constant 2 : index
    %c0_41 = arith.constant 0 : index
    %83 = memref.load %arg2[%82, %c2_40, %c0_41] : memref<2x4x4xf32, #tpu.memory_space<smem>>
    %84 = vector.broadcast %83 : f32 to vector<32x128xf32>
    %85 = arith.mulf %84, %27 : vector<32x128xf32>
    %86 = arith.index_cast %arg0 : i32 to index
    %c2_42 = arith.constant 2 : index
    %c1_43 = arith.constant 1 : index
    %87 = memref.load %arg2[%86, %c2_42, %c1_43] : memref<2x4x4xf32, #tpu.memory_space<smem>>
    %88 = vector.broadcast %87 : f32 to vector<32x128xf32>
    %89 = arith.mulf %88, %40 : vector<32x128xf32>
    %90 = arith.addf %85, %89 : vector<32x128xf32>
    %91 = arith.index_cast %arg0 : i32 to index
    %c2_44 = arith.constant 2 : index
    %c2_45 = arith.constant 2 : index
    %92 = memref.load %arg2[%91, %c2_44, %c2_45] : memref<2x4x4xf32, #tpu.memory_space<smem>>
    %93 = vector.broadcast %92 : f32 to vector<32x128xf32>
    %94 = arith.mulf %93, %53 : vector<32x128xf32>
    %95 = arith.addf %90, %94 : vector<32x128xf32>
    %cst_46 = arith.constant 1.000000e-07 : f32
    %96 = vector.broadcast %cst_46 : f32 to vector<32x128xf32>
    %97 = arith.addf %95, %96 : vector<32x128xf32>
    %98 = arith.divf %67, %97 : vector<32x128xf32>
    %cst_47 = arith.constant 1.000000e-07 : f32
    %99 = vector.broadcast %cst_47 : f32 to vector<32x128xf32>
    %100 = arith.addf %95, %99 : vector<32x128xf32>
    %101 = arith.divf %81, %100 : vector<32x128xf32>
    %cst_48 = arith.constant 5.000000e-01 : f32
    %102 = vector.broadcast %cst_48 : f32 to vector<32x128xf32>
    %103 = arith.addf %98, %102 : vector<32x128xf32>
    %104 = math.floor %103 : vector<32x128xf32>
    %cst_49 = arith.constant 5.000000e-01 : f32
    %105 = vector.broadcast %cst_49 : f32 to vector<32x128xf32>
    %106 = arith.addf %101, %105 : vector<32x128xf32>
    %107 = math.floor %106 : vector<32x128xf32>
    %cst_50 = arith.constant 0.000000e+00 : f32
    %108 = vector.broadcast %cst_50 : f32 to vector<32x128xf32>
    %109 = arith.cmpf oge, %104, %108 : vector<32x128xf32>
    %cst_51 = arith.constant 3.100000e+01 : f32
    %110 = vector.broadcast %cst_51 : f32 to vector<32x128xf32>
    %111 = arith.cmpf ole, %104, %110 : vector<32x128xf32>
    %112 = arith.andi %109, %111 : vector<32x128xi1>
    %cst_52 = arith.constant 0.000000e+00 : f32
    %113 = vector.broadcast %cst_52 : f32 to vector<32x128xf32>
    %114 = arith.cmpf oge, %107, %113 : vector<32x128xf32>
    %115 = arith.andi %112, %114 : vector<32x128xi1>
    %cst_53 = arith.constant 3.100000e+01 : f32
    %116 = vector.broadcast %cst_53 : f32 to vector<32x128xf32>
    %117 = arith.cmpf ole, %107, %116 : vector<32x128xf32>
    %118 = arith.andi %115, %117 : vector<32x128xi1>
    %119 = arith.extui %118 : vector<32x128xi1> to vector<32x128xi32>
    %120 = arith.sitofp %119 : vector<32x128xi32> to vector<32x128xf32>
    %cst_54 = arith.constant 0.000000e+00 : f32
    %cst_55 = arith.constant 3.100000e+01 : f32
    %121 = vector.broadcast %cst_54 : f32 to vector<32x128xf32>
    %122 = arith.maximumf %121, %104 : vector<32x128xf32>
    %123 = vector.broadcast %cst_55 : f32 to vector<32x128xf32>
    %124 = arith.minimumf %123, %122 : vector<32x128xf32>
    %125 = arith.fptosi %124 : vector<32x128xf32> to vector<32x128xi32>
    %cst_56 = arith.constant 0.000000e+00 : f32
    %cst_57 = arith.constant 3.100000e+01 : f32
    %126 = vector.broadcast %cst_56 : f32 to vector<32x128xf32>
    %127 = arith.maximumf %126, %107 : vector<32x128xf32>
    %128 = vector.broadcast %cst_57 : f32 to vector<32x128xf32>
    %129 = arith.minimumf %128, %127 : vector<32x128xf32>
    %130 = arith.fptosi %129 : vector<32x128xf32> to vector<32x128xi32>
    %131 = vector.extract_strided_slice %125 {offsets = [0, 0], sizes = [1, 128], strides = [1, 1]} : vector<32x128xi32> to vector<1x128xi32>
    %132 = vector.extract_strided_slice %125 {offsets = [1, 0], sizes = [1, 128], strides = [1, 1]} : vector<32x128xi32> to vector<1x128xi32>
    %133 = vector.extract_strided_slice %125 {offsets = [2, 0], sizes = [1, 128], strides = [1, 1]} : vector<32x128xi32> to vector<1x128xi32>
    %134 = vector.extract_strided_slice %125 {offsets = [3, 0], sizes = [1, 128], strides = [1, 1]} : vector<32x128xi32> to vector<1x128xi32>
    %135 = vector.extract_strided_slice %125 {offsets = [4, 0], sizes = [1, 128], strides = [1, 1]} : vector<32x128xi32> to vector<1x128xi32>
    %136 = vector.extract_strided_slice %125 {offsets = [5, 0], sizes = [1, 128], strides = [1, 1]} : vector<32x128xi32> to vector<1x128xi32>
    %137 = vector.extract_strided_slice %125 {offsets = [6, 0], sizes = [1, 128], strides = [1, 1]} : vector<32x128xi32> to vector<1x128xi32>
    %138 = vector.extract_strided_slice %125 {offsets = [7, 0], sizes = [1, 128], strides = [1, 1]} : vector<32x128xi32> to vector<1x128xi32>
    %139 = vector.extract_strided_slice %125 {offsets = [8, 0], sizes = [1, 128], strides = [1, 1]} : vector<32x128xi32> to vector<1x128xi32>
    %140 = vector.extract_strided_slice %125 {offsets = [9, 0], sizes = [1, 128], strides = [1, 1]} : vector<32x128xi32> to vector<1x128xi32>
    %141 = vector.extract_strided_slice %125 {offsets = [10, 0], sizes = [1, 128], strides = [1, 1]} : vector<32x128xi32> to vector<1x128xi32>
    %142 = vector.extract_strided_slice %125 {offsets = [11, 0], sizes = [1, 128], strides = [1, 1]} : vector<32x128xi32> to vector<1x128xi32>
    %143 = vector.extract_strided_slice %125 {offsets = [12, 0], sizes = [1, 128], strides = [1, 1]} : vector<32x128xi32> to vector<1x128xi32>
    %144 = vector.extract_strided_slice %125 {offsets = [13, 0], sizes = [1, 128], strides = [1, 1]} : vector<32x128xi32> to vector<1x128xi32>
    %145 = vector.extract_strided_slice %125 {offsets = [14, 0], sizes = [1, 128], strides = [1, 1]} : vector<32x128xi32> to vector<1x128xi32>
    %146 = vector.extract_strided_slice %125 {offsets = [15, 0], sizes = [1, 128], strides = [1, 1]} : vector<32x128xi32> to vector<1x128xi32>
    %147 = vector.extract_strided_slice %125 {offsets = [16, 0], sizes = [1, 128], strides = [1, 1]} : vector<32x128xi32> to vector<1x128xi32>
    %148 = vector.extract_strided_slice %125 {offsets = [17, 0], sizes = [1, 128], strides = [1, 1]} : vector<32x128xi32> to vector<1x128xi32>
    %149 = vector.extract_strided_slice %125 {offsets = [18, 0], sizes = [1, 128], strides = [1, 1]} : vector<32x128xi32> to vector<1x128xi32>
    %150 = vector.extract_strided_slice %125 {offsets = [19, 0], sizes = [1, 128], strides = [1, 1]} : vector<32x128xi32> to vector<1x128xi32>
    %151 = vector.extract_strided_slice %125 {offsets = [20, 0], sizes = [1, 128], strides = [1, 1]} : vector<32x128xi32> to vector<1x128xi32>
    %152 = vector.extract_strided_slice %125 {offsets = [21, 0], sizes = [1, 128], strides = [1, 1]} : vector<32x128xi32> to vector<1x128xi32>
    %153 = vector.extract_strided_slice %125 {offsets = [22, 0], sizes = [1, 128], strides = [1, 1]} : vector<32x128xi32> to vector<1x128xi32>
    %154 = vector.extract_strided_slice %125 {offsets = [23, 0], sizes = [1, 128], strides = [1, 1]} : vector<32x128xi32> to vector<1x128xi32>
    %155 = vector.extract_strided_slice %125 {offsets = [24, 0], sizes = [1, 128], strides = [1, 1]} : vector<32x128xi32> to vector<1x128xi32>
    %156 = vector.extract_strided_slice %125 {offsets = [25, 0], sizes = [1, 128], strides = [1, 1]} : vector<32x128xi32> to vector<1x128xi32>
    %157 = vector.extract_strided_slice %125 {offsets = [26, 0], sizes = [1, 128], strides = [1, 1]} : vector<32x128xi32> to vector<1x128xi32>
    %158 = vector.extract_strided_slice %125 {offsets = [27, 0], sizes = [1, 128], strides = [1, 1]} : vector<32x128xi32> to vector<1x128xi32>
    %159 = vector.extract_strided_slice %125 {offsets = [28, 0], sizes = [1, 128], strides = [1, 1]} : vector<32x128xi32> to vector<1x128xi32>
    %160 = vector.extract_strided_slice %125 {offsets = [29, 0], sizes = [1, 128], strides = [1, 1]} : vector<32x128xi32> to vector<1x128xi32>
    %161 = vector.extract_strided_slice %125 {offsets = [30, 0], sizes = [1, 128], strides = [1, 1]} : vector<32x128xi32> to vector<1x128xi32>
    %162 = vector.extract_strided_slice %125 {offsets = [31, 0], sizes = [1, 128], strides = [1, 1]} : vector<32x128xi32> to vector<1x128xi32>
    %163 = tpu.concatenate %131, %132, %133, %134, %135, %136, %137, %138, %139, %140, %141, %142, %143, %144, %145, %146 in 1 : vector<1x128xi32>, vector<1x128xi32>, vector<1x128xi32>, vector<1x128xi32>, vector<1x128xi32>, vector<1x128xi32>, vector<1x128xi32>, vector<1x128xi32>, vector<1x128xi32>, vector<1x128xi32>, vector<1x128xi32>, vector<1x128xi32>, vector<1x128xi32>, vector<1x128xi32>, vector<1x128xi32>, vector<1x128xi32> -> vector<1x2048xi32>
    %164 = tpu.concatenate %147, %148, %149, %150, %151, %152, %153, %154, %155, %156, %157, %158, %159, %160, %161, %162 in 1 : vector<1x128xi32>, vector<1x128xi32>, vector<1x128xi32>, vector<1x128xi32>, vector<1x128xi32>, vector<1x128xi32>, vector<1x128xi32>, vector<1x128xi32>, vector<1x128xi32>, vector<1x128xi32>, vector<1x128xi32>, vector<1x128xi32>, vector<1x128xi32>, vector<1x128xi32>, vector<1x128xi32>, vector<1x128xi32> -> vector<1x2048xi32>
    %165 = tpu.concatenate %163, %164 in 1 : vector<1x2048xi32>, vector<1x2048xi32> -> vector<1x4096xi32>
    %166 = vector.extract_strided_slice %130 {offsets = [0, 0], sizes = [1, 128], strides = [1, 1]} : vector<32x128xi32> to vector<1x128xi32>
    %167 = vector.extract_strided_slice %130 {offsets = [1, 0], sizes = [1, 128], strides = [1, 1]} : vector<32x128xi32> to vector<1x128xi32>
    %168 = vector.extract_strided_slice %130 {offsets = [2, 0], sizes = [1, 128], strides = [1, 1]} : vector<32x128xi32> to vector<1x128xi32>
    %169 = vector.extract_strided_slice %130 {offsets = [3, 0], sizes = [1, 128], strides = [1, 1]} : vector<32x128xi32> to vector<1x128xi32>
    %170 = vector.extract_strided_slice %130 {offsets = [4, 0], sizes = [1, 128], strides = [1, 1]} : vector<32x128xi32> to vector<1x128xi32>
    %171 = vector.extract_strided_slice %130 {offsets = [5, 0], sizes = [1, 128], strides = [1, 1]} : vector<32x128xi32> to vector<1x128xi32>
    %172 = vector.extract_strided_slice %130 {offsets = [6, 0], sizes = [1, 128], strides = [1, 1]} : vector<32x128xi32> to vector<1x128xi32>
    %173 = vector.extract_strided_slice %130 {offsets = [7, 0], sizes = [1, 128], strides = [1, 1]} : vector<32x128xi32> to vector<1x128xi32>
    %174 = vector.extract_strided_slice %130 {offsets = [8, 0], sizes = [1, 128], strides = [1, 1]} : vector<32x128xi32> to vector<1x128xi32>
    %175 = vector.extract_strided_slice %130 {offsets = [9, 0], sizes = [1, 128], strides = [1, 1]} : vector<32x128xi32> to vector<1x128xi32>
    %176 = vector.extract_strided_slice %130 {offsets = [10, 0], sizes = [1, 128], strides = [1, 1]} : vector<32x128xi32> to vector<1x128xi32>
    %177 = vector.extract_strided_slice %130 {offsets = [11, 0], sizes = [1, 128], strides = [1, 1]} : vector<32x128xi32> to vector<1x128xi32>
    %178 = vector.extract_strided_slice %130 {offsets = [12, 0], sizes = [1, 128], strides = [1, 1]} : vector<32x128xi32> to vector<1x128xi32>
    %179 = vector.extract_strided_slice %130 {offsets = [13, 0], sizes = [1, 128], strides = [1, 1]} : vector<32x128xi32> to vector<1x128xi32>
    %180 = vector.extract_strided_slice %130 {offsets = [14, 0], sizes = [1, 128], strides = [1, 1]} : vector<32x128xi32> to vector<1x128xi32>
    %181 = vector.extract_strided_slice %130 {offsets = [15, 0], sizes = [1, 128], strides = [1, 1]} : vector<32x128xi32> to vector<1x128xi32>
    %182 = vector.extract_strided_slice %130 {offsets = [16, 0], sizes = [1, 128], strides = [1, 1]} : vector<32x128xi32> to vector<1x128xi32>
    %183 = vector.extract_strided_slice %130 {offsets = [17, 0], sizes = [1, 128], strides = [1, 1]} : vector<32x128xi32> to vector<1x128xi32>
    %184 = vector.extract_strided_slice %130 {offsets = [18, 0], sizes = [1, 128], strides = [1, 1]} : vector<32x128xi32> to vector<1x128xi32>
    %185 = vector.extract_strided_slice %130 {offsets = [19, 0], sizes = [1, 128], strides = [1, 1]} : vector<32x128xi32> to vector<1x128xi32>
    %186 = vector.extract_strided_slice %130 {offsets = [20, 0], sizes = [1, 128], strides = [1, 1]} : vector<32x128xi32> to vector<1x128xi32>
    %187 = vector.extract_strided_slice %130 {offsets = [21, 0], sizes = [1, 128], strides = [1, 1]} : vector<32x128xi32> to vector<1x128xi32>
    %188 = vector.extract_strided_slice %130 {offsets = [22, 0], sizes = [1, 128], strides = [1, 1]} : vector<32x128xi32> to vector<1x128xi32>
    %189 = vector.extract_strided_slice %130 {offsets = [23, 0], sizes = [1, 128], strides = [1, 1]} : vector<32x128xi32> to vector<1x128xi32>
    %190 = vector.extract_strided_slice %130 {offsets = [24, 0], sizes = [1, 128], strides = [1, 1]} : vector<32x128xi32> to vector<1x128xi32>
    %191 = vector.extract_strided_slice %130 {offsets = [25, 0], sizes = [1, 128], strides = [1, 1]} : vector<32x128xi32> to vector<1x128xi32>
    %192 = vector.extract_strided_slice %130 {offsets = [26, 0], sizes = [1, 128], strides = [1, 1]} : vector<32x128xi32> to vector<1x128xi32>
    %193 = vector.extract_strided_slice %130 {offsets = [27, 0], sizes = [1, 128], strides = [1, 1]} : vector<32x128xi32> to vector<1x128xi32>
    %194 = vector.extract_strided_slice %130 {offsets = [28, 0], sizes = [1, 128], strides = [1, 1]} : vector<32x128xi32> to vector<1x128xi32>
    %195 = vector.extract_strided_slice %130 {offsets = [29, 0], sizes = [1, 128], strides = [1, 1]} : vector<32x128xi32> to vector<1x128xi32>
    %196 = vector.extract_strided_slice %130 {offsets = [30, 0], sizes = [1, 128], strides = [1, 1]} : vector<32x128xi32> to vector<1x128xi32>
    %197 = vector.extract_strided_slice %130 {offsets = [31, 0], sizes = [1, 128], strides = [1, 1]} : vector<32x128xi32> to vector<1x128xi32>
    %198 = tpu.concatenate %166, %167, %168, %169, %170, %171, %172, %173, %174, %175, %176, %177, %178, %179, %180, %181 in 1 : vector<1x128xi32>, vector<1x128xi32>, vector<1x128xi32>, vector<1x128xi32>, vector<1x128xi32>, vector<1x128xi32>, vector<1x128xi32>, vector<1x128xi32>, vector<1x128xi32>, vector<1x128xi32>, vector<1x128xi32>, vector<1x128xi32>, vector<1x128xi32>, vector<1x128xi32>, vector<1x128xi32>, vector<1x128xi32> -> vector<1x2048xi32>
    %199 = tpu.concatenate %182, %183, %184, %185, %186, %187, %188, %189, %190, %191, %192, %193, %194, %195, %196, %197 in 1 : vector<1x128xi32>, vector<1x128xi32>, vector<1x128xi32>, vector<1x128xi32>, vector<1x128xi32>, vector<1x128xi32>, vector<1x128xi32>, vector<1x128xi32>, vector<1x128xi32>, vector<1x128xi32>, vector<1x128xi32>, vector<1x128xi32>, vector<1x128xi32>, vector<1x128xi32>, vector<1x128xi32>, vector<1x128xi32> -> vector<1x2048xi32>
    %200 = tpu.concatenate %198, %199 in 1 : vector<1x2048xi32>, vector<1x2048xi32> -> vector<1x4096xi32>
    %201 = vector.extract_strided_slice %120 {offsets = [0, 0], sizes = [1, 128], strides = [1, 1]} : vector<32x128xf32> to vector<1x128xf32>
    %202 = vector.extract_strided_slice %120 {offsets = [1, 0], sizes = [1, 128], strides = [1, 1]} : vector<32x128xf32> to vector<1x128xf32>
    %203 = vector.extract_strided_slice %120 {offsets = [2, 0], sizes = [1, 128], strides = [1, 1]} : vector<32x128xf32> to vector<1x128xf32>
    %204 = vector.extract_strided_slice %120 {offsets = [3, 0], sizes = [1, 128], strides = [1, 1]} : vector<32x128xf32> to vector<1x128xf32>
    %205 = vector.extract_strided_slice %120 {offsets = [4, 0], sizes = [1, 128], strides = [1, 1]} : vector<32x128xf32> to vector<1x128xf32>
    %206 = vector.extract_strided_slice %120 {offsets = [5, 0], sizes = [1, 128], strides = [1, 1]} : vector<32x128xf32> to vector<1x128xf32>
    %207 = vector.extract_strided_slice %120 {offsets = [6, 0], sizes = [1, 128], strides = [1, 1]} : vector<32x128xf32> to vector<1x128xf32>
    %208 = vector.extract_strided_slice %120 {offsets = [7, 0], sizes = [1, 128], strides = [1, 1]} : vector<32x128xf32> to vector<1x128xf32>
    %209 = vector.extract_strided_slice %120 {offsets = [8, 0], sizes = [1, 128], strides = [1, 1]} : vector<32x128xf32> to vector<1x128xf32>
    %210 = vector.extract_strided_slice %120 {offsets = [9, 0], sizes = [1, 128], strides = [1, 1]} : vector<32x128xf32> to vector<1x128xf32>
    %211 = vector.extract_strided_slice %120 {offsets = [10, 0], sizes = [1, 128], strides = [1, 1]} : vector<32x128xf32> to vector<1x128xf32>
    %212 = vector.extract_strided_slice %120 {offsets = [11, 0], sizes = [1, 128], strides = [1, 1]} : vector<32x128xf32> to vector<1x128xf32>
    %213 = vector.extract_strided_slice %120 {offsets = [12, 0], sizes = [1, 128], strides = [1, 1]} : vector<32x128xf32> to vector<1x128xf32>
    %214 = vector.extract_strided_slice %120 {offsets = [13, 0], sizes = [1, 128], strides = [1, 1]} : vector<32x128xf32> to vector<1x128xf32>
    %215 = vector.extract_strided_slice %120 {offsets = [14, 0], sizes = [1, 128], strides = [1, 1]} : vector<32x128xf32> to vector<1x128xf32>
    %216 = vector.extract_strided_slice %120 {offsets = [15, 0], sizes = [1, 128], strides = [1, 1]} : vector<32x128xf32> to vector<1x128xf32>
    %217 = vector.extract_strided_slice %120 {offsets = [16, 0], sizes = [1, 128], strides = [1, 1]} : vector<32x128xf32> to vector<1x128xf32>
    %218 = vector.extract_strided_slice %120 {offsets = [17, 0], sizes = [1, 128], strides = [1, 1]} : vector<32x128xf32> to vector<1x128xf32>
    %219 = vector.extract_strided_slice %120 {offsets = [18, 0], sizes = [1, 128], strides = [1, 1]} : vector<32x128xf32> to vector<1x128xf32>
    %220 = vector.extract_strided_slice %120 {offsets = [19, 0], sizes = [1, 128], strides = [1, 1]} : vector<32x128xf32> to vector<1x128xf32>
    %221 = vector.extract_strided_slice %120 {offsets = [20, 0], sizes = [1, 128], strides = [1, 1]} : vector<32x128xf32> to vector<1x128xf32>
    %222 = vector.extract_strided_slice %120 {offsets = [21, 0], sizes = [1, 128], strides = [1, 1]} : vector<32x128xf32> to vector<1x128xf32>
    %223 = vector.extract_strided_slice %120 {offsets = [22, 0], sizes = [1, 128], strides = [1, 1]} : vector<32x128xf32> to vector<1x128xf32>
    %224 = vector.extract_strided_slice %120 {offsets = [23, 0], sizes = [1, 128], strides = [1, 1]} : vector<32x128xf32> to vector<1x128xf32>
    %225 = vector.extract_strided_slice %120 {offsets = [24, 0], sizes = [1, 128], strides = [1, 1]} : vector<32x128xf32> to vector<1x128xf32>
    %226 = vector.extract_strided_slice %120 {offsets = [25, 0], sizes = [1, 128], strides = [1, 1]} : vector<32x128xf32> to vector<1x128xf32>
    %227 = vector.extract_strided_slice %120 {offsets = [26, 0], sizes = [1, 128], strides = [1, 1]} : vector<32x128xf32> to vector<1x128xf32>
    %228 = vector.extract_strided_slice %120 {offsets = [27, 0], sizes = [1, 128], strides = [1, 1]} : vector<32x128xf32> to vector<1x128xf32>
    %229 = vector.extract_strided_slice %120 {offsets = [28, 0], sizes = [1, 128], strides = [1, 1]} : vector<32x128xf32> to vector<1x128xf32>
    %230 = vector.extract_strided_slice %120 {offsets = [29, 0], sizes = [1, 128], strides = [1, 1]} : vector<32x128xf32> to vector<1x128xf32>
    %231 = vector.extract_strided_slice %120 {offsets = [30, 0], sizes = [1, 128], strides = [1, 1]} : vector<32x128xf32> to vector<1x128xf32>
    %232 = vector.extract_strided_slice %120 {offsets = [31, 0], sizes = [1, 128], strides = [1, 1]} : vector<32x128xf32> to vector<1x128xf32>
    %233 = tpu.concatenate %201, %202, %203, %204, %205, %206, %207, %208, %209, %210, %211, %212, %213, %214, %215, %216 in 1 : vector<1x128xf32>, vector<1x128xf32>, vector<1x128xf32>, vector<1x128xf32>, vector<1x128xf32>, vector<1x128xf32>, vector<1x128xf32>, vector<1x128xf32>, vector<1x128xf32>, vector<1x128xf32>, vector<1x128xf32>, vector<1x128xf32>, vector<1x128xf32>, vector<1x128xf32>, vector<1x128xf32>, vector<1x128xf32> -> vector<1x2048xf32>
    %234 = tpu.concatenate %217, %218, %219, %220, %221, %222, %223, %224, %225, %226, %227, %228, %229, %230, %231, %232 in 1 : vector<1x128xf32>, vector<1x128xf32>, vector<1x128xf32>, vector<1x128xf32>, vector<1x128xf32>, vector<1x128xf32>, vector<1x128xf32>, vector<1x128xf32>, vector<1x128xf32>, vector<1x128xf32>, vector<1x128xf32>, vector<1x128xf32>, vector<1x128xf32>, vector<1x128xf32>, vector<1x128xf32>, vector<1x128xf32> -> vector<1x2048xf32>
    %235 = tpu.concatenate %233, %234 in 1 : vector<1x2048xf32>, vector<1x2048xf32> -> vector<1x4096xf32>
    %236 = tpu.iota {dimensions = array<i32: 0>} : vector<32x4096xi32>
    %237 = tpu.iota {dimensions = array<i32: 0>} : vector<32x4096xi32>
    %238 = vector.broadcast %165 : vector<1x4096xi32> to vector<32x4096xi32>
    %239 = arith.cmpi eq, %238, %236 : vector<32x4096xi32>
    %240 = arith.extui %239 : vector<32x4096xi1> to vector<32x4096xi32>
    %241 = arith.sitofp %240 : vector<32x4096xi32> to vector<32x4096xf32>
    %242 = vector.broadcast %200 : vector<1x4096xi32> to vector<32x4096xi32>
    %243 = arith.cmpi eq, %242, %237 : vector<32x4096xi32>
    %244 = arith.extui %243 : vector<32x4096xi1> to vector<32x4096xi32>
    %245 = arith.sitofp %244 : vector<32x4096xi32> to vector<32x4096xf32>
    %cst_58 = arith.constant dense<0.000000e+00> : vector<32x4096xf32>
    %246 = tpu.matmul %7, %241, %cst_58 {dimension_numbers = #tpu.dot_dimension_numbers<[1], [0], [0], [1], [0, 0, 1, 1], [], []>} : vector<32x32xf32>, vector<32x4096xf32>, vector<32x4096xf32> -> vector<32x4096xf32>
    %247 = arith.mulf %245, %246 : vector<32x4096xf32>
    %cst_59 = arith.constant dense<0.000000e+00> : vector<4096xf32>
    %248 = vector.multi_reduction <add>, %247, %cst_59 [0] : vector<32x4096xf32> to vector<4096xf32>
    %249 = vector.shape_cast %248 : vector<4096xf32> to vector<1x4096xf32>
    %250 = arith.mulf %249, %235 : vector<1x4096xf32>
    %251 = tpu.concatenate %250, %235 in 0 : vector<1x4096xf32>, vector<1x4096xf32> -> vector<2x4096xf32>
    %c0_60 = arith.constant 0 : index
    %c0_61 = arith.constant 0 : index
    %252 = vector.load %arg6[%c0_60, %c0_61] : memref<4096x256xf32, #tpu.memory_space<vmem>>, vector<4096x256xf32>
    %cst_62 = arith.constant dense<0.000000e+00> : vector<2x256xf32>
    %253 = tpu.matmul %251, %252, %cst_62 {dimension_numbers = #tpu.dot_dimension_numbers<[1], [0], [0], [1], [0, 0, 1, 1], [], []>} : vector<2x4096xf32>, vector<4096x256xf32>, vector<2x256xf32> -> vector<2x256xf32>
    %254 = vector.extract_strided_slice %253 {offsets = [0, 0], sizes = [1, 256], strides = [1, 1]} : vector<2x256xf32> to vector<1x256xf32>
    %255 = vector.extract_strided_slice %253 {offsets = [1, 0], sizes = [1, 256], strides = [1, 1]} : vector<2x256xf32> to vector<1x256xf32>
    %cst_63 = arith.constant 1.000000e+00 : f32
    %256 = vector.broadcast %cst_63 : f32 to vector<1x256xf32>
    %257 = arith.maximumf %255, %256 : vector<1x256xf32>
    %258 = arith.divf %254, %257 : vector<1x256xf32>
    %259 = vector.shape_cast %258 : vector<1x256xf32> to vector<1x1x256xf32>
    %cst_64 = arith.constant dense<0x7F800000> : vector<1xf32>
    %260 = vector.multi_reduction <minimumf>, %259, %cst_64 [1, 2] : vector<1x1x256xf32> to vector<1xf32>
    %261 = vector.shape_cast %260 : vector<1xf32> to vector<1x1x1xf32>
    %262 = vector.extract %261[0, 0, 0] : f32 from vector<1x1x1xf32>
    %263 = vector.shape_cast %258 : vector<1x256xf32> to vector<1x1x256xf32>
    %cst_65 = arith.constant dense<0xFF800000> : vector<1xf32>
    %264 = vector.multi_reduction <maximumf>, %263, %cst_65 [1, 2] : vector<1x1x256xf32> to vector<1xf32>
    %265 = vector.shape_cast %264 : vector<1xf32> to vector<1x1x1xf32>
    %266 = vector.extract %265[0, 0, 0] : f32 from vector<1x1x1xf32>
    %267 = vector.broadcast %262 : f32 to vector<1x256xf32>
    %268 = arith.subf %258, %267 : vector<1x256xf32>
    %269 = arith.subf %266, %262 : f32
    %cst_66 = arith.constant 1.000000e-10 : f32
    %270 = arith.maximumf %269, %cst_66 : f32
    %271 = vector.broadcast %270 : f32 to vector<1x256xf32>
    %272 = arith.divf %268, %271 : vector<1x256xf32>
    %c0_67 = arith.constant 0 : index
    %c0_68 = arith.constant 0 : index
    %c0_69 = arith.constant 0 : index
    %273 = vector.load %arg4[%c0_67, %c0_68, %c0_69] : memref<1x1x256xf32, #tpu.memory_space<vmem>>, vector<1x1x256xf32>
    %274 = vector.shape_cast %273 : vector<1x1x256xf32> to vector<1x256xf32>
    %275 = arith.mulf %274, %272 : vector<1x256xf32>
    %c0_70 = arith.constant 0 : index
    %c0_71 = arith.constant 0 : index
    %c0_72 = arith.constant 0 : index
    %276 = vector.load %arg8[%c0_70, %c0_71, %c0_72] : memref<1x1x256xf32, #tpu.memory_space<vmem>>, vector<1x1x256xf32>
    %277 = vector.shape_cast %276 : vector<1x1x256xf32> to vector<1x256xf32>
    %278 = vector.shape_cast %275 : vector<1x256xf32> to vector<1x1x256xf32>
    tpu.vector_store %arg8[%c0_70, %c0_71, %c0_72], %278 {strides = array<i32>} : memref<1x1x256xf32, #tpu.memory_space<vmem>>, vector<1x1x256xf32>,
    return
  }
  func.func @transform_0(%arg0: i32) -> (i32, i32, i32) {
    %c0_i32 = arith.constant 0 : i32
    %c0_i32_0 = arith.constant 0 : i32
    %c0_i32_1 = arith.constant 0 : i32
    %c0_i32_2 = arith.constant 0 : i32
    return %c0_i32, %c0_i32_0, %c0_i32_1 : i32, i32, i32
  }
  func.func @transform_1(%arg0: i32) -> (i32, i32, i32) {
    %c0_i32 = arith.constant 0 : i32
    %c0_i32_0 = arith.constant 0 : i32
    %c0_i32_1 = arith.constant 0 : i32
    %c0_i32_2 = arith.constant 0 : i32
    return %c0_i32, %c0_i32_0, %c0_i32_1 : i32, i32, i32
  }
  func.func @transform_2(%arg0: i32) -> (i32, i32, i32) {
    %c0_i32 = arith.constant 0 : i32
    %c0_i32_0 = arith.constant 0 : i32
    %c0_i32_1 = arith.constant 0 : i32
    return %arg0, %c0_i32, %c0_i32_0 : i32, i32, i32
  }
  func.func @transform_3(%arg0: i32) -> (i32, i32, i32) {
    %c0_i32 = arith.constant 0 : i32
    %c0_i32_0 = arith.constant 0 : i32
    %c0_i32_1 = arith.constant 0 : i32
    return %arg0, %c0_i32, %c0_i32_0 : i32, i32, i32
  }
  func.func @transform_4(%arg0: i32) -> (i32, i32, i32) {
    %c0_i32 = arith.constant 0 : i32
    %c0_i32_0 = arith.constant 0 : i32
    %c0_i32_1 = arith.constant 0 : i32
    %c0_i32_2 = arith.constant 0 : i32
    return %c0_i32, %c0_i32_0, %c0_i32_1 : i32, i32, i32
  }
  func.func @transform_5(%arg0: i32) -> (i32, i32) {
    %c0_i32 = arith.constant 0 : i32
    %c0_i32_0 = arith.constant 0 : i32
    %c0_i32_1 = arith.constant 0 : i32
    return %c0_i32, %c0_i32_0 : i32, i32
  }
  func.func @transform_6(%arg0: i32) -> (i32, i32, i32) {
    %c0_i32 = arith.constant 0 : i32
    %c0_i32_0 = arith.constant 0 : i32
    %c0_i32_1 = arith.constant 0 : i32
    return %arg0, %c0_i32, %c0_i32_0 : i32, i32, i32
  }
  func.func @transform_7(%arg0: i32) -> (i32, i32, i32) {
    %c0_i32 = arith.constant 0 : i32
    %c0_i32_0 = arith.constant 0 : i32
    %c0_i32_1 = arith.constant 0 : i32
    return %arg0, %c0_i32, %c0_i32_0 : i32, i32, i32
  }
}

</mosaic_0001>

<llo_original>
// kernel: tpu_custom_call.1
$region0: #{tpu_custom_call.1}
  #allocation0 [shape = 'u32[]', space=smem, size = 0x4, offset = 0x4, fixed_abs, tag = 'smem constant byte address 0x4 - core index']
  #allocation1 [shape = 'u32[144,128]{1,0:T(1,128)}', space=vmem, size = 0x12000, scoped, tag = 'internal scratch']
  %s0 = inlined_call_operand.hbm [shape: f32[2,4,4], index: 0, kind: input, shape index: {}]
  %s1 = inlined_call_operand.hbm [shape: f32[2,4,4], index: 1, kind: input, shape index: {}]
  %s2 = inlined_call_operand.hbm [shape: f32[2,32,32], index: 2, kind: input, shape index: {}]
  %s3 = inlined_call_operand.hbm [shape: f32[2,1,256], index: 3, kind: input, shape index: {}, may-alias: {3,7}]
  %s4 = inlined_call_operand.hbm [shape: f32[2,32,128], index: 4, kind: input, shape index: {}]
  %s5 = inlined_call_operand.hbm [shape: f32[4096,256], index: 5, kind: input, shape index: {}]
  %s6 = inlined_call_operand.hbm [shape: f32[2,32,32], index: 6, kind: output, shape index: {0}]
  %s7 = inlined_call_operand.hbm [shape: f32[2,1,256], index: 7, kind: output, shape index: {1}, may-alias: {3,7}]
  %8 = xla_tuple %s6, %s7
  %s9 = sld [smem:[#allocation0]]
  $region89: #{tpu_custom_call.1} parent=0
    _
  %s11 = ssub.s32 1, %s9
  %s12 = scalar_select 0, %s11, %s9
  $region1: #{tpu_custom_call.1} parent=0
    #allocation2 [shape = 'u8[4096]{0}', space=smem, size = 0x1000, scoped, tag = 'input window, operand 0, single buffered']
    #allocation3 [shape = 's32[2]{0}', space=sflag, size = 0x8, scoped, tag = 'scoped memory for tpu_custom_call.1']
    #allocation4 [shape = 's32[2]{0}', space=sflag, size = 0x8, scoped, tag = 'scoped memory for tpu_custom_call.1']
    #allocation5 [shape = 's32[2]{0}', space=sflag, size = 0x8, scoped, tag = 'scoped memory for tpu_custom_call.1']
    #allocation6 [shape = 'u8[4096]{0}', space=smem, size = 0x1000, scoped, tag = 'input window, operand 1, single buffered']
    #allocation7 [shape = 's32[1]{0}', space=sflag, size = 0x4, scoped, tag = 'scoped memory for tpu_custom_call.1']
    #allocation8 [shape = 'u8[32768]{0}', space=vmem, size = 0x8000, scoped, tag = 'input window, operand 2']
    #allocation9 [shape = 'u8[2048]{0}', space=vmem, size = 0x800, scoped, tag = 'input window, operand 3']
    #allocation10 [shape = 's32[2]{0}', space=sflag, size = 0x8, scoped, tag = 'scoped memory for tpu_custom_call.1']
    #allocation11 [shape = 'u8[32768]{0}', space=vmem, size = 0x8000, scoped, tag = 'input window, operand 4, single buffered']
    #allocation12 [shape = 'u8[4194304]{0}', space=vmem, size = 0x400000, scoped, tag = 'input window, operand 5, single buffered']
    #allocation13 [shape = 's32[1]{0}', space=sflag, size = 0x4, scoped, tag = 'scoped memory for tpu_custom_call.1']
    #allocation14 [shape = 'u8[32768]{0}', space=vmem, size = 0x8000, scoped, tag = 'output window, operand 0']
    #allocation15 [shape = 'u8[2048]{0}', space=vmem, size = 0x800, scoped, tag = 'output window, operand 1']
    #allocation16 [shape = 's32[2]{0}', space=sflag, size = 0x8, scoped, tag = 'scoped memory for tpu_custom_call.1']
    %13 = vsyncpa [#allocation5], 0
    %14 = vsyncpa [#allocation7], 0
    %15 = vsyncpa [#allocation3], 0
    %s16 = scalar_lea.sflag [#allocation3], 1
    %17 = vsyncpa %s16, 0
    %18 = vsyncpa [#allocation10], 0
    %s19 = scalar_lea.sflag [#allocation10], 1
    %20 = vsyncpa %s19, 0
    %21 = vsyncpa [#allocation13], 0
    %22 = vsyncpa [#allocation4], 0
    %s23 = scalar_lea.sflag [#allocation4], 1
    %24 = vsyncpa %s23, 0
    %25 = vsyncpa [#allocation16], 0
    %s26 = scalar_lea.sflag [#allocation16], 1
    %27 = vsyncpa %s26, 0
    loop: start=0, step=1, limit=4
    $region2: #{tpu_custom_call.1} parent=1 // loop_pre_header
      _
    $region3: #{tpu_custom_call.1} parent=1 // loop_header
      %s29 = sphi 0, %s33
      %p30 = scmp.ge.s32.totalorder %s29, 4
      %s37 = sphi 0, %s37
      %s39 = sphi 0, %s37
      %s40 = sphi 0, %s39
      %s54 = sphi 0, %s40
      %s58 = sphi 0, %s58
      %s60 = sphi 0, %s58
      %s61 = sphi 0, %s60
      %s75 = sphi 0, %s61
      %s81 = sphi 0, %s83
      %s84 = sphi 0, %s81
      %s85 = sphi 0, %s84
      %s101 = sphi 0, %s85
      %s107 = sphi 0, %s109
      %s110 = sphi 0, %s107
      %s111 = sphi 0, %s110
      %s127 = sphi 0, %s111
      %s131 = sphi 0, %s131
      %s133 = sphi 0, %s131
      %s134 = sphi 0, %s133
      %s148 = sphi 0, %s134
      %s152 = sphi 0, %s152
      %s154 = sphi 0, %s152
      %s155 = sphi 0, %s154
      %s169 = sphi 0, %s155
      %s175 = sphi 0, %s177
      %s178 = sphi 0, %s175
      %s179 = sphi 0, %s178
      %s195 = sphi 0, %s179
      %s201 = sphi 0, %s203
      %s204 = sphi 0, %s201
      %s205 = sphi 0, %s204
      %s221 = sphi 0, %s205
    $region4: #{tpu_custom_call.1} parent=1 // loop_header_branch
      %32 = sbr.rel (%p30) target = $region8
    $region5: #{tpu_custom_call.1} parent=1 // loop_body
      %s34 = ssub.s32 %s29, 1
      %s35 = ssub.s32 %s29, 2
      %s36 = sadd.s32 %s29, 1
      %s38 = sadd.s32 %s37, 1
      %p41 = scmp.eq.s32.totalorder %s29, 1
      %p42 = scmp.ne.s32.totalorder %s37, %s39
      %p43 = scmp.eq.s32.totalorder %s29, 0
      %p44 = por %p42, %p43
      %p45 = scmp.ne.s32.totalorder %s37, %s39
      %p46 = scmp.eq.s32.totalorder %s34, 1
      %p47 = por %p45, %p46
      %p48 = scmp.ne.s32.totalorder %s39, %s40
      %p49 = scmp.eq.s32.totalorder %s34, 0
      %p50 = por %p48, %p49
      %p51 = scmp.ne.s32.totalorder %s39, %s40
      %p52 = scmp.eq.s32.totalorder %s35, 1
      %p53 = por %p51, %p52
      %p55 = scmp.ne.s32.totalorder %s40, %s54
      %p56 = scmp.eq.s32.totalorder %s35, 0
      %p57 = por %p55, %p56
      %s59 = sadd.s32 %s58, 1
      %p62 = scmp.eq.s32.totalorder %s29, 1
      %p63 = scmp.ne.s32.totalorder %s58, %s60
      %p64 = scmp.eq.s32.totalorder %s29, 0
      %p65 = por %p63, %p64
      %p66 = scmp.ne.s32.totalorder %s58, %s60
      %p67 = scmp.eq.s32.totalorder %s34, 1
      %p68 = por %p66, %p67
      %p69 = scmp.ne.s32.totalorder %s60, %s61
      %p70 = scmp.eq.s32.totalorder %s34, 0
      %p71 = por %p69, %p70
      %p72 = scmp.ne.s32.totalorder %s60, %s61
      %p73 = scmp.eq.s32.totalorder %s35, 1
      %p74 = por %p72, %p73
      %p76 = scmp.ne.s32.totalorder %s61, %s75
      %p77 = scmp.eq.s32.totalorder %s35, 0
      %p78 = por %p76, %p77
      %s79 = ssub.s32 %s29, %s36
      %p80 = scmp.eq.s32.totalorder %s79, 0
      %s82 = sadd.s32 %s81, 1
      %s83 = scalar_select %p80, %s81, %s82
      %p86 = pneg %p80
      %p87 = scmp.eq.s32.totalorder %s29, 1
      %p88 = por %p86, %p87
      %p89 = scmp.ne.s32.totalorder %s81, %s84
      %p90 = scmp.eq.s32.totalorder %s29, 0
      %p91 = por %p89, %p90
      %p92 = scmp.ne.s32.totalorder %s81, %s84
      %p93 = scmp.eq.s32.totalorder %s34, 1
      %p94 = por %p92, %p93
      %p95 = scmp.ne.s32.totalorder %s84, %s85
      %p96 = scmp.eq.s32.totalorder %s34, 0
      %p97 = por %p95, %p96
      %p98 = scmp.ne.s32.totalorder %s84, %s85
      %p99 = scmp.eq.s32.totalorder %s35, 1
      %p100 = por %p98, %p99
      %p102 = scmp.ne.s32.totalorder %s85, %s101
      %p103 = scmp.eq.s32.totalorder %s35, 0
      %p104 = por %p102, %p103
      %s105 = ssub.s32 %s29, %s36
      %p106 = scmp.eq.s32.totalorder %s105, 0
      %s108 = sadd.s32 %s107, 1
      %s109 = scalar_select %p106, %s107, %s108
      %p112 = pneg %p106
      %p113 = scmp.eq.s32.totalorder %s29, 1
      %p114 = por %p112, %p113
      %p115 = scmp.ne.s32.totalorder %s107, %s110
      %p116 = scmp.eq.s32.totalorder %s29, 0
      %p117 = por %p115, %p116
      %p118 = scmp.ne.s32.totalorder %s107, %s110
      %p119 = scmp.eq.s32.totalorder %s34, 1
      %p120 = por %p118, %p119
      %p121 = scmp.ne.s32.totalorder %s110, %s111
      %p122 = scmp.eq.s32.totalorder %s34, 0
      %p123 = por %p121, %p122
      %p124 = scmp.ne.s32.totalorder %s110, %s111
      %p125 = scmp.eq.s32.totalorder %s35, 1
      %p126 = por %p124, %p125
      %p128 = scmp.ne.s32.totalorder %s111, %s127
      %p129 = scmp.eq.s32.totalorder %s35, 0
      %p130 = por %p128, %p129
      %s132 = sadd.s32 %s131, 1
      %p135 = scmp.eq.s32.totalorder %s29, 1
      %p136 = scmp.ne.s32.totalorder %s131, %s133
      %p137 = scmp.eq.s32.totalorder %s29, 0
      %p138 = por %p136, %p137
      %p139 = scmp.ne.s32.totalorder %s131, %s133
      %p140 = scmp.eq.s32.totalorder %s34, 1
      %p141 = por %p139, %p140
      %p142 = scmp.ne.s32.totalorder %s133, %s134
      %p143 = scmp.eq.s32.totalorder %s34, 0
      %p144 = por %p142, %p143
      %p145 = scmp.ne.s32.totalorder %s133, %s134
      %p146 = scmp.eq.s32.totalorder %s35, 1
      %p147 = por %p145, %p146
      %p149 = scmp.ne.s32.totalorder %s134, %s148
      %p150 = scmp.eq.s32.totalorder %s35, 0
      %p151 = por %p149, %p150
      %s153 = sadd.s32 %s152, 1
      %p156 = scmp.eq.s32.totalorder %s29, 1
      %p157 = scmp.ne.s32.totalorder %s152, %s154
      %p158 = scmp.eq.s32.totalorder %s29, 0
      %p159 = por %p157, %p158
      %p160 = scmp.ne.s32.totalorder %s152, %s154
      %p161 = scmp.eq.s32.totalorder %s34, 1
      %p162 = por %p160, %p161
      %p163 = scmp.ne.s32.totalorder %s154, %s155
      %p164 = scmp.eq.s32.totalorder %s34, 0
      %p165 = por %p163, %p164
      %p166 = scmp.ne.s32.totalorder %s154, %s155
      %p167 = scmp.eq.s32.totalorder %s35, 1
      %p168 = por %p166, %p167
      %p170 = scmp.ne.s32.totalorder %s155, %s169
      %p171 = scmp.eq.s32.totalorder %s35, 0
      %p172 = por %p170, %p171
      %s173 = ssub.s32 %s29, %s36
      %p174 = scmp.eq.s32.totalorder %s173, 0
      %s176 = sadd.s32 %s175, 1
      %s177 = scalar_select %p174, %s175, %s176
      %p180 = pneg %p174
      %p181 = scmp.eq.s32.totalorder %s29, 1
      %p182 = por %p180, %p181
      %p183 = scmp.ne.s32.totalorder %s175, %s178
      %p184 = scmp.eq.s32.totalorder %s29, 0
      %p185 = por %p183, %p184
      %p186 = scmp.ne.s32.totalorder %s175, %s178
      %p187 = scmp.eq.s32.totalorder %s34, 1
      %p188 = por %p186, %p187
      %p189 = scmp.ne.s32.totalorder %s178, %s179
      %p190 = scmp.eq.s32.totalorder %s34, 0
      %p191 = por %p189, %p190
      %p192 = scmp.ne.s32.totalorder %s178, %s179
      %p193 = scmp.eq.s32.totalorder %s35, 1
      %p194 = por %p192, %p193
      %p196 = scmp.ne.s32.totalorder %s179, %s195
      %p197 = scmp.eq.s32.totalorder %s35, 0
      %p198 = por %p196, %p197
      %s199 = ssub.s32 %s29, %s36
      %p200 = scmp.eq.s32.totalorder %s199, 0
      %s202 = sadd.s32 %s201, 1
      %s203 = scalar_select %p200, %s201, %s202
      %p206 = pneg %p200
      %p207 = scmp.eq.s32.totalorder %s29, 1
      %p208 = por %p206, %p207
      %p209 = scmp.ne.s32.totalorder %s201, %s204
      %p210 = scmp.eq.s32.totalorder %s29, 0
      %p211 = por %p209, %p210
      %p212 = scmp.ne.s32.totalorder %s201, %s204
      %p213 = scmp.eq.s32.totalorder %s34, 1
      %p214 = por %p212, %p213
      %p215 = scmp.ne.s32.totalorder %s204, %s205
      %p216 = scmp.eq.s32.totalorder %s34, 0
      %p217 = por %p215, %p216
      %p218 = scmp.ne.s32.totalorder %s204, %s205
      %p219 = scmp.eq.s32.totalorder %s35, 1
      %p220 = por %p218, %p219
      %p222 = scmp.ne.s32.totalorder %s205, %s221
      %p223 = scmp.eq.s32.totalorder %s35, 0
      %p224 = por %p222, %p223
      %p225 = scmp.le.s32.totalorder 1, %s29
      %p226 = scmp.lt.s32.totalorder %s29, 3
      %p227 = pnand %p225, %p226
      %p228 = pneg %p227
      // Predicated region
      $region9: #{tpu_custom_call.1} parent=5 // pred_check
        _
      $region10: #{tpu_custom_call.1} parent=5 // pred_check_branch
        %230 = sbr.rel (%p227) target = $region12
      $region11: #{tpu_custom_call.1} parent=5 // pred_region
        %s231 = ssub.s32 %s29, 1
        // Predicated region
        $region13: #{tpu_custom_call.1} parent=11 // pred_check
          %p232 = pneg %p50
        $region14: #{tpu_custom_call.1} parent=11 // pred_check_branch
          %234 = sbr.rel (%p232) target = $region16
        $region15: #{tpu_custom_call.1} parent=11 // pred_region
          %s236 = ssub.s32 128, 128
          %237 = vsyncadd [#allocation5], %s236
          %242 = dma.hbm_to_smem %s0, 128, [#allocation2], [#allocation5], 64, 64, 4
        $region16: #{tpu_custom_call.1} parent=11 // pred_fallthru
          _
        // Predicated region
        $region17: #{tpu_custom_call.1} parent=11 // pred_check
          %p243 = pneg %p71
        $region18: #{tpu_custom_call.1} parent=11 // pred_check_branch
          %245 = sbr.rel (%p243) target = $region20
        $region19: #{tpu_custom_call.1} parent=11 // pred_region
          %s247 = ssub.s32 128, 128
          %248 = vsyncadd [#allocation7], %s247
          %253 = dma.hbm_to_smem %s1, 128, [#allocation6], [#allocation7], 64, 64, 4
        $region20: #{tpu_custom_call.1} parent=11 // pred_fallthru
          _
        // Predicated region
        $region21: #{tpu_custom_call.1} parent=11 // pred_check
          %p254 = pneg %p144
        $region22: #{tpu_custom_call.1} parent=11 // pred_check_branch
          %256 = sbr.rel (%p254) target = $region24
        $region23: #{tpu_custom_call.1} parent=11 // pred_region
          %s258 = ssub.s32 1024, 1024
          %259 = vsyncadd [#allocation10], %s258
          %s260 = sshll.u32 [#allocation11], 4
          %s261 = int_to_ptr.vmem [resolvable:$true] %s260
          %266 = dma.hbm_to_vmem [thread:$0]  %s4, 1024, %s261, [#allocation10], 128, 128, 8
        $region24: #{tpu_custom_call.1} parent=11 // pred_fallthru
          _
        // Predicated region
        $region25: #{tpu_custom_call.1} parent=11 // pred_check
          %p267 = pneg %p165
        $region26: #{tpu_custom_call.1} parent=11 // pred_check_branch
          %269 = sbr.rel (%p267) target = $region28
        $region27: #{tpu_custom_call.1} parent=11 // pred_region
          %s271 = ssub.s32 131072, 131072
          %272 = vsyncadd [#allocation13], %s271
          %s273 = sshll.u32 [#allocation12], 4
          %s274 = int_to_ptr.vmem [resolvable:$true] %s273
          %279 = dma.hbm_to_vmem [thread:$0]  %s5, 131072, %s274, [#allocation13], 256, 256, 16
        $region28: #{tpu_custom_call.1} parent=11 // pred_fallthru
          _
      $region12: #{tpu_custom_call.1} parent=5 // pred_fallthru
        _
      %p280 = scmp.lt.s32.totalorder %s29, 2
      // Predicated region
      $region29: #{tpu_custom_call.1} parent=5 // pred_check
        %p281 = pneg %p280
      $region30: #{tpu_custom_call.1} parent=5 // pred_check_branch
        %283 = sbr.rel (%p281) target = $region32
      $region31: #{tpu_custom_call.1} parent=5 // pred_region
        // Predicated region
        $region33: #{tpu_custom_call.1} parent=31 // pred_check
          %p284 = pneg %p91
        $region34: #{tpu_custom_call.1} parent=31 // pred_check_branch
          %286 = sbr.rel (%p284) target = $region36
        $region35: #{tpu_custom_call.1} parent=31 // pred_region
          %s287 = sand.u32 %s81, 1
          %s288 = scalar_lea.sflag [#allocation3], %s287
          %s289 = sand.u32 %s81, 1
          %s290 = smul.addr %s289, 32
          %s291 = scalar_lea.vmem [#allocation8], %s290
          %s293 = ssub.s32 512, 512
          %294 = vsyncadd %s288, %s293
          %s295 = smul.addr %s29, 4
          %s296 = smul.addr %s295, 128
          %s297 = scalar_lea.hbm %s2, %s296
          %s298 = sshll.u32 %s291, 4
          %s299 = int_to_ptr.vmem [resolvable:$true] %s298
          %304 = dma.hbm_to_vmem [thread:$0]  %s297, 512, %s299, %s288, 128, 128, 8
        $region36: #{tpu_custom_call.1} parent=31 // pred_fallthru
          _
        // Predicated region
        $region37: #{tpu_custom_call.1} parent=31 // pred_check
          %p305 = pneg %p117
        $region38: #{tpu_custom_call.1} parent=31 // pred_check_branch
          %307 = sbr.rel (%p305) target = $region40
        $region39: #{tpu_custom_call.1} parent=31 // pred_region
          %s308 = sand.u32 %s29, 1
          %s309 = scalar_lea.sflag [#allocation10], %s308
          %s310 = sand.u32 %s107, 1
          %s311 = smul.addr %s310, 2
          %s312 = scalar_lea.vmem [#allocation9], %s311
          %s314 = ssub.s32 32, 32
          %315 = vsyncadd %s309, %s314
          %s316 = smul.addr %s29, 2
          %s317 = smul.addr %s316, 16
          %s318 = scalar_lea.hbm %s3, %s317
          %s320 = sshll.u32 %s312, 4
          %s321 = int_to_ptr.vmem [resolvable:$true] %s320
          %323 = dma.hbm_to_vmem [thread:$0]  %s318, 32, %s321, %s309
        $region40: #{tpu_custom_call.1} parent=31 // pred_fallthru
          _
      $region32: #{tpu_custom_call.1} parent=5 // pred_fallthru
        _
      %p324 = scmp.le.s32.totalorder 1, %s29
      %p325 = scmp.lt.s32.totalorder %s29, 3
      %p326 = pnand %p324, %p325
      %p327 = pneg %p326
      // Predicated region
      $region41: #{tpu_custom_call.1} parent=5 // pred_check
        _
      $region42: #{tpu_custom_call.1} parent=5 // pred_check_branch
        %329 = sbr.rel (%p326) target = $region44
      $region43: #{tpu_custom_call.1} parent=5 // pred_region
        %s330 = ssub.s32 %s29, 1
        // Predicated region
        $region45: #{tpu_custom_call.1} parent=43 // pred_check
          %p331 = pneg %p50
        $region46: #{tpu_custom_call.1} parent=43 // pred_check_branch
          %333 = sbr.rel (%p331) target = $region48
        $region47: #{tpu_custom_call.1} parent=43 // pred_region
          %334 = dma.done [#allocation5], 128
        $region48: #{tpu_custom_call.1} parent=43 // pred_fallthru
          _
        // Predicated region
        $region49: #{tpu_custom_call.1} parent=43 // pred_check
          %p335 = pneg %p71
        $region50: #{tpu_custom_call.1} parent=43 // pred_check_branch
          %337 = sbr.rel (%p335) target = $region52
        $region51: #{tpu_custom_call.1} parent=43 // pred_region
          %338 = dma.done [#allocation7], 128
        $region52: #{tpu_custom_call.1} parent=43 // pred_fallthru
          _
        %s339 = sand.u32 %s84, 1
        %s340 = scalar_lea.sflag [#allocation3], %s339
        %s341 = sand.u32 %s84, 1
        %s342 = smul.addr %s341, 32
        %s343 = scalar_lea.vmem [#allocation8], %s342
        // Predicated region
        $region53: #{tpu_custom_call.1} parent=43 // pred_check
          %p344 = pneg %p97
        $region54: #{tpu_custom_call.1} parent=43 // pred_check_branch
          %346 = sbr.rel (%p344) target = $region56
        $region55: #{tpu_custom_call.1} parent=43 // pred_region
          %347 = dma.done %s340, 512
        $region56: #{tpu_custom_call.1} parent=43 // pred_fallthru
          _
        %s348 = sand.u32 %s34, 1
        %s349 = scalar_lea.sflag [#allocation10], %s348
        %s350 = sand.u32 %s110, 1
        %s351 = smul.addr %s350, 2
        %s352 = scalar_lea.vmem [#allocation9], %s351
        // Predicated region
        $region57: #{tpu_custom_call.1} parent=43 // pred_check
          %p353 = pneg %p123
        $region58: #{tpu_custom_call.1} parent=43 // pred_check_branch
          %355 = sbr.rel (%p353) target = $region60
        $region59: #{tpu_custom_call.1} parent=43 // pred_region
          %356 = dma.done %s349, 32
        $region60: #{tpu_custom_call.1} parent=43 // pred_fallthru
          _
        // Predicated region
        $region61: #{tpu_custom_call.1} parent=43 // pred_check
          %p357 = pneg %p144
        $region62: #{tpu_custom_call.1} parent=43 // pred_check_branch
          %359 = sbr.rel (%p357) target = $region64
        $region63: #{tpu_custom_call.1} parent=43 // pred_region
          %360 = dma.done [#allocation10], 1024
        $region64: #{tpu_custom_call.1} parent=43 // pred_fallthru
          _
        // Predicated region
        $region65: #{tpu_custom_call.1} parent=43 // pred_check
          %p361 = pneg %p165
        $region66: #{tpu_custom_call.1} parent=43 // pred_check_branch
          %363 = sbr.rel (%p361) target = $region68
        $region67: #{tpu_custom_call.1} parent=43 // pred_region
          %364 = dma.done [#allocation13], 131072
        $region68: #{tpu_custom_call.1} parent=43 // pred_fallthru
          _
        %365 = sfence
        %p366 = pneg %p50
        %p367 = pneg %p47
        %p368 = pneg %p71
        %p369 = pneg %p68
        %s370 = sand.u32 %s84, 1
        %s371 = scalar_lea.sflag [#allocation3], %s370
        %s372 = sand.u32 %s84, 1
        %s373 = smul.addr %s372, 32
        %s374 = scalar_lea.vmem [#allocation8], %s373
        %p375 = pneg %p97
        %p376 = pneg %p94
        %s377 = sand.u32 %s34, 1
        %s378 = scalar_lea.sflag [#allocation10], %s377
        %s379 = sand.u32 %s110, 1
        %s380 = smul.addr %s379, 2
        %s381 = scalar_lea.vmem [#allocation9], %s380
        %p382 = pneg %p123
        %p383 = pneg %p120
        %p384 = pneg %p144
        %p385 = pneg %p141
        %p386 = pneg %p165
        %p387 = pneg %p162
        %p388 = pneg %p191
        %p389 = pneg %p188
        %s390 = sand.u32 %s178, 1
        %s391 = scalar_lea.sflag [#allocation4], %s390
        %s392 = sand.u32 %s178, 1
        %s393 = smul.addr %s392, 32
        %s394 = scalar_lea.vmem [#allocation14], %s393
        %p395 = pneg %p217
        %p396 = pneg %p214
        %s397 = sand.u32 %s204, 1
        %s398 = scalar_lea.sflag [#allocation16], %s397
        %s399 = sand.u32 %s204, 1
        %s400 = smul.addr %s399, 2
        %s401 = scalar_lea.vmem [#allocation15], %s400
        %v402 = vld [vmem:[%s343] sm:$0xff]
        %v403 = vld [vmem:[%s343 + $0x8] sm:$0xff]
        %v404 = vld [vmem:[%s343 + $0x10] sm:$0xff]
        %v405 = vld [vmem:[%s343 + $0x18] sm:$0xff]
        %v406 = vrcp.pop %v402
        %v407 = vmul.f32 1.0, %v406
        %v408 = vrcp.pop %v403
        %v409 = vmul.f32 1.0, %v408
        %v410 = vrcp.pop %v404
        %v411 = vmul.f32 1.0, %v410
        %v412 = vrcp.pop %v405
        %v413 = vmul.f32 1.0, %v412
        %v414 = vsub.f32 %v407, 0.01
        %v415 = vsub.f32 %v409, 0.01
        %v416 = vsub.f32 %v411, 0.01
        %v417 = vsub.f32 %v413, 0.01
        %v418 = vrcp.pop 9.99
        %v419 = vmul.f32 %v414, %v418
        %v420 = vmul.f32 %v415, %v418
        %v421 = vmul.f32 %v416, %v418
        %v422 = vmul.f32 %v417, %v418
        %vm423 = vcmask 261120
        %424 = vst.msk [vmem:[%s394] sm:$0xff] %vm423, %v419
        %425 = vst.msk [vmem:[%s394 + $0x8] sm:$0xff] %vm423, %v420
        %426 = vst.msk [vmem:[%s394 + $0x10] sm:$0xff] %vm423, %v421
        %427 = vst.msk [vmem:[%s394 + $0x18] sm:$0xff] %vm423, %v422
        %v428 = vld [vmem:[#allocation11] sm:$0xff]
        %v429 = vld [vmem:[#allocation11 + $0x8] sm:$0xff]
        %v430 = vld [vmem:[#allocation11 + $0x10] sm:$0xff]
        %v431 = vld [vmem:[#allocation11 + $0x18] sm:$0xff]
        %s432 = scalar_lea.vmem [#allocation11], 32
        %v433 = vld [vmem:[%s432] sm:$0xff]
        %v434 = vld [vmem:[%s432 + $0x8] sm:$0xff]
        %v435 = vld [vmem:[%s432 + $0x10] sm:$0xff]
        %v436 = vld [vmem:[%s432 + $0x18] sm:$0xff]
        %s437 = smul.u32 %s34, 4
        %s438 = smul.u32 %s437, 128
        %s439 = sld [smem:[#allocation2 + %s438]]
        %v440 = vstv %s439
        %v441 = vmul.f32 %v440, %v428
        %v442 = vmul.f32 %v440, %v429
        %v443 = vmul.f32 %v440, %v430
        %v444 = vmul.f32 %v440, %v431
        %s445 = sadd.s32 %s438, 2
        %s446 = sld [smem:[#allocation2 + %s445]]
        %v447 = vstv %s446
        %v448 = vmul.f32 %v447, %v433
        %v449 = vmul.f32 %v447, %v434
        %v450 = vmul.f32 %v447, %v435
        %v451 = vmul.f32 %v447, %v436
        %v452 = vadd.f32 %v441, %v448
        %v453 = vadd.f32 %v442, %v449
        %v454 = vadd.f32 %v443, %v450
        %v455 = vadd.f32 %v444, %v451
        %s456 = sadd.s32 %s438, 3
        %s457 = sld [smem:[#allocation2 + %s456]]
        %v458 = vstv %s457
        %v459 = vadd.f32 %v452, %v458
        %v460 = vadd.f32 %v453, %v458
        %v461 = vadd.f32 %v454, %v458
        %v462 = vadd.f32 %v455, %v458
        %s463 = sadd.s32 1, %s437
        %s464 = smul.u32 %s463, 128
        %s465 = sld [smem:[#allocation2 + %s464]]
        %v466 = vstv %s465
        %v467 = vmul.f32 %v466, %v428
        %v468 = vmul.f32 %v466, %v429
        %v469 = vmul.f32 %v466, %v430
        %v470 = vmul.f32 %v466, %v431
        %s471 = sadd.s32 %s464, 2
        %s472 = sld [smem:[#allocation2 + %s471]]
        %v473 = vstv %s472
        %v474 = vmul.f32 %v473, %v433
        %v475 = vmul.f32 %v473, %v434
        %v476 = vmul.f32 %v473, %v435
        %v477 = vmul.f32 %v473, %v436
        %v478 = vadd.f32 %v467, %v474
        %v479 = vadd.f32 %v468, %v475
        %v480 = vadd.f32 %v469, %v476
        %v481 = vadd.f32 %v470, %v477
        %s482 = sadd.s32 %s464, 3
        %s483 = sld [smem:[#allocation2 + %s482]]
        %v484 = vstv %s483
        %v485 = vadd.f32 %v478, %v484
        %v486 = vadd.f32 %v479, %v484
        %v487 = vadd.f32 %v480, %v484
        %v488 = vadd.f32 %v481, %v484
        %s489 = sadd.s32 2, %s437
        %s490 = smul.u32 %s489, 128
        %s491 = sld [smem:[#allocation2 + %s490]]
        %v492 = vstv %s491
        %v493 = vmul.f32 %v492, %v428
        %v494 = vmul.f32 %v492, %v429
        %v495 = vmul.f32 %v492, %v430
        %v496 = vmul.f32 %v492, %v431
        %s497 = sadd.s32 %s490, 2
        %s498 = sld [smem:[#allocation2 + %s497]]
        %v499 = vstv %s498
        %v500 = vmul.f32 %v499, %v433
        %v501 = vmul.f32 %v499, %v434
        %v502 = vmul.f32 %v499, %v435
        %v503 = vmul.f32 %v499, %v436
        %v504 = vadd.f32 %v493, %v500
        %v505 = vadd.f32 %v494, %v501
        %v506 = vadd.f32 %v495, %v502
        %v507 = vadd.f32 %v496, %v503
        %s508 = sadd.s32 %s490, 3
        %s509 = sld [smem:[#allocation2 + %s508]]
        %v510 = vstv %s509
        %v511 = vadd.f32 %v504, %v510
        %v512 = vadd.f32 %v505, %v510
        %v513 = vadd.f32 %v506, %v510
        %v514 = vadd.f32 %v507, %v510
        %s515 = sld [smem:[#allocation6 + %s438]]
        %v516 = vstv %s515
        %v517 = vmul.f32 %v516, %v459
        %v518 = vmul.f32 %v516, %v460
        %v519 = vmul.f32 %v516, %v461
        %v520 = vmul.f32 %v516, %v462
        %s521 = sadd.s32 %s438, 1
        %s522 = sld [smem:[#allocation6 + %s521]]
        %v523 = vstv %s522
        %v524 = vmul.f32 %v523, %v485
        %v525 = vmul.f32 %v523, %v486
        %v526 = vmul.f32 %v523, %v487
        %v527 = vmul.f32 %v523, %v488
        %v528 = vadd.f32 %v517, %v524
        %v529 = vadd.f32 %v518, %v525
        %v530 = vadd.f32 %v519, %v526
        %v531 = vadd.f32 %v520, %v527
        %s532 = sld [smem:[#allocation6 + %s445]]
        %v533 = vstv %s532
        %v534 = vmul.f32 %v533, %v511
        %v535 = vmul.f32 %v533, %v512
        %v536 = vmul.f32 %v533, %v513
        %v537 = vmul.f32 %v533, %v514
        %v538 = vadd.f32 %v528, %v534
        %v539 = vadd.f32 %v529, %v535
        %v540 = vadd.f32 %v530, %v536
        %v541 = vadd.f32 %v531, %v537
        %s542 = sld [smem:[#allocation6 + %s464]]
        %v543 = vstv %s542
        %v544 = vmul.f32 %v543, %v459
        %v545 = vmul.f32 %v543, %v460
        %v546 = vmul.f32 %v543, %v461
        %v547 = vmul.f32 %v543, %v462
        %s548 = sadd.s32 %s464, 1
        %s549 = sld [smem:[#allocation6 + %s548]]
        %v550 = vstv %s549
        %v551 = vmul.f32 %v550, %v485
        %v552 = vmul.f32 %v550, %v486
        %v553 = vmul.f32 %v550, %v487
        %v554 = vmul.f32 %v550, %v488
        %v555 = vadd.f32 %v544, %v551
        %v556 = vadd.f32 %v545, %v552
        %v557 = vadd.f32 %v546, %v553
        %v558 = vadd.f32 %v547, %v554
        %s559 = sld [smem:[#allocation6 + %s471]]
        %v560 = vstv %s559
        %v561 = vmul.f32 %v560, %v511
        %v562 = vmul.f32 %v560, %v512
        %v563 = vmul.f32 %v560, %v513
        %v564 = vmul.f32 %v560, %v514
        %v565 = vadd.f32 %v555, %v561
        %v566 = vadd.f32 %v556, %v562
        %v567 = vadd.f32 %v557, %v563
        %v568 = vadd.f32 %v558, %v564
        %s569 = sld [smem:[#allocation6 + %s490]]
        %v570 = vstv %s569
        %v571 = vmul.f32 %v570, %v459
        %v572 = vmul.f32 %v570, %v460
        %v573 = vmul.f32 %v570, %v461
        %v574 = vmul.f32 %v570, %v462
        %s575 = sadd.s32 %s490, 1
        %s576 = sld [smem:[#allocation6 + %s575]]
        %v577 = vstv %s576
        %v578 = vmul.f32 %v577, %v485
        %v579 = vmul.f32 %v577, %v486
        %v580 = vmul.f32 %v577, %v487
        %v581 = vmul.f32 %v577, %v488
        %v582 = vadd.f32 %v571, %v578
        %v583 = vadd.f32 %v572, %v579
        %v584 = vadd.f32 %v573, %v580
        %v585 = vadd.f32 %v574, %v581
        %s586 = sld [smem:[#allocation6 + %s497]]
        %v587 = vstv %s586
        %v588 = vmul.f32 %v587, %v511
        %v589 = vmul.f32 %v587, %v512
        %v590 = vmul.f32 %v587, %v513
        %v591 = vmul.f32 %v587, %v514
        %v592 = vadd.f32 %v582, %v588
        %v593 = vadd.f32 %v583, %v589
        %v594 = vadd.f32 %v584, %v590
        %v595 = vadd.f32 %v585, %v591
        %v596 = vadd.f32 %v592, 1e-07
        %v597 = vadd.f32 %v593, 1e-07
        %v598 = vadd.f32 %v594, 1e-07
        %v599 = vadd.f32 %v595, 1e-07
        %v600 = vrcp.pop %v596
        %v601 = vmul.f32 %v538, %v600
        %v602 = vrcp.pop %v597
        %v603 = vmul.f32 %v539, %v602
        %v604 = vrcp.pop %v598
        %v605 = vmul.f32 %v540, %v604
        %v606 = vrcp.pop %v599
        %v607 = vmul.f32 %v541, %v606
        %v608 = vmul.f32 %v565, %v600
        %v609 = vmul.f32 %v566, %v602
        %v610 = vmul.f32 %v567, %v604
        %v611 = vmul.f32 %v568, %v606
        %v612 = vadd.f32 %v601, 0.5
        %v613 = vadd.f32 %v603, 0.5
        %v614 = vadd.f32 %v605, 0.5
        %v615 = vadd.f32 %v607, 0.5
        %v616 = vfloor.f32 %v612
        %v617 = vfloor.f32 %v613
        %v618 = vfloor.f32 %v614
        %v619 = vfloor.f32 %v615
        %v620 = vadd.f32 %v608, 0.5
        %v621 = vadd.f32 %v609, 0.5
        %v622 = vadd.f32 %v610, 0.5
        %v623 = vadd.f32 %v611, 0.5
        %v624 = vfloor.f32 %v620
        %v625 = vfloor.f32 %v621
        %v626 = vfloor.f32 %v622
        %v627 = vfloor.f32 %v623
        %vm628 = vcmp.ge.f32.partialorder %v616, 0.0
        %vm629 = vcmp.ge.f32.partialorder %v617, 0.0
        %vm630 = vcmp.ge.f32.partialorder %v618, 0.0
        %vm631 = vcmp.ge.f32.partialorder %v619, 0.0
        %vm632 = vcmp.le.f32.partialorder %v616, 31.0
        %vm633 = vcmp.le.f32.partialorder %v617, 31.0
        %vm634 = vcmp.le.f32.partialorder %v618, 31.0
        %vm635 = vcmp.le.f32.partialorder %v619, 31.0
        %vm636 = vmand %vm628, %vm632
        %vm637 = vmand %vm629, %vm633
        %vm638 = vmand %vm630, %vm634
        %vm639 = vmand %vm631, %vm635
        %vm640 = vcmp.ge.f32.partialorder %v624, 0.0
        %vm641 = vcmp.ge.f32.partialorder %v625, 0.0
        %vm642 = vcmp.ge.f32.partialorder %v626, 0.0
        %vm643 = vcmp.ge.f32.partialorder %v627, 0.0
        %vm644 = vmand %vm636, %vm640
        %vm645 = vmand %vm637, %vm641
        %vm646 = vmand %vm638, %vm642
        %vm647 = vmand %vm639, %vm643
        %vm648 = vcmp.le.f32.partialorder %v624, 31.0
        %vm649 = vcmp.le.f32.partialorder %v625, 31.0
        %vm650 = vcmp.le.f32.partialorder %v626, 31.0
        %vm651 = vcmp.le.f32.partialorder %v627, 31.0
        %vm652 = vmand %vm644, %vm648
        %vm653 = vmand %vm645, %vm649
        %vm654 = vmand %vm646, %vm650
        %vm655 = vmand %vm647, %vm651
        %v656 = vsel %vm652, 1, 0
        %v657 = vsel %vm653, 1, 0
        %v658 = vsel %vm654, 1, 0
        %v659 = vsel %vm655, 1, 0
        %v660 = vcvt.s32.f32 %v656
        %v661 = vcvt.s32.f32 %v657
        %v662 = vcvt.s32.f32 %v658
        %v663 = vcvt.s32.f32 %v659
        %v664 = vmax.f32 %v616, 0.0
        %v665 = vmax.f32 %v617, 0.0
        %v666 = vmax.f32 %v618, 0.0
        %v667 = vmax.f32 %v619, 0.0
        %v668 = vmin.f32 %v664, 31.0
        %v669 = vmin.f32 %v665, 31.0
        %v670 = vmin.f32 %v666, 31.0
        %v671 = vmin.f32 %v667, 31.0
        %v672 = vcvt.f32.s32.to.zero.pseudo %v668
        %v673 = vcvt.f32.s32.to.zero.pseudo %v669
        %v674 = vcvt.f32.s32.to.zero.pseudo %v670
        %v675 = vcvt.f32.s32.to.zero.pseudo %v671
        %v676 = vmax.f32 %v624, 0.0
        %v677 = vmax.f32 %v625, 0.0
        %v678 = vmax.f32 %v626, 0.0
        %v679 = vmax.f32 %v627, 0.0
        %v680 = vmin.f32 %v676, 31.0
        %v681 = vmin.f32 %v677, 31.0
        %v682 = vmin.f32 %v678, 31.0
        %v683 = vmin.f32 %v679, 31.0
        %v684 = vcvt.f32.s32.to.zero.pseudo %v680
        %v685 = vcvt.f32.s32.to.zero.pseudo %v681
        %v686 = vcvt.f32.s32.to.zero.pseudo %v682
        %v687 = vcvt.f32.s32.to.zero.pseudo %v683
        %v688 = vrot.slane %v672, 1
        %v689 = vrot.slane %v672, 2
        %v690 = vrot.slane %v672, 3
        %v691 = vrot.slane %v672, 4
        %v692 = vrot.slane %v672, 5
        %v693 = vrot.slane %v672, 6
        %v694 = vrot.slane %v672, 7
        %v695 = vrot.slane %v673, 1
        %v696 = vrot.slane %v673, 2
        %v697 = vrot.slane %v673, 3
        %v698 = vrot.slane %v673, 4
        %v699 = vrot.slane %v673, 5
        %v700 = vrot.slane %v673, 6
        %v701 = vrot.slane %v673, 7
        %v702 = vrot.slane %v674, 1
        %v703 = vrot.slane %v674, 2
        %v704 = vrot.slane %v674, 3
        %v705 = vrot.slane %v674, 4
        %v706 = vrot.slane %v674, 5
        %v707 = vrot.slane %v674, 6
        %v708 = vrot.slane %v674, 7
        %v709 = vrot.slane %v675, 1
        %v710 = vrot.slane %v675, 2
        %v711 = vrot.slane %v675, 3
        %v712 = vrot.slane %v675, 4
        %v713 = vrot.slane %v675, 5
        %v714 = vrot.slane %v675, 6
        %v715 = vrot.slane %v675, 7
        %v716 = vrot.slane %v684, 1
        %v717 = vrot.slane %v684, 2
        %v718 = vrot.slane %v684, 3
        %v719 = vrot.slane %v684, 4
        %v720 = vrot.slane %v684, 5
        %v721 = vrot.slane %v684, 6
        %v722 = vrot.slane %v684, 7
        %v723 = vrot.slane %v685, 1
        %v724 = vrot.slane %v685, 2
        %v725 = vrot.slane %v685, 3
        %v726 = vrot.slane %v685, 4
        %v727 = vrot.slane %v685, 5
        %v728 = vrot.slane %v685, 6
        %v729 = vrot.slane %v685, 7
        %v730 = vrot.slane %v686, 1
        %v731 = vrot.slane %v686, 2
        %v732 = vrot.slane %v686, 3
        %v733 = vrot.slane %v686, 4
        %v734 = vrot.slane %v686, 5
        %v735 = vrot.slane %v686, 6
        %v736 = vrot.slane %v686, 7
        %v737 = vrot.slane %v687, 1
        %v738 = vrot.slane %v687, 2
        %v739 = vrot.slane %v687, 3
        %v740 = vrot.slane %v687, 4
        %v741 = vrot.slane %v687, 5
        %v742 = vrot.slane %v687, 6
        %v743 = vrot.slane %v687, 7
        %v745 = vrot.slane %v660, 1
        %v747 = vrot.slane %v660, 2
        %v749 = vrot.slane %v660, 3
        %v751 = vrot.slane %v660, 4
        %v753 = vrot.slane %v660, 5
        %v755 = vrot.slane %v660, 6
        %v757 = vrot.slane %v660, 7
        %v760 = vrot.slane %v661, 1
        %v762 = vrot.slane %v661, 2
        %v764 = vrot.slane %v661, 3
        %v766 = vrot.slane %v661, 4
        %v768 = vrot.slane %v661, 5
        %v770 = vrot.slane %v661, 6
        %v772 = vrot.slane %v661, 7
        %v775 = vrot.slane %v662, 1
        %v777 = vrot.slane %v662, 2
        %v779 = vrot.slane %v662, 3
        %v781 = vrot.slane %v662, 4
        %v783 = vrot.slane %v662, 5
        %v785 = vrot.slane %v662, 6
        %v787 = vrot.slane %v662, 7
        %v790 = vrot.slane %v663, 1
        %v792 = vrot.slane %v663, 2
        %v794 = vrot.slane %v663, 3
        %v796 = vrot.slane %v663, 4
        %v798 = vrot.slane %v663, 5
        %v800 = vrot.slane %v663, 6
        %v802 = vrot.slane %v663, 7
        %v804 = vlaneseq
        %v805 = vshrl.u32 %v804, 7
        %v806 = vadd.s32 %v805, 8
        %v807 = vadd.s32 %v805, 16
        %v808 = vadd.s32 %v805, 24
        %v809 = vlaneseq
        %v810 = vshrl.u32 %v809, 7
        %v811 = vsub.s32 0, %v810
        %v812 = vrot.slane %v672, %v811
        %v813 = vlaneseq
        %v814 = vshrl.u32 %v813, 7
        %v815 = vsub.s32 0, %v814
        %v816 = vrot.slane %v688, %v815
        %v817 = vlaneseq
        %v818 = vshrl.u32 %v817, 7
        %v819 = vsub.s32 0, %v818
        %v820 = vrot.slane %v689, %v819
        %v821 = vlaneseq
        %v822 = vshrl.u32 %v821, 7
        %v823 = vsub.s32 0, %v822
        %v824 = vrot.slane %v690, %v823
        %v825 = vlaneseq
        %v826 = vshrl.u32 %v825, 7
        %v827 = vsub.s32 0, %v826
        %v828 = vrot.slane %v691, %v827
        %v829 = vlaneseq
        %v830 = vshrl.u32 %v829, 7
        %v831 = vsub.s32 0, %v830
        %v832 = vrot.slane %v692, %v831
        %v833 = vlaneseq
        %v834 = vshrl.u32 %v833, 7
        %v835 = vsub.s32 0, %v834
        %v836 = vrot.slane %v693, %v835
        %v837 = vlaneseq
        %v838 = vshrl.u32 %v837, 7
        %v839 = vsub.s32 0, %v838
        %v840 = vrot.slane %v694, %v839
        %v841 = vlaneseq
        %v842 = vshrl.u32 %v841, 7
        %v843 = vsub.s32 0, %v842
        %v844 = vrot.slane %v673, %v843
        %v845 = vlaneseq
        %v846 = vshrl.u32 %v845, 7
        %v847 = vsub.s32 0, %v846
        %v848 = vrot.slane %v695, %v847
        %v849 = vlaneseq
        %v850 = vshrl.u32 %v849, 7
        %v851 = vsub.s32 0, %v850
        %v852 = vrot.slane %v696, %v851
        %v853 = vlaneseq
        %v854 = vshrl.u32 %v853, 7
        %v855 = vsub.s32 0, %v854
        %v856 = vrot.slane %v697, %v855
        %v857 = vlaneseq
        %v858 = vshrl.u32 %v857, 7
        %v859 = vsub.s32 0, %v858
        %v860 = vrot.slane %v698, %v859
        %v861 = vlaneseq
        %v862 = vshrl.u32 %v861, 7
        %v863 = vsub.s32 0, %v862
        %v864 = vrot.slane %v699, %v863
        %v865 = vlaneseq
        %v866 = vshrl.u32 %v865, 7
        %v867 = vsub.s32 0, %v866
        %v868 = vrot.slane %v700, %v867
        %v869 = vlaneseq
        %v870 = vshrl.u32 %v869, 7
        %v871 = vsub.s32 0, %v870
        %v872 = vrot.slane %v701, %v871
        %v873 = vlaneseq
        %v874 = vshrl.u32 %v873, 7
        %v875 = vsub.s32 0, %v874
        %v876 = vrot.slane %v674, %v875
        %v877 = vlaneseq
        %v878 = vshrl.u32 %v877, 7
        %v879 = vsub.s32 0, %v878
        %v880 = vrot.slane %v702, %v879
        %v881 = vlaneseq
        %v882 = vshrl.u32 %v881, 7
        %v883 = vsub.s32 0, %v882
        %v884 = vrot.slane %v703, %v883
        %v885 = vlaneseq
        %v886 = vshrl.u32 %v885, 7
        %v887 = vsub.s32 0, %v886
        %v888 = vrot.slane %v704, %v887
        %v889 = vlaneseq
        %v890 = vshrl.u32 %v889, 7
        %v891 = vsub.s32 0, %v890
        %v892 = vrot.slane %v705, %v891
        %v893 = vlaneseq
        %v894 = vshrl.u32 %v893, 7
        %v895 = vsub.s32 0, %v894
        %v896 = vrot.slane %v706, %v895
        %v897 = vlaneseq
        %v898 = vshrl.u32 %v897, 7
        %v899 = vsub.s32 0, %v898
        %v900 = vrot.slane %v707, %v899
        %v901 = vlaneseq
        %v902 = vshrl.u32 %v901, 7
        %v903 = vsub.s32 0, %v902
        %v904 = vrot.slane %v708, %v903
        %v905 = vlaneseq
        %v906 = vshrl.u32 %v905, 7
        %v907 = vsub.s32 0, %v906
        %v908 = vrot.slane %v675, %v907
        %v909 = vlaneseq
        %v910 = vshrl.u32 %v909, 7
        %v911 = vsub.s32 0, %v910
        %v912 = vrot.slane %v709, %v911
        %v913 = vlaneseq
        %v914 = vshrl.u32 %v913, 7
        %v915 = vsub.s32 0, %v914
        %v916 = vrot.slane %v710, %v915
        %v917 = vlaneseq
        %v918 = vshrl.u32 %v917, 7
        %v919 = vsub.s32 0, %v918
        %v920 = vrot.slane %v711, %v919
        %v921 = vlaneseq
        %v922 = vshrl.u32 %v921, 7
        %v923 = vsub.s32 0, %v922
        %v924 = vrot.slane %v712, %v923
        %v925 = vlaneseq
        %v926 = vshrl.u32 %v925, 7
        %v927 = vsub.s32 0, %v926
        %v928 = vrot.slane %v713, %v927
        %v929 = vlaneseq
        %v930 = vshrl.u32 %v929, 7
        %v931 = vsub.s32 0, %v930
        %v932 = vrot.slane %v714, %v931
        %v933 = vlaneseq
        %v934 = vshrl.u32 %v933, 7
        %v935 = vsub.s32 0, %v934
        %v936 = vrot.slane %v715, %v935
        %vm937 = vcmp.eq.s32.totalorder %v812, %v805
        %vm938 = vcmp.eq.s32.totalorder %v816, %v805
        %vm939 = vcmp.eq.s32.totalorder %v820, %v805
        %vm940 = vcmp.eq.s32.totalorder %v824, %v805
        %vm941 = vcmp.eq.s32.totalorder %v828, %v805
        %vm942 = vcmp.eq.s32.totalorder %v832, %v805
        %vm943 = vcmp.eq.s32.totalorder %v836, %v805
        %vm944 = vcmp.eq.s32.totalorder %v840, %v805
        %vm945 = vcmp.eq.s32.totalorder %v844, %v805
        %vm946 = vcmp.eq.s32.totalorder %v848, %v805
        %vm947 = vcmp.eq.s32.totalorder %v852, %v805
        %vm948 = vcmp.eq.s32.totalorder %v856, %v805
        %vm949 = vcmp.eq.s32.totalorder %v860, %v805
        %vm950 = vcmp.eq.s32.totalorder %v864, %v805
        %vm951 = vcmp.eq.s32.totalorder %v868, %v805
        %vm952 = vcmp.eq.s32.totalorder %v872, %v805
        %vm953 = vcmp.eq.s32.totalorder %v876, %v805
        %vm954 = vcmp.eq.s32.totalorder %v880, %v805
        %vm955 = vcmp.eq.s32.totalorder %v884, %v805
        %vm956 = vcmp.eq.s32.totalorder %v888, %v805
        %vm957 = vcmp.eq.s32.totalorder %v892, %v805
        %vm958 = vcmp.eq.s32.totalorder %v896, %v805
        %vm959 = vcmp.eq.s32.totalorder %v900, %v805
        %vm960 = vcmp.eq.s32.totalorder %v904, %v805
        %vm961 = vcmp.eq.s32.totalorder %v908, %v805
        %vm962 = vcmp.eq.s32.totalorder %v912, %v805
        %vm963 = vcmp.eq.s32.totalorder %v916, %v805
        %vm964 = vcmp.eq.s32.totalorder %v920, %v805
        %vm965 = vcmp.eq.s32.totalorder %v924, %v805
        %vm966 = vcmp.eq.s32.totalorder %v928, %v805
        %vm967 = vcmp.eq.s32.totalorder %v932, %v805
        %vm968 = vcmp.eq.s32.totalorder %v936, %v805
        %vm969 = vcmp.eq.s32.totalorder %v812, %v806
        %vm970 = vcmp.eq.s32.totalorder %v816, %v806
        %vm971 = vcmp.eq.s32.totalorder %v820, %v806
        %vm972 = vcmp.eq.s32.totalorder %v824, %v806
        %vm973 = vcmp.eq.s32.totalorder %v828, %v806
        %vm974 = vcmp.eq.s32.totalorder %v832, %v806
        %vm975 = vcmp.eq.s32.totalorder %v836, %v806
        %vm976 = vcmp.eq.s32.totalorder %v840, %v806
        %vm977 = vcmp.eq.s32.totalorder %v844, %v806
        %vm978 = vcmp.eq.s32.totalorder %v848, %v806
        %vm979 = vcmp.eq.s32.totalorder %v852, %v806
        %vm980 = vcmp.eq.s32.totalorder %v856, %v806
        %vm981 = vcmp.eq.s32.totalorder %v860, %v806
        %vm982 = vcmp.eq.s32.totalorder %v864, %v806
        %vm983 = vcmp.eq.s32.totalorder %v868, %v806
        %vm984 = vcmp.eq.s32.totalorder %v872, %v806
        %vm985 = vcmp.eq.s32.totalorder %v876, %v806
        %vm986 = vcmp.eq.s32.totalorder %v880, %v806
        %vm987 = vcmp.eq.s32.totalorder %v884, %v806
        %vm988 = vcmp.eq.s32.totalorder %v888, %v806
        %vm989 = vcmp.eq.s32.totalorder %v892, %v806
        %vm990 = vcmp.eq.s32.totalorder %v896, %v806
        %vm991 = vcmp.eq.s32.totalorder %v900, %v806
        %vm992 = vcmp.eq.s32.totalorder %v904, %v806
        %vm993 = vcmp.eq.s32.totalorder %v908, %v806
        %vm994 = vcmp.eq.s32.totalorder %v912, %v806
        %vm995 = vcmp.eq.s32.totalorder %v916, %v806
        %vm996 = vcmp.eq.s32.totalorder %v920, %v806
        %vm997 = vcmp.eq.s32.totalorder %v924, %v806
        %vm998 = vcmp.eq.s32.totalorder %v928, %v806
        %vm999 = vcmp.eq.s32.totalorder %v932, %v806
        %vm1000 = vcmp.eq.s32.totalorder %v936, %v806
        %vm1001 = vcmp.eq.s32.totalorder %v812, %v807
        %vm1002 = vcmp.eq.s32.totalorder %v816, %v807
        %vm1003 = vcmp.eq.s32.totalorder %v820, %v807
        %vm1004 = vcmp.eq.s32.totalorder %v824, %v807
        %vm1005 = vcmp.eq.s32.totalorder %v828, %v807
        %vm1006 = vcmp.eq.s32.totalorder %v832, %v807
        %vm1007 = vcmp.eq.s32.totalorder %v836, %v807
        %vm1008 = vcmp.eq.s32.totalorder %v840, %v807
        %vm1009 = vcmp.eq.s32.totalorder %v844, %v807
        %vm1010 = vcmp.eq.s32.totalorder %v848, %v807
        %vm1011 = vcmp.eq.s32.totalorder %v852, %v807
        %vm1012 = vcmp.eq.s32.totalorder %v856, %v807
        %vm1013 = vcmp.eq.s32.totalorder %v860, %v807
        %vm1014 = vcmp.eq.s32.totalorder %v864, %v807
        %vm1015 = vcmp.eq.s32.totalorder %v868, %v807
        %vm1016 = vcmp.eq.s32.totalorder %v872, %v807
        %vm1017 = vcmp.eq.s32.totalorder %v876, %v807
        %vm1018 = vcmp.eq.s32.totalorder %v880, %v807
        %vm1019 = vcmp.eq.s32.totalorder %v884, %v807
        %vm1020 = vcmp.eq.s32.totalorder %v888, %v807
        %vm1021 = vcmp.eq.s32.totalorder %v892, %v807
        %vm1022 = vcmp.eq.s32.totalorder %v896, %v807
        %vm1023 = vcmp.eq.s32.totalorder %v900, %v807
        %vm1024 = vcmp.eq.s32.totalorder %v904, %v807
        %vm1025 = vcmp.eq.s32.totalorder %v908, %v807
        %vm1026 = vcmp.eq.s32.totalorder %v912, %v807
        %vm1027 = vcmp.eq.s32.totalorder %v916, %v807
        %vm1028 = vcmp.eq.s32.totalorder %v920, %v807
        %vm1029 = vcmp.eq.s32.totalorder %v924, %v807
        %vm1030 = vcmp.eq.s32.totalorder %v928, %v807
        %vm1031 = vcmp.eq.s32.totalorder %v932, %v807
        %vm1032 = vcmp.eq.s32.totalorder %v936, %v807
        %vm1033 = vcmp.eq.s32.totalorder %v812, %v808
        %vm1034 = vcmp.eq.s32.totalorder %v816, %v808
        %vm1035 = vcmp.eq.s32.totalorder %v820, %v808
        %vm1036 = vcmp.eq.s32.totalorder %v824, %v808
        %vm1037 = vcmp.eq.s32.totalorder %v828, %v808
        %vm1038 = vcmp.eq.s32.totalorder %v832, %v808
        %vm1039 = vcmp.eq.s32.totalorder %v836, %v808
        %vm1040 = vcmp.eq.s32.totalorder %v840, %v808
        %vm1041 = vcmp.eq.s32.totalorder %v844, %v808
        %vm1042 = vcmp.eq.s32.totalorder %v848, %v808
        %vm1043 = vcmp.eq.s32.totalorder %v852, %v808
        %vm1044 = vcmp.eq.s32.totalorder %v856, %v808
        %vm1045 = vcmp.eq.s32.totalorder %v860, %v808
        %vm1046 = vcmp.eq.s32.totalorder %v864, %v808
        %vm1047 = vcmp.eq.s32.totalorder %v868, %v808
        %vm1048 = vcmp.eq.s32.totalorder %v872, %v808
        %vm1049 = vcmp.eq.s32.totalorder %v876, %v808
        %vm1050 = vcmp.eq.s32.totalorder %v880, %v808
        %vm1051 = vcmp.eq.s32.totalorder %v884, %v808
        %vm1052 = vcmp.eq.s32.totalorder %v888, %v808
        %vm1053 = vcmp.eq.s32.totalorder %v892, %v808
        %vm1054 = vcmp.eq.s32.totalorder %v896, %v808
        %vm1055 = vcmp.eq.s32.totalorder %v900, %v808
        %vm1056 = vcmp.eq.s32.totalorder %v904, %v808
        %vm1057 = vcmp.eq.s32.totalorder %v908, %v808
        %vm1058 = vcmp.eq.s32.totalorder %v912, %v808
        %vm1059 = vcmp.eq.s32.totalorder %v916, %v808
        %vm1060 = vcmp.eq.s32.totalorder %v920, %v808
        %vm1061 = vcmp.eq.s32.totalorder %v924, %v808
        %vm1062 = vcmp.eq.s32.totalorder %v928, %v808
        %vm1063 = vcmp.eq.s32.totalorder %v932, %v808
        %vm1064 = vcmp.eq.s32.totalorder %v936, %v808
        %v1065 = vsel %vm937, 1, 0
        %v1066 = vsel %vm938, 1, 0
        %v1067 = vsel %vm939, 1, 0
        %v1068 = vsel %vm940, 1, 0
        %v1069 = vsel %vm941, 1, 0
        %v1070 = vsel %vm942, 1, 0
        %v1071 = vsel %vm943, 1, 0
        %v1072 = vsel %vm944, 1, 0
        %v1073 = vsel %vm945, 1, 0
        %v1074 = vsel %vm946, 1, 0
        %v1075 = vsel %vm947, 1, 0
        %v1076 = vsel %vm948, 1, 0
        %v1077 = vsel %vm949, 1, 0
        %v1078 = vsel %vm950, 1, 0
        %v1079 = vsel %vm951, 1, 0
        %v1080 = vsel %vm952, 1, 0
        %v1081 = vsel %vm953, 1, 0
        %v1082 = vsel %vm954, 1, 0
        %v1083 = vsel %vm955, 1, 0
        %v1084 = vsel %vm956, 1, 0
        %v1085 = vsel %vm957, 1, 0
        %v1086 = vsel %vm958, 1, 0
        %v1087 = vsel %vm959, 1, 0
        %v1088 = vsel %vm960, 1, 0
        %v1089 = vsel %vm961, 1, 0
        %v1090 = vsel %vm962, 1, 0
        %v1091 = vsel %vm963, 1, 0
        %v1092 = vsel %vm964, 1, 0
        %v1093 = vsel %vm965, 1, 0
        %v1094 = vsel %vm966, 1, 0
        %v1095 = vsel %vm967, 1, 0
        %v1096 = vsel %vm968, 1, 0
        %v1097 = vsel %vm969, 1, 0
        %v1098 = vsel %vm970, 1, 0
        %v1099 = vsel %vm971, 1, 0
        %v1100 = vsel %vm972, 1, 0
        %v1101 = vsel %vm973, 1, 0
        %v1102 = vsel %vm974, 1, 0
        %v1103 = vsel %vm975, 1, 0
        %v1104 = vsel %vm976, 1, 0
        %v1105 = vsel %vm977, 1, 0
        %v1106 = vsel %vm978, 1, 0
        %v1107 = vsel %vm979, 1, 0
        %v1108 = vsel %vm980, 1, 0
        %v1109 = vsel %vm981, 1, 0
        %v1110 = vsel %vm982, 1, 0
        %v1111 = vsel %vm983, 1, 0
        %v1112 = vsel %vm984, 1, 0
        %v1113 = vsel %vm985, 1, 0
        %v1114 = vsel %vm986, 1, 0
        %v1115 = vsel %vm987, 1, 0
        %v1116 = vsel %vm988, 1, 0
        %v1117 = vsel %vm989, 1, 0
        %v1118 = vsel %vm990, 1, 0
        %v1119 = vsel %vm991, 1, 0
        %v1120 = vsel %vm992, 1, 0
        %v1121 = vsel %vm993, 1, 0
        %v1122 = vsel %vm994, 1, 0
        %v1123 = vsel %vm995, 1, 0
        %v1124 = vsel %vm996, 1, 0
        %v1125 = vsel %vm997, 1, 0
        %v1126 = vsel %vm998, 1, 0
        %v1127 = vsel %vm999, 1, 0
        %v1128 = vsel %vm1000, 1, 0
        %v1129 = vsel %vm1001, 1, 0
        %v1130 = vsel %vm1002, 1, 0
        %v1131 = vsel %vm1003, 1, 0
        %v1132 = vsel %vm1004, 1, 0
        %v1133 = vsel %vm1005, 1, 0
        %v1134 = vsel %vm1006, 1, 0
        %v1135 = vsel %vm1007, 1, 0
        %v1136 = vsel %vm1008, 1, 0
        %v1137 = vsel %vm1009, 1, 0
        %v1138 = vsel %vm1010, 1, 0
        %v1139 = vsel %vm1011, 1, 0
        %v1140 = vsel %vm1012, 1, 0
        %v1141 = vsel %vm1013, 1, 0
        %v1142 = vsel %vm1014, 1, 0
        %v1143 = vsel %vm1015, 1, 0
        %v1144 = vsel %vm1016, 1, 0
        %v1145 = vsel %vm1017, 1, 0
        %v1146 = vsel %vm1018, 1, 0
        %v1147 = vsel %vm1019, 1, 0
        %v1148 = vsel %vm1020, 1, 0
        %v1149 = vsel %vm1021, 1, 0
        %v1150 = vsel %vm1022, 1, 0
        %v1151 = vsel %vm1023, 1, 0
        %v1152 = vsel %vm1024, 1, 0
        %v1153 = vsel %vm1025, 1, 0
        %v1154 = vsel %vm1026, 1, 0
        %v1155 = vsel %vm1027, 1, 0
        %v1156 = vsel %vm1028, 1, 0
        %v1157 = vsel %vm1029, 1, 0
        %v1158 = vsel %vm1030, 1, 0
        %v1159 = vsel %vm1031, 1, 0
        %v1160 = vsel %vm1032, 1, 0
        %v1161 = vsel %vm1033, 1, 0
        %v1162 = vsel %vm1034, 1, 0
        %v1163 = vsel %vm1035, 1, 0
        %v1164 = vsel %vm1036, 1, 0
        %v1165 = vsel %vm1037, 1, 0
        %v1166 = vsel %vm1038, 1, 0
        %v1167 = vsel %vm1039, 1, 0
        %v1168 = vsel %vm1040, 1, 0
        %v1169 = vsel %vm1041, 1, 0
        %v1170 = vsel %vm1042, 1, 0
        %v1171 = vsel %vm1043, 1, 0
        %v1172 = vsel %vm1044, 1, 0
        %v1173 = vsel %vm1045, 1, 0
        %v1174 = vsel %vm1046, 1, 0
        %v1175 = vsel %vm1047, 1, 0
        %v1176 = vsel %vm1048, 1, 0
        %v1177 = vsel %vm1049, 1, 0
        %v1178 = vsel %vm1050, 1, 0
        %v1179 = vsel %vm1051, 1, 0
        %v1180 = vsel %vm1052, 1, 0
        %v1181 = vsel %vm1053, 1, 0
        %v1182 = vsel %vm1054, 1, 0
        %v1183 = vsel %vm1055, 1, 0
        %v1184 = vsel %vm1056, 1, 0
        %v1185 = vsel %vm1057, 1, 0
        %v1186 = vsel %vm1058, 1, 0
        %v1187 = vsel %vm1059, 1, 0
        %v1188 = vsel %vm1060, 1, 0
        %v1189 = vsel %vm1061, 1, 0
        %v1190 = vsel %vm1062, 1, 0
        %v1191 = vsel %vm1063, 1, 0
        %v1192 = vsel %vm1064, 1, 0
        %v1193 = vcvt.s32.f32 %v1065
        %v1194 = vcvt.s32.f32 %v1066
        %v1195 = vcvt.s32.f32 %v1067
        %v1196 = vcvt.s32.f32 %v1068
        %v1197 = vcvt.s32.f32 %v1069
        %v1198 = vcvt.s32.f32 %v1070
        %v1199 = vcvt.s32.f32 %v1071
        %v1200 = vcvt.s32.f32 %v1072
        %v1201 = vcvt.s32.f32 %v1073
        %v1202 = vcvt.s32.f32 %v1074
        %v1203 = vcvt.s32.f32 %v1075
        %v1204 = vcvt.s32.f32 %v1076
        %v1205 = vcvt.s32.f32 %v1077
        %v1206 = vcvt.s32.f32 %v1078
        %v1207 = vcvt.s32.f32 %v1079
        %v1208 = vcvt.s32.f32 %v1080
        %v1209 = vcvt.s32.f32 %v1081
        %v1210 = vcvt.s32.f32 %v1082
        %v1211 = vcvt.s32.f32 %v1083
        %v1212 = vcvt.s32.f32 %v1084
        %v1213 = vcvt.s32.f32 %v1085
        %v1214 = vcvt.s32.f32 %v1086
        %v1215 = vcvt.s32.f32 %v1087
        %v1216 = vcvt.s32.f32 %v1088
        %v1217 = vcvt.s32.f32 %v1089
        %v1218 = vcvt.s32.f32 %v1090
        %v1219 = vcvt.s32.f32 %v1091
        %v1220 = vcvt.s32.f32 %v1092
        %v1221 = vcvt.s32.f32 %v1093
        %v1222 = vcvt.s32.f32 %v1094
        %v1223 = vcvt.s32.f32 %v1095
        %v1224 = vcvt.s32.f32 %v1096
        %v1225 = vcvt.s32.f32 %v1097
        %v1226 = vcvt.s32.f32 %v1098
        %v1227 = vcvt.s32.f32 %v1099
        %v1228 = vcvt.s32.f32 %v1100
        %v1229 = vcvt.s32.f32 %v1101
        %v1230 = vcvt.s32.f32 %v1102
        %v1231 = vcvt.s32.f32 %v1103
        %v1232 = vcvt.s32.f32 %v1104
        %v1233 = vcvt.s32.f32 %v1105
        %v1234 = vcvt.s32.f32 %v1106
        %v1235 = vcvt.s32.f32 %v1107
        %v1236 = vcvt.s32.f32 %v1108
        %v1237 = vcvt.s32.f32 %v1109
        %v1238 = vcvt.s32.f32 %v1110
        %v1239 = vcvt.s32.f32 %v1111
        %v1240 = vcvt.s32.f32 %v1112
        %v1241 = vcvt.s32.f32 %v1113
        %v1242 = vcvt.s32.f32 %v1114
        %v1243 = vcvt.s32.f32 %v1115
        %v1244 = vcvt.s32.f32 %v1116
        %v1245 = vcvt.s32.f32 %v1117
        %v1246 = vcvt.s32.f32 %v1118
        %v1247 = vcvt.s32.f32 %v1119
        %v1248 = vcvt.s32.f32 %v1120
        %v1249 = vcvt.s32.f32 %v1121
        %v1250 = vcvt.s32.f32 %v1122
        %v1251 = vcvt.s32.f32 %v1123
        %v1252 = vcvt.s32.f32 %v1124
        %v1253 = vcvt.s32.f32 %v1125
        %v1254 = vcvt.s32.f32 %v1126
        %v1255 = vcvt.s32.f32 %v1127
        %v1256 = vcvt.s32.f32 %v1128
        %v1257 = vcvt.s32.f32 %v1129
        %v1258 = vcvt.s32.f32 %v1130
        %v1259 = vcvt.s32.f32 %v1131
        %v1260 = vcvt.s32.f32 %v1132
        %v1261 = vcvt.s32.f32 %v1133
        %v1262 = vcvt.s32.f32 %v1134
        %v1263 = vcvt.s32.f32 %v1135
        %v1264 = vcvt.s32.f32 %v1136
        %v1265 = vcvt.s32.f32 %v1137
        %v1266 = vcvt.s32.f32 %v1138
        %v1267 = vcvt.s32.f32 %v1139
        %v1268 = vcvt.s32.f32 %v1140
        %v1269 = vcvt.s32.f32 %v1141
        %v1270 = vcvt.s32.f32 %v1142
        %v1271 = vcvt.s32.f32 %v1143
        %v1272 = vcvt.s32.f32 %v1144
        %v1273 = vcvt.s32.f32 %v1145
        %v1274 = vcvt.s32.f32 %v1146
        %v1275 = vcvt.s32.f32 %v1147
        %v1276 = vcvt.s32.f32 %v1148
        %v1277 = vcvt.s32.f32 %v1149
        %v1278 = vcvt.s32.f32 %v1150
        %v1279 = vcvt.s32.f32 %v1151
        %v1280 = vcvt.s32.f32 %v1152
        %v1281 = vcvt.s32.f32 %v1153
        %v1282 = vcvt.s32.f32 %v1154
        %v1283 = vcvt.s32.f32 %v1155
        %v1284 = vcvt.s32.f32 %v1156
        %v1285 = vcvt.s32.f32 %v1157
        %v1286 = vcvt.s32.f32 %v1158
        %v1287 = vcvt.s32.f32 %v1159
        %v1288 = vcvt.s32.f32 %v1160
        %v1289 = vcvt.s32.f32 %v1161
        %v1290 = vcvt.s32.f32 %v1162
        %v1291 = vcvt.s32.f32 %v1163
        %v1292 = vcvt.s32.f32 %v1164
        %v1293 = vcvt.s32.f32 %v1165
        %v1294 = vcvt.s32.f32 %v1166
        %v1295 = vcvt.s32.f32 %v1167
        %v1296 = vcvt.s32.f32 %v1168
        %v1297 = vcvt.s32.f32 %v1169
        %v1298 = vcvt.s32.f32 %v1170
        %v1299 = vcvt.s32.f32 %v1171
        %v1300 = vcvt.s32.f32 %v1172
        %v1301 = vcvt.s32.f32 %v1173
        %v1302 = vcvt.s32.f32 %v1174
        %v1303 = vcvt.s32.f32 %v1175
        %v1304 = vcvt.s32.f32 %v1176
        %v1305 = vcvt.s32.f32 %v1177
        %v1306 = vcvt.s32.f32 %v1178
        %v1307 = vcvt.s32.f32 %v1179
        %v1308 = vcvt.s32.f32 %v1180
        %v1309 = vcvt.s32.f32 %v1181
        %v1310 = vcvt.s32.f32 %v1182
        %v1311 = vcvt.s32.f32 %v1183
        %v1312 = vcvt.s32.f32 %v1184
        %v1313 = vcvt.s32.f32 %v1185
        %v1314 = vcvt.s32.f32 %v1186
        %v1315 = vcvt.s32.f32 %v1187
        %v1316 = vcvt.s32.f32 %v1188
        %v1317 = vcvt.s32.f32 %v1189
        %v1318 = vcvt.s32.f32 %v1190
        %v1319 = vcvt.s32.f32 %v1191
        %v1320 = vcvt.s32.f32 %v1192
        %v1321 = vlaneseq
        %v1322 = vshrl.u32 %v1321, 7
        %v1323 = vsub.s32 0, %v1322
        %v1324 = vrot.slane %v684, %v1323
        %v1325 = vlaneseq
        %v1326 = vshrl.u32 %v1325, 7
        %v1327 = vsub.s32 0, %v1326
        %v1328 = vrot.slane %v716, %v1327
        %v1329 = vlaneseq
        %v1330 = vshrl.u32 %v1329, 7
        %v1331 = vsub.s32 0, %v1330
        %v1332 = vrot.slane %v717, %v1331
        %v1333 = vlaneseq
        %v1334 = vshrl.u32 %v1333, 7
        %v1335 = vsub.s32 0, %v1334
        %v1336 = vrot.slane %v718, %v1335
        %v1337 = vlaneseq
        %v1338 = vshrl.u32 %v1337, 7
        %v1339 = vsub.s32 0, %v1338
        %v1340 = vrot.slane %v719, %v1339
        %v1341 = vlaneseq
        %v1342 = vshrl.u32 %v1341, 7
        %v1343 = vsub.s32 0, %v1342
        %v1344 = vrot.slane %v720, %v1343
        %v1345 = vlaneseq
        %v1346 = vshrl.u32 %v1345, 7
        %v1347 = vsub.s32 0, %v1346
        %v1348 = vrot.slane %v721, %v1347
        %v1349 = vlaneseq
        %v1350 = vshrl.u32 %v1349, 7
        %v1351 = vsub.s32 0, %v1350
        %v1352 = vrot.slane %v722, %v1351
        %v1353 = vlaneseq
        %v1354 = vshrl.u32 %v1353, 7
        %v1355 = vsub.s32 0, %v1354
        %v1356 = vrot.slane %v685, %v1355
        %v1357 = vlaneseq
        %v1358 = vshrl.u32 %v1357, 7
        %v1359 = vsub.s32 0, %v1358
        %v1360 = vrot.slane %v723, %v1359
        %v1361 = vlaneseq
        %v1362 = vshrl.u32 %v1361, 7
        %v1363 = vsub.s32 0, %v1362
        %v1364 = vrot.slane %v724, %v1363
        %v1365 = vlaneseq
        %v1366 = vshrl.u32 %v1365, 7
        %v1367 = vsub.s32 0, %v1366
        %v1368 = vrot.slane %v725, %v1367
        %v1369 = vlaneseq
        %v1370 = vshrl.u32 %v1369, 7
        %v1371 = vsub.s32 0, %v1370
        %v1372 = vrot.slane %v726, %v1371
        %v1373 = vlaneseq
        %v1374 = vshrl.u32 %v1373, 7
        %v1375 = vsub.s32 0, %v1374
        %v1376 = vrot.slane %v727, %v1375
        %v1377 = vlaneseq
        %v1378 = vshrl.u32 %v1377, 7
        %v1379 = vsub.s32 0, %v1378
        %v1380 = vrot.slane %v728, %v1379
        %v1381 = vlaneseq
        %v1382 = vshrl.u32 %v1381, 7
        %v1383 = vsub.s32 0, %v1382
        %v1384 = vrot.slane %v729, %v1383
        %v1385 = vlaneseq
        %v1386 = vshrl.u32 %v1385, 7
        %v1387 = vsub.s32 0, %v1386
        %v1388 = vrot.slane %v686, %v1387
        %v1389 = vlaneseq
        %v1390 = vshrl.u32 %v1389, 7
        %v1391 = vsub.s32 0, %v1390
        %v1392 = vrot.slane %v730, %v1391
        %v1393 = vlaneseq
        %v1394 = vshrl.u32 %v1393, 7
        %v1395 = vsub.s32 0, %v1394
        %v1396 = vrot.slane %v731, %v1395
        %v1397 = vlaneseq
        %v1398 = vshrl.u32 %v1397, 7
        %v1399 = vsub.s32 0, %v1398
        %v1400 = vrot.slane %v732, %v1399
        %v1401 = vlaneseq
        %v1402 = vshrl.u32 %v1401, 7
        %v1403 = vsub.s32 0, %v1402
        %v1404 = vrot.slane %v733, %v1403
        %v1405 = vlaneseq
        %v1406 = vshrl.u32 %v1405, 7
        %v1407 = vsub.s32 0, %v1406
        %v1408 = vrot.slane %v734, %v1407
        %v1409 = vlaneseq
        %v1410 = vshrl.u32 %v1409, 7
        %v1411 = vsub.s32 0, %v1410
        %v1412 = vrot.slane %v735, %v1411
        %v1413 = vlaneseq
        %v1414 = vshrl.u32 %v1413, 7
        %v1415 = vsub.s32 0, %v1414
        %v1416 = vrot.slane %v736, %v1415
        %v1417 = vlaneseq
        %v1418 = vshrl.u32 %v1417, 7
        %v1419 = vsub.s32 0, %v1418
        %v1420 = vrot.slane %v687, %v1419
        %v1421 = vlaneseq
        %v1422 = vshrl.u32 %v1421, 7
        %v1423 = vsub.s32 0, %v1422
        %v1424 = vrot.slane %v737, %v1423
        %v1425 = vlaneseq
        %v1426 = vshrl.u32 %v1425, 7
        %v1427 = vsub.s32 0, %v1426
        %v1428 = vrot.slane %v738, %v1427
        %v1429 = vlaneseq
        %v1430 = vshrl.u32 %v1429, 7
        %v1431 = vsub.s32 0, %v1430
        %v1432 = vrot.slane %v739, %v1431
        %v1433 = vlaneseq
        %v1434 = vshrl.u32 %v1433, 7
        %v1435 = vsub.s32 0, %v1434
        %v1436 = vrot.slane %v740, %v1435
        %v1437 = vlaneseq
        %v1438 = vshrl.u32 %v1437, 7
        %v1439 = vsub.s32 0, %v1438
        %v1440 = vrot.slane %v741, %v1439
        %v1441 = vlaneseq
        %v1442 = vshrl.u32 %v1441, 7
        %v1443 = vsub.s32 0, %v1442
        %v1444 = vrot.slane %v742, %v1443
        %v1445 = vlaneseq
        %v1446 = vshrl.u32 %v1445, 7
        %v1447 = vsub.s32 0, %v1446
        %v1448 = vrot.slane %v743, %v1447
        %vm1449 = vcmp.eq.s32.totalorder %v1324, %v805
        %vm1450 = vcmp.eq.s32.totalorder %v1328, %v805
        %vm1451 = vcmp.eq.s32.totalorder %v1332, %v805
        %vm1452 = vcmp.eq.s32.totalorder %v1336, %v805
        %vm1453 = vcmp.eq.s32.totalorder %v1340, %v805
        %vm1454 = vcmp.eq.s32.totalorder %v1344, %v805
        %vm1455 = vcmp.eq.s32.totalorder %v1348, %v805
        %vm1456 = vcmp.eq.s32.totalorder %v1352, %v805
        %vm1457 = vcmp.eq.s32.totalorder %v1356, %v805
        %vm1458 = vcmp.eq.s32.totalorder %v1360, %v805
        %vm1459 = vcmp.eq.s32.totalorder %v1364, %v805
        %vm1460 = vcmp.eq.s32.totalorder %v1368, %v805
        %vm1461 = vcmp.eq.s32.totalorder %v1372, %v805
        %vm1462 = vcmp.eq.s32.totalorder %v1376, %v805
        %vm1463 = vcmp.eq.s32.totalorder %v1380, %v805
        %vm1464 = vcmp.eq.s32.totalorder %v1384, %v805
        %vm1465 = vcmp.eq.s32.totalorder %v1388, %v805
        %vm1466 = vcmp.eq.s32.totalorder %v1392, %v805
        %vm1467 = vcmp.eq.s32.totalorder %v1396, %v805
        %vm1468 = vcmp.eq.s32.totalorder %v1400, %v805
        %vm1469 = vcmp.eq.s32.totalorder %v1404, %v805
        %vm1470 = vcmp.eq.s32.totalorder %v1408, %v805
        %vm1471 = vcmp.eq.s32.totalorder %v1412, %v805
        %vm1472 = vcmp.eq.s32.totalorder %v1416, %v805
        %vm1473 = vcmp.eq.s32.totalorder %v1420, %v805
        %vm1474 = vcmp.eq.s32.totalorder %v1424, %v805
        %vm1475 = vcmp.eq.s32.totalorder %v1428, %v805
        %vm1476 = vcmp.eq.s32.totalorder %v1432, %v805
        %vm1477 = vcmp.eq.s32.totalorder %v1436, %v805
        %vm1478 = vcmp.eq.s32.totalorder %v1440, %v805
        %vm1479 = vcmp.eq.s32.totalorder %v1444, %v805
        %vm1480 = vcmp.eq.s32.totalorder %v1448, %v805
        %vm1481 = vcmp.eq.s32.totalorder %v1324, %v806
        %vm1482 = vcmp.eq.s32.totalorder %v1328, %v806
        %vm1483 = vcmp.eq.s32.totalorder %v1332, %v806
        %vm1484 = vcmp.eq.s32.totalorder %v1336, %v806
        %vm1485 = vcmp.eq.s32.totalorder %v1340, %v806
        %vm1486 = vcmp.eq.s32.totalorder %v1344, %v806
        %vm1487 = vcmp.eq.s32.totalorder %v1348, %v806
        %vm1488 = vcmp.eq.s32.totalorder %v1352, %v806
        %vm1489 = vcmp.eq.s32.totalorder %v1356, %v806
        %vm1490 = vcmp.eq.s32.totalorder %v1360, %v806
        %vm1491 = vcmp.eq.s32.totalorder %v1364, %v806
        %vm1492 = vcmp.eq.s32.totalorder %v1368, %v806
        %vm1493 = vcmp.eq.s32.totalorder %v1372, %v806
        %vm1494 = vcmp.eq.s32.totalorder %v1376, %v806
        %vm1495 = vcmp.eq.s32.totalorder %v1380, %v806
        %vm1496 = vcmp.eq.s32.totalorder %v1384, %v806
        %vm1497 = vcmp.eq.s32.totalorder %v1388, %v806
        %vm1498 = vcmp.eq.s32.totalorder %v1392, %v806
        %vm1499 = vcmp.eq.s32.totalorder %v1396, %v806
        %vm1500 = vcmp.eq.s32.totalorder %v1400, %v806
        %vm1501 = vcmp.eq.s32.totalorder %v1404, %v806
        %vm1502 = vcmp.eq.s32.totalorder %v1408, %v806
        %vm1503 = vcmp.eq.s32.totalorder %v1412, %v806
        %vm1504 = vcmp.eq.s32.totalorder %v1416, %v806
        %vm1505 = vcmp.eq.s32.totalorder %v1420, %v806
        %vm1506 = vcmp.eq.s32.totalorder %v1424, %v806
        %vm1507 = vcmp.eq.s32.totalorder %v1428, %v806
        %vm1508 = vcmp.eq.s32.totalorder %v1432, %v806
        %vm1509 = vcmp.eq.s32.totalorder %v1436, %v806
        %vm1510 = vcmp.eq.s32.totalorder %v1440, %v806
        %vm1511 = vcmp.eq.s32.totalorder %v1444, %v806
        %vm1512 = vcmp.eq.s32.totalorder %v1448, %v806
        %vm1513 = vcmp.eq.s32.totalorder %v1324, %v807
        %vm1514 = vcmp.eq.s32.totalorder %v1328, %v807
        %vm1515 = vcmp.eq.s32.totalorder %v1332, %v807
        %vm1516 = vcmp.eq.s32.totalorder %v1336, %v807
        %vm1517 = vcmp.eq.s32.totalorder %v1340, %v807
        %vm1518 = vcmp.eq.s32.totalorder %v1344, %v807
        %vm1519 = vcmp.eq.s32.totalorder %v1348, %v807
        %vm1520 = vcmp.eq.s32.totalorder %v1352, %v807
        %vm1521 = vcmp.eq.s32.totalorder %v1356, %v807
        %vm1522 = vcmp.eq.s32.totalorder %v1360, %v807
        %vm1523 = vcmp.eq.s32.totalorder %v1364, %v807
        %vm1524 = vcmp.eq.s32.totalorder %v1368, %v807
        %vm1525 = vcmp.eq.s32.totalorder %v1372, %v807
        %vm1526 = vcmp.eq.s32.totalorder %v1376, %v807
        %vm1527 = vcmp.eq.s32.totalorder %v1380, %v807
        %vm1528 = vcmp.eq.s32.totalorder %v1384, %v807
        %vm1529 = vcmp.eq.s32.totalorder %v1388, %v807
        %vm1530 = vcmp.eq.s32.totalorder %v1392, %v807
        %vm1531 = vcmp.eq.s32.totalorder %v1396, %v807
        %vm1532 = vcmp.eq.s32.totalorder %v1400, %v807
        %vm1533 = vcmp.eq.s32.totalorder %v1404, %v807
        %vm1534 = vcmp.eq.s32.totalorder %v1408, %v807
        %vm1535 = vcmp.eq.s32.totalorder %v1412, %v807
        %vm1536 = vcmp.eq.s32.totalorder %v1416, %v807
        %vm1537 = vcmp.eq.s32.totalorder %v1420, %v807
        %vm1538 = vcmp.eq.s32.totalorder %v1424, %v807
        %vm1539 = vcmp.eq.s32.totalorder %v1428, %v807
        %vm1540 = vcmp.eq.s32.totalorder %v1432, %v807
        %vm1541 = vcmp.eq.s32.totalorder %v1436, %v807
        %vm1542 = vcmp.eq.s32.totalorder %v1440, %v807
        %vm1543 = vcmp.eq.s32.totalorder %v1444, %v807
        %vm1544 = vcmp.eq.s32.totalorder %v1448, %v807
        %vm1545 = vcmp.eq.s32.totalorder %v1324, %v808
        %vm1546 = vcmp.eq.s32.totalorder %v1328, %v808
        %vm1547 = vcmp.eq.s32.totalorder %v1332, %v808
        %vm1548 = vcmp.eq.s32.totalorder %v1336, %v808
        %vm1549 = vcmp.eq.s32.totalorder %v1340, %v808
        %vm1550 = vcmp.eq.s32.totalorder %v1344, %v808
        %vm1551 = vcmp.eq.s32.totalorder %v1348, %v808
        %vm1552 = vcmp.eq.s32.totalorder %v1352, %v808
        %vm1553 = vcmp.eq.s32.totalorder %v1356, %v808
        %vm1554 = vcmp.eq.s32.totalorder %v1360, %v808
        %vm1555 = vcmp.eq.s32.totalorder %v1364, %v808
        %vm1556 = vcmp.eq.s32.totalorder %v1368, %v808
        %vm1557 = vcmp.eq.s32.totalorder %v1372, %v808
        %vm1558 = vcmp.eq.s32.totalorder %v1376, %v808
        %vm1559 = vcmp.eq.s32.totalorder %v1380, %v808
        %vm1560 = vcmp.eq.s32.totalorder %v1384, %v808
        %vm1561 = vcmp.eq.s32.totalorder %v1388, %v808
        %vm1562 = vcmp.eq.s32.totalorder %v1392, %v808
        %vm1563 = vcmp.eq.s32.totalorder %v1396, %v808
        %vm1564 = vcmp.eq.s32.totalorder %v1400, %v808
        %vm1565 = vcmp.eq.s32.totalorder %v1404, %v808
        %vm1566 = vcmp.eq.s32.totalorder %v1408, %v808
        %vm1567 = vcmp.eq.s32.totalorder %v1412, %v808
        %vm1568 = vcmp.eq.s32.totalorder %v1416, %v808
        %vm1569 = vcmp.eq.s32.totalorder %v1420, %v808
        %vm1570 = vcmp.eq.s32.totalorder %v1424, %v808
        %vm1571 = vcmp.eq.s32.totalorder %v1428, %v808
        %vm1572 = vcmp.eq.s32.totalorder %v1432, %v808
        %vm1573 = vcmp.eq.s32.totalorder %v1436, %v808
        %vm1574 = vcmp.eq.s32.totalorder %v1440, %v808
        %vm1575 = vcmp.eq.s32.totalorder %v1444, %v808
        %vm1576 = vcmp.eq.s32.totalorder %v1448, %v808
        %v1577 = vsel %vm1449, 1, 0
        %v1578 = vsel %vm1450, 1, 0
        %v1579 = vsel %vm1451, 1, 0
        %v1580 = vsel %vm1452, 1, 0
        %v1581 = vsel %vm1453, 1, 0
        %v1582 = vsel %vm1454, 1, 0
        %v1583 = vsel %vm1455, 1, 0
        %v1584 = vsel %vm1456, 1, 0
        %v1585 = vsel %vm1457, 1, 0
        %v1586 = vsel %vm1458, 1, 0
        %v1587 = vsel %vm1459, 1, 0
        %v1588 = vsel %vm1460, 1, 0
        %v1589 = vsel %vm1461, 1, 0
        %v1590 = vsel %vm1462, 1, 0
        %v1591 = vsel %vm1463, 1, 0
        %v1592 = vsel %vm1464, 1, 0
        %v1593 = vsel %vm1465, 1, 0
        %v1594 = vsel %vm1466, 1, 0
        %v1595 = vsel %vm1467, 1, 0
        %v1596 = vsel %vm1468, 1, 0
        %v1597 = vsel %vm1469, 1, 0
        %v1598 = vsel %vm1470, 1, 0
        %v1599 = vsel %vm1471, 1, 0
        %v1600 = vsel %vm1472, 1, 0
        %v1601 = vsel %vm1473, 1, 0
        %v1602 = vsel %vm1474, 1, 0
        %v1603 = vsel %vm1475, 1, 0
        %v1604 = vsel %vm1476, 1, 0
        %v1605 = vsel %vm1477, 1, 0
        %v1606 = vsel %vm1478, 1, 0
        %v1607 = vsel %vm1479, 1, 0
        %v1608 = vsel %vm1480, 1, 0
        %v1609 = vsel %vm1481, 1, 0
        %v1610 = vsel %vm1482, 1, 0
        %v1611 = vsel %vm1483, 1, 0
        %v1612 = vsel %vm1484, 1, 0
        %v1613 = vsel %vm1485, 1, 0
        %v1614 = vsel %vm1486, 1, 0
        %v1615 = vsel %vm1487, 1, 0
        %v1616 = vsel %vm1488, 1, 0
        %v1617 = vsel %vm1489, 1, 0
        %v1618 = vsel %vm1490, 1, 0
        %v1619 = vsel %vm1491, 1, 0
        %v1620 = vsel %vm1492, 1, 0
        %v1621 = vsel %vm1493, 1, 0
        %v1622 = vsel %vm1494, 1, 0
        %v1623 = vsel %vm1495, 1, 0
        %v1624 = vsel %vm1496, 1, 0
        %v1625 = vsel %vm1497, 1, 0
        %v1626 = vsel %vm1498, 1, 0
        %v1627 = vsel %vm1499, 1, 0
        %v1628 = vsel %vm1500, 1, 0
        %v1629 = vsel %vm1501, 1, 0
        %v1630 = vsel %vm1502, 1, 0
        %v1631 = vsel %vm1503, 1, 0
        %v1632 = vsel %vm1504, 1, 0
        %v1633 = vsel %vm1505, 1, 0
        %v1634 = vsel %vm1506, 1, 0
        %v1635 = vsel %vm1507, 1, 0
        %v1636 = vsel %vm1508, 1, 0
        %v1637 = vsel %vm1509, 1, 0
        %v1638 = vsel %vm1510, 1, 0
        %v1639 = vsel %vm1511, 1, 0
        %v1640 = vsel %vm1512, 1, 0
        %v1641 = vsel %vm1513, 1, 0
        %v1642 = vsel %vm1514, 1, 0
        %v1643 = vsel %vm1515, 1, 0
        %v1644 = vsel %vm1516, 1, 0
        %v1645 = vsel %vm1517, 1, 0
        %v1646 = vsel %vm1518, 1, 0
        %v1647 = vsel %vm1519, 1, 0
        %v1648 = vsel %vm1520, 1, 0
        %v1649 = vsel %vm1521, 1, 0
        %v1650 = vsel %vm1522, 1, 0
        %v1651 = vsel %vm1523, 1, 0
        %v1652 = vsel %vm1524, 1, 0
        %v1653 = vsel %vm1525, 1, 0
        %v1654 = vsel %vm1526, 1, 0
        %v1655 = vsel %vm1527, 1, 0
        %v1656 = vsel %vm1528, 1, 0
        %v1657 = vsel %vm1529, 1, 0
        %v1658 = vsel %vm1530, 1, 0
        %v1659 = vsel %vm1531, 1, 0
        %v1660 = vsel %vm1532, 1, 0
        %v1661 = vsel %vm1533, 1, 0
        %v1662 = vsel %vm1534, 1, 0
        %v1663 = vsel %vm1535, 1, 0
        %v1664 = vsel %vm1536, 1, 0
        %v1665 = vsel %vm1537, 1, 0
        %v1666 = vsel %vm1538, 1, 0
        %v1667 = vsel %vm1539, 1, 0
        %v1668 = vsel %vm1540, 1, 0
        %v1669 = vsel %vm1541, 1, 0
        %v1670 = vsel %vm1542, 1, 0
        %v1671 = vsel %vm1543, 1, 0
        %v1672 = vsel %vm1544, 1, 0
        %v1673 = vsel %vm1545, 1, 0
        %v1674 = vsel %vm1546, 1, 0
        %v1675 = vsel %vm1547, 1, 0
        %v1676 = vsel %vm1548, 1, 0
        %v1677 = vsel %vm1549, 1, 0
        %v1678 = vsel %vm1550, 1, 0
        %v1679 = vsel %vm1551, 1, 0
        %v1680 = vsel %vm1552, 1, 0
        %v1681 = vsel %vm1553, 1, 0
        %v1682 = vsel %vm1554, 1, 0
        %v1683 = vsel %vm1555, 1, 0
        %v1684 = vsel %vm1556, 1, 0
        %v1685 = vsel %vm1557, 1, 0
        %v1686 = vsel %vm1558, 1, 0
        %v1687 = vsel %vm1559, 1, 0
        %v1688 = vsel %vm1560, 1, 0
        %v1689 = vsel %vm1561, 1, 0
        %v1690 = vsel %vm1562, 1, 0
        %v1691 = vsel %vm1563, 1, 0
        %v1692 = vsel %vm1564, 1, 0
        %v1693 = vsel %vm1565, 1, 0
        %v1694 = vsel %vm1566, 1, 0
        %v1695 = vsel %vm1567, 1, 0
        %v1696 = vsel %vm1568, 1, 0
        %v1697 = vsel %vm1569, 1, 0
        %v1698 = vsel %vm1570, 1, 0
        %v1699 = vsel %vm1571, 1, 0
        %v1700 = vsel %vm1572, 1, 0
        %v1701 = vsel %vm1573, 1, 0
        %v1702 = vsel %vm1574, 1, 0
        %v1703 = vsel %vm1575, 1, 0
        %v1704 = vsel %vm1576, 1, 0
        %v1705 = vcvt.s32.f32 %v1577
        %v1706 = vcvt.s32.f32 %v1578
        %v1707 = vcvt.s32.f32 %v1579
        %v1708 = vcvt.s32.f32 %v1580
        %v1709 = vcvt.s32.f32 %v1581
        %v1710 = vcvt.s32.f32 %v1582
        %v1711 = vcvt.s32.f32 %v1583
        %v1712 = vcvt.s32.f32 %v1584
        %v1713 = vcvt.s32.f32 %v1585
        %v1714 = vcvt.s32.f32 %v1586
        %v1715 = vcvt.s32.f32 %v1587
        %v1716 = vcvt.s32.f32 %v1588
        %v1717 = vcvt.s32.f32 %v1589
        %v1718 = vcvt.s32.f32 %v1590
        %v1719 = vcvt.s32.f32 %v1591
        %v1720 = vcvt.s32.f32 %v1592
        %v1721 = vcvt.s32.f32 %v1593
        %v1722 = vcvt.s32.f32 %v1594
        %v1723 = vcvt.s32.f32 %v1595
        %v1724 = vcvt.s32.f32 %v1596
        %v1725 = vcvt.s32.f32 %v1597
        %v1726 = vcvt.s32.f32 %v1598
        %v1727 = vcvt.s32.f32 %v1599
        %v1728 = vcvt.s32.f32 %v1600
        %v1729 = vcvt.s32.f32 %v1601
        %v1730 = vcvt.s32.f32 %v1602
        %v1731 = vcvt.s32.f32 %v1603
        %v1732 = vcvt.s32.f32 %v1604
        %v1733 = vcvt.s32.f32 %v1605
        %v1734 = vcvt.s32.f32 %v1606
        %v1735 = vcvt.s32.f32 %v1607
        %v1736 = vcvt.s32.f32 %v1608
        %v1737 = vcvt.s32.f32 %v1609
        %v1738 = vcvt.s32.f32 %v1610
        %v1739 = vcvt.s32.f32 %v1611
        %v1740 = vcvt.s32.f32 %v1612
        %v1741 = vcvt.s32.f32 %v1613
        %v1742 = vcvt.s32.f32 %v1614
        %v1743 = vcvt.s32.f32 %v1615
        %v1744 = vcvt.s32.f32 %v1616
        %v1745 = vcvt.s32.f32 %v1617
        %v1746 = vcvt.s32.f32 %v1618
        %v1747 = vcvt.s32.f32 %v1619
        %v1748 = vcvt.s32.f32 %v1620
        %v1749 = vcvt.s32.f32 %v1621
        %v1750 = vcvt.s32.f32 %v1622
        %v1751 = vcvt.s32.f32 %v1623
        %v1752 = vcvt.s32.f32 %v1624
        %v1753 = vcvt.s32.f32 %v1625
        %v1754 = vcvt.s32.f32 %v1626
        %v1755 = vcvt.s32.f32 %v1627
        %v1756 = vcvt.s32.f32 %v1628
        %v1757 = vcvt.s32.f32 %v1629
        %v1758 = vcvt.s32.f32 %v1630
        %v1759 = vcvt.s32.f32 %v1631
        %v1760 = vcvt.s32.f32 %v1632
        %v1761 = vcvt.s32.f32 %v1633
        %v1762 = vcvt.s32.f32 %v1634
        %v1763 = vcvt.s32.f32 %v1635
        %v1764 = vcvt.s32.f32 %v1636
        %v1765 = vcvt.s32.f32 %v1637
        %v1766 = vcvt.s32.f32 %v1638
        %v1767 = vcvt.s32.f32 %v1639
        %v1768 = vcvt.s32.f32 %v1640
        %v1769 = vcvt.s32.f32 %v1641
        %v1770 = vcvt.s32.f32 %v1642
        %v1771 = vcvt.s32.f32 %v1643
        %v1772 = vcvt.s32.f32 %v1644
        %v1773 = vcvt.s32.f32 %v1645
        %v1774 = vcvt.s32.f32 %v1646
        %v1775 = vcvt.s32.f32 %v1647
        %v1776 = vcvt.s32.f32 %v1648
        %v1777 = vcvt.s32.f32 %v1649
        %v1778 = vcvt.s32.f32 %v1650
        %v1779 = vcvt.s32.f32 %v1651
        %v1780 = vcvt.s32.f32 %v1652
        %v1781 = vcvt.s32.f32 %v1653
        %v1782 = vcvt.s32.f32 %v1654
        %v1783 = vcvt.s32.f32 %v1655
        %v1784 = vcvt.s32.f32 %v1656
        %v1785 = vcvt.s32.f32 %v1657
        %v1786 = vcvt.s32.f32 %v1658
        %v1787 = vcvt.s32.f32 %v1659
        %v1788 = vcvt.s32.f32 %v1660
        %v1789 = vcvt.s32.f32 %v1661
        %v1790 = vcvt.s32.f32 %v1662
        %v1791 = vcvt.s32.f32 %v1663
        %v1792 = vcvt.s32.f32 %v1664
        %v1793 = vcvt.s32.f32 %v1665
        %v1794 = vcvt.s32.f32 %v1666
        %v1795 = vcvt.s32.f32 %v1667
        %v1796 = vcvt.s32.f32 %v1668
        %v1797 = vcvt.s32.f32 %v1669
        %v1798 = vcvt.s32.f32 %v1670
        %v1799 = vcvt.s32.f32 %v1671
        %v1800 = vcvt.s32.f32 %v1672
        %v1801 = vcvt.s32.f32 %v1673
        %v1802 = vcvt.s32.f32 %v1674
        %v1803 = vcvt.s32.f32 %v1675
        %v1804 = vcvt.s32.f32 %v1676
        %v1805 = vcvt.s32.f32 %v1677
        %v1806 = vcvt.s32.f32 %v1678
        %v1807 = vcvt.s32.f32 %v1679
        %v1808 = vcvt.s32.f32 %v1680
        %v1809 = vcvt.s32.f32 %v1681
        %v1810 = vcvt.s32.f32 %v1682
        %v1811 = vcvt.s32.f32 %v1683
        %v1812 = vcvt.s32.f32 %v1684
        %v1813 = vcvt.s32.f32 %v1685
        %v1814 = vcvt.s32.f32 %v1686
        %v1815 = vcvt.s32.f32 %v1687
        %v1816 = vcvt.s32.f32 %v1688
        %v1817 = vcvt.s32.f32 %v1689
        %v1818 = vcvt.s32.f32 %v1690
        %v1819 = vcvt.s32.f32 %v1691
        %v1820 = vcvt.s32.f32 %v1692
        %v1821 = vcvt.s32.f32 %v1693
        %v1822 = vcvt.s32.f32 %v1694
        %v1823 = vcvt.s32.f32 %v1695
        %v1824 = vcvt.s32.f32 %v1696
        %v1825 = vcvt.s32.f32 %v1697
        %v1826 = vcvt.s32.f32 %v1698
        %v1827 = vcvt.s32.f32 %v1699
        %v1828 = vcvt.s32.f32 %v1700
        %v1829 = vcvt.s32.f32 %v1701
        %v1830 = vcvt.s32.f32 %v1702
        %v1831 = vcvt.s32.f32 %v1703
        %v1832 = vcvt.s32.f32 %v1704
        %v1834 = vsel %vm423, %v419, 0
        %v1837 = vsel %vm423, %v420, 0
        %v1840 = vsel %vm423, %v421, 0
        %v1843 = vsel %vm423, %v422, 0
        %1845 = vmatprep.subr.mxu0 %v1194
        %1846 = vmatpush1.msra.mxu0 %v1193
        %1847 = vmatprep.subr.mxu0 %v1226
        %1848 = vmatpush1.msra.mxu0 %v1225
        %1849 = vmatprep.subr.mxu0 %v1258
        %1850 = vmatpush1.msra.mxu0 %v1257
        %1851 = vmatprep.subr.mxu0 %v1290
        %1852 = vmatpush1.msra.mxu0 %v1289
        %1853 = vmatprep.subr.mxu0 0.0
        %1854 = vmatpush1.msra.mxu0 0.0
        %1855 = vmatprep.subr.mxu0 0.0
        %1856 = vmatpush1.msra.mxu0 0.0
        %1857 = vmatprep.subr.mxu0 0.0
        %1858 = vmatpush1.msra.mxu0 0.0
        %1859 = vmatprep.subr.mxu0 0.0
        %1860 = vmatpush1.msra.mxu0 0.0
        %1861 = vmatprep.subr.mxu0 0.0
        %1862 = vmatpush1.msra.mxu0 0.0
        %1863 = vmatprep.subr.mxu0 0.0
        %1864 = vmatpush1.msra.mxu0 0.0
        %1865 = vmatprep.subr.mxu0 0.0
        %1866 = vmatpush1.msra.mxu0 0.0
        %1867 = vmatprep.subr.mxu0 0.0
        %1868 = vmatpush1.msra.mxu0 0.0
        %1869 = vmatprep.subr.mxu0 0.0
        %1870 = vmatpush1.msra.mxu0 0.0
        %1871 = vmatprep.subr.mxu0 0.0
        %1872 = vmatpush1.msra.mxu0 0.0
        %1873 = vmatprep.subr.mxu0 0.0
        %1874 = vmatpush1.msra.mxu0 0.0
        %1875 = vmatprep.subr.mxu0 0.0
        %1876 = vmatpush1.msra.mxu0 0.0
        %1877 = vmatprep.subr.mxu0 0.0
        %1878 = vmatpush1.msra.mxu0 0.0
        %1879 = vmatprep.subr.mxu0 0.0
        %1880 = vmatpush1.msra.mxu0 0.0
        %1881 = vmatprep.subr.mxu0 0.0
        %1882 = vmatpush1.msra.mxu0 0.0
        %1883 = vmatprep.subr.mxu0 0.0
        %1884 = vmatpush1.msra.mxu0 0.0
        %1885 = vmatprep.subr.mxu0 0.0
        %1886 = vmatpush1.msra.mxu0 0.0
        %1887 = vmatprep.subr.mxu0 0.0
        %1888 = vmatpush1.msra.mxu0 0.0
        %1889 = vmatprep.subr.mxu0 0.0
        %1890 = vmatpush1.msra.mxu0 0.0
        %1891 = vmatprep.subr.mxu0 0.0
        %1892 = vmatpush1.msra.mxu0 0.0
        %1893 = vmatprep.subr.mxu0 0.0
        %1894 = vmatpush1.msra.mxu0 0.0
        %1895 = vmatprep.subr.mxu0 0.0
        %1896 = vmatpush1.msra.mxu0 0.0
        %1897 = vmatprep.subr.mxu0 0.0
        %1898 = vmatpush1.msra.mxu0 0.0
        %1899 = vmatprep.subr.mxu0 0.0
        %1900 = vmatpush1.msra.mxu0 0.0
        %1901 = vmatprep.subr.mxu0 0.0
        %1902 = vmatpush1.msra.mxu0 0.0
        %1903 = vmatprep.subr.mxu0 0.0
        %1904 = vmatpush1.msra.mxu0 0.0
        %1905 = vmatprep.subr.mxu0 0.0
        %1906 = vmatpush1.msra.mxu0 0.0
        %1907 = vmatprep.subr.mxu0 0.0
        %1908 = vmatpush1.msra.mxu0 0.0
        %1909 = vmatprep.mubr.f32.mxu0 0.0
        %1910 = vmatmul.mubr.f32.gmra.mrb[0].mxu0 %v1834
        %v1911 = vpop.f32.mrb[0].mxu0
        %v1912 = vadd.f32 0.0, %v1911
        %v1913 = vpop.f32.mrb[0].mxu0
        %v1914 = vadd.f32 0.0, %v1913
        %1915 = vmatprep.mubr.f32.mxu0 0.0
        %1916 = vmatmul.mubr.f32.gmra.mrb[0].mxu0 %v1837
        %v1917 = vpop.f32.mrb[0].mxu0
        %v1918 = vadd.f32 0.0, %v1917
        %v1919 = vpop.f32.mrb[0].mxu0
        %v1920 = vadd.f32 0.0, %v1919
        %1921 = vmatprep.mubr.f32.mxu0 0.0
        %1922 = vmatmul.mubr.f32.gmra.mrb[0].mxu0 %v1840
        %v1923 = vpop.f32.mrb[0].mxu0
        %v1924 = vadd.f32 0.0, %v1923
        %v1925 = vpop.f32.mrb[0].mxu0
        %v1926 = vadd.f32 0.0, %v1925
        %1927 = vmatprep.mubr.f32.mxu0 0.0
        %1928 = vmatmul.mubr.f32.gmra.mrb[0].mxu0 %v1843
        %v1929 = vpop.f32.mrb[0].mxu0
        %v1930 = vadd.f32 0.0, %v1929
        %v1931 = vpop.f32.mrb[0].mxu0
        %v1932 = vadd.f32 0.0, %v1931
        %1933 = vdwg.mxu0
        %1934 = vmatprep.subr.mxu0 %v1196
        %1935 = vmatpush1.msra.mxu0 %v1195
        %1936 = vmatprep.subr.mxu0 %v1228
        %1937 = vmatpush1.msra.mxu0 %v1227
        %1938 = vmatprep.subr.mxu0 %v1260
        %1939 = vmatpush1.msra.mxu0 %v1259
        %1940 = vmatprep.subr.mxu0 %v1292
        %1941 = vmatpush1.msra.mxu0 %v1291
        %1942 = vmatprep.subr.mxu0 0.0
        %1943 = vmatpush1.msra.mxu0 0.0
        %1944 = vmatprep.subr.mxu0 0.0
        %1945 = vmatpush1.msra.mxu0 0.0
        %1946 = vmatprep.subr.mxu0 0.0
        %1947 = vmatpush1.msra.mxu0 0.0
        %1948 = vmatprep.subr.mxu0 0.0
        %1949 = vmatpush1.msra.mxu0 0.0
        %1950 = vmatprep.subr.mxu0 0.0
        %1951 = vmatpush1.msra.mxu0 0.0
        %1952 = vmatprep.subr.mxu0 0.0
        %1953 = vmatpush1.msra.mxu0 0.0
        %1954 = vmatprep.subr.mxu0 0.0
        %1955 = vmatpush1.msra.mxu0 0.0
        %1956 = vmatprep.subr.mxu0 0.0
        %1957 = vmatpush1.msra.mxu0 0.0
        %1958 = vmatprep.subr.mxu0 0.0
        %1959 = vmatpush1.msra.mxu0 0.0
        %1960 = vmatprep.subr.mxu0 0.0
        %1961 = vmatpush1.msra.mxu0 0.0
        %1962 = vmatprep.subr.mxu0 0.0
        %1963 = vmatpush1.msra.mxu0 0.0
        %1964 = vmatprep.subr.mxu0 0.0
        %1965 = vmatpush1.msra.mxu0 0.0
        %1966 = vmatprep.subr.mxu0 0.0
        %1967 = vmatpush1.msra.mxu0 0.0
        %1968 = vmatprep.subr.mxu0 0.0
        %1969 = vmatpush1.msra.mxu0 0.0
        %1970 = vmatprep.subr.mxu0 0.0
        %1971 = vmatpush1.msra.mxu0 0.0
        %1972 = vmatprep.subr.mxu0 0.0
        %1973 = vmatpush1.msra.mxu0 0.0
        %1974 = vmatprep.subr.mxu0 0.0
        %1975 = vmatpush1.msra.mxu0 0.0
        %1976 = vmatprep.subr.mxu0 0.0
        %1977 = vmatpush1.msra.mxu0 0.0
        %1978 = vmatprep.subr.mxu0 0.0
        %1979 = vmatpush1.msra.mxu0 0.0
        %1980 = vmatprep.subr.mxu0 0.0
        %1981 = vmatpush1.msra.mxu0 0.0
        %1982 = vmatprep.subr.mxu0 0.0
        %1983 = vmatpush1.msra.mxu0 0.0
        %1984 = vmatprep.subr.mxu0 0.0
        %1985 = vmatpush1.msra.mxu0 0.0
        %1986 = vmatprep.subr.mxu0 0.0
        %1987 = vmatpush1.msra.mxu0 0.0
        %1988 = vmatprep.subr.mxu0 0.0
        %1989 = vmatpush1.msra.mxu0 0.0
        %1990 = vmatprep.subr.mxu0 0.0
        %1991 = vmatpush1.msra.mxu0 0.0
        %1992 = vmatprep.subr.mxu0 0.0
        %1993 = vmatpush1.msra.mxu0 0.0
        %1994 = vmatprep.subr.mxu0 0.0
        %1995 = vmatpush1.msra.mxu0 0.0
        %1996 = vmatprep.subr.mxu0 0.0
        %1997 = vmatpush1.msra.mxu0 0.0
        %1998 = vmatprep.mubr.f32.mxu0 0.0
        %1999 = vmatmul.mubr.f32.gmra.mrb[0].mxu0 %v1834
        %v2000 = vpop.f32.mrb[0].mxu0
        %v2001 = vadd.f32 0.0, %v2000
        %v2002 = vpop.f32.mrb[0].mxu0
        %v2003 = vadd.f32 0.0, %v2002
        %2004 = vmatprep.mubr.f32.mxu0 0.0
        %2005 = vmatmul.mubr.f32.gmra.mrb[0].mxu0 %v1837
        %v2006 = vpop.f32.mrb[0].mxu0
        %v2007 = vadd.f32 0.0, %v2006
        %v2008 = vpop.f32.mrb[0].mxu0
        %v2009 = vadd.f32 0.0, %v2008
        %2010 = vmatprep.mubr.f32.mxu0 0.0
        %2011 = vmatmul.mubr.f32.gmra.mrb[0].mxu0 %v1840
        %v2012 = vpop.f32.mrb[0].mxu0
        %v2013 = vadd.f32 0.0, %v2012
        %v2014 = vpop.f32.mrb[0].mxu0
        %v2015 = vadd.f32 0.0, %v2014
        %2016 = vmatprep.mubr.f32.mxu0 0.0
        %2017 = vmatmul.mubr.f32.gmra.mrb[0].mxu0 %v1843
        %v2018 = vpop.f32.mrb[0].mxu0
        %v2019 = vadd.f32 0.0, %v2018
        %v2020 = vpop.f32.mrb[0].mxu0
        %v2021 = vadd.f32 0.0, %v2020
        %2022 = vdwg.mxu0
        %2023 = vmatprep.subr.mxu0 %v1198
        %2024 = vmatpush1.msra.mxu0 %v1197
        %2025 = vmatprep.subr.mxu0 %v1230
        %2026 = vmatpush1.msra.mxu0 %v1229
        %2027 = vmatprep.subr.mxu0 %v1262
        %2028 = vmatpush1.msra.mxu0 %v1261
        %2029 = vmatprep.subr.mxu0 %v1294
        %2030 = vmatpush1.msra.mxu0 %v1293
        %2031 = vmatprep.subr.mxu0 0.0
        %2032 = vmatpush1.msra.mxu0 0.0
        %2033 = vmatprep.subr.mxu0 0.0
        %2034 = vmatpush1.msra.mxu0 0.0
        %2035 = vmatprep.subr.mxu0 0.0
        %2036 = vmatpush1.msra.mxu0 0.0
        %2037 = vmatprep.subr.mxu0 0.0
        %2038 = vmatpush1.msra.mxu0 0.0
        %2039 = vmatprep.subr.mxu0 0.0
        %2040 = vmatpush1.msra.mxu0 0.0
        %2041 = vmatprep.subr.mxu0 0.0
        %2042 = vmatpush1.msra.mxu0 0.0
        %2043 = vmatprep.subr.mxu0 0.0
        %2044 = vmatpush1.msra.mxu0 0.0
        %2045 = vmatprep.subr.mxu0 0.0
        %2046 = vmatpush1.msra.mxu0 0.0
        %2047 = vmatprep.subr.mxu0 0.0
        %2048 = vmatpush1.msra.mxu0 0.0
        %2049 = vmatprep.subr.mxu0 0.0
        %2050 = vmatpush1.msra.mxu0 0.0
        %2051 = vmatprep.subr.mxu0 0.0
        %2052 = vmatpush1.msra.mxu0 0.0
        %2053 = vmatprep.subr.mxu0 0.0
        %2054 = vmatpush1.msra.mxu0 0.0
        %2055 = vmatprep.subr.mxu0 0.0
        %2056 = vmatpush1.msra.mxu0 0.0
        %2057 = vmatprep.subr.mxu0 0.0
        %2058 = vmatpush1.msra.mxu0 0.0
        %2059 = vmatprep.subr.mxu0 0.0
        %2060 = vmatpush1.msra.mxu0 0.0
        %2061 = vmatprep.subr.mxu0 0.0
        %2062 = vmatpush1.msra.mxu0 0.0
        %2063 = vmatprep.subr.mxu0 0.0
        %2064 = vmatpush1.msra.mxu0 0.0
        %2065 = vmatprep.subr.mxu0 0.0
        %2066 = vmatpush1.msra.mxu0 0.0
        %2067 = vmatprep.subr.mxu0 0.0
        %2068 = vmatpush1.msra.mxu0 0.0
        %2069 = vmatprep.subr.mxu0 0.0
        %2070 = vmatpush1.msra.mxu0 0.0
        %2071 = vmatprep.subr.mxu0 0.0
        %2072 = vmatpush1.msra.mxu0 0.0
        %2073 = vmatprep.subr.mxu0 0.0
        %2074 = vmatpush1.msra.mxu0 0.0
        %2075 = vmatprep.subr.mxu0 0.0
        %2076 = vmatpush1.msra.mxu0 0.0
        %2077 = vmatprep.subr.mxu0 0.0
        %2078 = vmatpush1.msra.mxu0 0.0
        %2079 = vmatprep.subr.mxu0 0.0
        %2080 = vmatpush1.msra.mxu0 0.0
        %2081 = vmatprep.subr.mxu0 0.0
        %2082 = vmatpush1.msra.mxu0 0.0
        %2083 = vmatprep.subr.mxu0 0.0
        %2084 = vmatpush1.msra.mxu0 0.0
        %2085 = vmatprep.subr.mxu0 0.0
        %2086 = vmatpush1.msra.mxu0 0.0
        %2087 = vmatprep.mubr.f32.mxu0 0.0
        %2088 = vmatmul.mubr.f32.gmra.mrb[0].mxu0 %v1834
        %v2089 = vpop.f32.mrb[0].mxu0
        %v2090 = vadd.f32 0.0, %v2089
        %v2091 = vpop.f32.mrb[0].mxu0
        %v2092 = vadd.f32 0.0, %v2091
        %2093 = vmatprep.mubr.f32.mxu0 0.0
        %2094 = vmatmul.mubr.f32.gmra.mrb[0].mxu0 %v1837
        %v2095 = vpop.f32.mrb[0].mxu0
        %v2096 = vadd.f32 0.0, %v2095
        %v2097 = vpop.f32.mrb[0].mxu0
        %v2098 = vadd.f32 0.0, %v2097
        %2099 = vmatprep.mubr.f32.mxu0 0.0
        %2100 = vmatmul.mubr.f32.gmra.mrb[0].mxu0 %v1840
        %v2101 = vpop.f32.mrb[0].mxu0
        %v2102 = vadd.f32 0.0, %v2101
        %v2103 = vpop.f32.mrb[0].mxu0
        %v2104 = vadd.f32 0.0, %v2103
        %2105 = vmatprep.mubr.f32.mxu0 0.0
        %2106 = vmatmul.mubr.f32.gmra.mrb[0].mxu0 %v1843
        %v2107 = vpop.f32.mrb[0].mxu0
        %v2108 = vadd.f32 0.0, %v2107
        %v2109 = vpop.f32.mrb[0].mxu0
        %v2110 = vadd.f32 0.0, %v2109
        %2111 = vdwg.mxu0
        %2112 = vmatprep.subr.mxu0 %v1200
        %2113 = vmatpush1.msra.mxu0 %v1199
        %2114 = vmatprep.subr.mxu0 %v1232
        %2115 = vmatpush1.msra.mxu0 %v1231
        %2116 = vmatprep.subr.mxu0 %v1264
        %2117 = vmatpush1.msra.mxu0 %v1263
        %2118 = vmatprep.subr.mxu0 %v1296
        %2119 = vmatpush1.msra.mxu0 %v1295
        %2120 = vmatprep.subr.mxu0 0.0
        %2121 = vmatpush1.msra.mxu0 0.0
        %2122 = vmatprep.subr.mxu0 0.0
        %2123 = vmatpush1.msra.mxu0 0.0
        %2124 = vmatprep.subr.mxu0 0.0
        %2125 = vmatpush1.msra.mxu0 0.0
        %2126 = vmatprep.subr.mxu0 0.0
        %2127 = vmatpush1.msra.mxu0 0.0
        %2128 = vmatprep.subr.mxu0 0.0
        %2129 = vmatpush1.msra.mxu0 0.0
        %2130 = vmatprep.subr.mxu0 0.0
        %2131 = vmatpush1.msra.mxu0 0.0
        %2132 = vmatprep.subr.mxu0 0.0
        %2133 = vmatpush1.msra.mxu0 0.0
        %2134 = vmatprep.subr.mxu0 0.0
        %2135 = vmatpush1.msra.mxu0 0.0
        %2136 = vmatprep.subr.mxu0 0.0
        %2137 = vmatpush1.msra.mxu0 0.0
        %2138 = vmatprep.subr.mxu0 0.0
        %2139 = vmatpush1.msra.mxu0 0.0
        %2140 = vmatprep.subr.mxu0 0.0
        %2141 = vmatpush1.msra.mxu0 0.0
        %2142 = vmatprep.subr.mxu0 0.0
        %2143 = vmatpush1.msra.mxu0 0.0
        %2144 = vmatprep.subr.mxu0 0.0
        %2145 = vmatpush1.msra.mxu0 0.0
        %2146 = vmatprep.subr.mxu0 0.0
        %2147 = vmatpush1.msra.mxu0 0.0
        %2148 = vmatprep.subr.mxu0 0.0
        %2149 = vmatpush1.msra.mxu0 0.0
        %2150 = vmatprep.subr.mxu0 0.0
        %2151 = vmatpush1.msra.mxu0 0.0
        %2152 = vmatprep.subr.mxu0 0.0
        %2153 = vmatpush1.msra.mxu0 0.0
        %2154 = vmatprep.subr.mxu0 0.0
        %2155 = vmatpush1.msra.mxu0 0.0
        %2156 = vmatprep.subr.mxu0 0.0
        %2157 = vmatpush1.msra.mxu0 0.0
        %2158 = vmatprep.subr.mxu0 0.0
        %2159 = vmatpush1.msra.mxu0 0.0
        %2160 = vmatprep.subr.mxu0 0.0
        %2161 = vmatpush1.msra.mxu0 0.0
        %2162 = vmatprep.subr.mxu0 0.0
        %2163 = vmatpush1.msra.mxu0 0.0
        %2164 = vmatprep.subr.mxu0 0.0
        %2165 = vmatpush1.msra.mxu0 0.0
        %2166 = vmatprep.subr.mxu0 0.0
        %2167 = vmatpush1.msra.mxu0 0.0
        %2168 = vmatprep.subr.mxu0 0.0
        %2169 = vmatpush1.msra.mxu0 0.0
        %2170 = vmatprep.subr.mxu0 0.0
        %2171 = vmatpush1.msra.mxu0 0.0
        %2172 = vmatprep.subr.mxu0 0.0
        %2173 = vmatpush1.msra.mxu0 0.0
        %2174 = vmatprep.subr.mxu0 0.0
        %2175 = vmatpush1.msra.mxu0 0.0
        %2176 = vmatprep.mubr.f32.mxu0 0.0
        %2177 = vmatmul.mubr.f32.gmra.mrb[0].mxu0 %v1834
        %v2178 = vpop.f32.mrb[0].mxu0
        %v2179 = vadd.f32 0.0, %v2178
        %v2180 = vpop.f32.mrb[0].mxu0
        %v2181 = vadd.f32 0.0, %v2180
        %2182 = vmatprep.mubr.f32.mxu0 0.0
        %2183 = vmatmul.mubr.f32.gmra.mrb[0].mxu0 %v1837
        %v2184 = vpop.f32.mrb[0].mxu0
        %v2185 = vadd.f32 0.0, %v2184
        %v2186 = vpop.f32.mrb[0].mxu0
        %v2187 = vadd.f32 0.0, %v2186
        %2188 = vmatprep.mubr.f32.mxu0 0.0
        %2189 = vmatmul.mubr.f32.gmra.mrb[0].mxu0 %v1840
        %v2190 = vpop.f32.mrb[0].mxu0
        %v2191 = vadd.f32 0.0, %v2190
        %v2192 = vpop.f32.mrb[0].mxu0
        %v2193 = vadd.f32 0.0, %v2192
        %2194 = vmatprep.mubr.f32.mxu0 0.0
        %2195 = vmatmul.mubr.f32.gmra.mrb[0].mxu0 %v1843
        %v2196 = vpop.f32.mrb[0].mxu0
        %v2197 = vadd.f32 0.0, %v2196
        %v2198 = vpop.f32.mrb[0].mxu0
        %v2199 = vadd.f32 0.0, %v2198
        %2200 = vdwg.mxu0
        %2201 = vmatprep.subr.mxu0 %v1202
        %2202 = vmatpush1.msra.mxu0 %v1201
        %2203 = vmatprep.subr.mxu0 %v1234
        %2204 = vmatpush1.msra.mxu0 %v1233
        %2205 = vmatprep.subr.mxu0 %v1266
        %2206 = vmatpush1.msra.mxu0 %v1265
        %2207 = vmatprep.subr.mxu0 %v1298
        %2208 = vmatpush1.msra.mxu0 %v1297
        %2209 = vmatprep.subr.mxu0 0.0
        %2210 = vmatpush1.msra.mxu0 0.0
        %2211 = vmatprep.subr.mxu0 0.0
        %2212 = vmatpush1.msra.mxu0 0.0
        %2213 = vmatprep.subr.mxu0 0.0
        %2214 = vmatpush1.msra.mxu0 0.0
        %2215 = vmatprep.subr.mxu0 0.0
        %2216 = vmatpush1.msra.mxu0 0.0
        %2217 = vmatprep.subr.mxu0 0.0
        %2218 = vmatpush1.msra.mxu0 0.0
        %2219 = vmatprep.subr.mxu0 0.0
        %2220 = vmatpush1.msra.mxu0 0.0
        %2221 = vmatprep.subr.mxu0 0.0
        %2222 = vmatpush1.msra.mxu0 0.0
        %2223 = vmatprep.subr.mxu0 0.0
        %2224 = vmatpush1.msra.mxu0 0.0
        %2225 = vmatprep.subr.mxu0 0.0
        %2226 = vmatpush1.msra.mxu0 0.0
        %2227 = vmatprep.subr.mxu0 0.0
        %2228 = vmatpush1.msra.mxu0 0.0
        %2229 = vmatprep.subr.mxu0 0.0
        %2230 = vmatpush1.msra.mxu0 0.0
        %2231 = vmatprep.subr.mxu0 0.0
        %2232 = vmatpush1.msra.mxu0 0.0
        %2233 = vmatprep.subr.mxu0 0.0
        %2234 = vmatpush1.msra.mxu0 0.0
        %2235 = vmatprep.subr.mxu0 0.0
        %2236 = vmatpush1.msra.mxu0 0.0
        %2237 = vmatprep.subr.mxu0 0.0
        %2238 = vmatpush1.msra.mxu0 0.0
        %2239 = vmatprep.subr.mxu0 0.0
        %2240 = vmatpush1.msra.mxu0 0.0
        %2241 = vmatprep.subr.mxu0 0.0
        %2242 = vmatpush1.msra.mxu0 0.0
        %2243 = vmatprep.subr.mxu0 0.0
        %2244 = vmatpush1.msra.mxu0 0.0
        %2245 = vmatprep.subr.mxu0 0.0
        %2246 = vmatpush1.msra.mxu0 0.0
        %2247 = vmatprep.subr.mxu0 0.0
        %2248 = vmatpush1.msra.mxu0 0.0
        %2249 = vmatprep.subr.mxu0 0.0
        %2250 = vmatpush1.msra.mxu0 0.0
        %2251 = vmatprep.subr.mxu0 0.0
        %2252 = vmatpush1.msra.mxu0 0.0
        %2253 = vmatprep.subr.mxu0 0.0
        %2254 = vmatpush1.msra.mxu0 0.0
        %2255 = vmatprep.subr.mxu0 0.0
        %2256 = vmatpush1.msra.mxu0 0.0
        %2257 = vmatprep.subr.mxu0 0.0
        %2258 = vmatpush1.msra.mxu0 0.0
        %2259 = vmatprep.subr.mxu0 0.0
        %2260 = vmatpush1.msra.mxu0 0.0
        %2261 = vmatprep.subr.mxu0 0.0
        %2262 = vmatpush1.msra.mxu0 0.0
        %2263 = vmatprep.subr.mxu0 0.0
        %2264 = vmatpush1.msra.mxu0 0.0
        %2265 = vmatprep.mubr.f32.mxu0 0.0
        %2266 = vmatmul.mubr.f32.gmra.mrb[0].mxu0 %v1834
        %v2267 = vpop.f32.mrb[0].mxu0
        %v2268 = vadd.f32 0.0, %v2267
        %v2269 = vpop.f32.mrb[0].mxu0
        %v2270 = vadd.f32 0.0, %v2269
        %2271 = vmatprep.mubr.f32.mxu0 0.0
        %2272 = vmatmul.mubr.f32.gmra.mrb[0].mxu0 %v1837
        %v2273 = vpop.f32.mrb[0].mxu0
        %v2274 = vadd.f32 0.0, %v2273
        %v2275 = vpop.f32.mrb[0].mxu0
        %v2276 = vadd.f32 0.0, %v2275
        %2277 = vmatprep.mubr.f32.mxu0 0.0
        %2278 = vmatmul.mubr.f32.gmra.mrb[0].mxu0 %v1840
        %v2279 = vpop.f32.mrb[0].mxu0
        %v2280 = vadd.f32 0.0, %v2279
        %v2281 = vpop.f32.mrb[0].mxu0
        %v2282 = vadd.f32 0.0, %v2281
        %2283 = vmatprep.mubr.f32.mxu0 0.0
        %2284 = vmatmul.mubr.f32.gmra.mrb[0].mxu0 %v1843
        %v2285 = vpop.f32.mrb[0].mxu0
        %v2286 = vadd.f32 0.0, %v2285
        %v2287 = vpop.f32.mrb[0].mxu0
        %v2288 = vadd.f32 0.0, %v2287
        %2289 = vdwg.mxu0
        %2290 = vmatprep.subr.mxu0 %v1204
        %2291 = vmatpush1.msra.mxu0 %v1203
        %2292 = vmatprep.subr.mxu0 %v1236
        %2293 = vmatpush1.msra.mxu0 %v1235
        %2294 = vmatprep.subr.mxu0 %v1268
        %2295 = vmatpush1.msra.mxu0 %v1267
        %2296 = vmatprep.subr.mxu0 %v1300
        %2297 = vmatpush1.msra.mxu0 %v1299
        %2298 = vmatprep.subr.mxu0 0.0
        %2299 = vmatpush1.msra.mxu0 0.0
        %2300 = vmatprep.subr.mxu0 0.0
        %2301 = vmatpush1.msra.mxu0 0.0
        %2302 = vmatprep.subr.mxu0 0.0
        %2303 = vmatpush1.msra.mxu0 0.0
        %2304 = vmatprep.subr.mxu0 0.0
        %2305 = vmatpush1.msra.mxu0 0.0
        %2306 = vmatprep.subr.mxu0 0.0
        %2307 = vmatpush1.msra.mxu0 0.0
        %2308 = vmatprep.subr.mxu0 0.0
        %2309 = vmatpush1.msra.mxu0 0.0
        %2310 = vmatprep.subr.mxu0 0.0
        %2311 = vmatpush1.msra.mxu0 0.0
        %2312 = vmatprep.subr.mxu0 0.0
        %2313 = vmatpush1.msra.mxu0 0.0
        %2314 = vmatprep.subr.mxu0 0.0
        %2315 = vmatpush1.msra.mxu0 0.0
        %2316 = vmatprep.subr.mxu0 0.0
        %2317 = vmatpush1.msra.mxu0 0.0
        %2318 = vmatprep.subr.mxu0 0.0
        %2319 = vmatpush1.msra.mxu0 0.0
        %2320 = vmatprep.subr.mxu0 0.0
        %2321 = vmatpush1.msra.mxu0 0.0
        %2322 = vmatprep.subr.mxu0 0.0
        %2323 = vmatpush1.msra.mxu0 0.0
        %2324 = vmatprep.subr.mxu0 0.0
        %2325 = vmatpush1.msra.mxu0 0.0
        %2326 = vmatprep.subr.mxu0 0.0
        %2327 = vmatpush1.msra.mxu0 0.0
        %2328 = vmatprep.subr.mxu0 0.0
        %2329 = vmatpush1.msra.mxu0 0.0
        %2330 = vmatprep.subr.mxu0 0.0
        %2331 = vmatpush1.msra.mxu0 0.0
        %2332 = vmatprep.subr.mxu0 0.0
        %2333 = vmatpush1.msra.mxu0 0.0
        %2334 = vmatprep.subr.mxu0 0.0
        %2335 = vmatpush1.msra.mxu0 0.0
        %2336 = vmatprep.subr.mxu0 0.0
        %2337 = vmatpush1.msra.mxu0 0.0
        %2338 = vmatprep.subr.mxu0 0.0
        %2339 = vmatpush1.msra.mxu0 0.0
        %2340 = vmatprep.subr.mxu0 0.0
        %2341 = vmatpush1.msra.mxu0 0.0
        %2342 = vmatprep.subr.mxu0 0.0
        %2343 = vmatpush1.msra.mxu0 0.0
        %2344 = vmatprep.subr.mxu0 0.0
        %2345 = vmatpush1.msra.mxu0 0.0
        %2346 = vmatprep.subr.mxu0 0.0
        %2347 = vmatpush1.msra.mxu0 0.0
        %2348 = vmatprep.subr.mxu0 0.0
        %2349 = vmatpush1.msra.mxu0 0.0
        %2350 = vmatprep.subr.mxu0 0.0
        %2351 = vmatpush1.msra.mxu0 0.0
        %2352 = vmatprep.subr.mxu0 0.0
        %2353 = vmatpush1.msra.mxu0 0.0
        %2354 = vmatprep.mubr.f32.mxu0 0.0
        %2355 = vmatmul.mubr.f32.gmra.mrb[0].mxu0 %v1834
        %v2356 = vpop.f32.mrb[0].mxu0
        %v2357 = vadd.f32 0.0, %v2356
        %v2358 = vpop.f32.mrb[0].mxu0
        %v2359 = vadd.f32 0.0, %v2358
        %2360 = vmatprep.mubr.f32.mxu0 0.0
        %2361 = vmatmul.mubr.f32.gmra.mrb[0].mxu0 %v1837
        %v2362 = vpop.f32.mrb[0].mxu0
        %v2363 = vadd.f32 0.0, %v2362
        %v2364 = vpop.f32.mrb[0].mxu0
        %v2365 = vadd.f32 0.0, %v2364
        %2366 = vmatprep.mubr.f32.mxu0 0.0
        %2367 = vmatmul.mubr.f32.gmra.mrb[0].mxu0 %v1840
        %v2368 = vpop.f32.mrb[0].mxu0
        %v2369 = vadd.f32 0.0, %v2368
        %v2370 = vpop.f32.mrb[0].mxu0
        %v2371 = vadd.f32 0.0, %v2370
        %2372 = vmatprep.mubr.f32.mxu0 0.0
        %2373 = vmatmul.mubr.f32.gmra.mrb[0].mxu0 %v1843
        %v2374 = vpop.f32.mrb[0].mxu0
        %v2375 = vadd.f32 0.0, %v2374
        %v2376 = vpop.f32.mrb[0].mxu0
        %v2377 = vadd.f32 0.0, %v2376
        %2378 = vdwg.mxu0
        %2379 = vmatprep.subr.mxu0 %v1206
        %2380 = vmatpush1.msra.mxu0 %v1205
        %2381 = vmatprep.subr.mxu0 %v1238
        %2382 = vmatpush1.msra.mxu0 %v1237
        %2383 = vmatprep.subr.mxu0 %v1270
        %2384 = vmatpush1.msra.mxu0 %v1269
        %2385 = vmatprep.subr.mxu0 %v1302
        %2386 = vmatpush1.msra.mxu0 %v1301
        %2387 = vmatprep.subr.mxu0 0.0
        %2388 = vmatpush1.msra.mxu0 0.0
        %2389 = vmatprep.subr.mxu0 0.0
        %2390 = vmatpush1.msra.mxu0 0.0
        %2391 = vmatprep.subr.mxu0 0.0
        %2392 = vmatpush1.msra.mxu0 0.0
        %2393 = vmatprep.subr.mxu0 0.0
        %2394 = vmatpush1.msra.mxu0 0.0
        %2395 = vmatprep.subr.mxu0 0.0
        %2396 = vmatpush1.msra.mxu0 0.0
        %2397 = vmatprep.subr.mxu0 0.0
        %2398 = vmatpush1.msra.mxu0 0.0
        %2399 = vmatprep.subr.mxu0 0.0
        %2400 = vmatpush1.msra.mxu0 0.0
        %2401 = vmatprep.subr.mxu0 0.0
        %2402 = vmatpush1.msra.mxu0 0.0
        %2403 = vmatprep.subr.mxu0 0.0
        %2404 = vmatpush1.msra.mxu0 0.0
        %2405 = vmatprep.subr.mxu0 0.0
        %2406 = vmatpush1.msra.mxu0 0.0
        %2407 = vmatprep.subr.mxu0 0.0
        %2408 = vmatpush1.msra.mxu0 0.0
        %2409 = vmatprep.subr.mxu0 0.0
        %2410 = vmatpush1.msra.mxu0 0.0
        %2411 = vmatprep.subr.mxu0 0.0
        %2412 = vmatpush1.msra.mxu0 0.0
        %2413 = vmatprep.subr.mxu0 0.0
        %2414 = vmatpush1.msra.mxu0 0.0
        %2415 = vmatprep.subr.mxu0 0.0
        %2416 = vmatpush1.msra.mxu0 0.0
        %2417 = vmatprep.subr.mxu0 0.0
        %2418 = vmatpush1.msra.mxu0 0.0
        %2419 = vmatprep.subr.mxu0 0.0
        %2420 = vmatpush1.msra.mxu0 0.0
        %2421 = vmatprep.subr.mxu0 0.0
        %2422 = vmatpush1.msra.mxu0 0.0
        %2423 = vmatprep.subr.mxu0 0.0
        %2424 = vmatpush1.msra.mxu0 0.0
        %2425 = vmatprep.subr.mxu0 0.0
        %2426 = vmatpush1.msra.mxu0 0.0
        %2427 = vmatprep.subr.mxu0 0.0
        %2428 = vmatpush1.msra.mxu0 0.0
        %2429 = vmatprep.subr.mxu0 0.0
        %2430 = vmatpush1.msra.mxu0 0.0
        %2431 = vmatprep.subr.mxu0 0.0
        %2432 = vmatpush1.msra.mxu0 0.0
        %2433 = vmatprep.subr.mxu0 0.0
        %2434 = vmatpush1.msra.mxu0 0.0
        %2435 = vmatprep.subr.mxu0 0.0
        %2436 = vmatpush1.msra.mxu0 0.0
        %2437 = vmatprep.subr.mxu0 0.0
        %2438 = vmatpush1.msra.mxu0 0.0
        %2439 = vmatprep.subr.mxu0 0.0
        %2440 = vmatpush1.msra.mxu0 0.0
        %2441 = vmatprep.subr.mxu0 0.0
        %2442 = vmatpush1.msra.mxu0 0.0
        %2443 = vmatprep.mubr.f32.mxu0 0.0
        %2444 = vmatmul.mubr.f32.gmra.mrb[0].mxu0 %v1834
        %v2445 = vpop.f32.mrb[0].mxu0
        %v2446 = vadd.f32 0.0, %v2445
        %v2447 = vpop.f32.mrb[0].mxu0
        %v2448 = vadd.f32 0.0, %v2447
        %2449 = vmatprep.mubr.f32.mxu0 0.0
        %2450 = vmatmul.mubr.f32.gmra.mrb[0].mxu0 %v1837
        %v2451 = vpop.f32.mrb[0].mxu0
        %v2452 = vadd.f32 0.0, %v2451
        %v2453 = vpop.f32.mrb[0].mxu0
        %v2454 = vadd.f32 0.0, %v2453
        %2455 = vmatprep.mubr.f32.mxu0 0.0
        %2456 = vmatmul.mubr.f32.gmra.mrb[0].mxu0 %v1840
        %v2457 = vpop.f32.mrb[0].mxu0
        %v2458 = vadd.f32 0.0, %v2457
        %v2459 = vpop.f32.mrb[0].mxu0
        %v2460 = vadd.f32 0.0, %v2459
        %2461 = vmatprep.mubr.f32.mxu0 0.0
        %2462 = vmatmul.mubr.f32.gmra.mrb[0].mxu0 %v1843
        %v2463 = vpop.f32.mrb[0].mxu0
        %v2464 = vadd.f32 0.0, %v2463
        %v2465 = vpop.f32.mrb[0].mxu0
        %v2466 = vadd.f32 0.0, %v2465
        %2467 = vdwg.mxu0
        %2468 = vmatprep.subr.mxu0 %v1208
        %2469 = vmatpush1.msra.mxu0 %v1207
        %2470 = vmatprep.subr.mxu0 %v1240
        %2471 = vmatpush1.msra.mxu0 %v1239
        %2472 = vmatprep.subr.mxu0 %v1272
        %2473 = vmatpush1.msra.mxu0 %v1271
        %2474 = vmatprep.subr.mxu0 %v1304
        %2475 = vmatpush1.msra.mxu0 %v1303
        %2476 = vmatprep.subr.mxu0 0.0
        %2477 = vmatpush1.msra.mxu0 0.0
        %2478 = vmatprep.subr.mxu0 0.0
        %2479 = vmatpush1.msra.mxu0 0.0
        %2480 = vmatprep.subr.mxu0 0.0
        %2481 = vmatpush1.msra.mxu0 0.0
        %2482 = vmatprep.subr.mxu0 0.0
        %2483 = vmatpush1.msra.mxu0 0.0
        %2484 = vmatprep.subr.mxu0 0.0
        %2485 = vmatpush1.msra.mxu0 0.0
        %2486 = vmatprep.subr.mxu0 0.0
        %2487 = vmatpush1.msra.mxu0 0.0
        %2488 = vmatprep.subr.mxu0 0.0
        %2489 = vmatpush1.msra.mxu0 0.0
        %2490 = vmatprep.subr.mxu0 0.0
        %2491 = vmatpush1.msra.mxu0 0.0
        %2492 = vmatprep.subr.mxu0 0.0
        %2493 = vmatpush1.msra.mxu0 0.0
        %2494 = vmatprep.subr.mxu0 0.0
        %2495 = vmatpush1.msra.mxu0 0.0
        %2496 = vmatprep.subr.mxu0 0.0
        %2497 = vmatpush1.msra.mxu0 0.0
        %2498 = vmatprep.subr.mxu0 0.0
        %2499 = vmatpush1.msra.mxu0 0.0
        %2500 = vmatprep.subr.mxu0 0.0
        %2501 = vmatpush1.msra.mxu0 0.0
        %2502 = vmatprep.subr.mxu0 0.0
        %2503 = vmatpush1.msra.mxu0 0.0
        %2504 = vmatprep.subr.mxu0 0.0
        %2505 = vmatpush1.msra.mxu0 0.0
        %2506 = vmatprep.subr.mxu0 0.0
        %2507 = vmatpush1.msra.mxu0 0.0
        %2508 = vmatprep.subr.mxu0 0.0
        %2509 = vmatpush1.msra.mxu0 0.0
        %2510 = vmatprep.subr.mxu0 0.0
        %2511 = vmatpush1.msra.mxu0 0.0
        %2512 = vmatprep.subr.mxu0 0.0
        %2513 = vmatpush1.msra.mxu0 0.0
        %2514 = vmatprep.subr.mxu0 0.0
        %2515 = vmatpush1.msra.mxu0 0.0
        %2516 = vmatprep.subr.mxu0 0.0
        %2517 = vmatpush1.msra.mxu0 0.0
        %2518 = vmatprep.subr.mxu0 0.0
        %2519 = vmatpush1.msra.mxu0 0.0
        %2520 = vmatprep.subr.mxu0 0.0
        %2521 = vmatpush1.msra.mxu0 0.0
        %2522 = vmatprep.subr.mxu0 0.0
        %2523 = vmatpush1.msra.mxu0 0.0
        %2524 = vmatprep.subr.mxu0 0.0
        %2525 = vmatpush1.msra.mxu0 0.0
        %2526 = vmatprep.subr.mxu0 0.0
        %2527 = vmatpush1.msra.mxu0 0.0
        %2528 = vmatprep.subr.mxu0 0.0
        %2529 = vmatpush1.msra.mxu0 0.0
        %2530 = vmatprep.subr.mxu0 0.0
        %2531 = vmatpush1.msra.mxu0 0.0
        %2532 = vmatprep.mubr.f32.mxu0 0.0
        %2533 = vmatmul.mubr.f32.gmra.mrb[0].mxu0 %v1834
        %v2534 = vpop.f32.mrb[0].mxu0
        %v2535 = vadd.f32 0.0, %v2534
        %v2536 = vpop.f32.mrb[0].mxu0
        %v2537 = vadd.f32 0.0, %v2536
        %2538 = vmatprep.mubr.f32.mxu0 0.0
        %2539 = vmatmul.mubr.f32.gmra.mrb[0].mxu0 %v1837
        %v2540 = vpop.f32.mrb[0].mxu0
        %v2541 = vadd.f32 0.0, %v2540
        %v2542 = vpop.f32.mrb[0].mxu0
        %v2543 = vadd.f32 0.0, %v2542
        %2544 = vmatprep.mubr.f32.mxu0 0.0
        %2545 = vmatmul.mubr.f32.gmra.mrb[0].mxu0 %v1840
        %v2546 = vpop.f32.mrb[0].mxu0
        %v2547 = vadd.f32 0.0, %v2546
        %v2548 = vpop.f32.mrb[0].mxu0
        %v2549 = vadd.f32 0.0, %v2548
        %2550 = vmatprep.mubr.f32.mxu0 0.0
        %2551 = vmatmul.mubr.f32.gmra.mrb[0].mxu0 %v1843
        %v2552 = vpop.f32.mrb[0].mxu0
        %v2553 = vadd.f32 0.0, %v2552
        %v2554 = vpop.f32.mrb[0].mxu0
        %v2555 = vadd.f32 0.0, %v2554
        %2556 = vdwg.mxu0
        %2557 = vmatprep.subr.mxu0 %v1210
        %2558 = vmatpush1.msra.mxu0 %v1209
        %2559 = vmatprep.subr.mxu0 %v1242
        %2560 = vmatpush1.msra.mxu0 %v1241
        %2561 = vmatprep.subr.mxu0 %v1274
        %2562 = vmatpush1.msra.mxu0 %v1273
        %2563 = vmatprep.subr.mxu0 %v1306
        %2564 = vmatpush1.msra.mxu0 %v1305
        %2565 = vmatprep.subr.mxu0 0.0
        %2566 = vmatpush1.msra.mxu0 0.0
        %2567 = vmatprep.subr.mxu0 0.0
        %2568 = vmatpush1.msra.mxu0 0.0
        %2569 = vmatprep.subr.mxu0 0.0
        %2570 = vmatpush1.msra.mxu0 0.0
        %2571 = vmatprep.subr.mxu0 0.0
        %2572 = vmatpush1.msra.mxu0 0.0
        %2573 = vmatprep.subr.mxu0 0.0
        %2574 = vmatpush1.msra.mxu0 0.0
        %2575 = vmatprep.subr.mxu0 0.0
        %2576 = vmatpush1.msra.mxu0 0.0
        %2577 = vmatprep.subr.mxu0 0.0
        %2578 = vmatpush1.msra.mxu0 0.0
        %2579 = vmatprep.subr.mxu0 0.0
        %2580 = vmatpush1.msra.mxu0 0.0
        %2581 = vmatprep.subr.mxu0 0.0
        %2582 = vmatpush1.msra.mxu0 0.0
        %2583 = vmatprep.subr.mxu0 0.0
        %2584 = vmatpush1.msra.mxu0 0.0
        %2585 = vmatprep.subr.mxu0 0.0
        %2586 = vmatpush1.msra.mxu0 0.0
        %2587 = vmatprep.subr.mxu0 0.0
        %2588 = vmatpush1.msra.mxu0 0.0
        %2589 = vmatprep.subr.mxu0 0.0
        %2590 = vmatpush1.msra.mxu0 0.0
        %2591 = vmatprep.subr.mxu0 0.0
        %2592 = vmatpush1.msra.mxu0 0.0
        %2593 = vmatprep.subr.mxu0 0.0
        %2594 = vmatpush1.msra.mxu0 0.0
        %2595 = vmatprep.subr.mxu0 0.0
        %2596 = vmatpush1.msra.mxu0 0.0
        %2597 = vmatprep.subr.mxu0 0.0
        %2598 = vmatpush1.msra.mxu0 0.0
        %2599 = vmatprep.subr.mxu0 0.0
        %2600 = vmatpush1.msra.mxu0 0.0
        %2601 = vmatprep.subr.mxu0 0.0
        %2602 = vmatpush1.msra.mxu0 0.0
        %2603 = vmatprep.subr.mxu0 0.0
        %2604 = vmatpush1.msra.mxu0 0.0
        %2605 = vmatprep.subr.mxu0 0.0
        %2606 = vmatpush1.msra.mxu0 0.0
        %2607 = vmatprep.subr.mxu0 0.0
        %2608 = vmatpush1.msra.mxu0 0.0
        %2609 = vmatprep.subr.mxu0 0.0
        %2610 = vmatpush1.msra.mxu0 0.0
        %2611 = vmatprep.subr.mxu0 0.0
        %2612 = vmatpush1.msra.mxu0 0.0
        %2613 = vmatprep.subr.mxu0 0.0
        %2614 = vmatpush1.msra.mxu0 0.0
        %2615 = vmatprep.subr.mxu0 0.0
        %2616 = vmatpush1.msra.mxu0 0.0
        %2617 = vmatprep.subr.mxu0 0.0
        %2618 = vmatpush1.msra.mxu0 0.0
        %2619 = vmatprep.subr.mxu0 0.0
        %2620 = vmatpush1.msra.mxu0 0.0
        %2621 = vmatprep.mubr.f32.mxu0 0.0
        %2622 = vmatmul.mubr.f32.gmra.mrb[0].mxu0 %v1834
        %v2623 = vpop.f32.mrb[0].mxu0
        %v2624 = vadd.f32 0.0, %v2623
        %v2625 = vpop.f32.mrb[0].mxu0
        %v2626 = vadd.f32 0.0, %v2625
        %2627 = vmatprep.mubr.f32.mxu0 0.0
        %2628 = vmatmul.mubr.f32.gmra.mrb[0].mxu0 %v1837
        %v2629 = vpop.f32.mrb[0].mxu0
        %v2630 = vadd.f32 0.0, %v2629
        %v2631 = vpop.f32.mrb[0].mxu0
        %v2632 = vadd.f32 0.0, %v2631
        %2633 = vmatprep.mubr.f32.mxu0 0.0
        %2634 = vmatmul.mubr.f32.gmra.mrb[0].mxu0 %v1840
        %v2635 = vpop.f32.mrb[0].mxu0
        %v2636 = vadd.f32 0.0, %v2635
        %v2637 = vpop.f32.mrb[0].mxu0
        %v2638 = vadd.f32 0.0, %v2637
        %2639 = vmatprep.mubr.f32.mxu0 0.0
        %2640 = vmatmul.mubr.f32.gmra.mrb[0].mxu0 %v1843
        %v2641 = vpop.f32.mrb[0].mxu0
        %v2642 = vadd.f32 0.0, %v2641
        %v2643 = vpop.f32.mrb[0].mxu0
        %v2644 = vadd.f32 0.0, %v2643
        %2645 = vdwg.mxu0
        %2646 = vmatprep.subr.mxu0 %v1212
        %2647 = vmatpush1.msra.mxu0 %v1211
        %2648 = vmatprep.subr.mxu0 %v1244
        %2649 = vmatpush1.msra.mxu0 %v1243
        %2650 = vmatprep.subr.mxu0 %v1276
        %2651 = vmatpush1.msra.mxu0 %v1275
        %2652 = vmatprep.subr.mxu0 %v1308
        %2653 = vmatpush1.msra.mxu0 %v1307
        %2654 = vmatprep.subr.mxu0 0.0
        %2655 = vmatpush1.msra.mxu0 0.0
        %2656 = vmatprep.subr.mxu0 0.0
        %2657 = vmatpush1.msra.mxu0 0.0
        %2658 = vmatprep.subr.mxu0 0.0
        %2659 = vmatpush1.msra.mxu0 0.0
        %2660 = vmatprep.subr.mxu0 0.0
        %2661 = vmatpush1.msra.mxu0 0.0
        %2662 = vmatprep.subr.mxu0 0.0
        %2663 = vmatpush1.msra.mxu0 0.0
        %2664 = vmatprep.subr.mxu0 0.0
        %2665 = vmatpush1.msra.mxu0 0.0
        %2666 = vmatprep.subr.mxu0 0.0
        %2667 = vmatpush1.msra.mxu0 0.0
        %2668 = vmatprep.subr.mxu0 0.0
        %2669 = vmatpush1.msra.mxu0 0.0
        %2670 = vmatprep.subr.mxu0 0.0
        %2671 = vmatpush1.msra.mxu0 0.0
        %2672 = vmatprep.subr.mxu0 0.0
        %2673 = vmatpush1.msra.mxu0 0.0
        %2674 = vmatprep.subr.mxu0 0.0
        %2675 = vmatpush1.msra.mxu0 0.0
        %2676 = vmatprep.subr.mxu0 0.0
        %2677 = vmatpush1.msra.mxu0 0.0
        %2678 = vmatprep.subr.mxu0 0.0
        %2679 = vmatpush1.msra.mxu0 0.0
        %2680 = vmatprep.subr.mxu0 0.0
        %2681 = vmatpush1.msra.mxu0 0.0
        %2682 = vmatprep.subr.mxu0 0.0
        %2683 = vmatpush1.msra.mxu0 0.0
        %2684 = vmatprep.subr.mxu0 0.0
        %2685 = vmatpush1.msra.mxu0 0.0
        %2686 = vmatprep.subr.mxu0 0.0
        %2687 = vmatpush1.msra.mxu0 0.0
        %2688 = vmatprep.subr.mxu0 0.0
        %2689 = vmatpush1.msra.mxu0 0.0
        %2690 = vmatprep.subr.mxu0 0.0
        %2691 = vmatpush1.msra.mxu0 0.0
        %2692 = vmatprep.subr.mxu0 0.0
        %2693 = vmatpush1.msra.mxu0 0.0
        %2694 = vmatprep.subr.mxu0 0.0
        %2695 = vmatpush1.msra.mxu0 0.0
        %2696 = vmatprep.subr.mxu0 0.0
        %2697 = vmatpush1.msra.mxu0 0.0
        %2698 = vmatprep.subr.mxu0 0.0
        %2699 = vmatpush1.msra.mxu0 0.0
        %2700 = vmatprep.subr.mxu0 0.0
        %2701 = vmatpush1.msra.mxu0 0.0
        %2702 = vmatprep.subr.mxu0 0.0
        %2703 = vmatpush1.msra.mxu0 0.0
        %2704 = vmatprep.subr.mxu0 0.0
        %2705 = vmatpush1.msra.mxu0 0.0
        %2706 = vmatprep.subr.mxu0 0.0
        %2707 = vmatpush1.msra.mxu0 0.0
        %2708 = vmatprep.subr.mxu0 0.0
        %2709 = vmatpush1.msra.mxu0 0.0
        %2710 = vmatprep.mubr.f32.mxu0 0.0
        %2711 = vmatmul.mubr.f32.gmra.mrb[0].mxu0 %v1834
        %v2712 = vpop.f32.mrb[0].mxu0
        %v2713 = vadd.f32 0.0, %v2712
        %v2714 = vpop.f32.mrb[0].mxu0
        %v2715 = vadd.f32 0.0, %v2714
        %2716 = vmatprep.mubr.f32.mxu0 0.0
        %2717 = vmatmul.mubr.f32.gmra.mrb[0].mxu0 %v1837
        %v2718 = vpop.f32.mrb[0].mxu0
        %v2719 = vadd.f32 0.0, %v2718
        %v2720 = vpop.f32.mrb[0].mxu0
        %v2721 = vadd.f32 0.0, %v2720
        %2722 = vmatprep.mubr.f32.mxu0 0.0
        %2723 = vmatmul.mubr.f32.gmra.mrb[0].mxu0 %v1840
        %v2724 = vpop.f32.mrb[0].mxu0
        %v2725 = vadd.f32 0.0, %v2724
        %v2726 = vpop.f32.mrb[0].mxu0
        %v2727 = vadd.f32 0.0, %v2726
        %2728 = vmatprep.mubr.f32.mxu0 0.0
        %2729 = vmatmul.mubr.f32.gmra.mrb[0].mxu0 %v1843
        %v2730 = vpop.f32.mrb[0].mxu0
        %v2731 = vadd.f32 0.0, %v2730
        %v2732 = vpop.f32.mrb[0].mxu0
        %v2733 = vadd.f32 0.0, %v2732
        %2734 = vdwg.mxu0
        %2735 = vmatprep.subr.mxu0 %v1214
        %2736 = vmatpush1.msra.mxu0 %v1213
        %2737 = vmatprep.subr.mxu0 %v1246
        %2738 = vmatpush1.msra.mxu0 %v1245
        %2739 = vmatprep.subr.mxu0 %v1278
        %2740 = vmatpush1.msra.mxu0 %v1277
        %2741 = vmatprep.subr.mxu0 %v1310
        %2742 = vmatpush1.msra.mxu0 %v1309
        %2743 = vmatprep.subr.mxu0 0.0
        %2744 = vmatpush1.msra.mxu0 0.0
        %2745 = vmatprep.subr.mxu0 0.0
        %2746 = vmatpush1.msra.mxu0 0.0
        %2747 = vmatprep.subr.mxu0 0.0
        %2748 = vmatpush1.msra.mxu0 0.0
        %2749 = vmatprep.subr.mxu0 0.0
        %2750 = vmatpush1.msra.mxu0 0.0
        %2751 = vmatprep.subr.mxu0 0.0
        %2752 = vmatpush1.msra.mxu0 0.0
        %2753 = vmatprep.subr.mxu0 0.0
        %2754 = vmatpush1.msra.mxu0 0.0
        %2755 = vmatprep.subr.mxu0 0.0
        %2756 = vmatpush1.msra.mxu0 0.0
        %2757 = vmatprep.subr.mxu0 0.0
        %2758 = vmatpush1.msra.mxu0 0.0
        %2759 = vmatprep.subr.mxu0 0.0
        %2760 = vmatpush1.msra.mxu0 0.0
        %2761 = vmatprep.subr.mxu0 0.0
        %2762 = vmatpush1.msra.mxu0 0.0
        %2763 = vmatprep.subr.mxu0 0.0
        %2764 = vmatpush1.msra.mxu0 0.0
        %2765 = vmatprep.subr.mxu0 0.0
        %2766 = vmatpush1.msra.mxu0 0.0
        %2767 = vmatprep.subr.mxu0 0.0
        %2768 = vmatpush1.msra.mxu0 0.0
        %2769 = vmatprep.subr.mxu0 0.0
        %2770 = vmatpush1.msra.mxu0 0.0
        %2771 = vmatprep.subr.mxu0 0.0
        %2772 = vmatpush1.msra.mxu0 0.0
        %2773 = vmatprep.subr.mxu0 0.0
        %2774 = vmatpush1.msra.mxu0 0.0
        %2775 = vmatprep.subr.mxu0 0.0
        %2776 = vmatpush1.msra.mxu0 0.0
        %2777 = vmatprep.subr.mxu0 0.0
        %2778 = vmatpush1.msra.mxu0 0.0
        %2779 = vmatprep.subr.mxu0 0.0
        %2780 = vmatpush1.msra.mxu0 0.0
        %2781 = vmatprep.subr.mxu0 0.0
        %2782 = vmatpush1.msra.mxu0 0.0
        %2783 = vmatprep.subr.mxu0 0.0
        %2784 = vmatpush1.msra.mxu0 0.0
        %2785 = vmatprep.subr.mxu0 0.0
        %2786 = vmatpush1.msra.mxu0 0.0
        %2787 = vmatprep.subr.mxu0 0.0
        %2788 = vmatpush1.msra.mxu0 0.0
        %2789 = vmatprep.subr.mxu0 0.0
        %2790 = vmatpush1.msra.mxu0 0.0
        %2791 = vmatprep.subr.mxu0 0.0
        %2792 = vmatpush1.msra.mxu0 0.0
        %2793 = vmatprep.subr.mxu0 0.0
        %2794 = vmatpush1.msra.mxu0 0.0
        %2795 = vmatprep.subr.mxu0 0.0
        %2796 = vmatpush1.msra.mxu0 0.0
        %2797 = vmatprep.subr.mxu0 0.0
        %2798 = vmatpush1.msra.mxu0 0.0
        %2799 = vmatprep.mubr.f32.mxu0 0.0
        %2800 = vmatmul.mubr.f32.gmra.mrb[0].mxu0 %v1834
        %v2801 = vpop.f32.mrb[0].mxu0
        %v2802 = vadd.f32 0.0, %v2801
        %v2803 = vpop.f32.mrb[0].mxu0
        %v2804 = vadd.f32 0.0, %v2803
        %2805 = vmatprep.mubr.f32.mxu0 0.0
        %2806 = vmatmul.mubr.f32.gmra.mrb[0].mxu0 %v1837
        %v2807 = vpop.f32.mrb[0].mxu0
        %v2808 = vadd.f32 0.0, %v2807
        %v2809 = vpop.f32.mrb[0].mxu0
        %v2810 = vadd.f32 0.0, %v2809
        %2811 = vmatprep.mubr.f32.mxu0 0.0
        %2812 = vmatmul.mubr.f32.gmra.mrb[0].mxu0 %v1840
        %v2813 = vpop.f32.mrb[0].mxu0
        %v2814 = vadd.f32 0.0, %v2813
        %v2815 = vpop.f32.mrb[0].mxu0
        %v2816 = vadd.f32 0.0, %v2815
        %2817 = vmatprep.mubr.f32.mxu0 0.0
        %2818 = vmatmul.mubr.f32.gmra.mrb[0].mxu0 %v1843
        %v2819 = vpop.f32.mrb[0].mxu0
        %v2820 = vadd.f32 0.0, %v2819
        %v2821 = vpop.f32.mrb[0].mxu0
        %v2822 = vadd.f32 0.0, %v2821
        %2823 = vdwg.mxu0
        %2824 = vmatprep.subr.mxu0 %v1216
        %2825 = vmatpush1.msra.mxu0 %v1215
        %2826 = vmatprep.subr.mxu0 %v1248
        %2827 = vmatpush1.msra.mxu0 %v1247
        %2828 = vmatprep.subr.mxu0 %v1280
        %2829 = vmatpush1.msra.mxu0 %v1279
        %2830 = vmatprep.subr.mxu0 %v1312
        %2831 = vmatpush1.msra.mxu0 %v1311
        %2832 = vmatprep.subr.mxu0 0.0
        %2833 = vmatpush1.msra.mxu0 0.0
        %2834 = vmatprep.subr.mxu0 0.0
        %2835 = vmatpush1.msra.mxu0 0.0
        %2836 = vmatprep.subr.mxu0 0.0
        %2837 = vmatpush1.msra.mxu0 0.0
        %2838 = vmatprep.subr.mxu0 0.0
        %2839 = vmatpush1.msra.mxu0 0.0
        %2840 = vmatprep.subr.mxu0 0.0
        %2841 = vmatpush1.msra.mxu0 0.0
        %2842 = vmatprep.subr.mxu0 0.0
        %2843 = vmatpush1.msra.mxu0 0.0
        %2844 = vmatprep.subr.mxu0 0.0
        %2845 = vmatpush1.msra.mxu0 0.0
        %2846 = vmatprep.subr.mxu0 0.0
        %2847 = vmatpush1.msra.mxu0 0.0
        %2848 = vmatprep.subr.mxu0 0.0
        %2849 = vmatpush1.msra.mxu0 0.0
        %2850 = vmatprep.subr.mxu0 0.0
        %2851 = vmatpush1.msra.mxu0 0.0
        %2852 = vmatprep.subr.mxu0 0.0
        %2853 = vmatpush1.msra.mxu0 0.0
        %2854 = vmatprep.subr.mxu0 0.0
        %2855 = vmatpush1.msra.mxu0 0.0
        %2856 = vmatprep.subr.mxu0 0.0
        %2857 = vmatpush1.msra.mxu0 0.0
        %2858 = vmatprep.subr.mxu0 0.0
        %2859 = vmatpush1.msra.mxu0 0.0
        %2860 = vmatprep.subr.mxu0 0.0
        %2861 = vmatpush1.msra.mxu0 0.0
        %2862 = vmatprep.subr.mxu0 0.0
        %2863 = vmatpush1.msra.mxu0 0.0
        %2864 = vmatprep.subr.mxu0 0.0
        %2865 = vmatpush1.msra.mxu0 0.0
        %2866 = vmatprep.subr.mxu0 0.0
        %2867 = vmatpush1.msra.mxu0 0.0
        %2868 = vmatprep.subr.mxu0 0.0
        %2869 = vmatpush1.msra.mxu0 0.0
        %2870 = vmatprep.subr.mxu0 0.0
        %2871 = vmatpush1.msra.mxu0 0.0
        %2872 = vmatprep.subr.mxu0 0.0
        %2873 = vmatpush1.msra.mxu0 0.0
        %2874 = vmatprep.subr.mxu0 0.0
        %2875 = vmatpush1.msra.mxu0 0.0
        %2876 = vmatprep.subr.mxu0 0.0
        %2877 = vmatpush1.msra.mxu0 0.0
        %2878 = vmatprep.subr.mxu0 0.0
        %2879 = vmatpush1.msra.mxu0 0.0
        %2880 = vmatprep.subr.mxu0 0.0
        %2881 = vmatpush1.msra.mxu0 0.0
        %2882 = vmatprep.subr.mxu0 0.0
        %2883 = vmatpush1.msra.mxu0 0.0
        %2884 = vmatprep.subr.mxu0 0.0
        %2885 = vmatpush1.msra.mxu0 0.0
        %2886 = vmatprep.subr.mxu0 0.0
        %2887 = vmatpush1.msra.mxu0 0.0
        %2888 = vmatprep.mubr.f32.mxu0 0.0
        %2889 = vmatmul.mubr.f32.gmra.mrb[0].mxu0 %v1834
        %v2890 = vpop.f32.mrb[0].mxu0
        %v2891 = vadd.f32 0.0, %v2890
        %v2892 = vpop.f32.mrb[0].mxu0
        %v2893 = vadd.f32 0.0, %v2892
        %2894 = vmatprep.mubr.f32.mxu0 0.0
        %2895 = vmatmul.mubr.f32.gmra.mrb[0].mxu0 %v1837
        %v2896 = vpop.f32.mrb[0].mxu0
        %v2897 = vadd.f32 0.0, %v2896
        %v2898 = vpop.f32.mrb[0].mxu0
        %v2899 = vadd.f32 0.0, %v2898
        %2900 = vmatprep.mubr.f32.mxu0 0.0
        %2901 = vmatmul.mubr.f32.gmra.mrb[0].mxu0 %v1840
        %v2902 = vpop.f32.mrb[0].mxu0
        %v2903 = vadd.f32 0.0, %v2902
        %v2904 = vpop.f32.mrb[0].mxu0
        %v2905 = vadd.f32 0.0, %v2904
        %2906 = vmatprep.mubr.f32.mxu0 0.0
        %2907 = vmatmul.mubr.f32.gmra.mrb[0].mxu0 %v1843
        %v2908 = vpop.f32.mrb[0].mxu0
        %v2909 = vadd.f32 0.0, %v2908
        %v2910 = vpop.f32.mrb[0].mxu0
        %v2911 = vadd.f32 0.0, %v2910
        %2912 = vdwg.mxu0
        %2913 = vmatprep.subr.mxu0 %v1218
        %2914 = vmatpush1.msra.mxu0 %v1217
        %2915 = vmatprep.subr.mxu0 %v1250
        %2916 = vmatpush1.msra.mxu0 %v1249
        %2917 = vmatprep.subr.mxu0 %v1282
        %2918 = vmatpush1.msra.mxu0 %v1281
        %2919 = vmatprep.subr.mxu0 %v1314
        %2920 = vmatpush1.msra.mxu0 %v1313
        %2921 = vmatprep.subr.mxu0 0.0
        %2922 = vmatpush1.msra.mxu0 0.0
        %2923 = vmatprep.subr.mxu0 0.0
        %2924 = vmatpush1.msra.mxu0 0.0
        %2925 = vmatprep.subr.mxu0 0.0
        %2926 = vmatpush1.msra.mxu0 0.0
        %2927 = vmatprep.subr.mxu0 0.0
        %2928 = vmatpush1.msra.mxu0 0.0
        %2929 = vmatprep.subr.mxu0 0.0
        %2930 = vmatpush1.msra.mxu0 0.0
        %2931 = vmatprep.subr.mxu0 0.0
        %2932 = vmatpush1.msra.mxu0 0.0
        %2933 = vmatprep.subr.mxu0 0.0
        %2934 = vmatpush1.msra.mxu0 0.0
        %2935 = vmatprep.subr.mxu0 0.0
        %2936 = vmatpush1.msra.mxu0 0.0
        %2937 = vmatprep.subr.mxu0 0.0
        %2938 = vmatpush1.msra.mxu0 0.0
        %2939 = vmatprep.subr.mxu0 0.0
        %2940 = vmatpush1.msra.mxu0 0.0
        %2941 = vmatprep.subr.mxu0 0.0
        %2942 = vmatpush1.msra.mxu0 0.0
        %2943 = vmatprep.subr.mxu0 0.0
        %2944 = vmatpush1.msra.mxu0 0.0
        %2945 = vmatprep.subr.mxu0 0.0
        %2946 = vmatpush1.msra.mxu0 0.0
        %2947 = vmatprep.subr.mxu0 0.0
        %2948 = vmatpush1.msra.mxu0 0.0
        %2949 = vmatprep.subr.mxu0 0.0
        %2950 = vmatpush1.msra.mxu0 0.0
        %2951 = vmatprep.subr.mxu0 0.0
        %2952 = vmatpush1.msra.mxu0 0.0
        %2953 = vmatprep.subr.mxu0 0.0
        %2954 = vmatpush1.msra.mxu0 0.0
        %2955 = vmatprep.subr.mxu0 0.0
        %2956 = vmatpush1.msra.mxu0 0.0
        %2957 = vmatprep.subr.mxu0 0.0
        %2958 = vmatpush1.msra.mxu0 0.0
        %2959 = vmatprep.subr.mxu0 0.0
        %2960 = vmatpush1.msra.mxu0 0.0
        %2961 = vmatprep.subr.mxu0 0.0
        %2962 = vmatpush1.msra.mxu0 0.0
        %2963 = vmatprep.subr.mxu0 0.0
        %2964 = vmatpush1.msra.mxu0 0.0
        %2965 = vmatprep.subr.mxu0 0.0
        %2966 = vmatpush1.msra.mxu0 0.0
        %2967 = vmatprep.subr.mxu0 0.0
        %2968 = vmatpush1.msra.mxu0 0.0
        %2969 = vmatprep.subr.mxu0 0.0
        %2970 = vmatpush1.msra.mxu0 0.0
        %2971 = vmatprep.subr.mxu0 0.0
        %2972 = vmatpush1.msra.mxu0 0.0
        %2973 = vmatprep.subr.mxu0 0.0
        %2974 = vmatpush1.msra.mxu0 0.0
        %2975 = vmatprep.subr.mxu0 0.0
        %2976 = vmatpush1.msra.mxu0 0.0
        %2977 = vmatprep.mubr.f32.mxu0 0.0
        %2978 = vmatmul.mubr.f32.gmra.mrb[0].mxu0 %v1834
        %v2979 = vpop.f32.mrb[0].mxu0
        %v2980 = vadd.f32 0.0, %v2979
        %v2981 = vpop.f32.mrb[0].mxu0
        %v2982 = vadd.f32 0.0, %v2981
        %2983 = vmatprep.mubr.f32.mxu0 0.0
        %2984 = vmatmul.mubr.f32.gmra.mrb[0].mxu0 %v1837
        %v2985 = vpop.f32.mrb[0].mxu0
        %v2986 = vadd.f32 0.0, %v2985
        %v2987 = vpop.f32.mrb[0].mxu0
        %v2988 = vadd.f32 0.0, %v2987
        %2989 = vmatprep.mubr.f32.mxu0 0.0
        %2990 = vmatmul.mubr.f32.gmra.mrb[0].mxu0 %v1840
        %v2991 = vpop.f32.mrb[0].mxu0
        %v2992 = vadd.f32 0.0, %v2991
        %v2993 = vpop.f32.mrb[0].mxu0
        %v2994 = vadd.f32 0.0, %v2993
        %2995 = vmatprep.mubr.f32.mxu0 0.0
        %2996 = vmatmul.mubr.f32.gmra.mrb[0].mxu0 %v1843
        %v2997 = vpop.f32.mrb[0].mxu0
        %v2998 = vadd.f32 0.0, %v2997
        %v2999 = vpop.f32.mrb[0].mxu0
        %v3000 = vadd.f32 0.0, %v2999
        %3001 = vdwg.mxu0
        %3002 = vmatprep.subr.mxu0 %v1220
        %3003 = vmatpush1.msra.mxu0 %v1219
        %3004 = vmatprep.subr.mxu0 %v1252
        %3005 = vmatpush1.msra.mxu0 %v1251
        %3006 = vmatprep.subr.mxu0 %v1284
        %3007 = vmatpush1.msra.mxu0 %v1283
        %3008 = vmatprep.subr.mxu0 %v1316
        %3009 = vmatpush1.msra.mxu0 %v1315
        %3010 = vmatprep.subr.mxu0 0.0
        %3011 = vmatpush1.msra.mxu0 0.0
        %3012 = vmatprep.subr.mxu0 0.0
        %3013 = vmatpush1.msra.mxu0 0.0
        %3014 = vmatprep.subr.mxu0 0.0
        %3015 = vmatpush1.msra.mxu0 0.0
        %3016 = vmatprep.subr.mxu0 0.0
        %3017 = vmatpush1.msra.mxu0 0.0
        %3018 = vmatprep.subr.mxu0 0.0
        %3019 = vmatpush1.msra.mxu0 0.0
        %3020 = vmatprep.subr.mxu0 0.0
        %3021 = vmatpush1.msra.mxu0 0.0
        %3022 = vmatprep.subr.mxu0 0.0
        %3023 = vmatpush1.msra.mxu0 0.0
        %3024 = vmatprep.subr.mxu0 0.0
        %3025 = vmatpush1.msra.mxu0 0.0
        %3026 = vmatprep.subr.mxu0 0.0
        %3027 = vmatpush1.msra.mxu0 0.0
        %3028 = vmatprep.subr.mxu0 0.0
        %3029 = vmatpush1.msra.mxu0 0.0
        %3030 = vmatprep.subr.mxu0 0.0
        %3031 = vmatpush1.msra.mxu0 0.0
        %3032 = vmatprep.subr.mxu0 0.0
        %3033 = vmatpush1.msra.mxu0 0.0
        %3034 = vmatprep.subr.mxu0 0.0
        %3035 = vmatpush1.msra.mxu0 0.0
        %3036 = vmatprep.subr.mxu0 0.0
        %3037 = vmatpush1.msra.mxu0 0.0
        %3038 = vmatprep.subr.mxu0 0.0
        %3039 = vmatpush1.msra.mxu0 0.0
        %3040 = vmatprep.subr.mxu0 0.0
        %3041 = vmatpush1.msra.mxu0 0.0
        %3042 = vmatprep.subr.mxu0 0.0
        %3043 = vmatpush1.msra.mxu0 0.0
        %3044 = vmatprep.subr.mxu0 0.0
        %3045 = vmatpush1.msra.mxu0 0.0
        %3046 = vmatprep.subr.mxu0 0.0
        %3047 = vmatpush1.msra.mxu0 0.0
        %3048 = vmatprep.subr.mxu0 0.0
        %3049 = vmatpush1.msra.mxu0 0.0
        %3050 = vmatprep.subr.mxu0 0.0
        %3051 = vmatpush1.msra.mxu0 0.0
        %3052 = vmatprep.subr.mxu0 0.0
        %3053 = vmatpush1.msra.mxu0 0.0
        %3054 = vmatprep.subr.mxu0 0.0
        %3055 = vmatpush1.msra.mxu0 0.0
        %3056 = vmatprep.subr.mxu0 0.0
        %3057 = vmatpush1.msra.mxu0 0.0
        %3058 = vmatprep.subr.mxu0 0.0
        %3059 = vmatpush1.msra.mxu0 0.0
        %3060 = vmatprep.subr.mxu0 0.0
        %3061 = vmatpush1.msra.mxu0 0.0
        %3062 = vmatprep.subr.mxu0 0.0
        %3063 = vmatpush1.msra.mxu0 0.0
        %3064 = vmatprep.subr.mxu0 0.0
        %3065 = vmatpush1.msra.mxu0 0.0
        %3066 = vmatprep.mubr.f32.mxu0 0.0
        %3067 = vmatmul.mubr.f32.gmra.mrb[0].mxu0 %v1834
        %v3068 = vpop.f32.mrb[0].mxu0
        %v3069 = vadd.f32 0.0, %v3068
        %v3070 = vpop.f32.mrb[0].mxu0
        %v3071 = vadd.f32 0.0, %v3070
        %3072 = vmatprep.mubr.f32.mxu0 0.0
        %3073 = vmatmul.mubr.f32.gmra.mrb[0].mxu0 %v1837
        %v3074 = vpop.f32.mrb[0].mxu0
        %v3075 = vadd.f32 0.0, %v3074
        %v3076 = vpop.f32.mrb[0].mxu0
        %v3077 = vadd.f32 0.0, %v3076
        %3078 = vmatprep.mubr.f32.mxu0 0.0
        %3079 = vmatmul.mubr.f32.gmra.mrb[0].mxu0 %v1840
        %v3080 = vpop.f32.mrb[0].mxu0
        %v3081 = vadd.f32 0.0, %v3080
        %v3082 = vpop.f32.mrb[0].mxu0
        %v3083 = vadd.f32 0.0, %v3082
        %3084 = vmatprep.mubr.f32.mxu0 0.0
        %3085 = vmatmul.mubr.f32.gmra.mrb[0].mxu0 %v1843
        %v3086 = vpop.f32.mrb[0].mxu0
        %v3087 = vadd.f32 0.0, %v3086
        %v3088 = vpop.f32.mrb[0].mxu0
        %v3089 = vadd.f32 0.0, %v3088
        %3090 = vdwg.mxu0
        %3091 = vmatprep.subr.mxu0 %v1222
        %3092 = vmatpush1.msra.mxu0 %v1221
        %3093 = vmatprep.subr.mxu0 %v1254
        %3094 = vmatpush1.msra.mxu0 %v1253
        %3095 = vmatprep.subr.mxu0 %v1286
        %3096 = vmatpush1.msra.mxu0 %v1285
        %3097 = vmatprep.subr.mxu0 %v1318
        %3098 = vmatpush1.msra.mxu0 %v1317
        %3099 = vmatprep.subr.mxu0 0.0
        %3100 = vmatpush1.msra.mxu0 0.0
        %3101 = vmatprep.subr.mxu0 0.0
        %3102 = vmatpush1.msra.mxu0 0.0
        %3103 = vmatprep.subr.mxu0 0.0
        %3104 = vmatpush1.msra.mxu0 0.0
        %3105 = vmatprep.subr.mxu0 0.0
        %3106 = vmatpush1.msra.mxu0 0.0
        %3107 = vmatprep.subr.mxu0 0.0
        %3108 = vmatpush1.msra.mxu0 0.0
        %3109 = vmatprep.subr.mxu0 0.0
        %3110 = vmatpush1.msra.mxu0 0.0
        %3111 = vmatprep.subr.mxu0 0.0
        %3112 = vmatpush1.msra.mxu0 0.0
        %3113 = vmatprep.subr.mxu0 0.0
        %3114 = vmatpush1.msra.mxu0 0.0
        %3115 = vmatprep.subr.mxu0 0.0
        %3116 = vmatpush1.msra.mxu0 0.0
        %3117 = vmatprep.subr.mxu0 0.0
        %3118 = vmatpush1.msra.mxu0 0.0
        %3119 = vmatprep.subr.mxu0 0.0
        %3120 = vmatpush1.msra.mxu0 0.0
        %3121 = vmatprep.subr.mxu0 0.0
        %3122 = vmatpush1.msra.mxu0 0.0
        %3123 = vmatprep.subr.mxu0 0.0
        %3124 = vmatpush1.msra.mxu0 0.0
        %3125 = vmatprep.subr.mxu0 0.0
        %3126 = vmatpush1.msra.mxu0 0.0
        %3127 = vmatprep.subr.mxu0 0.0
        %3128 = vmatpush1.msra.mxu0 0.0
        %3129 = vmatprep.subr.mxu0 0.0
        %3130 = vmatpush1.msra.mxu0 0.0
        %3131 = vmatprep.subr.mxu0 0.0
        %3132 = vmatpush1.msra.mxu0 0.0
        %3133 = vmatprep.subr.mxu0 0.0
        %3134 = vmatpush1.msra.mxu0 0.0
        %3135 = vmatprep.subr.mxu0 0.0
        %3136 = vmatpush1.msra.mxu0 0.0
        %3137 = vmatprep.subr.mxu0 0.0
        %3138 = vmatpush1.msra.mxu0 0.0
        %3139 = vmatprep.subr.mxu0 0.0
        %3140 = vmatpush1.msra.mxu0 0.0
        %3141 = vmatprep.subr.mxu0 0.0
        %3142 = vmatpush1.msra.mxu0 0.0
        %3143 = vmatprep.subr.mxu0 0.0
        %3144 = vmatpush1.msra.mxu0 0.0
        %3145 = vmatprep.subr.mxu0 0.0
        %3146 = vmatpush1.msra.mxu0 0.0
        %3147 = vmatprep.subr.mxu0 0.0
        %3148 = vmatpush1.msra.mxu0 0.0
        %3149 = vmatprep.subr.mxu0 0.0
        %3150 = vmatpush1.msra.mxu0 0.0
        %3151 = vmatprep.subr.mxu0 0.0
        %3152 = vmatpush1.msra.mxu0 0.0
        %3153 = vmatprep.subr.mxu0 0.0
        %3154 = vmatpush1.msra.mxu0 0.0
        %3155 = vmatprep.mubr.f32.mxu0 0.0
        %3156 = vmatmul.mubr.f32.gmra.mrb[0].mxu0 %v1834
        %v3157 = vpop.f32.mrb[0].mxu0
        %v3158 = vadd.f32 0.0, %v3157
        %v3159 = vpop.f32.mrb[0].mxu0
        %v3160 = vadd.f32 0.0, %v3159
        %3161 = vmatprep.mubr.f32.mxu0 0.0
        %3162 = vmatmul.mubr.f32.gmra.mrb[0].mxu0 %v1837
        %v3163 = vpop.f32.mrb[0].mxu0
        %v3164 = vadd.f32 0.0, %v3163
        %v3165 = vpop.f32.mrb[0].mxu0
        %v3166 = vadd.f32 0.0, %v3165
        %3167 = vmatprep.mubr.f32.mxu0 0.0
        %3168 = vmatmul.mubr.f32.gmra.mrb[0].mxu0 %v1840
        %v3169 = vpop.f32.mrb[0].mxu0
        %v3170 = vadd.f32 0.0, %v3169
        %v3171 = vpop.f32.mrb[0].mxu0
        %v3172 = vadd.f32 0.0, %v3171
        %3173 = vmatprep.mubr.f32.mxu0 0.0
        %3174 = vmatmul.mubr.f32.gmra.mrb[0].mxu0 %v1843
        %v3175 = vpop.f32.mrb[0].mxu0
        %v3176 = vadd.f32 0.0, %v3175
        %v3177 = vpop.f32.mrb[0].mxu0
        %v3178 = vadd.f32 0.0, %v3177
        %3179 = vdwg.mxu0
        %3180 = vmatprep.subr.mxu0 %v1224
        %3181 = vmatpush1.msra.mxu0 %v1223
        %3182 = vmatprep.subr.mxu0 %v1256
        %3183 = vmatpush1.msra.mxu0 %v1255
        %3184 = vmatprep.subr.mxu0 %v1288
        %3185 = vmatpush1.msra.mxu0 %v1287
        %3186 = vmatprep.subr.mxu0 %v1320
        %3187 = vmatpush1.msra.mxu0 %v1319
        %3188 = vmatprep.subr.mxu0 0.0
        %3189 = vmatpush1.msra.mxu0 0.0
        %3190 = vmatprep.subr.mxu0 0.0
        %3191 = vmatpush1.msra.mxu0 0.0
        %3192 = vmatprep.subr.mxu0 0.0
        %3193 = vmatpush1.msra.mxu0 0.0
        %3194 = vmatprep.subr.mxu0 0.0
        %3195 = vmatpush1.msra.mxu0 0.0
        %3196 = vmatprep.subr.mxu0 0.0
        %3197 = vmatpush1.msra.mxu0 0.0
        %3198 = vmatprep.subr.mxu0 0.0
        %3199 = vmatpush1.msra.mxu0 0.0
        %3200 = vmatprep.subr.mxu0 0.0
        %3201 = vmatpush1.msra.mxu0 0.0
        %3202 = vmatprep.subr.mxu0 0.0
        %3203 = vmatpush1.msra.mxu0 0.0
        %3204 = vmatprep.subr.mxu0 0.0
        %3205 = vmatpush1.msra.mxu0 0.0
        %3206 = vmatprep.subr.mxu0 0.0
        %3207 = vmatpush1.msra.mxu0 0.0
        %3208 = vmatprep.subr.mxu0 0.0
        %3209 = vmatpush1.msra.mxu0 0.0
        %3210 = vmatprep.subr.mxu0 0.0
        %3211 = vmatpush1.msra.mxu0 0.0
        %3212 = vmatprep.subr.mxu0 0.0
        %3213 = vmatpush1.msra.mxu0 0.0
        %3214 = vmatprep.subr.mxu0 0.0
        %3215 = vmatpush1.msra.mxu0 0.0
        %3216 = vmatprep.subr.mxu0 0.0
        %3217 = vmatpush1.msra.mxu0 0.0
        %3218 = vmatprep.subr.mxu0 0.0
        %3219 = vmatpush1.msra.mxu0 0.0
        %3220 = vmatprep.subr.mxu0 0.0
        %3221 = vmatpush1.msra.mxu0 0.0
        %3222 = vmatprep.subr.mxu0 0.0
        %3223 = vmatpush1.msra.mxu0 0.0
        %3224 = vmatprep.subr.mxu0 0.0
        %3225 = vmatpush1.msra.mxu0 0.0
        %3226 = vmatprep.subr.mxu0 0.0
        %3227 = vmatpush1.msra.mxu0 0.0
        %3228 = vmatprep.subr.mxu0 0.0
        %3229 = vmatpush1.msra.mxu0 0.0
        %3230 = vmatprep.subr.mxu0 0.0
        %3231 = vmatpush1.msra.mxu0 0.0
        %3232 = vmatprep.subr.mxu0 0.0
        %3233 = vmatpush1.msra.mxu0 0.0
        %3234 = vmatprep.subr.mxu0 0.0
        %3235 = vmatpush1.msra.mxu0 0.0
        %3236 = vmatprep.subr.mxu0 0.0
        %3237 = vmatpush1.msra.mxu0 0.0
        %3238 = vmatprep.subr.mxu0 0.0
        %3239 = vmatpush1.msra.mxu0 0.0
        %3240 = vmatprep.subr.mxu0 0.0
        %3241 = vmatpush1.msra.mxu0 0.0
        %3242 = vmatprep.subr.mxu0 0.0
        %3243 = vmatpush1.msra.mxu0 0.0
        %3244 = vmatprep.mubr.f32.mxu0 0.0
        %3245 = vmatmul.mubr.f32.gmra.mrb[0].mxu0 %v1834
        %v3246 = vpop.f32.mrb[0].mxu0
        %v3247 = vadd.f32 0.0, %v3246
        %v3248 = vpop.f32.mrb[0].mxu0
        %v3249 = vadd.f32 0.0, %v3248
        %3250 = vmatprep.mubr.f32.mxu0 0.0
        %3251 = vmatmul.mubr.f32.gmra.mrb[0].mxu0 %v1837
        %v3252 = vpop.f32.mrb[0].mxu0
        %v3253 = vadd.f32 0.0, %v3252
        %v3254 = vpop.f32.mrb[0].mxu0
        %v3255 = vadd.f32 0.0, %v3254
        %3256 = vmatprep.mubr.f32.mxu0 0.0
        %3257 = vmatmul.mubr.f32.gmra.mrb[0].mxu0 %v1840
        %v3258 = vpop.f32.mrb[0].mxu0
        %v3259 = vadd.f32 0.0, %v3258
        %v3260 = vpop.f32.mrb[0].mxu0
        %v3261 = vadd.f32 0.0, %v3260
        %3262 = vmatprep.mubr.f32.mxu0 0.0
        %3263 = vmatmul.mubr.f32.gmra.mrb[0].mxu0 %v1843
        %v3264 = vpop.f32.mrb[0].mxu0
        %v3265 = vadd.f32 0.0, %v3264
        %v3266 = vpop.f32.mrb[0].mxu0
        %v3267 = vadd.f32 0.0, %v3266
        %3268 = vdwg.mxu0
        %v3269 = vmul.f32 %v1705, %v1912
        %v3270 = vmul.f32 %v1706, %v1914
        %v3271 = vmul.f32 %v1707, %v2001
        %v3272 = vmul.f32 %v1708, %v2003
        %v3273 = vmul.f32 %v1709, %v2090
        %v3274 = vmul.f32 %v1710, %v2092
        %v3275 = vmul.f32 %v1711, %v2179
        %v3276 = vmul.f32 %v1712, %v2181
        %v3277 = vmul.f32 %v1713, %v2268
        %v3278 = vmul.f32 %v1714, %v2270
        %v3279 = vmul.f32 %v1715, %v2357
        %v3280 = vmul.f32 %v1716, %v2359
        %v3281 = vmul.f32 %v1717, %v2446
        %v3282 = vmul.f32 %v1718, %v2448
        %v3283 = vmul.f32 %v1719, %v2535
        %v3284 = vmul.f32 %v1720, %v2537
        %v3285 = vmul.f32 %v1721, %v2624
        %v3286 = vmul.f32 %v1722, %v2626
        %v3287 = vmul.f32 %v1723, %v2713
        %v3288 = vmul.f32 %v1724, %v2715
        %v3289 = vmul.f32 %v1725, %v2802
        %v3290 = vmul.f32 %v1726, %v2804
        %v3291 = vmul.f32 %v1727, %v2891
        %v3292 = vmul.f32 %v1728, %v2893
        %v3293 = vmul.f32 %v1729, %v2980
        %v3294 = vmul.f32 %v1730, %v2982
        %v3295 = vmul.f32 %v1731, %v3069
        %v3296 = vmul.f32 %v1732, %v3071
        %v3297 = vmul.f32 %v1733, %v3158
        %v3298 = vmul.f32 %v1734, %v3160
        %v3299 = vmul.f32 %v1735, %v3247
        %v3300 = vmul.f32 %v1736, %v3249
        %v3301 = vmul.f32 %v1737, %v1918
        %v3302 = vmul.f32 %v1738, %v1920
        %v3303 = vmul.f32 %v1739, %v2007
        %v3304 = vmul.f32 %v1740, %v2009
        %v3305 = vmul.f32 %v1741, %v2096
        %v3306 = vmul.f32 %v1742, %v2098
        %v3307 = vmul.f32 %v1743, %v2185
        %v3308 = vmul.f32 %v1744, %v2187
        %v3309 = vmul.f32 %v1745, %v2274
        %v3310 = vmul.f32 %v1746, %v2276
        %v3311 = vmul.f32 %v1747, %v2363
        %v3312 = vmul.f32 %v1748, %v2365
        %v3313 = vmul.f32 %v1749, %v2452
        %v3314 = vmul.f32 %v1750, %v2454
        %v3315 = vmul.f32 %v1751, %v2541
        %v3316 = vmul.f32 %v1752, %v2543
        %v3317 = vmul.f32 %v1753, %v2630
        %v3318 = vmul.f32 %v1754, %v2632
        %v3319 = vmul.f32 %v1755, %v2719
        %v3320 = vmul.f32 %v1756, %v2721
        %v3321 = vmul.f32 %v1757, %v2808
        %v3322 = vmul.f32 %v1758, %v2810
        %v3323 = vmul.f32 %v1759, %v2897
        %v3324 = vmul.f32 %v1760, %v2899
        %v3325 = vmul.f32 %v1761, %v2986
        %v3326 = vmul.f32 %v1762, %v2988
        %v3327 = vmul.f32 %v1763, %v3075
        %v3328 = vmul.f32 %v1764, %v3077
        %v3329 = vmul.f32 %v1765, %v3164
        %v3330 = vmul.f32 %v1766, %v3166
        %v3331 = vmul.f32 %v1767, %v3253
        %v3332 = vmul.f32 %v1768, %v3255
        %v3333 = vmul.f32 %v1769, %v1924
        %v3334 = vmul.f32 %v1770, %v1926
        %v3335 = vmul.f32 %v1771, %v2013
        %v3336 = vmul.f32 %v1772, %v2015
        %v3337 = vmul.f32 %v1773, %v2102
        %v3338 = vmul.f32 %v1774, %v2104
        %v3339 = vmul.f32 %v1775, %v2191
        %v3340 = vmul.f32 %v1776, %v2193
        %v3341 = vmul.f32 %v1777, %v2280
        %v3342 = vmul.f32 %v1778, %v2282
        %v3343 = vmul.f32 %v1779, %v2369
        %v3344 = vmul.f32 %v1780, %v2371
        %v3345 = vmul.f32 %v1781, %v2458
        %v3346 = vmul.f32 %v1782, %v2460
        %v3347 = vmul.f32 %v1783, %v2547
        %v3348 = vmul.f32 %v1784, %v2549
        %v3349 = vmul.f32 %v1785, %v2636
        %v3350 = vmul.f32 %v1786, %v2638
        %v3351 = vmul.f32 %v1787, %v2725
        %v3352 = vmul.f32 %v1788, %v2727
        %v3353 = vmul.f32 %v1789, %v2814
        %v3354 = vmul.f32 %v1790, %v2816
        %v3355 = vmul.f32 %v1791, %v2903
        %v3356 = vmul.f32 %v1792, %v2905
        %v3357 = vmul.f32 %v1793, %v2992
        %v3358 = vmul.f32 %v1794, %v2994
        %v3359 = vmul.f32 %v1795, %v3081
        %v3360 = vmul.f32 %v1796, %v3083
        %v3361 = vmul.f32 %v1797, %v3170
        %v3362 = vmul.f32 %v1798, %v3172
        %v3363 = vmul.f32 %v1799, %v3259
        %v3364 = vmul.f32 %v1800, %v3261
        %v3365 = vmul.f32 %v1801, %v1930
        %v3366 = vmul.f32 %v1802, %v1932
        %v3367 = vmul.f32 %v1803, %v2019
        %v3368 = vmul.f32 %v1804, %v2021
        %v3369 = vmul.f32 %v1805, %v2108
        %v3370 = vmul.f32 %v1806, %v2110
        %v3371 = vmul.f32 %v1807, %v2197
        %v3372 = vmul.f32 %v1808, %v2199
        %v3373 = vmul.f32 %v1809, %v2286
        %v3374 = vmul.f32 %v1810, %v2288
        %v3375 = vmul.f32 %v1811, %v2375
        %v3376 = vmul.f32 %v1812, %v2377
        %v3377 = vmul.f32 %v1813, %v2464
        %v3378 = vmul.f32 %v1814, %v2466
        %v3379 = vmul.f32 %v1815, %v2553
        %v3380 = vmul.f32 %v1816, %v2555
        %v3381 = vmul.f32 %v1817, %v2642
        %v3382 = vmul.f32 %v1818, %v2644
        %v3383 = vmul.f32 %v1819, %v2731
        %v3384 = vmul.f32 %v1820, %v2733
        %v3385 = vmul.f32 %v1821, %v2820
        %v3386 = vmul.f32 %v1822, %v2822
        %v3387 = vmul.f32 %v1823, %v2909
        %v3388 = vmul.f32 %v1824, %v2911
        %v3389 = vmul.f32 %v1825, %v2998
        %v3390 = vmul.f32 %v1826, %v3000
        %v3391 = vmul.f32 %v1827, %v3087
        %v3392 = vmul.f32 %v1828, %v3089
        %v3393 = vmul.f32 %v1829, %v3176
        %v3394 = vmul.f32 %v1830, %v3178
        %v3395 = vmul.f32 %v1831, %v3265
        %v3396 = vmul.f32 %v1832, %v3267
        %v3397 = vadd.f32 %v3269, %v3301
        %v3398 = vadd.f32 %v3397, %v3333
        %v3399 = vadd.f32 %v3398, %v3365
        %v3400 = vrot.slane %v3399, 4
        %v3401 = vadd.f32 %v3399, %v3400
        %v3402 = vrot.slane %v3401, 2
        %v3403 = vadd.f32 %v3401, %v3402
        %v3404 = vrot.slane %v3403, 1
        %v3405 = vadd.f32 %v3403, %v3404
        %v3406 = vadd.f32 %v3270, %v3302
        %v3407 = vadd.f32 %v3406, %v3334
        %v3408 = vadd.f32 %v3407, %v3366
        %v3409 = vrot.slane %v3408, 4
        %v3410 = vadd.f32 %v3408, %v3409
        %v3411 = vrot.slane %v3410, 2
        %v3412 = vadd.f32 %v3410, %v3411
        %v3413 = vrot.slane %v3412, 1
        %v3414 = vadd.f32 %v3412, %v3413
        %v3415 = vadd.f32 %v3271, %v3303
        %v3416 = vadd.f32 %v3415, %v3335
        %v3417 = vadd.f32 %v3416, %v3367
        %v3418 = vrot.slane %v3417, 4
        %v3419 = vadd.f32 %v3417, %v3418
        %v3420 = vrot.slane %v3419, 2
        %v3421 = vadd.f32 %v3419, %v3420
        %v3422 = vrot.slane %v3421, 1
        %v3423 = vadd.f32 %v3421, %v3422
        %v3424 = vadd.f32 %v3272, %v3304
        %v3425 = vadd.f32 %v3424, %v3336
        %v3426 = vadd.f32 %v3425, %v3368
        %v3427 = vrot.slane %v3426, 4
        %v3428 = vadd.f32 %v3426, %v3427
        %v3429 = vrot.slane %v3428, 2
        %v3430 = vadd.f32 %v3428, %v3429
        %v3431 = vrot.slane %v3430, 1
        %v3432 = vadd.f32 %v3430, %v3431
        %v3433 = vadd.f32 %v3273, %v3305
        %v3434 = vadd.f32 %v3433, %v3337
        %v3435 = vadd.f32 %v3434, %v3369
        %v3436 = vrot.slane %v3435, 4
        %v3437 = vadd.f32 %v3435, %v3436
        %v3438 = vrot.slane %v3437, 2
        %v3439 = vadd.f32 %v3437, %v3438
        %v3440 = vrot.slane %v3439, 1
        %v3441 = vadd.f32 %v3439, %v3440
        %v3442 = vadd.f32 %v3274, %v3306
        %v3443 = vadd.f32 %v3442, %v3338
        %v3444 = vadd.f32 %v3443, %v3370
        %v3445 = vrot.slane %v3444, 4
        %v3446 = vadd.f32 %v3444, %v3445
        %v3447 = vrot.slane %v3446, 2
        %v3448 = vadd.f32 %v3446, %v3447
        %v3449 = vrot.slane %v3448, 1
        %v3450 = vadd.f32 %v3448, %v3449
        %v3451 = vadd.f32 %v3275, %v3307
        %v3452 = vadd.f32 %v3451, %v3339
        %v3453 = vadd.f32 %v3452, %v3371
        %v3454 = vrot.slane %v3453, 4
        %v3455 = vadd.f32 %v3453, %v3454
        %v3456 = vrot.slane %v3455, 2
        %v3457 = vadd.f32 %v3455, %v3456
        %v3458 = vrot.slane %v3457, 1
        %v3459 = vadd.f32 %v3457, %v3458
        %v3460 = vadd.f32 %v3276, %v3308
        %v3461 = vadd.f32 %v3460, %v3340
        %v3462 = vadd.f32 %v3461, %v3372
        %v3463 = vrot.slane %v3462, 4
        %v3464 = vadd.f32 %v3462, %v3463
        %v3465 = vrot.slane %v3464, 2
        %v3466 = vadd.f32 %v3464, %v3465
        %v3467 = vrot.slane %v3466, 1
        %v3468 = vadd.f32 %v3466, %v3467
        %v3469 = vadd.f32 %v3277, %v3309
        %v3470 = vadd.f32 %v3469, %v3341
        %v3471 = vadd.f32 %v3470, %v3373
        %v3472 = vrot.slane %v3471, 4
        %v3473 = vadd.f32 %v3471, %v3472
        %v3474 = vrot.slane %v3473, 2
        %v3475 = vadd.f32 %v3473, %v3474
        %v3476 = vrot.slane %v3475, 1
        %v3477 = vadd.f32 %v3475, %v3476
        %v3478 = vadd.f32 %v3278, %v3310
        %v3479 = vadd.f32 %v3478, %v3342
        %v3480 = vadd.f32 %v3479, %v3374
        %v3481 = vrot.slane %v3480, 4
        %v3482 = vadd.f32 %v3480, %v3481
        %v3483 = vrot.slane %v3482, 2
        %v3484 = vadd.f32 %v3482, %v3483
        %v3485 = vrot.slane %v3484, 1
        %v3486 = vadd.f32 %v3484, %v3485
        %v3487 = vadd.f32 %v3279, %v3311
        %v3488 = vadd.f32 %v3487, %v3343
        %v3489 = vadd.f32 %v3488, %v3375
        %v3490 = vrot.slane %v3489, 4
        %v3491 = vadd.f32 %v3489, %v3490
        %v3492 = vrot.slane %v3491, 2
        %v3493 = vadd.f32 %v3491, %v3492
        %v3494 = vrot.slane %v3493, 1
        %v3495 = vadd.f32 %v3493, %v3494
        %v3496 = vadd.f32 %v3280, %v3312
        %v3497 = vadd.f32 %v3496, %v3344
        %v3498 = vadd.f32 %v3497, %v3376
        %v3499 = vrot.slane %v3498, 4
        %v3500 = vadd.f32 %v3498, %v3499
        %v3501 = vrot.slane %v3500, 2
        %v3502 = vadd.f32 %v3500, %v3501
        %v3503 = vrot.slane %v3502, 1
        %v3504 = vadd.f32 %v3502, %v3503
        %v3505 = vadd.f32 %v3281, %v3313
        %v3506 = vadd.f32 %v3505, %v3345
        %v3507 = vadd.f32 %v3506, %v3377
        %v3508 = vrot.slane %v3507, 4
        %v3509 = vadd.f32 %v3507, %v3508
        %v3510 = vrot.slane %v3509, 2
        %v3511 = vadd.f32 %v3509, %v3510
        %v3512 = vrot.slane %v3511, 1
        %v3513 = vadd.f32 %v3511, %v3512
        %v3514 = vadd.f32 %v3282, %v3314
        %v3515 = vadd.f32 %v3514, %v3346
        %v3516 = vadd.f32 %v3515, %v3378
        %v3517 = vrot.slane %v3516, 4
        %v3518 = vadd.f32 %v3516, %v3517
        %v3519 = vrot.slane %v3518, 2
        %v3520 = vadd.f32 %v3518, %v3519
        %v3521 = vrot.slane %v3520, 1
        %v3522 = vadd.f32 %v3520, %v3521
        %v3523 = vadd.f32 %v3283, %v3315
        %v3524 = vadd.f32 %v3523, %v3347
        %v3525 = vadd.f32 %v3524, %v3379
        %v3526 = vrot.slane %v3525, 4
        %v3527 = vadd.f32 %v3525, %v3526
        %v3528 = vrot.slane %v3527, 2
        %v3529 = vadd.f32 %v3527, %v3528
        %v3530 = vrot.slane %v3529, 1
        %v3531 = vadd.f32 %v3529, %v3530
        %v3532 = vadd.f32 %v3284, %v3316
        %v3533 = vadd.f32 %v3532, %v3348
        %v3534 = vadd.f32 %v3533, %v3380
        %v3535 = vrot.slane %v3534, 4
        %v3536 = vadd.f32 %v3534, %v3535
        %v3537 = vrot.slane %v3536, 2
        %v3538 = vadd.f32 %v3536, %v3537
        %v3539 = vrot.slane %v3538, 1
        %v3540 = vadd.f32 %v3538, %v3539
        %v3541 = vadd.f32 %v3285, %v3317
        %v3542 = vadd.f32 %v3541, %v3349
        %v3543 = vadd.f32 %v3542, %v3381
        %v3544 = vrot.slane %v3543, 4
        %v3545 = vadd.f32 %v3543, %v3544
        %v3546 = vrot.slane %v3545, 2
        %v3547 = vadd.f32 %v3545, %v3546
        %v3548 = vrot.slane %v3547, 1
        %v3549 = vadd.f32 %v3547, %v3548
        %v3550 = vadd.f32 %v3286, %v3318
        %v3551 = vadd.f32 %v3550, %v3350
        %v3552 = vadd.f32 %v3551, %v3382
        %v3553 = vrot.slane %v3552, 4
        %v3554 = vadd.f32 %v3552, %v3553
        %v3555 = vrot.slane %v3554, 2
        %v3556 = vadd.f32 %v3554, %v3555
        %v3557 = vrot.slane %v3556, 1
        %v3558 = vadd.f32 %v3556, %v3557
        %v3559 = vadd.f32 %v3287, %v3319
        %v3560 = vadd.f32 %v3559, %v3351
        %v3561 = vadd.f32 %v3560, %v3383
        %v3562 = vrot.slane %v3561, 4
        %v3563 = vadd.f32 %v3561, %v3562
        %v3564 = vrot.slane %v3563, 2
        %v3565 = vadd.f32 %v3563, %v3564
        %v3566 = vrot.slane %v3565, 1
        %v3567 = vadd.f32 %v3565, %v3566
        %v3568 = vadd.f32 %v3288, %v3320
        %v3569 = vadd.f32 %v3568, %v3352
        %v3570 = vadd.f32 %v3569, %v3384
        %v3571 = vrot.slane %v3570, 4
        %v3572 = vadd.f32 %v3570, %v3571
        %v3573 = vrot.slane %v3572, 2
        %v3574 = vadd.f32 %v3572, %v3573
        %v3575 = vrot.slane %v3574, 1
        %v3576 = vadd.f32 %v3574, %v3575
        %v3577 = vadd.f32 %v3289, %v3321
        %v3578 = vadd.f32 %v3577, %v3353
        %v3579 = vadd.f32 %v3578, %v3385
        %v3580 = vrot.slane %v3579, 4
        %v3581 = vadd.f32 %v3579, %v3580
        %v3582 = vrot.slane %v3581, 2
        %v3583 = vadd.f32 %v3581, %v3582
        %v3584 = vrot.slane %v3583, 1
        %v3585 = vadd.f32 %v3583, %v3584
        %v3586 = vadd.f32 %v3290, %v3322
        %v3587 = vadd.f32 %v3586, %v3354
        %v3588 = vadd.f32 %v3587, %v3386
        %v3589 = vrot.slane %v3588, 4
        %v3590 = vadd.f32 %v3588, %v3589
        %v3591 = vrot.slane %v3590, 2
        %v3592 = vadd.f32 %v3590, %v3591
        %v3593 = vrot.slane %v3592, 1
        %v3594 = vadd.f32 %v3592, %v3593
        %v3595 = vadd.f32 %v3291, %v3323
        %v3596 = vadd.f32 %v3595, %v3355
        %v3597 = vadd.f32 %v3596, %v3387
        %v3598 = vrot.slane %v3597, 4
        %v3599 = vadd.f32 %v3597, %v3598
        %v3600 = vrot.slane %v3599, 2
        %v3601 = vadd.f32 %v3599, %v3600
        %v3602 = vrot.slane %v3601, 1
        %v3603 = vadd.f32 %v3601, %v3602
        %v3604 = vadd.f32 %v3292, %v3324
        %v3605 = vadd.f32 %v3604, %v3356
        %v3606 = vadd.f32 %v3605, %v3388
        %v3607 = vrot.slane %v3606, 4
        %v3608 = vadd.f32 %v3606, %v3607
        %v3609 = vrot.slane %v3608, 2
        %v3610 = vadd.f32 %v3608, %v3609
        %v3611 = vrot.slane %v3610, 1
        %v3612 = vadd.f32 %v3610, %v3611
        %v3613 = vadd.f32 %v3293, %v3325
        %v3614 = vadd.f32 %v3613, %v3357
        %v3615 = vadd.f32 %v3614, %v3389
        %v3616 = vrot.slane %v3615, 4
        %v3617 = vadd.f32 %v3615, %v3616
        %v3618 = vrot.slane %v3617, 2
        %v3619 = vadd.f32 %v3617, %v3618
        %v3620 = vrot.slane %v3619, 1
        %v3621 = vadd.f32 %v3619, %v3620
        %v3622 = vadd.f32 %v3294, %v3326
        %v3623 = vadd.f32 %v3622, %v3358
        %v3624 = vadd.f32 %v3623, %v3390
        %v3625 = vrot.slane %v3624, 4
        %v3626 = vadd.f32 %v3624, %v3625
        %v3627 = vrot.slane %v3626, 2
        %v3628 = vadd.f32 %v3626, %v3627
        %v3629 = vrot.slane %v3628, 1
        %v3630 = vadd.f32 %v3628, %v3629
        %v3631 = vadd.f32 %v3295, %v3327
        %v3632 = vadd.f32 %v3631, %v3359
        %v3633 = vadd.f32 %v3632, %v3391
        %v3634 = vrot.slane %v3633, 4
        %v3635 = vadd.f32 %v3633, %v3634
        %v3636 = vrot.slane %v3635, 2
        %v3637 = vadd.f32 %v3635, %v3636
        %v3638 = vrot.slane %v3637, 1
        %v3639 = vadd.f32 %v3637, %v3638
        %v3640 = vadd.f32 %v3296, %v3328
        %v3641 = vadd.f32 %v3640, %v3360
        %v3642 = vadd.f32 %v3641, %v3392
        %v3643 = vrot.slane %v3642, 4
        %v3644 = vadd.f32 %v3642, %v3643
        %v3645 = vrot.slane %v3644, 2
        %v3646 = vadd.f32 %v3644, %v3645
        %v3647 = vrot.slane %v3646, 1
        %v3648 = vadd.f32 %v3646, %v3647
        %v3649 = vadd.f32 %v3297, %v3329
        %v3650 = vadd.f32 %v3649, %v3361
        %v3651 = vadd.f32 %v3650, %v3393
        %v3652 = vrot.slane %v3651, 4
        %v3653 = vadd.f32 %v3651, %v3652
        %v3654 = vrot.slane %v3653, 2
        %v3655 = vadd.f32 %v3653, %v3654
        %v3656 = vrot.slane %v3655, 1
        %v3657 = vadd.f32 %v3655, %v3656
        %v3658 = vadd.f32 %v3298, %v3330
        %v3659 = vadd.f32 %v3658, %v3362
        %v3660 = vadd.f32 %v3659, %v3394
        %v3661 = vrot.slane %v3660, 4
        %v3662 = vadd.f32 %v3660, %v3661
        %v3663 = vrot.slane %v3662, 2
        %v3664 = vadd.f32 %v3662, %v3663
        %v3665 = vrot.slane %v3664, 1
        %v3666 = vadd.f32 %v3664, %v3665
        %v3667 = vadd.f32 %v3299, %v3331
        %v3668 = vadd.f32 %v3667, %v3363
        %v3669 = vadd.f32 %v3668, %v3395
        %v3670 = vrot.slane %v3669, 4
        %v3671 = vadd.f32 %v3669, %v3670
        %v3672 = vrot.slane %v3671, 2
        %v3673 = vadd.f32 %v3671, %v3672
        %v3674 = vrot.slane %v3673, 1
        %v3675 = vadd.f32 %v3673, %v3674
        %v3676 = vadd.f32 %v3300, %v3332
        %v3677 = vadd.f32 %v3676, %v3364
        %v3678 = vadd.f32 %v3677, %v3396
        %v3679 = vrot.slane %v3678, 4
        %v3680 = vadd.f32 %v3678, %v3679
        %v3681 = vrot.slane %v3680, 2
        %v3682 = vadd.f32 %v3680, %v3681
        %v3683 = vrot.slane %v3682, 1
        %v3684 = vadd.f32 %v3682, %v3683
        %v3685 = vmul.f32 %v3405, %v660
        %v3686 = vmul.f32 %v3414, %v745
        %v3687 = vmul.f32 %v3423, %v747
        %v3688 = vmul.f32 %v3432, %v749
        %v3689 = vmul.f32 %v3441, %v751
        %v3690 = vmul.f32 %v3450, %v753
        %v3691 = vmul.f32 %v3459, %v755
        %v3692 = vmul.f32 %v3468, %v757
        %v3693 = vmul.f32 %v3477, %v661
        %v3694 = vmul.f32 %v3486, %v760
        %v3695 = vmul.f32 %v3495, %v762
        %v3696 = vmul.f32 %v3504, %v764
        %v3697 = vmul.f32 %v3513, %v766
        %v3698 = vmul.f32 %v3522, %v768
        %v3699 = vmul.f32 %v3531, %v770
        %v3700 = vmul.f32 %v3540, %v772
        %v3701 = vmul.f32 %v3549, %v662
        %v3702 = vmul.f32 %v3558, %v775
        %v3703 = vmul.f32 %v3567, %v777
        %v3704 = vmul.f32 %v3576, %v779
        %v3705 = vmul.f32 %v3585, %v781
        %v3706 = vmul.f32 %v3594, %v783
        %v3707 = vmul.f32 %v3603, %v785
        %v3708 = vmul.f32 %v3612, %v787
        %v3709 = vmul.f32 %v3621, %v663
        %v3710 = vmul.f32 %v3630, %v790
        %v3711 = vmul.f32 %v3639, %v792
        %v3712 = vmul.f32 %v3648, %v794
        %v3713 = vmul.f32 %v3657, %v796
        %v3714 = vmul.f32 %v3666, %v798
        %v3715 = vmul.f32 %v3675, %v800
        %v3716 = vmul.f32 %v3684, %v802
        %v3717 = vrot.slane %v745, 7
        %v3718 = vrot.slane %v747, 7
        %v3719 = vrot.slane %v749, 7
        %v3720 = vrot.slane %v751, 7
        %v3721 = vrot.slane %v753, 7
        %v3722 = vrot.slane %v755, 7
        %v3723 = vrot.slane %v757, 7
        %v3724 = vrot.slane %v760, 7
        %v3725 = vrot.slane %v762, 7
        %v3726 = vrot.slane %v764, 7
        %v3727 = vrot.slane %v766, 7
        %v3728 = vrot.slane %v768, 7
        %v3729 = vrot.slane %v770, 7
        %v3730 = vrot.slane %v772, 7
        %v3731 = vrot.slane %v775, 7
        %v3732 = vrot.slane %v777, 7
        %v3733 = vrot.slane %v779, 7
        %v3734 = vrot.slane %v781, 7
        %v3735 = vrot.slane %v783, 7
        %v3736 = vrot.slane %v785, 7
        %v3737 = vrot.slane %v787, 7
        %v3738 = vrot.slane %v790, 7
        %v3739 = vrot.slane %v792, 7
        %v3740 = vrot.slane %v794, 7
        %v3741 = vrot.slane %v796, 7
        %v3742 = vrot.slane %v798, 7
        %v3743 = vrot.slane %v800, 7
        %v3744 = vrot.slane %v802, 7
        %vm3773 = vcmask 1040384
        %v3774 = vsel %vm3773, %v3685, %v757
        %v3775 = vsel %vm3773, %v3686, %v3717
        %v3776 = vsel %vm3773, %v3687, %v3718
        %v3777 = vsel %vm3773, %v3688, %v3719
        %v3778 = vsel %vm3773, %v3689, %v3720
        %v3779 = vsel %vm3773, %v3690, %v3721
        %v3780 = vsel %vm3773, %v3691, %v3722
        %v3781 = vsel %vm3773, %v3692, %v3723
        %v3782 = vsel %vm3773, %v3693, %v772
        %v3783 = vsel %vm3773, %v3694, %v3724
        %v3784 = vsel %vm3773, %v3695, %v3725
        %v3785 = vsel %vm3773, %v3696, %v3726
        %v3786 = vsel %vm3773, %v3697, %v3727
        %v3787 = vsel %vm3773, %v3698, %v3728
        %v3788 = vsel %vm3773, %v3699, %v3729
        %v3789 = vsel %vm3773, %v3700, %v3730
        %v3790 = vsel %vm3773, %v3701, %v787
        %v3791 = vsel %vm3773, %v3702, %v3731
        %v3792 = vsel %vm3773, %v3703, %v3732
        %v3793 = vsel %vm3773, %v3704, %v3733
        %v3794 = vsel %vm3773, %v3705, %v3734
        %v3795 = vsel %vm3773, %v3706, %v3735
        %v3796 = vsel %vm3773, %v3707, %v3736
        %v3797 = vsel %vm3773, %v3708, %v3737
        %v3798 = vsel %vm3773, %v3709, %v802
        %v3799 = vsel %vm3773, %v3710, %v3738
        %v3800 = vsel %vm3773, %v3711, %v3739
        %v3801 = vsel %vm3773, %v3712, %v3740
        %v3802 = vsel %vm3773, %v3713, %v3741
        %v3803 = vsel %vm3773, %v3714, %v3742
        %v3804 = vsel %vm3773, %v3715, %v3743
        %v3805 = vsel %vm3773, %v3716, %v3744
        %v3806 = vld [vmem:[#allocation12] sm:$0xff]
        %v3807 = vld [vmem:[#allocation12 + $0x8] sm:$0xff]
        %v3808 = vld [vmem:[#allocation12 + $0x10] sm:$0xff]
        %v3809 = vld [vmem:[#allocation12 + $0x18] sm:$0xff]
        %v3810 = vld [vmem:[#allocation12 + $0x20] sm:$0xff]
        %v3811 = vld [vmem:[#allocation12 + $0x28] sm:$0xff]
        %v3812 = vld [vmem:[#allocation12 + $0x30] sm:$0xff]
        %v3813 = vld [vmem:[#allocation12 + $0x38] sm:$0xff]
        %v3814 = vld [vmem:[#allocation12 + $0x40] sm:$0xff]
        %v3815 = vld [vmem:[#allocation12 + $0x48] sm:$0xff]
        %v3816 = vld [vmem:[#allocation12 + $0x50] sm:$0xff]
        %v3817 = vld [vmem:[#allocation12 + $0x58] sm:$0xff]
        %v3818 = vld [vmem:[#allocation12 + $0x60] sm:$0xff]
        %v3819 = vld [vmem:[#allocation12 + $0x68] sm:$0xff]
        %v3820 = vld [vmem:[#allocation12 + $0x70] sm:$0xff]
        %v3821 = vld [vmem:[#allocation12 + $0x78] sm:$0xff]
        %v3822 = vld [vmem:[#allocation12 + $0x80] sm:$0xff]
        %v3823 = vld [vmem:[#allocation12 + $0x88] sm:$0xff]
        %v3824 = vld [vmem:[#allocation12 + $0x90] sm:$0xff]
        %v3825 = vld [vmem:[#allocation12 + $0x98] sm:$0xff]
        %v3826 = vld [vmem:[#allocation12 + $0xa0] sm:$0xff]
        %v3827 = vld [vmem:[#allocation12 + $0xa8] sm:$0xff]
        %v3828 = vld [vmem:[#allocation12 + $0xb0] sm:$0xff]
        %v3829 = vld [vmem:[#allocation12 + $0xb8] sm:$0xff]
        %v3830 = vld [vmem:[#allocation12 + $0xc0] sm:$0xff]
        %v3831 = vld [vmem:[#allocation12 + $0xc8] sm:$0xff]
        %v3832 = vld [vmem:[#allocation12 + $0xd0] sm:$0xff]
        %v3833 = vld [vmem:[#allocation12 + $0xd8] sm:$0xff]
        %v3834 = vld [vmem:[#allocation12 + $0xe0] sm:$0xff]
        %v3835 = vld [vmem:[#allocation12 + $0xe8] sm:$0xff]
        %v3836 = vld [vmem:[#allocation12 + $0xf0] sm:$0xff]
        %v3837 = vld [vmem:[#allocation12 + $0xf8] sm:$0xff]
        %v3838 = vld [vmem:[#allocation12 + $0x100] sm:$0xff]
        %v3839 = vld [vmem:[#allocation12 + $0x108] sm:$0xff]
        %v3840 = vld [vmem:[#allocation12 + $0x110] sm:$0xff]
        %v3841 = vld [vmem:[#allocation12 + $0x118] sm:$0xff]
        %v3842 = vld [vmem:[#allocation12 + $0x120] sm:$0xff]
        %v3843 = vld [vmem:[#allocation12 + $0x128] sm:$0xff]
        %v3844 = vld [vmem:[#allocation12 + $0x130] sm:$0xff]
        %v3845 = vld [vmem:[#allocation12 + $0x138] sm:$0xff]
        %v3846 = vld [vmem:[#allocation12 + $0x140] sm:$0xff]
        %v3847 = vld [vmem:[#allocation12 + $0x148] sm:$0xff]
        %v3848 = vld [vmem:[#allocation12 + $0x150] sm:$0xff]
        %v3849 = vld [vmem:[#allocation12 + $0x158] sm:$0xff]
        %v3850 = vld [vmem:[#allocation12 + $0x160] sm:$0xff]
        %v3851 = vld [vmem:[#allocation12 + $0x168] sm:$0xff]
        %v3852 = vld [vmem:[#allocation12 + $0x170] sm:$0xff]
        %v3853 = vld [vmem:[#allocation12 + $0x178] sm:$0xff]
        %v3854 = vld [vmem:[#allocation12 + $0x180] sm:$0xff]
        %v3855 = vld [vmem:[#allocation12 + $0x188] sm:$0xff]
        %v3856 = vld [vmem:[#allocation12 + $0x190] sm:$0xff]
        %v3857 = vld [vmem:[#allocation12 + $0x198] sm:$0xff]
        %v3858 = vld [vmem:[#allocation12 + $0x1a0] sm:$0xff]
        %v3859 = vld [vmem:[#allocation12 + $0x1a8] sm:$0xff]
        %v3860 = vld [vmem:[#allocation12 + $0x1b0] sm:$0xff]
        %v3861 = vld [vmem:[#allocation12 + $0x1b8] sm:$0xff]
        %v3862 = vld [vmem:[#allocation12 + $0x1c0] sm:$0xff]
        %v3863 = vld [vmem:[#allocation12 + $0x1c8] sm:$0xff]
        %v3864 = vld [vmem:[#allocation12 + $0x1d0] sm:$0xff]
        %v3865 = vld [vmem:[#allocation12 + $0x1d8] sm:$0xff]
        %v3866 = vld [vmem:[#allocation12 + $0x1e0] sm:$0xff]
        %v3867 = vld [vmem:[#allocation12 + $0x1e8] sm:$0xff]
        %v3868 = vld [vmem:[#allocation12 + $0x1f0] sm:$0xff]
        %v3869 = vld [vmem:[#allocation12 + $0x1f8] sm:$0xff]
        %v3870 = vld [vmem:[#allocation12 + $0x200] sm:$0xff]
        %v3871 = vld [vmem:[#allocation12 + $0x208] sm:$0xff]
        %v3872 = vld [vmem:[#allocation12 + $0x210] sm:$0xff]
        %v3873 = vld [vmem:[#allocation12 + $0x218] sm:$0xff]
        %v3874 = vld [vmem:[#allocation12 + $0x220] sm:$0xff]
        %v3875 = vld [vmem:[#allocation12 + $0x228] sm:$0xff]
        %v3876 = vld [vmem:[#allocation12 + $0x230] sm:$0xff]
        %v3877 = vld [vmem:[#allocation12 + $0x238] sm:$0xff]
        %v3878 = vld [vmem:[#allocation12 + $0x240] sm:$0xff]
        %v3879 = vld [vmem:[#allocation12 + $0x248] sm:$0xff]
        %v3880 = vld [vmem:[#allocation12 + $0x250] sm:$0xff]
        %v3881 = vld [vmem:[#allocation12 + $0x258] sm:$0xff]
        %v3882 = vld [vmem:[#allocation12 + $0x260] sm:$0xff]
        %v3883 = vld [vmem:[#allocation12 + $0x268] sm:$0xff]
        %v3884 = vld [vmem:[#allocation12 + $0x270] sm:$0xff]
        %v3885 = vld [vmem:[#allocation12 + $0x278] sm:$0xff]
        %v3886 = vld [vmem:[#allocation12 + $0x280] sm:$0xff]
        %v3887 = vld [vmem:[#allocation12 + $0x288] sm:$0xff]
        %v3888 = vld [vmem:[#allocation12 + $0x290] sm:$0xff]
        %v3889 = vld [vmem:[#allocation12 + $0x298] sm:$0xff]
        %v3890 = vld [vmem:[#allocation12 + $0x2a0] sm:$0xff]
        %v3891 = vld [vmem:[#allocation12 + $0x2a8] sm:$0xff]
        %v3892 = vld [vmem:[#allocation12 + $0x2b0] sm:$0xff]
        %v3893 = vld [vmem:[#allocation12 + $0x2b8] sm:$0xff]
        %v3894 = vld [vmem:[#allocation12 + $0x2c0] sm:$0xff]
        %v3895 = vld [vmem:[#allocation12 + $0x2c8] sm:$0xff]
        %v3896 = vld [vmem:[#allocation12 + $0x2d0] sm:$0xff]
        %v3897 = vld [vmem:[#allocation12 + $0x2d8] sm:$0xff]
        %v3898 = vld [vmem:[#allocation12 + $0x2e0] sm:$0xff]
        %v3899 = vld [vmem:[#allocation12 + $0x2e8] sm:$0xff]
        %v3900 = vld [vmem:[#allocation12 + $0x2f0] sm:$0xff]
        %v3901 = vld [vmem:[#allocation12 + $0x2f8] sm:$0xff]
        %v3902 = vld [vmem:[#allocation12 + $0x300] sm:$0xff]
        %v3903 = vld [vmem:[#allocation12 + $0x308] sm:$0xff]
        %v3904 = vld [vmem:[#allocation12 + $0x310] sm:$0xff]
        %v3905 = vld [vmem:[#allocation12 + $0x318] sm:$0xff]
        %v3906 = vld [vmem:[#allocation12 + $0x320] sm:$0xff]
        %v3907 = vld [vmem:[#allocation12 + $0x328] sm:$0xff]
        %v3908 = vld [vmem:[#allocation12 + $0x330] sm:$0xff]
        %v3909 = vld [vmem:[#allocation12 + $0x338] sm:$0xff]
        %v3910 = vld [vmem:[#allocation12 + $0x340] sm:$0xff]
        %v3911 = vld [vmem:[#allocation12 + $0x348] sm:$0xff]
        %v3912 = vld [vmem:[#allocation12 + $0x350] sm:$0xff]
        %v3913 = vld [vmem:[#allocation12 + $0x358] sm:$0xff]
        %v3914 = vld [vmem:[#allocation12 + $0x360] sm:$0xff]
        %v3915 = vld [vmem:[#allocation12 + $0x368] sm:$0xff]
        %v3916 = vld [vmem:[#allocation12 + $0x370] sm:$0xff]
        %v3917 = vld [vmem:[#allocation12 + $0x378] sm:$0xff]
        %v3918 = vld [vmem:[#allocation12 + $0x380] sm:$0xff]
        %v3919 = vld [vmem:[#allocation12 + $0x388] sm:$0xff]
        %v3920 = vld [vmem:[#allocation12 + $0x390] sm:$0xff]
        %v3921 = vld [vmem:[#allocation12 + $0x398] sm:$0xff]
        %v3922 = vld [vmem:[#allocation12 + $0x3a0] sm:$0xff]
        %v3923 = vld [vmem:[#allocation12 + $0x3a8] sm:$0xff]
        %v3924 = vld [vmem:[#allocation12 + $0x3b0] sm:$0xff]
        %v3925 = vld [vmem:[#allocation12 + $0x3b8] sm:$0xff]
        %v3926 = vld [vmem:[#allocation12 + $0x3c0] sm:$0xff]
        %v3927 = vld [vmem:[#allocation12 + $0x3c8] sm:$0xff]
        %v3928 = vld [vmem:[#allocation12 + $0x3d0] sm:$0xff]
        %v3929 = vld [vmem:[#allocation12 + $0x3d8] sm:$0xff]
        %v3930 = vld [vmem:[#allocation12 + $0x3e0] sm:$0xff]
        %v3931 = vld [vmem:[#allocation12 + $0x3e8] sm:$0xff]
        %v3932 = vld [vmem:[#allocation12 + $0x3f0] sm:$0xff]
        %v3933 = vld [vmem:[#allocation12 + $0x3f8] sm:$0xff]
        %v3934 = vld [vmem:[#allocation12 + $0x400] sm:$0xff]
        %v3935 = vld [vmem:[#allocation12 + $0x408] sm:$0xff]
        %v3936 = vld [vmem:[#allocation12 + $0x410] sm:$0xff]
        %v3937 = vld [vmem:[#allocation12 + $0x418] sm:$0xff]
        %v3938 = vld [vmem:[#allocation12 + $0x420] sm:$0xff]
        %v3939 = vld [vmem:[#allocation12 + $0x428] sm:$0xff]
        %v3940 = vld [vmem:[#allocation12 + $0x430] sm:$0xff]
        %v3941 = vld [vmem:[#allocation12 + $0x438] sm:$0xff]
        %v3942 = vld [vmem:[#allocation12 + $0x440] sm:$0xff]
        %v3943 = vld [vmem:[#allocation12 + $0x448] sm:$0xff]
        %v3944 = vld [vmem:[#allocation12 + $0x450] sm:$0xff]
        %v3945 = vld [vmem:[#allocation12 + $0x458] sm:$0xff]
        %v3946 = vld [vmem:[#allocation12 + $0x460] sm:$0xff]
        %v3947 = vld [vmem:[#allocation12 + $0x468] sm:$0xff]
        %v3948 = vld [vmem:[#allocation12 + $0x470] sm:$0xff]
        %v3949 = vld [vmem:[#allocation12 + $0x478] sm:$0xff]
        %v3950 = vld [vmem:[#allocation12 + $0x480] sm:$0xff]
        %v3951 = vld [vmem:[#allocation12 + $0x488] sm:$0xff]
        %v3952 = vld [vmem:[#allocation12 + $0x490] sm:$0xff]
        %v3953 = vld [vmem:[#allocation12 + $0x498] sm:$0xff]
        %v3954 = vld [vmem:[#allocation12 + $0x4a0] sm:$0xff]
        %v3955 = vld [vmem:[#allocation12 + $0x4a8] sm:$0xff]
        %v3956 = vld [vmem:[#allocation12 + $0x4b0] sm:$0xff]
        %v3957 = vld [vmem:[#allocation12 + $0x4b8] sm:$0xff]
        %v3958 = vld [vmem:[#allocation12 + $0x4c0] sm:$0xff]
        %v3959 = vld [vmem:[#allocation12 + $0x4c8] sm:$0xff]
        %v3960 = vld [vmem:[#allocation12 + $0x4d0] sm:$0xff]
        %v3961 = vld [vmem:[#allocation12 + $0x4d8] sm:$0xff]
        %v3962 = vld [vmem:[#allocation12 + $0x4e0] sm:$0xff]
        %v3963 = vld [vmem:[#allocation12 + $0x4e8] sm:$0xff]
        %v3964 = vld [vmem:[#allocation12 + $0x4f0] sm:$0xff]
        %v3965 = vld [vmem:[#allocation12 + $0x4f8] sm:$0xff]
        %v3966 = vld [vmem:[#allocation12 + $0x500] sm:$0xff]
        %v3967 = vld [vmem:[#allocation12 + $0x508] sm:$0xff]
        %v3968 = vld [vmem:[#allocation12 + $0x510] sm:$0xff]
        %v3969 = vld [vmem:[#allocation12 + $0x518] sm:$0xff]
        %v3970 = vld [vmem:[#allocation12 + $0x520] sm:$0xff]
        %v3971 = vld [vmem:[#allocation12 + $0x528] sm:$0xff]
        %v3972 = vld [vmem:[#allocation12 + $0x530] sm:$0xff]
        %v3973 = vld [vmem:[#allocation12 + $0x538] sm:$0xff]
        %v3974 = vld [vmem:[#allocation12 + $0x540] sm:$0xff]
        %v3975 = vld [vmem:[#allocation12 + $0x548] sm:$0xff]
        %v3976 = vld [vmem:[#allocation12 + $0x550] sm:$0xff]
        %v3977 = vld [vmem:[#allocation12 + $0x558] sm:$0xff]
        %v3978 = vld [vmem:[#allocation12 + $0x560] sm:$0xff]
        %v3979 = vld [vmem:[#allocation12 + $0x568] sm:$0xff]
        %v3980 = vld [vmem:[#allocation12 + $0x570] sm:$0xff]
        %v3981 = vld [vmem:[#allocation12 + $0x578] sm:$0xff]
        %v3982 = vld [vmem:[#allocation12 + $0x580] sm:$0xff]
        %v3983 = vld [vmem:[#allocation12 + $0x588] sm:$0xff]
        %v3984 = vld [vmem:[#allocation12 + $0x590] sm:$0xff]
        %v3985 = vld [vmem:[#allocation12 + $0x598] sm:$0xff]
        %v3986 = vld [vmem:[#allocation12 + $0x5a0] sm:$0xff]
        %v3987 = vld [vmem:[#allocation12 + $0x5a8] sm:$0xff]
        %v3988 = vld [vmem:[#allocation12 + $0x5b0] sm:$0xff]
        %v3989 = vld [vmem:[#allocation12 + $0x5b8] sm:$0xff]
        %v3990 = vld [vmem:[#allocation12 + $0x5c0] sm:$0xff]
        %v3991 = vld [vmem:[#allocation12 + $0x5c8] sm:$0xff]
        %v3992 = vld [vmem:[#allocation12 + $0x5d0] sm:$0xff]
        %v3993 = vld [vmem:[#allocation12 + $0x5d8] sm:$0xff]
        %v3994 = vld [vmem:[#allocation12 + $0x5e0] sm:$0xff]
        %v3995 = vld [vmem:[#allocation12 + $0x5e8] sm:$0xff]
        %v3996 = vld [vmem:[#allocation12 + $0x5f0] sm:$0xff]
        %v3997 = vld [vmem:[#allocation12 + $0x5f8] sm:$0xff]
        %v3998 = vld [vmem:[#allocation12 + $0x600] sm:$0xff]
        %v3999 = vld [vmem:[#allocation12 + $0x608] sm:$0xff]
        %v4000 = vld [vmem:[#allocation12 + $0x610] sm:$0xff]
        %v4001 = vld [vmem:[#allocation12 + $0x618] sm:$0xff]
        %v4002 = vld [vmem:[#allocation12 + $0x620] sm:$0xff]
        %v4003 = vld [vmem:[#allocation12 + $0x628] sm:$0xff]
        %v4004 = vld [vmem:[#allocation12 + $0x630] sm:$0xff]
        %v4005 = vld [vmem:[#allocation12 + $0x638] sm:$0xff]
        %v4006 = vld [vmem:[#allocation12 + $0x640] sm:$0xff]
        %v4007 = vld [vmem:[#allocation12 + $0x648] sm:$0xff]
        %v4008 = vld [vmem:[#allocation12 + $0x650] sm:$0xff]
        %v4009 = vld [vmem:[#allocation12 + $0x658] sm:$0xff]
        %v4010 = vld [vmem:[#allocation12 + $0x660] sm:$0xff]
        %v4011 = vld [vmem:[#allocation12 + $0x668] sm:$0xff]
        %v4012 = vld [vmem:[#allocation12 + $0x670] sm:$0xff]
        %v4013 = vld [vmem:[#allocation12 + $0x678] sm:$0xff]
        %v4014 = vld [vmem:[#allocation12 + $0x680] sm:$0xff]
        %v4015 = vld [vmem:[#allocation12 + $0x688] sm:$0xff]
        %v4016 = vld [vmem:[#allocation12 + $0x690] sm:$0xff]
        %v4017 = vld [vmem:[#allocation12 + $0x698] sm:$0xff]
        %v4018 = vld [vmem:[#allocation12 + $0x6a0] sm:$0xff]
        %v4019 = vld [vmem:[#allocation12 + $0x6a8] sm:$0xff]
        %v4020 = vld [vmem:[#allocation12 + $0x6b0] sm:$0xff]
        %v4021 = vld [vmem:[#allocation12 + $0x6b8] sm:$0xff]
        %v4022 = vld [vmem:[#allocation12 + $0x6c0] sm:$0xff]
        %v4023 = vld [vmem:[#allocation12 + $0x6c8] sm:$0xff]
        %v4024 = vld [vmem:[#allocation12 + $0x6d0] sm:$0xff]
        %v4025 = vld [vmem:[#allocation12 + $0x6d8] sm:$0xff]
        %v4026 = vld [vmem:[#allocation12 + $0x6e0] sm:$0xff]
        %v4027 = vld [vmem:[#allocation12 + $0x6e8] sm:$0xff]
        %v4028 = vld [vmem:[#allocation12 + $0x6f0] sm:$0xff]
        %v4029 = vld [vmem:[#allocation12 + $0x6f8] sm:$0xff]
        %v4030 = vld [vmem:[#allocation12 + $0x700] sm:$0xff]
        %v4031 = vld [vmem:[#allocation12 + $0x708] sm:$0xff]
        %v4032 = vld [vmem:[#allocation12 + $0x710] sm:$0xff]
        %v4033 = vld [vmem:[#allocation12 + $0x718] sm:$0xff]
        %v4034 = vld [vmem:[#allocation12 + $0x720] sm:$0xff]
        %v4035 = vld [vmem:[#allocation12 + $0x728] sm:$0xff]
        %v4036 = vld [vmem:[#allocation12 + $0x730] sm:$0xff]
        %v4037 = vld [vmem:[#allocation12 + $0x738] sm:$0xff]
        %v4038 = vld [vmem:[#allocation12 + $0x740] sm:$0xff]
        %v4039 = vld [vmem:[#allocation12 + $0x748] sm:$0xff]
        %v4040 = vld [vmem:[#allocation12 + $0x750] sm:$0xff]
        %v4041 = vld [vmem:[#allocation12 + $0x758] sm:$0xff]
        %v4042 = vld [vmem:[#allocation12 + $0x760] sm:$0xff]
        %v4043 = vld [vmem:[#allocation12 + $0x768] sm:$0xff]
        %v4044 = vld [vmem:[#allocation12 + $0x770] sm:$0xff]
        %v4045 = vld [vmem:[#allocation12 + $0x778] sm:$0xff]
        %v4046 = vld [vmem:[#allocation12 + $0x780] sm:$0xff]
        %v4047 = vld [vmem:[#allocation12 + $0x788] sm:$0xff]
        %v4048 = vld [vmem:[#allocation12 + $0x790] sm:$0xff]
        %v4049 = vld [vmem:[#allocation12 + $0x798] sm:$0xff]
        %v4050 = vld [vmem:[#allocation12 + $0x7a0] sm:$0xff]
        %v4051 = vld [vmem:[#allocation12 + $0x7a8] sm:$0xff]
        %v4052 = vld [vmem:[#allocation12 + $0x7b0] sm:$0xff]
        %v4053 = vld [vmem:[#allocation12 + $0x7b8] sm:$0xff]
        %v4054 = vld [vmem:[#allocation12 + $0x7c0] sm:$0xff]
        %v4055 = vld [vmem:[#allocation12 + $0x7c8] sm:$0xff]
        %v4056 = vld [vmem:[#allocation12 + $0x7d0] sm:$0xff]
        %v4057 = vld [vmem:[#allocation12 + $0x7d8] sm:$0xff]
        %v4058 = vld [vmem:[#allocation12 + $0x7e0] sm:$0xff]
        %v4059 = vld [vmem:[#allocation12 + $0x7e8] sm:$0xff]
        %v4060 = vld [vmem:[#allocation12 + $0x7f0] sm:$0xff]
        %v4061 = vld [vmem:[#allocation12 + $0x7f8] sm:$0xff]
        %v4062 = vld [vmem:[#allocation12 + $0x800] sm:$0xff]
        %v4063 = vld [vmem:[#allocation12 + $0x808] sm:$0xff]
        %v4064 = vld [vmem:[#allocation12 + $0x810] sm:$0xff]
        %v4065 = vld [vmem:[#allocation12 + $0x818] sm:$0xff]
        %v4066 = vld [vmem:[#allocation12 + $0x820] sm:$0xff]
        %v4067 = vld [vmem:[#allocation12 + $0x828] sm:$0xff]
        %v4068 = vld [vmem:[#allocation12 + $0x830] sm:$0xff]
        %v4069 = vld [vmem:[#allocation12 + $0x838] sm:$0xff]
        %v4070 = vld [vmem:[#allocation12 + $0x840] sm:$0xff]
        %v4071 = vld [vmem:[#allocation12 + $0x848] sm:$0xff]
        %v4072 = vld [vmem:[#allocation12 + $0x850] sm:$0xff]
        %v4073 = vld [vmem:[#allocation12 + $0x858] sm:$0xff]
        %v4074 = vld [vmem:[#allocation12 + $0x860] sm:$0xff]
        %v4075 = vld [vmem:[#allocation12 + $0x868] sm:$0xff]
        %v4076 = vld [vmem:[#allocation12 + $0x870] sm:$0xff]
        %v4077 = vld [vmem:[#allocation12 + $0x878] sm:$0xff]
        %v4078 = vld [vmem:[#allocation12 + $0x880] sm:$0xff]
        %v4079 = vld [vmem:[#allocation12 + $0x888] sm:$0xff]
        %v4080 = vld [vmem:[#allocation12 + $0x890] sm:$0xff]
        %v4081 = vld [vmem:[#allocation12 + $0x898] sm:$0xff]
        %v4082 = vld [vmem:[#allocation12 + $0x8a0] sm:$0xff]
        %v4083 = vld [vmem:[#allocation12 + $0x8a8] sm:$0xff]
        %v4084 = vld [vmem:[#allocation12 + $0x8b0] sm:$0xff]
        %v4085 = vld [vmem:[#allocation12 + $0x8b8] sm:$0xff]
        %v4086 = vld [vmem:[#allocation12 + $0x8c0] sm:$0xff]
        %v4087 = vld [vmem:[#allocation12 + $0x8c8] sm:$0xff]
        %v4088 = vld [vmem:[#allocation12 + $0x8d0] sm:$0xff]
        %v4089 = vld [vmem:[#allocation12 + $0x8d8] sm:$0xff]
        %v4090 = vld [vmem:[#allocation12 + $0x8e0] sm:$0xff]
        %v4091 = vld [vmem:[#allocation12 + $0x8e8] sm:$0xff]
        %v4092 = vld [vmem:[#allocation12 + $0x8f0] sm:$0xff]
        %v4093 = vld [vmem:[#allocation12 + $0x8f8] sm:$0xff]
        %v4094 = vld [vmem:[#allocation12 + $0x900] sm:$0xff]
        %v4095 = vld [vmem:[#allocation12 + $0x908] sm:$0xff]
        %v4096 = vld [vmem:[#allocation12 + $0x910] sm:$0xff]
        %v4097 = vld [vmem:[#allocation12 + $0x918] sm:$0xff]
        %v4098 = vld [vmem:[#allocation12 + $0x920] sm:$0xff]
        %v4099 = vld [vmem:[#allocation12 + $0x928] sm:$0xff]
        %v4100 = vld [vmem:[#allocation12 + $0x930] sm:$0xff]
        %v4101 = vld [vmem:[#allocation12 + $0x938] sm:$0xff]
        %v4102 = vld [vmem:[#allocation12 + $0x940] sm:$0xff]
        %v4103 = vld [vmem:[#allocation12 + $0x948] sm:$0xff]
        %v4104 = vld [vmem:[#allocation12 + $0x950] sm:$0xff]
        %v4105 = vld [vmem:[#allocation12 + $0x958] sm:$0xff]
        %v4106 = vld [vmem:[#allocation12 + $0x960] sm:$0xff]
        %v4107 = vld [vmem:[#allocation12 + $0x968] sm:$0xff]
        %v4108 = vld [vmem:[#allocation12 + $0x970] sm:$0xff]
        %v4109 = vld [vmem:[#allocation12 + $0x978] sm:$0xff]
        %v4110 = vld [vmem:[#allocation12 + $0x980] sm:$0xff]
        %v4111 = vld [vmem:[#allocation12 + $0x988] sm:$0xff]
        %v4112 = vld [vmem:[#allocation12 + $0x990] sm:$0xff]
        %v4113 = vld [vmem:[#allocation12 + $0x998] sm:$0xff]
        %v4114 = vld [vmem:[#allocation12 + $0x9a0] sm:$0xff]
        %v4115 = vld [vmem:[#allocation12 + $0x9a8] sm:$0xff]
        %v4116 = vld [vmem:[#allocation12 + $0x9b0] sm:$0xff]
        %v4117 = vld [vmem:[#allocation12 + $0x9b8] sm:$0xff]
        %v4118 = vld [vmem:[#allocation12 + $0x9c0] sm:$0xff]
        %v4119 = vld [vmem:[#allocation12 + $0x9c8] sm:$0xff]
        %v4120 = vld [vmem:[#allocation12 + $0x9d0] sm:$0xff]
        %v4121 = vld [vmem:[#allocation12 + $0x9d8] sm:$0xff]
        %v4122 = vld [vmem:[#allocation12 + $0x9e0] sm:$0xff]
        %v4123 = vld [vmem:[#allocation12 + $0x9e8] sm:$0xff]
        %v4124 = vld [vmem:[#allocation12 + $0x9f0] sm:$0xff]
        %v4125 = vld [vmem:[#allocation12 + $0x9f8] sm:$0xff]
        %v4126 = vld [vmem:[#allocation12 + $0xa00] sm:$0xff]
        %v4127 = vld [vmem:[#allocation12 + $0xa08] sm:$0xff]
        %v4128 = vld [vmem:[#allocation12 + $0xa10] sm:$0xff]
        %v4129 = vld [vmem:[#allocation12 + $0xa18] sm:$0xff]
        %v4130 = vld [vmem:[#allocation12 + $0xa20] sm:$0xff]
        %v4131 = vld [vmem:[#allocation12 + $0xa28] sm:$0xff]
        %v4132 = vld [vmem:[#allocation12 + $0xa30] sm:$0xff]
        %v4133 = vld [vmem:[#allocation12 + $0xa38] sm:$0xff]
        %v4134 = vld [vmem:[#allocation12 + $0xa40] sm:$0xff]
        %v4135 = vld [vmem:[#allocation12 + $0xa48] sm:$0xff]
        %v4136 = vld [vmem:[#allocation12 + $0xa50] sm:$0xff]
        %v4137 = vld [vmem:[#allocation12 + $0xa58] sm:$0xff]
        %v4138 = vld [vmem:[#allocation12 + $0xa60] sm:$0xff]
        %v4139 = vld [vmem:[#allocation12 + $0xa68] sm:$0xff]
        %v4140 = vld [vmem:[#allocation12 + $0xa70] sm:$0xff]
        %v4141 = vld [vmem:[#allocation12 + $0xa78] sm:$0xff]
        %v4142 = vld [vmem:[#allocation12 + $0xa80] sm:$0xff]
        %v4143 = vld [vmem:[#allocation12 + $0xa88] sm:$0xff]
        %v4144 = vld [vmem:[#allocation12 + $0xa90] sm:$0xff]
        %v4145 = vld [vmem:[#allocation12 + $0xa98] sm:$0xff]
        %v4146 = vld [vmem:[#allocation12 + $0xaa0] sm:$0xff]
        %v4147 = vld [vmem:[#allocation12 + $0xaa8] sm:$0xff]
        %v4148 = vld [vmem:[#allocation12 + $0xab0] sm:$0xff]
        %v4149 = vld [vmem:[#allocation12 + $0xab8] sm:$0xff]
        %v4150 = vld [vmem:[#allocation12 + $0xac0] sm:$0xff]
        %v4151 = vld [vmem:[#allocation12 + $0xac8] sm:$0xff]
        %v4152 = vld [vmem:[#allocation12 + $0xad0] sm:$0xff]
        %v4153 = vld [vmem:[#allocation12 + $0xad8] sm:$0xff]
        %v4154 = vld [vmem:[#allocation12 + $0xae0] sm:$0xff]
        %v4155 = vld [vmem:[#allocation12 + $0xae8] sm:$0xff]
        %v4156 = vld [vmem:[#allocation12 + $0xaf0] sm:$0xff]
        %v4157 = vld [vmem:[#allocation12 + $0xaf8] sm:$0xff]
        %v4158 = vld [vmem:[#allocation12 + $0xb00] sm:$0xff]
        %v4159 = vld [vmem:[#allocation12 + $0xb08] sm:$0xff]
        %v4160 = vld [vmem:[#allocation12 + $0xb10] sm:$0xff]
        %v4161 = vld [vmem:[#allocation12 + $0xb18] sm:$0xff]
        %v4162 = vld [vmem:[#allocation12 + $0xb20] sm:$0xff]
        %v4163 = vld [vmem:[#allocation12 + $0xb28] sm:$0xff]
        %v4164 = vld [vmem:[#allocation12 + $0xb30] sm:$0xff]
        %v4165 = vld [vmem:[#allocation12 + $0xb38] sm:$0xff]
        %v4166 = vld [vmem:[#allocation12 + $0xb40] sm:$0xff]
        %v4167 = vld [vmem:[#allocation12 + $0xb48] sm:$0xff]
        %v4168 = vld [vmem:[#allocation12 + $0xb50] sm:$0xff]
        %v4169 = vld [vmem:[#allocation12 + $0xb58] sm:$0xff]
        %v4170 = vld [vmem:[#allocation12 + $0xb60] sm:$0xff]
        %v4171 = vld [vmem:[#allocation12 + $0xb68] sm:$0xff]
        %v4172 = vld [vmem:[#allocation12 + $0xb70] sm:$0xff]
        %v4173 = vld [vmem:[#allocation12 + $0xb78] sm:$0xff]
        %v4174 = vld [vmem:[#allocation12 + $0xb80] sm:$0xff]
        %v4175 = vld [vmem:[#allocation12 + $0xb88] sm:$0xff]
        %v4176 = vld [vmem:[#allocation12 + $0xb90] sm:$0xff]
        %v4177 = vld [vmem:[#allocation12 + $0xb98] sm:$0xff]
        %v4178 = vld [vmem:[#allocation12 + $0xba0] sm:$0xff]
        %v4179 = vld [vmem:[#allocation12 + $0xba8] sm:$0xff]
        %v4180 = vld [vmem:[#allocation12 + $0xbb0] sm:$0xff]
        %v4181 = vld [vmem:[#allocation12 + $0xbb8] sm:$0xff]
        %v4182 = vld [vmem:[#allocation12 + $0xbc0] sm:$0xff]
        %v4183 = vld [vmem:[#allocation12 + $0xbc8] sm:$0xff]
        %v4184 = vld [vmem:[#allocation12 + $0xbd0] sm:$0xff]
        %v4185 = vld [vmem:[#allocation12 + $0xbd8] sm:$0xff]
        %v4186 = vld [vmem:[#allocation12 + $0xbe0] sm:$0xff]
        %v4187 = vld [vmem:[#allocation12 + $0xbe8] sm:$0xff]
        %v4188 = vld [vmem:[#allocation12 + $0xbf0] sm:$0xff]
        %v4189 = vld [vmem:[#allocation12 + $0xbf8] sm:$0xff]
        %v4190 = vld [vmem:[#allocation12 + $0xc00] sm:$0xff]
        %v4191 = vld [vmem:[#allocation12 + $0xc08] sm:$0xff]
        %v4192 = vld [vmem:[#allocation12 + $0xc10] sm:$0xff]
        %v4193 = vld [vmem:[#allocation12 + $0xc18] sm:$0xff]
        %v4194 = vld [vmem:[#allocation12 + $0xc20] sm:$0xff]
        %v4195 = vld [vmem:[#allocation12 + $0xc28] sm:$0xff]
        %v4196 = vld [vmem:[#allocation12 + $0xc30] sm:$0xff]
        %v4197 = vld [vmem:[#allocation12 + $0xc38] sm:$0xff]
        %v4198 = vld [vmem:[#allocation12 + $0xc40] sm:$0xff]
        %v4199 = vld [vmem:[#allocation12 + $0xc48] sm:$0xff]
        %v4200 = vld [vmem:[#allocation12 + $0xc50] sm:$0xff]
        %v4201 = vld [vmem:[#allocation12 + $0xc58] sm:$0xff]
        %v4202 = vld [vmem:[#allocation12 + $0xc60] sm:$0xff]
        %v4203 = vld [vmem:[#allocation12 + $0xc68] sm:$0xff]
        %v4204 = vld [vmem:[#allocation12 + $0xc70] sm:$0xff]
        %v4205 = vld [vmem:[#allocation12 + $0xc78] sm:$0xff]
        %v4206 = vld [vmem:[#allocation12 + $0xc80] sm:$0xff]
        %v4207 = vld [vmem:[#allocation12 + $0xc88] sm:$0xff]
        %v4208 = vld [vmem:[#allocation12 + $0xc90] sm:$0xff]
        %v4209 = vld [vmem:[#allocation12 + $0xc98] sm:$0xff]
        %v4210 = vld [vmem:[#allocation12 + $0xca0] sm:$0xff]
        %v4211 = vld [vmem:[#allocation12 + $0xca8] sm:$0xff]
        %v4212 = vld [vmem:[#allocation12 + $0xcb0] sm:$0xff]
        %v4213 = vld [vmem:[#allocation12 + $0xcb8] sm:$0xff]
        %v4214 = vld [vmem:[#allocation12 + $0xcc0] sm:$0xff]
        %v4215 = vld [vmem:[#allocation12 + $0xcc8] sm:$0xff]
        %v4216 = vld [vmem:[#allocation12 + $0xcd0] sm:$0xff]
        %v4217 = vld [vmem:[#allocation12 + $0xcd8] sm:$0xff]
        %v4218 = vld [vmem:[#allocation12 + $0xce0] sm:$0xff]
        %v4219 = vld [vmem:[#allocation12 + $0xce8] sm:$0xff]
        %v4220 = vld [vmem:[#allocation12 + $0xcf0] sm:$0xff]
        %v4221 = vld [vmem:[#allocation12 + $0xcf8] sm:$0xff]
        %v4222 = vld [vmem:[#allocation12 + $0xd00] sm:$0xff]
        %v4223 = vld [vmem:[#allocation12 + $0xd08] sm:$0xff]
        %v4224 = vld [vmem:[#allocation12 + $0xd10] sm:$0xff]
        %v4225 = vld [vmem:[#allocation12 + $0xd18] sm:$0xff]
        %v4226 = vld [vmem:[#allocation12 + $0xd20] sm:$0xff]
        %v4227 = vld [vmem:[#allocation12 + $0xd28] sm:$0xff]
        %v4228 = vld [vmem:[#allocation12 + $0xd30] sm:$0xff]
        %v4229 = vld [vmem:[#allocation12 + $0xd38] sm:$0xff]
        %v4230 = vld [vmem:[#allocation12 + $0xd40] sm:$0xff]
        %v4231 = vld [vmem:[#allocation12 + $0xd48] sm:$0xff]
        %v4232 = vld [vmem:[#allocation12 + $0xd50] sm:$0xff]
        %v4233 = vld [vmem:[#allocation12 + $0xd58] sm:$0xff]
        %v4234 = vld [vmem:[#allocation12 + $0xd60] sm:$0xff]
        %v4235 = vld [vmem:[#allocation12 + $0xd68] sm:$0xff]
        %v4236 = vld [vmem:[#allocation12 + $0xd70] sm:$0xff]
        %v4237 = vld [vmem:[#allocation12 + $0xd78] sm:$0xff]
        %v4238 = vld [vmem:[#allocation12 + $0xd80] sm:$0xff]
        %v4239 = vld [vmem:[#allocation12 + $0xd88] sm:$0xff]
        %v4240 = vld [vmem:[#allocation12 + $0xd90] sm:$0xff]
        %v4241 = vld [vmem:[#allocation12 + $0xd98] sm:$0xff]
        %v4242 = vld [vmem:[#allocation12 + $0xda0] sm:$0xff]
        %v4243 = vld [vmem:[#allocation12 + $0xda8] sm:$0xff]
        %v4244 = vld [vmem:[#allocation12 + $0xdb0] sm:$0xff]
        %v4245 = vld [vmem:[#allocation12 + $0xdb8] sm:$0xff]
        %v4246 = vld [vmem:[#allocation12 + $0xdc0] sm:$0xff]
        %v4247 = vld [vmem:[#allocation12 + $0xdc8] sm:$0xff]
        %v4248 = vld [vmem:[#allocation12 + $0xdd0] sm:$0xff]
        %v4249 = vld [vmem:[#allocation12 + $0xdd8] sm:$0xff]
        %v4250 = vld [vmem:[#allocation12 + $0xde0] sm:$0xff]
        %v4251 = vld [vmem:[#allocation12 + $0xde8] sm:$0xff]
        %v4252 = vld [vmem:[#allocation12 + $0xdf0] sm:$0xff]
        %v4253 = vld [vmem:[#allocation12 + $0xdf8] sm:$0xff]
        %v4254 = vld [vmem:[#allocation12 + $0xe00] sm:$0xff]
        %v4255 = vld [vmem:[#allocation12 + $0xe08] sm:$0xff]
        %v4256 = vld [vmem:[#allocation12 + $0xe10] sm:$0xff]
        %v4257 = vld [vmem:[#allocation12 + $0xe18] sm:$0xff]
        %v4258 = vld [vmem:[#allocation12 + $0xe20] sm:$0xff]
        %v4259 = vld [vmem:[#allocation12 + $0xe28] sm:$0xff]
        %v4260 = vld [vmem:[#allocation12 + $0xe30] sm:$0xff]
        %v4261 = vld [vmem:[#allocation12 + $0xe38] sm:$0xff]
        %v4262 = vld [vmem:[#allocation12 + $0xe40] sm:$0xff]
        %v4263 = vld [vmem:[#allocation12 + $0xe48] sm:$0xff]
        %v4264 = vld [vmem:[#allocation12 + $0xe50] sm:$0xff]
        %v4265 = vld [vmem:[#allocation12 + $0xe58] sm:$0xff]
        %v4266 = vld [vmem:[#allocation12 + $0xe60] sm:$0xff]
        %v4267 = vld [vmem:[#allocation12 + $0xe68] sm:$0xff]
        %v4268 = vld [vmem:[#allocation12 + $0xe70] sm:$0xff]
        %v4269 = vld [vmem:[#allocation12 + $0xe78] sm:$0xff]
        %v4270 = vld [vmem:[#allocation12 + $0xe80] sm:$0xff]
        %v4271 = vld [vmem:[#allocation12 + $0xe88] sm:$0xff]
        %v4272 = vld [vmem:[#allocation12 + $0xe90] sm:$0xff]
        %v4273 = vld [vmem:[#allocation12 + $0xe98] sm:$0xff]
        %v4274 = vld [vmem:[#allocation12 + $0xea0] sm:$0xff]
        %v4275 = vld [vmem:[#allocation12 + $0xea8] sm:$0xff]
        %v4276 = vld [vmem:[#allocation12 + $0xeb0] sm:$0xff]
        %v4277 = vld [vmem:[#allocation12 + $0xeb8] sm:$0xff]
        %v4278 = vld [vmem:[#allocation12 + $0xec0] sm:$0xff]
        %v4279 = vld [vmem:[#allocation12 + $0xec8] sm:$0xff]
        %v4280 = vld [vmem:[#allocation12 + $0xed0] sm:$0xff]
        %v4281 = vld [vmem:[#allocation12 + $0xed8] sm:$0xff]
        %v4282 = vld [vmem:[#allocation12 + $0xee0] sm:$0xff]
        %v4283 = vld [vmem:[#allocation12 + $0xee8] sm:$0xff]
        %v4284 = vld [vmem:[#allocation12 + $0xef0] sm:$0xff]
        %v4285 = vld [vmem:[#allocation12 + $0xef8] sm:$0xff]
        %v4286 = vld [vmem:[#allocation12 + $0xf00] sm:$0xff]
        %v4287 = vld [vmem:[#allocation12 + $0xf08] sm:$0xff]
        %v4288 = vld [vmem:[#allocation12 + $0xf10] sm:$0xff]
        %v4289 = vld [vmem:[#allocation12 + $0xf18] sm:$0xff]
        %v4290 = vld [vmem:[#allocation12 + $0xf20] sm:$0xff]
        %v4291 = vld [vmem:[#allocation12 + $0xf28] sm:$0xff]
        %v4292 = vld [vmem:[#allocation12 + $0xf30] sm:$0xff]
        %v4293 = vld [vmem:[#allocation12 + $0xf38] sm:$0xff]
        %v4294 = vld [vmem:[#allocation12 + $0xf40] sm:$0xff]
        %v4295 = vld [vmem:[#allocation12 + $0xf48] sm:$0xff]
        %v4296 = vld [vmem:[#allocation12 + $0xf50] sm:$0xff]
        %v4297 = vld [vmem:[#allocation12 + $0xf58] sm:$0xff]
        %v4298 = vld [vmem:[#allocation12 + $0xf60] sm:$0xff]
        %v4299 = vld [vmem:[#allocation12 + $0xf68] sm:$0xff]
        %v4300 = vld [vmem:[#allocation12 + $0xf70] sm:$0xff]
        %v4301 = vld [vmem:[#allocation12 + $0xf78] sm:$0xff]
        %v4302 = vld [vmem:[#allocation12 + $0xf80] sm:$0xff]
        %v4303 = vld [vmem:[#allocation12 + $0xf88] sm:$0xff]
        %v4304 = vld [vmem:[#allocation12 + $0xf90] sm:$0xff]
        %v4305 = vld [vmem:[#allocation12 + $0xf98] sm:$0xff]
        %v4306 = vld [vmem:[#allocation12 + $0xfa0] sm:$0xff]
        %v4307 = vld [vmem:[#allocation12 + $0xfa8] sm:$0xff]
        %v4308 = vld [vmem:[#allocation12 + $0xfb0] sm:$0xff]
        %v4309 = vld [vmem:[#allocation12 + $0xfb8] sm:$0xff]
        %v4310 = vld [vmem:[#allocation12 + $0xfc0] sm:$0xff]
        %v4311 = vld [vmem:[#allocation12 + $0xfc8] sm:$0xff]
        %v4312 = vld [vmem:[#allocation12 + $0xfd0] sm:$0xff]
        %v4313 = vld [vmem:[#allocation12 + $0xfd8] sm:$0xff]
        %v4314 = vld [vmem:[#allocation12 + $0xfe0] sm:$0xff]
        %v4315 = vld [vmem:[#allocation12 + $0xfe8] sm:$0xff]
        %v4316 = vld [vmem:[#allocation12 + $0xff0] sm:$0xff]
        %v4317 = vld [vmem:[#allocation12 + $0xff8] sm:$0xff]
        %v4318 = vld [vmem:[#allocation12 + $0x1000] sm:$0xff]
        %v4319 = vld [vmem:[#allocation12 + $0x1008] sm:$0xff]
        %v4320 = vld [vmem:[#allocation12 + $0x1010] sm:$0xff]
        %v4321 = vld [vmem:[#allocation12 + $0x1018] sm:$0xff]
        %v4322 = vld [vmem:[#allocation12 + $0x1020] sm:$0xff]
        %v4323 = vld [vmem:[#allocation12 + $0x1028] sm:$0xff]
        %v4324 = vld [vmem:[#allocation12 + $0x1030] sm:$0xff]
        %v4325 = vld [vmem:[#allocation12 + $0x1038] sm:$0xff]
        %v4326 = vld [vmem:[#allocation12 + $0x1040] sm:$0xff]
        %v4327 = vld [vmem:[#allocation12 + $0x1048] sm:$0xff]
        %v4328 = vld [vmem:[#allocation12 + $0x1050] sm:$0xff]
        %v4329 = vld [vmem:[#allocation12 + $0x1058] sm:$0xff]
        %v4330 = vld [vmem:[#allocation12 + $0x1060] sm:$0xff]
        %v4331 = vld [vmem:[#allocation12 + $0x1068] sm:$0xff]
        %v4332 = vld [vmem:[#allocation12 + $0x1070] sm:$0xff]
        %v4333 = vld [vmem:[#allocation12 + $0x1078] sm:$0xff]
        %v4334 = vld [vmem:[#allocation12 + $0x1080] sm:$0xff]
        %v4335 = vld [vmem:[#allocation12 + $0x1088] sm:$0xff]
        %v4336 = vld [vmem:[#allocation12 + $0x1090] sm:$0xff]
        %v4337 = vld [vmem:[#allocation12 + $0x1098] sm:$0xff]
        %v4338 = vld [vmem:[#allocation12 + $0x10a0] sm:$0xff]
        %v4339 = vld [vmem:[#allocation12 + $0x10a8] sm:$0xff]
        %v4340 = vld [vmem:[#allocation12 + $0x10b0] sm:$0xff]
        %v4341 = vld [vmem:[#allocation12 + $0x10b8] sm:$0xff]
        %v4342 = vld [vmem:[#allocation12 + $0x10c0] sm:$0xff]
        %v4343 = vld [vmem:[#allocation12 + $0x10c8] sm:$0xff]
        %v4344 = vld [vmem:[#allocation12 + $0x10d0] sm:$0xff]
        %v4345 = vld [vmem:[#allocation12 + $0x10d8] sm:$0xff]
        %v4346 = vld [vmem:[#allocation12 + $0x10e0] sm:$0xff]
        %v4347 = vld [vmem:[#allocation12 + $0x10e8] sm:$0xff]
        %v4348 = vld [vmem:[#allocation12 + $0x10f0] sm:$0xff]
        %v4349 = vld [vmem:[#allocation12 + $0x10f8] sm:$0xff]
        %v4350 = vld [vmem:[#allocation12 + $0x1100] sm:$0xff]
        %v4351 = vld [vmem:[#allocation12 + $0x1108] sm:$0xff]
        %v4352 = vld [vmem:[#allocation12 + $0x1110] sm:$0xff]
        %v4353 = vld [vmem:[#allocation12 + $0x1118] sm:$0xff]
        %v4354 = vld [vmem:[#allocation12 + $0x1120] sm:$0xff]
        %v4355 = vld [vmem:[#allocation12 + $0x1128] sm:$0xff]
        %v4356 = vld [vmem:[#allocation12 + $0x1130] sm:$0xff]
        %v4357 = vld [vmem:[#allocation12 + $0x1138] sm:$0xff]
        %v4358 = vld [vmem:[#allocation12 + $0x1140] sm:$0xff]
        %v4359 = vld [vmem:[#allocation12 + $0x1148] sm:$0xff]
        %v4360 = vld [vmem:[#allocation12 + $0x1150] sm:$0xff]
        %v4361 = vld [vmem:[#allocation12 + $0x1158] sm:$0xff]
        %v4362 = vld [vmem:[#allocation12 + $0x1160] sm:$0xff]
        %v4363 = vld [vmem:[#allocation12 + $0x1168] sm:$0xff]
        %v4364 = vld [vmem:[#allocation12 + $0x1170] sm:$0xff]
        %v4365 = vld [vmem:[#allocation12 + $0x1178] sm:$0xff]
        %v4366 = vld [vmem:[#allocation12 + $0x1180] sm:$0xff]
        %v4367 = vld [vmem:[#allocation12 + $0x1188] sm:$0xff]
        %v4368 = vld [vmem:[#allocation12 + $0x1190] sm:$0xff]
        %v4369 = vld [vmem:[#allocation12 + $0x1198] sm:$0xff]
        %v4370 = vld [vmem:[#allocation12 + $0x11a0] sm:$0xff]
        %v4371 = vld [vmem:[#allocation12 + $0x11a8] sm:$0xff]
        %v4372 = vld [vmem:[#allocation12 + $0x11b0] sm:$0xff]
        %v4373 = vld [vmem:[#allocation12 + $0x11b8] sm:$0xff]
        %v4374 = vld [vmem:[#allocation12 + $0x11c0] sm:$0xff]
        %v4375 = vld [vmem:[#allocation12 + $0x11c8] sm:$0xff]
        %v4376 = vld [vmem:[#allocation12 + $0x11d0] sm:$0xff]
        %v4377 = vld [vmem:[#allocation12 + $0x11d8] sm:$0xff]
        %v4378 = vld [vmem:[#allocation12 + $0x11e0] sm:$0xff]
        %v4379 = vld [vmem:[#allocation12 + $0x11e8] sm:$0xff]
        %v4380 = vld [vmem:[#allocation12 + $0x11f0] sm:$0xff]
        %v4381 = vld [vmem:[#allocation12 + $0x11f8] sm:$0xff]
        %v4382 = vld [vmem:[#allocation12 + $0x1200] sm:$0xff]
        %v4383 = vld [vmem:[#allocation12 + $0x1208] sm:$0xff]
        %v4384 = vld [vmem:[#allocation12 + $0x1210] sm:$0xff]
        %v4385 = vld [vmem:[#allocation12 + $0x1218] sm:$0xff]
        %v4386 = vld [vmem:[#allocation12 + $0x1220] sm:$0xff]
        %v4387 = vld [vmem:[#allocation12 + $0x1228] sm:$0xff]
        %v4388 = vld [vmem:[#allocation12 + $0x1230] sm:$0xff]
        %v4389 = vld [vmem:[#allocation12 + $0x1238] sm:$0xff]
        %v4390 = vld [vmem:[#allocation12 + $0x1240] sm:$0xff]
        %v4391 = vld [vmem:[#allocation12 + $0x1248] sm:$0xff]
        %v4392 = vld [vmem:[#allocation12 + $0x1250] sm:$0xff]
        %v4393 = vld [vmem:[#allocation12 + $0x1258] sm:$0xff]
        %v4394 = vld [vmem:[#allocation12 + $0x1260] sm:$0xff]
        %v4395 = vld [vmem:[#allocation12 + $0x1268] sm:$0xff]
        %v4396 = vld [vmem:[#allocation12 + $0x1270] sm:$0xff]
        %v4397 = vld [vmem:[#allocation12 + $0x1278] sm:$0xff]
        %v4398 = vld [vmem:[#allocation12 + $0x1280] sm:$0xff]
        %v4399 = vld [vmem:[#allocation12 + $0x1288] sm:$0xff]
        %v4400 = vld [vmem:[#allocation12 + $0x1290] sm:$0xff]
        %v4401 = vld [vmem:[#allocation12 + $0x1298] sm:$0xff]
        %v4402 = vld [vmem:[#allocation12 + $0x12a0] sm:$0xff]
        %v4403 = vld [vmem:[#allocation12 + $0x12a8] sm:$0xff]
        %v4404 = vld [vmem:[#allocation12 + $0x12b0] sm:$0xff]
        %v4405 = vld [vmem:[#allocation12 + $0x12b8] sm:$0xff]
        %v4406 = vld [vmem:[#allocation12 + $0x12c0] sm:$0xff]
        %v4407 = vld [vmem:[#allocation12 + $0x12c8] sm:$0xff]
        %v4408 = vld [vmem:[#allocation12 + $0x12d0] sm:$0xff]
        %v4409 = vld [vmem:[#allocation12 + $0x12d8] sm:$0xff]
        %v4410 = vld [vmem:[#allocation12 + $0x12e0] sm:$0xff]
        %v4411 = vld [vmem:[#allocation12 + $0x12e8] sm:$0xff]
        %v4412 = vld [vmem:[#allocation12 + $0x12f0] sm:$0xff]
        %v4413 = vld [vmem:[#allocation12 + $0x12f8] sm:$0xff]
        %v4414 = vld [vmem:[#allocation12 + $0x1300] sm:$0xff]
        %v4415 = vld [vmem:[#allocation12 + $0x1308] sm:$0xff]
        %v4416 = vld [vmem:[#allocation12 + $0x1310] sm:$0xff]
        %v4417 = vld [vmem:[#allocation12 + $0x1318] sm:$0xff]
        %v4418 = vld [vmem:[#allocation12 + $0x1320] sm:$0xff]
        %v4419 = vld [vmem:[#allocation12 + $0x1328] sm:$0xff]
        %v4420 = vld [vmem:[#allocation12 + $0x1330] sm:$0xff]
        %v4421 = vld [vmem:[#allocation12 + $0x1338] sm:$0xff]
        %v4422 = vld [vmem:[#allocation12 + $0x1340] sm:$0xff]
        %v4423 = vld [vmem:[#allocation12 + $0x1348] sm:$0xff]
        %v4424 = vld [vmem:[#allocation12 + $0x1350] sm:$0xff]
        %v4425 = vld [vmem:[#allocation12 + $0x1358] sm:$0xff]
        %v4426 = vld [vmem:[#allocation12 + $0x1360] sm:$0xff]
        %v4427 = vld [vmem:[#allocation12 + $0x1368] sm:$0xff]
        %v4428 = vld [vmem:[#allocation12 + $0x1370] sm:$0xff]
        %v4429 = vld [vmem:[#allocation12 + $0x1378] sm:$0xff]
        %v4430 = vld [vmem:[#allocation12 + $0x1380] sm:$0xff]
        %v4431 = vld [vmem:[#allocation12 + $0x1388] sm:$0xff]
        %v4432 = vld [vmem:[#allocation12 + $0x1390] sm:$0xff]
        %v4433 = vld [vmem:[#allocation12 + $0x1398] sm:$0xff]
        %v4434 = vld [vmem:[#allocation12 + $0x13a0] sm:$0xff]
        %v4435 = vld [vmem:[#allocation12 + $0x13a8] sm:$0xff]
        %v4436 = vld [vmem:[#allocation12 + $0x13b0] sm:$0xff]
        %v4437 = vld [vmem:[#allocation12 + $0x13b8] sm:$0xff]
        %v4438 = vld [vmem:[#allocation12 + $0x13c0] sm:$0xff]
        %v4439 = vld [vmem:[#allocation12 + $0x13c8] sm:$0xff]
        %v4440 = vld [vmem:[#allocation12 + $0x13d0] sm:$0xff]
        %v4441 = vld [vmem:[#allocation12 + $0x13d8] sm:$0xff]
        %v4442 = vld [vmem:[#allocation12 + $0x13e0] sm:$0xff]
        %v4443 = vld [vmem:[#allocation12 + $0x13e8] sm:$0xff]
        %v4444 = vld [vmem:[#allocation12 + $0x13f0] sm:$0xff]
        %v4445 = vld [vmem:[#allocation12 + $0x13f8] sm:$0xff]
        %v4446 = vld [vmem:[#allocation12 + $0x1400] sm:$0xff]
        %v4447 = vld [vmem:[#allocation12 + $0x1408] sm:$0xff]
        %v4448 = vld [vmem:[#allocation12 + $0x1410] sm:$0xff]
        %v4449 = vld [vmem:[#allocation12 + $0x1418] sm:$0xff]
        %v4450 = vld [vmem:[#allocation12 + $0x1420] sm:$0xff]
        %v4451 = vld [vmem:[#allocation12 + $0x1428] sm:$0xff]
        %v4452 = vld [vmem:[#allocation12 + $0x1430] sm:$0xff]
        %v4453 = vld [vmem:[#allocation12 + $0x1438] sm:$0xff]
        %v4454 = vld [vmem:[#allocation12 + $0x1440] sm:$0xff]
        %v4455 = vld [vmem:[#allocation12 + $0x1448] sm:$0xff]
        %v4456 = vld [vmem:[#allocation12 + $0x1450] sm:$0xff]
        %v4457 = vld [vmem:[#allocation12 + $0x1458] sm:$0xff]
        %v4458 = vld [vmem:[#allocation12 + $0x1460] sm:$0xff]
        %v4459 = vld [vmem:[#allocation12 + $0x1468] sm:$0xff]
        %v4460 = vld [vmem:[#allocation12 + $0x1470] sm:$0xff]
        %v4461 = vld [vmem:[#allocation12 + $0x1478] sm:$0xff]
        %v4462 = vld [vmem:[#allocation12 + $0x1480] sm:$0xff]
        %v4463 = vld [vmem:[#allocation12 + $0x1488] sm:$0xff]
        %v4464 = vld [vmem:[#allocation12 + $0x1490] sm:$0xff]
        %v4465 = vld [vmem:[#allocation12 + $0x1498] sm:$0xff]
        %v4466 = vld [vmem:[#allocation12 + $0x14a0] sm:$0xff]
        %v4467 = vld [vmem:[#allocation12 + $0x14a8] sm:$0xff]
        %v4468 = vld [vmem:[#allocation12 + $0x14b0] sm:$0xff]
        %v4469 = vld [vmem:[#allocation12 + $0x14b8] sm:$0xff]
        %v4470 = vld [vmem:[#allocation12 + $0x14c0] sm:$0xff]
        %v4471 = vld [vmem:[#allocation12 + $0x14c8] sm:$0xff]
        %v4472 = vld [vmem:[#allocation12 + $0x14d0] sm:$0xff]
        %v4473 = vld [vmem:[#allocation12 + $0x14d8] sm:$0xff]
        %v4474 = vld [vmem:[#allocation12 + $0x14e0] sm:$0xff]
        %v4475 = vld [vmem:[#allocation12 + $0x14e8] sm:$0xff]
        %v4476 = vld [vmem:[#allocation12 + $0x14f0] sm:$0xff]
        %v4477 = vld [vmem:[#allocation12 + $0x14f8] sm:$0xff]
        %v4478 = vld [vmem:[#allocation12 + $0x1500] sm:$0xff]
        %v4479 = vld [vmem:[#allocation12 + $0x1508] sm:$0xff]
        %v4480 = vld [vmem:[#allocation12 + $0x1510] sm:$0xff]
        %v4481 = vld [vmem:[#allocation12 + $0x1518] sm:$0xff]
        %v4482 = vld [vmem:[#allocation12 + $0x1520] sm:$0xff]
        %v4483 = vld [vmem:[#allocation12 + $0x1528] sm:$0xff]
        %v4484 = vld [vmem:[#allocation12 + $0x1530] sm:$0xff]
        %v4485 = vld [vmem:[#allocation12 + $0x1538] sm:$0xff]
        %v4486 = vld [vmem:[#allocation12 + $0x1540] sm:$0xff]
        %v4487 = vld [vmem:[#allocation12 + $0x1548] sm:$0xff]
        %v4488 = vld [vmem:[#allocation12 + $0x1550] sm:$0xff]
        %v4489 = vld [vmem:[#allocation12 + $0x1558] sm:$0xff]
        %v4490 = vld [vmem:[#allocation12 + $0x1560] sm:$0xff]
        %v4491 = vld [vmem:[#allocation12 + $0x1568] sm:$0xff]
        %v4492 = vld [vmem:[#allocation12 + $0x1570] sm:$0xff]
        %v4493 = vld [vmem:[#allocation12 + $0x1578] sm:$0xff]
        %v4494 = vld [vmem:[#allocation12 + $0x1580] sm:$0xff]
        %v4495 = vld [vmem:[#allocation12 + $0x1588] sm:$0xff]
        %v4496 = vld [vmem:[#allocation12 + $0x1590] sm:$0xff]
        %v4497 = vld [vmem:[#allocation12 + $0x1598] sm:$0xff]
        %v4498 = vld [vmem:[#allocation12 + $0x15a0] sm:$0xff]
        %v4499 = vld [vmem:[#allocation12 + $0x15a8] sm:$0xff]
        %v4500 = vld [vmem:[#allocation12 + $0x15b0] sm:$0xff]
        %v4501 = vld [vmem:[#allocation12 + $0x15b8] sm:$0xff]
        %v4502 = vld [vmem:[#allocation12 + $0x15c0] sm:$0xff]
        %v4503 = vld [vmem:[#allocation12 + $0x15c8] sm:$0xff]
        %v4504 = vld [vmem:[#allocation12 + $0x15d0] sm:$0xff]
        %v4505 = vld [vmem:[#allocation12 + $0x15d8] sm:$0xff]
        %v4506 = vld [vmem:[#allocation12 + $0x15e0] sm:$0xff]
        %v4507 = vld [vmem:[#allocation12 + $0x15e8] sm:$0xff]
        %v4508 = vld [vmem:[#allocation12 + $0x15f0] sm:$0xff]
        %v4509 = vld [vmem:[#allocation12 + $0x15f8] sm:$0xff]
        %v4510 = vld [vmem:[#allocation12 + $0x1600] sm:$0xff]
        %v4511 = vld [vmem:[#allocation12 + $0x1608] sm:$0xff]
        %v4512 = vld [vmem:[#allocation12 + $0x1610] sm:$0xff]
        %v4513 = vld [vmem:[#allocation12 + $0x1618] sm:$0xff]
        %v4514 = vld [vmem:[#allocation12 + $0x1620] sm:$0xff]
        %v4515 = vld [vmem:[#allocation12 + $0x1628] sm:$0xff]
        %v4516 = vld [vmem:[#allocation12 + $0x1630] sm:$0xff]
        %v4517 = vld [vmem:[#allocation12 + $0x1638] sm:$0xff]
        %v4518 = vld [vmem:[#allocation12 + $0x1640] sm:$0xff]
        %v4519 = vld [vmem:[#allocation12 + $0x1648] sm:$0xff]
        %v4520 = vld [vmem:[#allocation12 + $0x1650] sm:$0xff]
        %v4521 = vld [vmem:[#allocation12 + $0x1658] sm:$0xff]
        %v4522 = vld [vmem:[#allocation12 + $0x1660] sm:$0xff]
        %v4523 = vld [vmem:[#allocation12 + $0x1668] sm:$0xff]
        %v4524 = vld [vmem:[#allocation12 + $0x1670] sm:$0xff]
        %v4525 = vld [vmem:[#allocation12 + $0x1678] sm:$0xff]
        %v4526 = vld [vmem:[#allocation12 + $0x1680] sm:$0xff]
        %v4527 = vld [vmem:[#allocation12 + $0x1688] sm:$0xff]
        %v4528 = vld [vmem:[#allocation12 + $0x1690] sm:$0xff]
        %v4529 = vld [vmem:[#allocation12 + $0x1698] sm:$0xff]
        %v4530 = vld [vmem:[#allocation12 + $0x16a0] sm:$0xff]
        %v4531 = vld [vmem:[#allocation12 + $0x16a8] sm:$0xff]
        %v4532 = vld [vmem:[#allocation12 + $0x16b0] sm:$0xff]
        %v4533 = vld [vmem:[#allocation12 + $0x16b8] sm:$0xff]
        %v4534 = vld [vmem:[#allocation12 + $0x16c0] sm:$0xff]
        %v4535 = vld [vmem:[#allocation12 + $0x16c8] sm:$0xff]
        %v4536 = vld [vmem:[#allocation12 + $0x16d0] sm:$0xff]
        %v4537 = vld [vmem:[#allocation12 + $0x16d8] sm:$0xff]
        %v4538 = vld [vmem:[#allocation12 + $0x16e0] sm:$0xff]
        %v4539 = vld [vmem:[#allocation12 + $0x16e8] sm:$0xff]
        %v4540 = vld [vmem:[#allocation12 + $0x16f0] sm:$0xff]
        %v4541 = vld [vmem:[#allocation12 + $0x16f8] sm:$0xff]
        %v4542 = vld [vmem:[#allocation12 + $0x1700] sm:$0xff]
        %v4543 = vld [vmem:[#allocation12 + $0x1708] sm:$0xff]
        %v4544 = vld [vmem:[#allocation12 + $0x1710] sm:$0xff]
        %v4545 = vld [vmem:[#allocation12 + $0x1718] sm:$0xff]
        %v4546 = vld [vmem:[#allocation12 + $0x1720] sm:$0xff]
        %v4547 = vld [vmem:[#allocation12 + $0x1728] sm:$0xff]
        %v4548 = vld [vmem:[#allocation12 + $0x1730] sm:$0xff]
        %v4549 = vld [vmem:[#allocation12 + $0x1738] sm:$0xff]
        %v4550 = vld [vmem:[#allocation12 + $0x1740] sm:$0xff]
        %v4551 = vld [vmem:[#allocation12 + $0x1748] sm:$0xff]
        %v4552 = vld [vmem:[#allocation12 + $0x1750] sm:$0xff]
        %v4553 = vld [vmem:[#allocation12 + $0x1758] sm:$0xff]
        %v4554 = vld [vmem:[#allocation12 + $0x1760] sm:$0xff]
        %v4555 = vld [vmem:[#allocation12 + $0x1768] sm:$0xff]
        %v4556 = vld [vmem:[#allocation12 + $0x1770] sm:$0xff]
        %v4557 = vld [vmem:[#allocation12 + $0x1778] sm:$0xff]
        %v4558 = vld [vmem:[#allocation12 + $0x1780] sm:$0xff]
        %v4559 = vld [vmem:[#allocation12 + $0x1788] sm:$0xff]
        %v4560 = vld [vmem:[#allocation12 + $0x1790] sm:$0xff]
        %v4561 = vld [vmem:[#allocation12 + $0x1798] sm:$0xff]
        %v4562 = vld [vmem:[#allocation12 + $0x17a0] sm:$0xff]
        %v4563 = vld [vmem:[#allocation12 + $0x17a8] sm:$0xff]
        %v4564 = vld [vmem:[#allocation12 + $0x17b0] sm:$0xff]
        %v4565 = vld [vmem:[#allocation12 + $0x17b8] sm:$0xff]
        %v4566 = vld [vmem:[#allocation12 + $0x17c0] sm:$0xff]
        %v4567 = vld [vmem:[#allocation12 + $0x17c8] sm:$0xff]
        %v4568 = vld [vmem:[#allocation12 + $0x17d0] sm:$0xff]
        %v4569 = vld [vmem:[#allocation12 + $0x17d8] sm:$0xff]
        %v4570 = vld [vmem:[#allocation12 + $0x17e0] sm:$0xff]
        %v4571 = vld [vmem:[#allocation12 + $0x17e8] sm:$0xff]
        %v4572 = vld [vmem:[#allocation12 + $0x17f0] sm:$0xff]
        %v4573 = vld [vmem:[#allocation12 + $0x17f8] sm:$0xff]
        %v4574 = vld [vmem:[#allocation12 + $0x1800] sm:$0xff]
        %v4575 = vld [vmem:[#allocation12 + $0x1808] sm:$0xff]
        %v4576 = vld [vmem:[#allocation12 + $0x1810] sm:$0xff]
        %v4577 = vld [vmem:[#allocation12 + $0x1818] sm:$0xff]
        %v4578 = vld [vmem:[#allocation12 + $0x1820] sm:$0xff]
        %v4579 = vld [vmem:[#allocation12 + $0x1828] sm:$0xff]
        %v4580 = vld [vmem:[#allocation12 + $0x1830] sm:$0xff]
        %v4581 = vld [vmem:[#allocation12 + $0x1838] sm:$0xff]
        %v4582 = vld [vmem:[#allocation12 + $0x1840] sm:$0xff]
        %v4583 = vld [vmem:[#allocation12 + $0x1848] sm:$0xff]
        %v4584 = vld [vmem:[#allocation12 + $0x1850] sm:$0xff]
        %v4585 = vld [vmem:[#allocation12 + $0x1858] sm:$0xff]
        %v4586 = vld [vmem:[#allocation12 + $0x1860] sm:$0xff]
        %v4587 = vld [vmem:[#allocation12 + $0x1868] sm:$0xff]
        %v4588 = vld [vmem:[#allocation12 + $0x1870] sm:$0xff]
        %v4589 = vld [vmem:[#allocation12 + $0x1878] sm:$0xff]
        %v4590 = vld [vmem:[#allocation12 + $0x1880] sm:$0xff]
        %v4591 = vld [vmem:[#allocation12 + $0x1888] sm:$0xff]
        %v4592 = vld [vmem:[#allocation12 + $0x1890] sm:$0xff]
        %v4593 = vld [vmem:[#allocation12 + $0x1898] sm:$0xff]
        %v4594 = vld [vmem:[#allocation12 + $0x18a0] sm:$0xff]
        %v4595 = vld [vmem:[#allocation12 + $0x18a8] sm:$0xff]
        %v4596 = vld [vmem:[#allocation12 + $0x18b0] sm:$0xff]
        %v4597 = vld [vmem:[#allocation12 + $0x18b8] sm:$0xff]
        %v4598 = vld [vmem:[#allocation12 + $0x18c0] sm:$0xff]
        %v4599 = vld [vmem:[#allocation12 + $0x18c8] sm:$0xff]
        %v4600 = vld [vmem:[#allocation12 + $0x18d0] sm:$0xff]
        %v4601 = vld [vmem:[#allocation12 + $0x18d8] sm:$0xff]
        %v4602 = vld [vmem:[#allocation12 + $0x18e0] sm:$0xff]
        %v4603 = vld [vmem:[#allocation12 + $0x18e8] sm:$0xff]
        %v4604 = vld [vmem:[#allocation12 + $0x18f0] sm:$0xff]
        %v4605 = vld [vmem:[#allocation12 + $0x18f8] sm:$0xff]
        %v4606 = vld [vmem:[#allocation12 + $0x1900] sm:$0xff]
        %v4607 = vld [vmem:[#allocation12 + $0x1908] sm:$0xff]
        %v4608 = vld [vmem:[#allocation12 + $0x1910] sm:$0xff]
        %v4609 = vld [vmem:[#allocation12 + $0x1918] sm:$0xff]
        %v4610 = vld [vmem:[#allocation12 + $0x1920] sm:$0xff]
        %v4611 = vld [vmem:[#allocation12 + $0x1928] sm:$0xff]
        %v4612 = vld [vmem:[#allocation12 + $0x1930] sm:$0xff]
        %v4613 = vld [vmem:[#allocation12 + $0x1938] sm:$0xff]
        %v4614 = vld [vmem:[#allocation12 + $0x1940] sm:$0xff]
        %v4615 = vld [vmem:[#allocation12 + $0x1948] sm:$0xff]
        %v4616 = vld [vmem:[#allocation12 + $0x1950] sm:$0xff]
        %v4617 = vld [vmem:[#allocation12 + $0x1958] sm:$0xff]
        %v4618 = vld [vmem:[#allocation12 + $0x1960] sm:$0xff]
        %v4619 = vld [vmem:[#allocation12 + $0x1968] sm:$0xff]
        %v4620 = vld [vmem:[#allocation12 + $0x1970] sm:$0xff]
        %v4621 = vld [vmem:[#allocation12 + $0x1978] sm:$0xff]
        %v4622 = vld [vmem:[#allocation12 + $0x1980] sm:$0xff]
        %v4623 = vld [vmem:[#allocation12 + $0x1988] sm:$0xff]
        %v4624 = vld [vmem:[#allocation12 + $0x1990] sm:$0xff]
        %v4625 = vld [vmem:[#allocation12 + $0x1998] sm:$0xff]
        %v4626 = vld [vmem:[#allocation12 + $0x19a0] sm:$0xff]
        %v4627 = vld [vmem:[#allocation12 + $0x19a8] sm:$0xff]
        %v4628 = vld [vmem:[#allocation12 + $0x19b0] sm:$0xff]
        %v4629 = vld [vmem:[#allocation12 + $0x19b8] sm:$0xff]
        %v4630 = vld [vmem:[#allocation12 + $0x19c0] sm:$0xff]
        %v4631 = vld [vmem:[#allocation12 + $0x19c8] sm:$0xff]
        %v4632 = vld [vmem:[#allocation12 + $0x19d0] sm:$0xff]
        %v4633 = vld [vmem:[#allocation12 + $0x19d8] sm:$0xff]
        %v4634 = vld [vmem:[#allocation12 + $0x19e0] sm:$0xff]
        %v4635 = vld [vmem:[#allocation12 + $0x19e8] sm:$0xff]
        %v4636 = vld [vmem:[#allocation12 + $0x19f0] sm:$0xff]
        %v4637 = vld [vmem:[#allocation12 + $0x19f8] sm:$0xff]
        %v4638 = vld [vmem:[#allocation12 + $0x1a00] sm:$0xff]
        %v4639 = vld [vmem:[#allocation12 + $0x1a08] sm:$0xff]
        %v4640 = vld [vmem:[#allocation12 + $0x1a10] sm:$0xff]
        %v4641 = vld [vmem:[#allocation12 + $0x1a18] sm:$0xff]
        %v4642 = vld [vmem:[#allocation12 + $0x1a20] sm:$0xff]
        %v4643 = vld [vmem:[#allocation12 + $0x1a28] sm:$0xff]
        %v4644 = vld [vmem:[#allocation12 + $0x1a30] sm:$0xff]
        %v4645 = vld [vmem:[#allocation12 + $0x1a38] sm:$0xff]
        %v4646 = vld [vmem:[#allocation12 + $0x1a40] sm:$0xff]
        %v4647 = vld [vmem:[#allocation12 + $0x1a48] sm:$0xff]
        %v4648 = vld [vmem:[#allocation12 + $0x1a50] sm:$0xff]
        %v4649 = vld [vmem:[#allocation12 + $0x1a58] sm:$0xff]
        %v4650 = vld [vmem:[#allocation12 + $0x1a60] sm:$0xff]
        %v4651 = vld [vmem:[#allocation12 + $0x1a68] sm:$0xff]
        %v4652 = vld [vmem:[#allocation12 + $0x1a70] sm:$0xff]
        %v4653 = vld [vmem:[#allocation12 + $0x1a78] sm:$0xff]
        %v4654 = vld [vmem:[#allocation12 + $0x1a80] sm:$0xff]
        %v4655 = vld [vmem:[#allocation12 + $0x1a88] sm:$0xff]
        %v4656 = vld [vmem:[#allocation12 + $0x1a90] sm:$0xff]
        %v4657 = vld [vmem:[#allocation12 + $0x1a98] sm:$0xff]
        %v4658 = vld [vmem:[#allocation12 + $0x1aa0] sm:$0xff]
        %v4659 = vld [vmem:[#allocation12 + $0x1aa8] sm:$0xff]
        %v4660 = vld [vmem:[#allocation12 + $0x1ab0] sm:$0xff]
        %v4661 = vld [vmem:[#allocation12 + $0x1ab8] sm:$0xff]
        %v4662 = vld [vmem:[#allocation12 + $0x1ac0] sm:$0xff]
        %v4663 = vld [vmem:[#allocation12 + $0x1ac8] sm:$0xff]
        %v4664 = vld [vmem:[#allocation12 + $0x1ad0] sm:$0xff]
        %v4665 = vld [vmem:[#allocation12 + $0x1ad8] sm:$0xff]
        %v4666 = vld [vmem:[#allocation12 + $0x1ae0] sm:$0xff]
        %v4667 = vld [vmem:[#allocation12 + $0x1ae8] sm:$0xff]
        %v4668 = vld [vmem:[#allocation12 + $0x1af0] sm:$0xff]
        %v4669 = vld [vmem:[#allocation12 + $0x1af8] sm:$0xff]
        %v4670 = vld [vmem:[#allocation12 + $0x1b00] sm:$0xff]
        %v4671 = vld [vmem:[#allocation12 + $0x1b08] sm:$0xff]
        %v4672 = vld [vmem:[#allocation12 + $0x1b10] sm:$0xff]
        %v4673 = vld [vmem:[#allocation12 + $0x1b18] sm:$0xff]
        %v4674 = vld [vmem:[#allocation12 + $0x1b20] sm:$0xff]
        %v4675 = vld [vmem:[#allocation12 + $0x1b28] sm:$0xff]
        %v4676 = vld [vmem:[#allocation12 + $0x1b30] sm:$0xff]
        %v4677 = vld [vmem:[#allocation12 + $0x1b38] sm:$0xff]
        %v4678 = vld [vmem:[#allocation12 + $0x1b40] sm:$0xff]
        %v4679 = vld [vmem:[#allocation12 + $0x1b48] sm:$0xff]
        %v4680 = vld [vmem:[#allocation12 + $0x1b50] sm:$0xff]
        %v4681 = vld [vmem:[#allocation12 + $0x1b58] sm:$0xff]
        %v4682 = vld [vmem:[#allocation12 + $0x1b60] sm:$0xff]
        %v4683 = vld [vmem:[#allocation12 + $0x1b68] sm:$0xff]
        %v4684 = vld [vmem:[#allocation12 + $0x1b70] sm:$0xff]
        %v4685 = vld [vmem:[#allocation12 + $0x1b78] sm:$0xff]
        %v4686 = vld [vmem:[#allocation12 + $0x1b80] sm:$0xff]
        %v4687 = vld [vmem:[#allocation12 + $0x1b88] sm:$0xff]
        %v4688 = vld [vmem:[#allocation12 + $0x1b90] sm:$0xff]
        %v4689 = vld [vmem:[#allocation12 + $0x1b98] sm:$0xff]
        %v4690 = vld [vmem:[#allocation12 + $0x1ba0] sm:$0xff]
        %v4691 = vld [vmem:[#allocation12 + $0x1ba8] sm:$0xff]
        %v4692 = vld [vmem:[#allocation12 + $0x1bb0] sm:$0xff]
        %v4693 = vld [vmem:[#allocation12 + $0x1bb8] sm:$0xff]
        %v4694 = vld [vmem:[#allocation12 + $0x1bc0] sm:$0xff]
        %v4695 = vld [vmem:[#allocation12 + $0x1bc8] sm:$0xff]
        %v4696 = vld [vmem:[#allocation12 + $0x1bd0] sm:$0xff]
        %v4697 = vld [vmem:[#allocation12 + $0x1bd8] sm:$0xff]
        %v4698 = vld [vmem:[#allocation12 + $0x1be0] sm:$0xff]
        %v4699 = vld [vmem:[#allocation12 + $0x1be8] sm:$0xff]
        %v4700 = vld [vmem:[#allocation12 + $0x1bf0] sm:$0xff]
        %v4701 = vld [vmem:[#allocation12 + $0x1bf8] sm:$0xff]
        %v4702 = vld [vmem:[#allocation12 + $0x1c00] sm:$0xff]
        %v4703 = vld [vmem:[#allocation12 + $0x1c08] sm:$0xff]
        %v4704 = vld [vmem:[#allocation12 + $0x1c10] sm:$0xff]
        %v4705 = vld [vmem:[#allocation12 + $0x1c18] sm:$0xff]
        %v4706 = vld [vmem:[#allocation12 + $0x1c20] sm:$0xff]
        %v4707 = vld [vmem:[#allocation12 + $0x1c28] sm:$0xff]
        %v4708 = vld [vmem:[#allocation12 + $0x1c30] sm:$0xff]
        %v4709 = vld [vmem:[#allocation12 + $0x1c38] sm:$0xff]
        %v4710 = vld [vmem:[#allocation12 + $0x1c40] sm:$0xff]
        %v4711 = vld [vmem:[#allocation12 + $0x1c48] sm:$0xff]
        %v4712 = vld [vmem:[#allocation12 + $0x1c50] sm:$0xff]
        %v4713 = vld [vmem:[#allocation12 + $0x1c58] sm:$0xff]
        %v4714 = vld [vmem:[#allocation12 + $0x1c60] sm:$0xff]
        %v4715 = vld [vmem:[#allocation12 + $0x1c68] sm:$0xff]
        %v4716 = vld [vmem:[#allocation12 + $0x1c70] sm:$0xff]
        %v4717 = vld [vmem:[#allocation12 + $0x1c78] sm:$0xff]
        %v4718 = vld [vmem:[#allocation12 + $0x1c80] sm:$0xff]
        %v4719 = vld [vmem:[#allocation12 + $0x1c88] sm:$0xff]
        %v4720 = vld [vmem:[#allocation12 + $0x1c90] sm:$0xff]
        %v4721 = vld [vmem:[#allocation12 + $0x1c98] sm:$0xff]
        %v4722 = vld [vmem:[#allocation12 + $0x1ca0] sm:$0xff]
        %v4723 = vld [vmem:[#allocation12 + $0x1ca8] sm:$0xff]
        %v4724 = vld [vmem:[#allocation12 + $0x1cb0] sm:$0xff]
        %v4725 = vld [vmem:[#allocation12 + $0x1cb8] sm:$0xff]
        %v4726 = vld [vmem:[#allocation12 + $0x1cc0] sm:$0xff]
        %v4727 = vld [vmem:[#allocation12 + $0x1cc8] sm:$0xff]
        %v4728 = vld [vmem:[#allocation12 + $0x1cd0] sm:$0xff]
        %v4729 = vld [vmem:[#allocation12 + $0x1cd8] sm:$0xff]
        %v4730 = vld [vmem:[#allocation12 + $0x1ce0] sm:$0xff]
        %v4731 = vld [vmem:[#allocation12 + $0x1ce8] sm:$0xff]
        %v4732 = vld [vmem:[#allocation12 + $0x1cf0] sm:$0xff]
        %v4733 = vld [vmem:[#allocation12 + $0x1cf8] sm:$0xff]
        %v4734 = vld [vmem:[#allocation12 + $0x1d00] sm:$0xff]
        %v4735 = vld [vmem:[#allocation12 + $0x1d08] sm:$0xff]
        %v4736 = vld [vmem:[#allocation12 + $0x1d10] sm:$0xff]
        %v4737 = vld [vmem:[#allocation12 + $0x1d18] sm:$0xff]
        %v4738 = vld [vmem:[#allocation12 + $0x1d20] sm:$0xff]
        %v4739 = vld [vmem:[#allocation12 + $0x1d28] sm:$0xff]
        %v4740 = vld [vmem:[#allocation12 + $0x1d30] sm:$0xff]
        %v4741 = vld [vmem:[#allocation12 + $0x1d38] sm:$0xff]
        %v4742 = vld [vmem:[#allocation12 + $0x1d40] sm:$0xff]
        %v4743 = vld [vmem:[#allocation12 + $0x1d48] sm:$0xff]
        %v4744 = vld [vmem:[#allocation12 + $0x1d50] sm:$0xff]
        %v4745 = vld [vmem:[#allocation12 + $0x1d58] sm:$0xff]
        %v4746 = vld [vmem:[#allocation12 + $0x1d60] sm:$0xff]
        %v4747 = vld [vmem:[#allocation12 + $0x1d68] sm:$0xff]
        %v4748 = vld [vmem:[#allocation12 + $0x1d70] sm:$0xff]
        %v4749 = vld [vmem:[#allocation12 + $0x1d78] sm:$0xff]
        %v4750 = vld [vmem:[#allocation12 + $0x1d80] sm:$0xff]
        %v4751 = vld [vmem:[#allocation12 + $0x1d88] sm:$0xff]
        %v4752 = vld [vmem:[#allocation12 + $0x1d90] sm:$0xff]
        %v4753 = vld [vmem:[#allocation12 + $0x1d98] sm:$0xff]
        %v4754 = vld [vmem:[#allocation12 + $0x1da0] sm:$0xff]
        %v4755 = vld [vmem:[#allocation12 + $0x1da8] sm:$0xff]
        %v4756 = vld [vmem:[#allocation12 + $0x1db0] sm:$0xff]
        %v4757 = vld [vmem:[#allocation12 + $0x1db8] sm:$0xff]
        %v4758 = vld [vmem:[#allocation12 + $0x1dc0] sm:$0xff]
        %v4759 = vld [vmem:[#allocation12 + $0x1dc8] sm:$0xff]
        %v4760 = vld [vmem:[#allocation12 + $0x1dd0] sm:$0xff]
        %v4761 = vld [vmem:[#allocation12 + $0x1dd8] sm:$0xff]
        %v4762 = vld [vmem:[#allocation12 + $0x1de0] sm:$0xff]
        %v4763 = vld [vmem:[#allocation12 + $0x1de8] sm:$0xff]
        %v4764 = vld [vmem:[#allocation12 + $0x1df0] sm:$0xff]
        %v4765 = vld [vmem:[#allocation12 + $0x1df8] sm:$0xff]
        %v4766 = vld [vmem:[#allocation12 + $0x1e00] sm:$0xff]
        %v4767 = vld [vmem:[#allocation12 + $0x1e08] sm:$0xff]
        %v4768 = vld [vmem:[#allocation12 + $0x1e10] sm:$0xff]
        %v4769 = vld [vmem:[#allocation12 + $0x1e18] sm:$0xff]
        %v4770 = vld [vmem:[#allocation12 + $0x1e20] sm:$0xff]
        %v4771 = vld [vmem:[#allocation12 + $0x1e28] sm:$0xff]
        %v4772 = vld [vmem:[#allocation12 + $0x1e30] sm:$0xff]
        %v4773 = vld [vmem:[#allocation12 + $0x1e38] sm:$0xff]
        %v4774 = vld [vmem:[#allocation12 + $0x1e40] sm:$0xff]
        %v4775 = vld [vmem:[#allocation12 + $0x1e48] sm:$0xff]
        %v4776 = vld [vmem:[#allocation12 + $0x1e50] sm:$0xff]
        %v4777 = vld [vmem:[#allocation12 + $0x1e58] sm:$0xff]
        %v4778 = vld [vmem:[#allocation12 + $0x1e60] sm:$0xff]
        %v4779 = vld [vmem:[#allocation12 + $0x1e68] sm:$0xff]
        %v4780 = vld [vmem:[#allocation12 + $0x1e70] sm:$0xff]
        %v4781 = vld [vmem:[#allocation12 + $0x1e78] sm:$0xff]
        %v4782 = vld [vmem:[#allocation12 + $0x1e80] sm:$0xff]
        %v4783 = vld [vmem:[#allocation12 + $0x1e88] sm:$0xff]
        %v4784 = vld [vmem:[#allocation12 + $0x1e90] sm:$0xff]
        %v4785 = vld [vmem:[#allocation12 + $0x1e98] sm:$0xff]
        %v4786 = vld [vmem:[#allocation12 + $0x1ea0] sm:$0xff]
        %v4787 = vld [vmem:[#allocation12 + $0x1ea8] sm:$0xff]
        %v4788 = vld [vmem:[#allocation12 + $0x1eb0] sm:$0xff]
        %v4789 = vld [vmem:[#allocation12 + $0x1eb8] sm:$0xff]
        %v4790 = vld [vmem:[#allocation12 + $0x1ec0] sm:$0xff]
        %v4791 = vld [vmem:[#allocation12 + $0x1ec8] sm:$0xff]
        %v4792 = vld [vmem:[#allocation12 + $0x1ed0] sm:$0xff]
        %v4793 = vld [vmem:[#allocation12 + $0x1ed8] sm:$0xff]
        %v4794 = vld [vmem:[#allocation12 + $0x1ee0] sm:$0xff]
        %v4795 = vld [vmem:[#allocation12 + $0x1ee8] sm:$0xff]
        %v4796 = vld [vmem:[#allocation12 + $0x1ef0] sm:$0xff]
        %v4797 = vld [vmem:[#allocation12 + $0x1ef8] sm:$0xff]
        %v4798 = vld [vmem:[#allocation12 + $0x1f00] sm:$0xff]
        %v4799 = vld [vmem:[#allocation12 + $0x1f08] sm:$0xff]
        %v4800 = vld [vmem:[#allocation12 + $0x1f10] sm:$0xff]
        %v4801 = vld [vmem:[#allocation12 + $0x1f18] sm:$0xff]
        %v4802 = vld [vmem:[#allocation12 + $0x1f20] sm:$0xff]
        %v4803 = vld [vmem:[#allocation12 + $0x1f28] sm:$0xff]
        %v4804 = vld [vmem:[#allocation12 + $0x1f30] sm:$0xff]
        %v4805 = vld [vmem:[#allocation12 + $0x1f38] sm:$0xff]
        %v4806 = vld [vmem:[#allocation12 + $0x1f40] sm:$0xff]
        %v4807 = vld [vmem:[#allocation12 + $0x1f48] sm:$0xff]
        %v4808 = vld [vmem:[#allocation12 + $0x1f50] sm:$0xff]
        %v4809 = vld [vmem:[#allocation12 + $0x1f58] sm:$0xff]
        %v4810 = vld [vmem:[#allocation12 + $0x1f60] sm:$0xff]
        %v4811 = vld [vmem:[#allocation12 + $0x1f68] sm:$0xff]
        %v4812 = vld [vmem:[#allocation12 + $0x1f70] sm:$0xff]
        %v4813 = vld [vmem:[#allocation12 + $0x1f78] sm:$0xff]
        %v4814 = vld [vmem:[#allocation12 + $0x1f80] sm:$0xff]
        %v4815 = vld [vmem:[#allocation12 + $0x1f88] sm:$0xff]
        %v4816 = vld [vmem:[#allocation12 + $0x1f90] sm:$0xff]
        %v4817 = vld [vmem:[#allocation12 + $0x1f98] sm:$0xff]
        %v4818 = vld [vmem:[#allocation12 + $0x1fa0] sm:$0xff]
        %v4819 = vld [vmem:[#allocation12 + $0x1fa8] sm:$0xff]
        %v4820 = vld [vmem:[#allocation12 + $0x1fb0] sm:$0xff]
        %v4821 = vld [vmem:[#allocation12 + $0x1fb8] sm:$0xff]
        %v4822 = vld [vmem:[#allocation12 + $0x1fc0] sm:$0xff]
        %v4823 = vld [vmem:[#allocation12 + $0x1fc8] sm:$0xff]
        %v4824 = vld [vmem:[#allocation12 + $0x1fd0] sm:$0xff]
        %v4825 = vld [vmem:[#allocation12 + $0x1fd8] sm:$0xff]
        %v4826 = vld [vmem:[#allocation12 + $0x1fe0] sm:$0xff]
        %v4827 = vld [vmem:[#allocation12 + $0x1fe8] sm:$0xff]
        %v4828 = vld [vmem:[#allocation12 + $0x1ff0] sm:$0xff]
        %v4829 = vld [vmem:[#allocation12 + $0x1ff8] sm:$0xff]
        %4830 = vmatprep.subr.mxu0 %v3807
        %4831 = vmatpush1.msra.mxu0 %v3806
        %4832 = vmatprep.subr.mxu0 %v3809
        %4833 = vmatpush1.msra.mxu0 %v3808
        %4834 = vmatprep.subr.mxu0 %v3811
        %4835 = vmatpush1.msra.mxu0 %v3810
        %4836 = vmatprep.subr.mxu0 %v3813
        %4837 = vmatpush1.msra.mxu0 %v3812
        %4838 = vmatprep.subr.mxu0 %v3815
        %4839 = vmatpush1.msra.mxu0 %v3814
        %4840 = vmatprep.subr.mxu0 %v3817
        %4841 = vmatpush1.msra.mxu0 %v3816
        %4842 = vmatprep.subr.mxu0 %v3819
        %4843 = vmatpush1.msra.mxu0 %v3818
        %4844 = vmatprep.subr.mxu0 %v3821
        %4845 = vmatpush1.msra.mxu0 %v3820
        %4846 = vmatprep.subr.mxu0 %v3823
        %4847 = vmatpush1.msra.mxu0 %v3822
        %4848 = vmatprep.subr.mxu0 %v3825
        %4849 = vmatpush1.msra.mxu0 %v3824
        %4850 = vmatprep.subr.mxu0 %v3827
        %4851 = vmatpush1.msra.mxu0 %v3826
        %4852 = vmatprep.subr.mxu0 %v3829
        %4853 = vmatpush1.msra.mxu0 %v3828
        %4854 = vmatprep.subr.mxu0 %v3831
        %4855 = vmatpush1.msra.mxu0 %v3830
        %4856 = vmatprep.subr.mxu0 %v3833
        %4857 = vmatpush1.msra.mxu0 %v3832
        %4858 = vmatprep.subr.mxu0 %v3835
        %4859 = vmatpush1.msra.mxu0 %v3834
        %4860 = vmatprep.subr.mxu0 %v3837
        %4861 = vmatpush1.msra.mxu0 %v3836
        %4862 = vmatprep.subr.mxu0 %v3839
        %4863 = vmatpush1.msra.mxu0 %v3838
        %4864 = vmatprep.subr.mxu0 %v3841
        %4865 = vmatpush1.msra.mxu0 %v3840
        %4866 = vmatprep.subr.mxu0 %v3843
        %4867 = vmatpush1.msra.mxu0 %v3842
        %4868 = vmatprep.subr.mxu0 %v3845
        %4869 = vmatpush1.msra.mxu0 %v3844
        %4870 = vmatprep.subr.mxu0 %v3847
        %4871 = vmatpush1.msra.mxu0 %v3846
        %4872 = vmatprep.subr.mxu0 %v3849
        %4873 = vmatpush1.msra.mxu0 %v3848
        %4874 = vmatprep.subr.mxu0 %v3851
        %4875 = vmatpush1.msra.mxu0 %v3850
        %4876 = vmatprep.subr.mxu0 %v3853
        %4877 = vmatpush1.msra.mxu0 %v3852
        %4878 = vmatprep.subr.mxu0 %v3855
        %4879 = vmatpush1.msra.mxu0 %v3854
        %4880 = vmatprep.subr.mxu0 %v3857
        %4881 = vmatpush1.msra.mxu0 %v3856
        %4882 = vmatprep.subr.mxu0 %v3859
        %4883 = vmatpush1.msra.mxu0 %v3858
        %4884 = vmatprep.subr.mxu0 %v3861
        %4885 = vmatpush1.msra.mxu0 %v3860
        %4886 = vmatprep.subr.mxu0 %v3863
        %4887 = vmatpush1.msra.mxu0 %v3862
        %4888 = vmatprep.subr.mxu0 %v3865
        %4889 = vmatpush1.msra.mxu0 %v3864
        %4890 = vmatprep.subr.mxu0 %v3867
        %4891 = vmatpush1.msra.mxu0 %v3866
        %4892 = vmatprep.subr.mxu0 %v3869
        %4893 = vmatpush1.msra.mxu0 %v3868
        %4894 = vmatprep.mubr.f32.mxu0 %v3775
        %4895 = vmatmul.mubr.f32.gmra.mrb[0].mxu0 %v3774
        %v4896 = vpop.f32.mrb[0].mxu0
        %v4897 = vadd.f32 0.0, %v4896
        %v4898 = vpop.f32.mrb[0].mxu0
        %v4899 = vadd.f32 0.0, %v4898
        %4900 = vdwg.mxu0
        %4901 = vmatprep.subr.mxu0 %v3871
        %4902 = vmatpush1.msra.mxu0 %v3870
        %4903 = vmatprep.subr.mxu0 %v3873
        %4904 = vmatpush1.msra.mxu0 %v3872
        %4905 = vmatprep.subr.mxu0 %v3875
        %4906 = vmatpush1.msra.mxu0 %v3874
        %4907 = vmatprep.subr.mxu0 %v3877
        %4908 = vmatpush1.msra.mxu0 %v3876
        %4909 = vmatprep.subr.mxu0 %v3879
        %4910 = vmatpush1.msra.mxu0 %v3878
        %4911 = vmatprep.subr.mxu0 %v3881
        %4912 = vmatpush1.msra.mxu0 %v3880
        %4913 = vmatprep.subr.mxu0 %v3883
        %4914 = vmatpush1.msra.mxu0 %v3882
        %4915 = vmatprep.subr.mxu0 %v3885
        %4916 = vmatpush1.msra.mxu0 %v3884
        %4917 = vmatprep.subr.mxu0 %v3887
        %4918 = vmatpush1.msra.mxu0 %v3886
        %4919 = vmatprep.subr.mxu0 %v3889
        %4920 = vmatpush1.msra.mxu0 %v3888
        %4921 = vmatprep.subr.mxu0 %v3891
        %4922 = vmatpush1.msra.mxu0 %v3890
        %4923 = vmatprep.subr.mxu0 %v3893
        %4924 = vmatpush1.msra.mxu0 %v3892
        %4925 = vmatprep.subr.mxu0 %v3895
        %4926 = vmatpush1.msra.mxu0 %v3894
        %4927 = vmatprep.subr.mxu0 %v3897
        %4928 = vmatpush1.msra.mxu0 %v3896
        %4929 = vmatprep.subr.mxu0 %v3899
        %4930 = vmatpush1.msra.mxu0 %v3898
        %4931 = vmatprep.subr.mxu0 %v3901
        %4932 = vmatpush1.msra.mxu0 %v3900
        %4933 = vmatprep.subr.mxu0 %v3903
        %4934 = vmatpush1.msra.mxu0 %v3902
        %4935 = vmatprep.subr.mxu0 %v3905
        %4936 = vmatpush1.msra.mxu0 %v3904
        %4937 = vmatprep.subr.mxu0 %v3907
        %4938 = vmatpush1.msra.mxu0 %v3906
        %4939 = vmatprep.subr.mxu0 %v3909
        %4940 = vmatpush1.msra.mxu0 %v3908
        %4941 = vmatprep.subr.mxu0 %v3911
        %4942 = vmatpush1.msra.mxu0 %v3910
        %4943 = vmatprep.subr.mxu0 %v3913
        %4944 = vmatpush1.msra.mxu0 %v3912
        %4945 = vmatprep.subr.mxu0 %v3915
        %4946 = vmatpush1.msra.mxu0 %v3914
        %4947 = vmatprep.subr.mxu0 %v3917
        %4948 = vmatpush1.msra.mxu0 %v3916
        %4949 = vmatprep.subr.mxu0 %v3919
        %4950 = vmatpush1.msra.mxu0 %v3918
        %4951 = vmatprep.subr.mxu0 %v3921
        %4952 = vmatpush1.msra.mxu0 %v3920
        %4953 = vmatprep.subr.mxu0 %v3923
        %4954 = vmatpush1.msra.mxu0 %v3922
        %4955 = vmatprep.subr.mxu0 %v3925
        %4956 = vmatpush1.msra.mxu0 %v3924
        %4957 = vmatprep.subr.mxu0 %v3927
        %4958 = vmatpush1.msra.mxu0 %v3926
        %4959 = vmatprep.subr.mxu0 %v3929
        %4960 = vmatpush1.msra.mxu0 %v3928
        %4961 = vmatprep.subr.mxu0 %v3931
        %4962 = vmatpush1.msra.mxu0 %v3930
        %4963 = vmatprep.subr.mxu0 %v3933
        %4964 = vmatpush1.msra.mxu0 %v3932
        %4965 = vmatprep.mubr.f32.mxu0 %v3777
        %4966 = vmatmul.mubr.f32.gmra.mrb[0].mxu0 %v3776
        %v4967 = vpop.f32.mrb[0].mxu0
        %v4968 = vadd.f32 %v4897, %v4967
        %v4969 = vpop.f32.mrb[0].mxu0
        %v4970 = vadd.f32 %v4899, %v4969
        %4971 = vdwg.mxu0
        %4972 = vmatprep.subr.mxu0 %v3935
        %4973 = vmatpush1.msra.mxu0 %v3934
        %4974 = vmatprep.subr.mxu0 %v3937
        %4975 = vmatpush1.msra.mxu0 %v3936
        %4976 = vmatprep.subr.mxu0 %v3939
        %4977 = vmatpush1.msra.mxu0 %v3938
        %4978 = vmatprep.subr.mxu0 %v3941
        %4979 = vmatpush1.msra.mxu0 %v3940
        %4980 = vmatprep.subr.mxu0 %v3943
        %4981 = vmatpush1.msra.mxu0 %v3942
        %4982 = vmatprep.subr.mxu0 %v3945
        %4983 = vmatpush1.msra.mxu0 %v3944
        %4984 = vmatprep.subr.mxu0 %v3947
        %4985 = vmatpush1.msra.mxu0 %v3946
        %4986 = vmatprep.subr.mxu0 %v3949
        %4987 = vmatpush1.msra.mxu0 %v3948
        %4988 = vmatprep.subr.mxu0 %v3951
        %4989 = vmatpush1.msra.mxu0 %v3950
        %4990 = vmatprep.subr.mxu0 %v3953
        %4991 = vmatpush1.msra.mxu0 %v3952
        %4992 = vmatprep.subr.mxu0 %v3955
        %4993 = vmatpush1.msra.mxu0 %v3954
        %4994 = vmatprep.subr.mxu0 %v3957
        %4995 = vmatpush1.msra.mxu0 %v3956
        %4996 = vmatprep.subr.mxu0 %v3959
        %4997 = vmatpush1.msra.mxu0 %v3958
        %4998 = vmatprep.subr.mxu0 %v3961
        %4999 = vmatpush1.msra.mxu0 %v3960
        %5000 = vmatprep.subr.mxu0 %v3963
        %5001 = vmatpush1.msra.mxu0 %v3962
        %5002 = vmatprep.subr.mxu0 %v3965
        %5003 = vmatpush1.msra.mxu0 %v3964
        %5004 = vmatprep.subr.mxu0 %v3967
        %5005 = vmatpush1.msra.mxu0 %v3966
        %5006 = vmatprep.subr.mxu0 %v3969
        %5007 = vmatpush1.msra.mxu0 %v3968
        %5008 = vmatprep.subr.mxu0 %v3971
        %5009 = vmatpush1.msra.mxu0 %v3970
        %5010 = vmatprep.subr.mxu0 %v3973
        %5011 = vmatpush1.msra.mxu0 %v3972
        %5012 = vmatprep.subr.mxu0 %v3975
        %5013 = vmatpush1.msra.mxu0 %v3974
        %5014 = vmatprep.subr.mxu0 %v3977
        %5015 = vmatpush1.msra.mxu0 %v3976
        %5016 = vmatprep.subr.mxu0 %v3979
        %5017 = vmatpush1.msra.mxu0 %v3978
        %5018 = vmatprep.subr.mxu0 %v3981
        %5019 = vmatpush1.msra.mxu0 %v3980
        %5020 = vmatprep.subr.mxu0 %v3983
        %5021 = vmatpush1.msra.mxu0 %v3982
        %5022 = vmatprep.subr.mxu0 %v3985
        %5023 = vmatpush1.msra.mxu0 %v3984
        %5024 = vmatprep.subr.mxu0 %v3987
        %5025 = vmatpush1.msra.mxu0 %v3986
        %5026 = vmatprep.subr.mxu0 %v3989
        %5027 = vmatpush1.msra.mxu0 %v3988
        %5028 = vmatprep.subr.mxu0 %v3991
        %5029 = vmatpush1.msra.mxu0 %v3990
        %5030 = vmatprep.subr.mxu0 %v3993
        %5031 = vmatpush1.msra.mxu0 %v3992
        %5032 = vmatprep.subr.mxu0 %v3995
        %5033 = vmatpush1.msra.mxu0 %v3994
        %5034 = vmatprep.subr.mxu0 %v3997
        %5035 = vmatpush1.msra.mxu0 %v3996
        %5036 = vmatprep.mubr.f32.mxu0 %v3779
        %5037 = vmatmul.mubr.f32.gmra.mrb[0].mxu0 %v3778
        %v5038 = vpop.f32.mrb[0].mxu0
        %v5039 = vadd.f32 %v4968, %v5038
        %v5040 = vpop.f32.mrb[0].mxu0
        %v5041 = vadd.f32 %v4970, %v5040
        %5042 = vdwg.mxu0
        %5043 = vmatprep.subr.mxu0 %v3999
        %5044 = vmatpush1.msra.mxu0 %v3998
        %5045 = vmatprep.subr.mxu0 %v4001
        %5046 = vmatpush1.msra.mxu0 %v4000
        %5047 = vmatprep.subr.mxu0 %v4003
        %5048 = vmatpush1.msra.mxu0 %v4002
        %5049 = vmatprep.subr.mxu0 %v4005
        %5050 = vmatpush1.msra.mxu0 %v4004
        %5051 = vmatprep.subr.mxu0 %v4007
        %5052 = vmatpush1.msra.mxu0 %v4006
        %5053 = vmatprep.subr.mxu0 %v4009
        %5054 = vmatpush1.msra.mxu0 %v4008
        %5055 = vmatprep.subr.mxu0 %v4011
        %5056 = vmatpush1.msra.mxu0 %v4010
        %5057 = vmatprep.subr.mxu0 %v4013
        %5058 = vmatpush1.msra.mxu0 %v4012
        %5059 = vmatprep.subr.mxu0 %v4015
        %5060 = vmatpush1.msra.mxu0 %v4014
        %5061 = vmatprep.subr.mxu0 %v4017
        %5062 = vmatpush1.msra.mxu0 %v4016
        %5063 = vmatprep.subr.mxu0 %v4019
        %5064 = vmatpush1.msra.mxu0 %v4018
        %5065 = vmatprep.subr.mxu0 %v4021
        %5066 = vmatpush1.msra.mxu0 %v4020
        %5067 = vmatprep.subr.mxu0 %v4023
        %5068 = vmatpush1.msra.mxu0 %v4022
        %5069 = vmatprep.subr.mxu0 %v4025
        %5070 = vmatpush1.msra.mxu0 %v4024
        %5071 = vmatprep.subr.mxu0 %v4027
        %5072 = vmatpush1.msra.mxu0 %v4026
        %5073 = vmatprep.subr.mxu0 %v4029
        %5074 = vmatpush1.msra.mxu0 %v4028
        %5075 = vmatprep.subr.mxu0 %v4031
        %5076 = vmatpush1.msra.mxu0 %v4030
        %5077 = vmatprep.subr.mxu0 %v4033
        %5078 = vmatpush1.msra.mxu0 %v4032
        %5079 = vmatprep.subr.mxu0 %v4035
        %5080 = vmatpush1.msra.mxu0 %v4034
        %5081 = vmatprep.subr.mxu0 %v4037
        %5082 = vmatpush1.msra.mxu0 %v4036
        %5083 = vmatprep.subr.mxu0 %v4039
        %5084 = vmatpush1.msra.mxu0 %v4038
        %5085 = vmatprep.subr.mxu0 %v4041
        %5086 = vmatpush1.msra.mxu0 %v4040
        %5087 = vmatprep.subr.mxu0 %v4043
        %5088 = vmatpush1.msra.mxu0 %v4042
        %5089 = vmatprep.subr.mxu0 %v4045
        %5090 = vmatpush1.msra.mxu0 %v4044
        %5091 = vmatprep.subr.mxu0 %v4047
        %5092 = vmatpush1.msra.mxu0 %v4046
        %5093 = vmatprep.subr.mxu0 %v4049
        %5094 = vmatpush1.msra.mxu0 %v4048
        %5095 = vmatprep.subr.mxu0 %v4051
        %5096 = vmatpush1.msra.mxu0 %v4050
        %5097 = vmatprep.subr.mxu0 %v4053
        %5098 = vmatpush1.msra.mxu0 %v4052
        %5099 = vmatprep.subr.mxu0 %v4055
        %5100 = vmatpush1.msra.mxu0 %v4054
        %5101 = vmatprep.subr.mxu0 %v4057
        %5102 = vmatpush1.msra.mxu0 %v4056
        %5103 = vmatprep.subr.mxu0 %v4059
        %5104 = vmatpush1.msra.mxu0 %v4058
        %5105 = vmatprep.subr.mxu0 %v4061
        %5106 = vmatpush1.msra.mxu0 %v4060
        %5107 = vmatprep.mubr.f32.mxu0 %v3781
        %5108 = vmatmul.mubr.f32.gmra.mrb[0].mxu0 %v3780
        %v5109 = vpop.f32.mrb[0].mxu0
        %v5110 = vadd.f32 %v5039, %v5109
        %v5111 = vpop.f32.mrb[0].mxu0
        %v5112 = vadd.f32 %v5041, %v5111
        %5113 = vdwg.mxu0
        %5114 = vmatprep.subr.mxu0 %v4063
        %5115 = vmatpush1.msra.mxu0 %v4062
        %5116 = vmatprep.subr.mxu0 %v4065
        %5117 = vmatpush1.msra.mxu0 %v4064
        %5118 = vmatprep.subr.mxu0 %v4067
        %5119 = vmatpush1.msra.mxu0 %v4066
        %5120 = vmatprep.subr.mxu0 %v4069
        %5121 = vmatpush1.msra.mxu0 %v4068
        %5122 = vmatprep.subr.mxu0 %v4071
        %5123 = vmatpush1.msra.mxu0 %v4070
        %5124 = vmatprep.subr.mxu0 %v4073
        %5125 = vmatpush1.msra.mxu0 %v4072
        %5126 = vmatprep.subr.mxu0 %v4075
        %5127 = vmatpush1.msra.mxu0 %v4074
        %5128 = vmatprep.subr.mxu0 %v4077
        %5129 = vmatpush1.msra.mxu0 %v4076
        %5130 = vmatprep.subr.mxu0 %v4079
        %5131 = vmatpush1.msra.mxu0 %v4078
        %5132 = vmatprep.subr.mxu0 %v4081
        %5133 = vmatpush1.msra.mxu0 %v4080
        %5134 = vmatprep.subr.mxu0 %v4083
        %5135 = vmatpush1.msra.mxu0 %v4082
        %5136 = vmatprep.subr.mxu0 %v4085
        %5137 = vmatpush1.msra.mxu0 %v4084
        %5138 = vmatprep.subr.mxu0 %v4087
        %5139 = vmatpush1.msra.mxu0 %v4086
        %5140 = vmatprep.subr.mxu0 %v4089
        %5141 = vmatpush1.msra.mxu0 %v4088
        %5142 = vmatprep.subr.mxu0 %v4091
        %5143 = vmatpush1.msra.mxu0 %v4090
        %5144 = vmatprep.subr.mxu0 %v4093
        %5145 = vmatpush1.msra.mxu0 %v4092
        %5146 = vmatprep.subr.mxu0 %v4095
        %5147 = vmatpush1.msra.mxu0 %v4094
        %5148 = vmatprep.subr.mxu0 %v4097
        %5149 = vmatpush1.msra.mxu0 %v4096
        %5150 = vmatprep.subr.mxu0 %v4099
        %5151 = vmatpush1.msra.mxu0 %v4098
        %5152 = vmatprep.subr.mxu0 %v4101
        %5153 = vmatpush1.msra.mxu0 %v4100
        %5154 = vmatprep.subr.mxu0 %v4103
        %5155 = vmatpush1.msra.mxu0 %v4102
        %5156 = vmatprep.subr.mxu0 %v4105
        %5157 = vmatpush1.msra.mxu0 %v4104
        %5158 = vmatprep.subr.mxu0 %v4107
        %5159 = vmatpush1.msra.mxu0 %v4106
        %5160 = vmatprep.subr.mxu0 %v4109
        %5161 = vmatpush1.msra.mxu0 %v4108
        %5162 = vmatprep.subr.mxu0 %v4111
        %5163 = vmatpush1.msra.mxu0 %v4110
        %5164 = vmatprep.subr.mxu0 %v4113
        %5165 = vmatpush1.msra.mxu0 %v4112
        %5166 = vmatprep.subr.mxu0 %v4115
        %5167 = vmatpush1.msra.mxu0 %v4114
        %5168 = vmatprep.subr.mxu0 %v4117
        %5169 = vmatpush1.msra.mxu0 %v4116
        %5170 = vmatprep.subr.mxu0 %v4119
        %5171 = vmatpush1.msra.mxu0 %v4118
        %5172 = vmatprep.subr.mxu0 %v4121
        %5173 = vmatpush1.msra.mxu0 %v4120
        %5174 = vmatprep.subr.mxu0 %v4123
        %5175 = vmatpush1.msra.mxu0 %v4122
        %5176 = vmatprep.subr.mxu0 %v4125
        %5177 = vmatpush1.msra.mxu0 %v4124
        %5178 = vmatprep.mubr.f32.mxu0 %v3783
        %5179 = vmatmul.mubr.f32.gmra.mrb[0].mxu0 %v3782
        %v5180 = vpop.f32.mrb[0].mxu0
        %v5181 = vadd.f32 %v5110, %v5180
        %v5182 = vpop.f32.mrb[0].mxu0
        %v5183 = vadd.f32 %v5112, %v5182
        %5184 = vdwg.mxu0
        %5185 = vmatprep.subr.mxu0 %v4127
        %5186 = vmatpush1.msra.mxu0 %v4126
        %5187 = vmatprep.subr.mxu0 %v4129
        %5188 = vmatpush1.msra.mxu0 %v4128
        %5189 = vmatprep.subr.mxu0 %v4131
        %5190 = vmatpush1.msra.mxu0 %v4130
        %5191 = vmatprep.subr.mxu0 %v4133
        %5192 = vmatpush1.msra.mxu0 %v4132
        %5193 = vmatprep.subr.mxu0 %v4135
        %5194 = vmatpush1.msra.mxu0 %v4134
        %5195 = vmatprep.subr.mxu0 %v4137
        %5196 = vmatpush1.msra.mxu0 %v4136
        %5197 = vmatprep.subr.mxu0 %v4139
        %5198 = vmatpush1.msra.mxu0 %v4138
        %5199 = vmatprep.subr.mxu0 %v4141
        %5200 = vmatpush1.msra.mxu0 %v4140
        %5201 = vmatprep.subr.mxu0 %v4143
        %5202 = vmatpush1.msra.mxu0 %v4142
        %5203 = vmatprep.subr.mxu0 %v4145
        %5204 = vmatpush1.msra.mxu0 %v4144
        %5205 = vmatprep.subr.mxu0 %v4147
        %5206 = vmatpush1.msra.mxu0 %v4146
        %5207 = vmatprep.subr.mxu0 %v4149
        %5208 = vmatpush1.msra.mxu0 %v4148
        %5209 = vmatprep.subr.mxu0 %v4151
        %5210 = vmatpush1.msra.mxu0 %v4150
        %5211 = vmatprep.subr.mxu0 %v4153
        %5212 = vmatpush1.msra.mxu0 %v4152
        %5213 = vmatprep.subr.mxu0 %v4155
        %5214 = vmatpush1.msra.mxu0 %v4154
        %5215 = vmatprep.subr.mxu0 %v4157
        %5216 = vmatpush1.msra.mxu0 %v4156
        %5217 = vmatprep.subr.mxu0 %v4159
        %5218 = vmatpush1.msra.mxu0 %v4158
        %5219 = vmatprep.subr.mxu0 %v4161
        %5220 = vmatpush1.msra.mxu0 %v4160
        %5221 = vmatprep.subr.mxu0 %v4163
        %5222 = vmatpush1.msra.mxu0 %v4162
        %5223 = vmatprep.subr.mxu0 %v4165
        %5224 = vmatpush1.msra.mxu0 %v4164
        %5225 = vmatprep.subr.mxu0 %v4167
        %5226 = vmatpush1.msra.mxu0 %v4166
        %5227 = vmatprep.subr.mxu0 %v4169
        %5228 = vmatpush1.msra.mxu0 %v4168
        %5229 = vmatprep.subr.mxu0 %v4171
        %5230 = vmatpush1.msra.mxu0 %v4170
        %5231 = vmatprep.subr.mxu0 %v4173
        %5232 = vmatpush1.msra.mxu0 %v4172
        %5233 = vmatprep.subr.mxu0 %v4175
        %5234 = vmatpush1.msra.mxu0 %v4174
        %5235 = vmatprep.subr.mxu0 %v4177
        %5236 = vmatpush1.msra.mxu0 %v4176
        %5237 = vmatprep.subr.mxu0 %v4179
        %5238 = vmatpush1.msra.mxu0 %v4178
        %5239 = vmatprep.subr.mxu0 %v4181
        %5240 = vmatpush1.msra.mxu0 %v4180
        %5241 = vmatprep.subr.mxu0 %v4183
        %5242 = vmatpush1.msra.mxu0 %v4182
        %5243 = vmatprep.subr.mxu0 %v4185
        %5244 = vmatpush1.msra.mxu0 %v4184
        %5245 = vmatprep.subr.mxu0 %v4187
        %5246 = vmatpush1.msra.mxu0 %v4186
        %5247 = vmatprep.subr.mxu0 %v4189
        %5248 = vmatpush1.msra.mxu0 %v4188
        %5249 = vmatprep.mubr.f32.mxu0 %v3785
        %5250 = vmatmul.mubr.f32.gmra.mrb[0].mxu0 %v3784
        %v5251 = vpop.f32.mrb[0].mxu0
        %v5252 = vadd.f32 %v5181, %v5251
        %v5253 = vpop.f32.mrb[0].mxu0
        %v5254 = vadd.f32 %v5183, %v5253
        %5255 = vdwg.mxu0
        %5256 = vmatprep.subr.mxu0 %v4191
        %5257 = vmatpush1.msra.mxu0 %v4190
        %5258 = vmatprep.subr.mxu0 %v4193
        %5259 = vmatpush1.msra.mxu0 %v4192
        %5260 = vmatprep.subr.mxu0 %v4195
        %5261 = vmatpush1.msra.mxu0 %v4194
        %5262 = vmatprep.subr.mxu0 %v4197
        %5263 = vmatpush1.msra.mxu0 %v4196
        %5264 = vmatprep.subr.mxu0 %v4199
        %5265 = vmatpush1.msra.mxu0 %v4198
        %5266 = vmatprep.subr.mxu0 %v4201
        %5267 = vmatpush1.msra.mxu0 %v4200
        %5268 = vmatprep.subr.mxu0 %v4203
        %5269 = vmatpush1.msra.mxu0 %v4202
        %5270 = vmatprep.subr.mxu0 %v4205
        %5271 = vmatpush1.msra.mxu0 %v4204
        %5272 = vmatprep.subr.mxu0 %v4207
        %5273 = vmatpush1.msra.mxu0 %v4206
        %5274 = vmatprep.subr.mxu0 %v4209
        %5275 = vmatpush1.msra.mxu0 %v4208
        %5276 = vmatprep.subr.mxu0 %v4211
        %5277 = vmatpush1.msra.mxu0 %v4210
        %5278 = vmatprep.subr.mxu0 %v4213
        %5279 = vmatpush1.msra.mxu0 %v4212
        %5280 = vmatprep.subr.mxu0 %v4215
        %5281 = vmatpush1.msra.mxu0 %v4214
        %5282 = vmatprep.subr.mxu0 %v4217
        %5283 = vmatpush1.msra.mxu0 %v4216
        %5284 = vmatprep.subr.mxu0 %v4219
        %5285 = vmatpush1.msra.mxu0 %v4218
        %5286 = vmatprep.subr.mxu0 %v4221
        %5287 = vmatpush1.msra.mxu0 %v4220
        %5288 = vmatprep.subr.mxu0 %v4223
        %5289 = vmatpush1.msra.mxu0 %v4222
        %5290 = vmatprep.subr.mxu0 %v4225
        %5291 = vmatpush1.msra.mxu0 %v4224
        %5292 = vmatprep.subr.mxu0 %v4227
        %5293 = vmatpush1.msra.mxu0 %v4226
        %5294 = vmatprep.subr.mxu0 %v4229
        %5295 = vmatpush1.msra.mxu0 %v4228
        %5296 = vmatprep.subr.mxu0 %v4231
        %5297 = vmatpush1.msra.mxu0 %v4230
        %5298 = vmatprep.subr.mxu0 %v4233
        %5299 = vmatpush1.msra.mxu0 %v4232
        %5300 = vmatprep.subr.mxu0 %v4235
        %5301 = vmatpush1.msra.mxu0 %v4234
        %5302 = vmatprep.subr.mxu0 %v4237
        %5303 = vmatpush1.msra.mxu0 %v4236
        %5304 = vmatprep.subr.mxu0 %v4239
        %5305 = vmatpush1.msra.mxu0 %v4238
        %5306 = vmatprep.subr.mxu0 %v4241
        %5307 = vmatpush1.msra.mxu0 %v4240
        %5308 = vmatprep.subr.mxu0 %v4243
        %5309 = vmatpush1.msra.mxu0 %v4242
        %5310 = vmatprep.subr.mxu0 %v4245
        %5311 = vmatpush1.msra.mxu0 %v4244
        %5312 = vmatprep.subr.mxu0 %v4247
        %5313 = vmatpush1.msra.mxu0 %v4246
        %5314 = vmatprep.subr.mxu0 %v4249
        %5315 = vmatpush1.msra.mxu0 %v4248
        %5316 = vmatprep.subr.mxu0 %v4251
        %5317 = vmatpush1.msra.mxu0 %v4250
        %5318 = vmatprep.subr.mxu0 %v4253
        %5319 = vmatpush1.msra.mxu0 %v4252
        %5320 = vmatprep.mubr.f32.mxu0 %v3787
        %5321 = vmatmul.mubr.f32.gmra.mrb[0].mxu0 %v3786
        %v5322 = vpop.f32.mrb[0].mxu0
        %v5323 = vadd.f32 %v5252, %v5322
        %v5324 = vpop.f32.mrb[0].mxu0
        %v5325 = vadd.f32 %v5254, %v5324
        %5326 = vdwg.mxu0
        %5327 = vmatprep.subr.mxu0 %v4255
        %5328 = vmatpush1.msra.mxu0 %v4254
        %5329 = vmatprep.subr.mxu0 %v4257
        %5330 = vmatpush1.msra.mxu0 %v4256
        %5331 = vmatprep.subr.mxu0 %v4259
        %5332 = vmatpush1.msra.mxu0 %v4258
        %5333 = vmatprep.subr.mxu0 %v4261
        %5334 = vmatpush1.msra.mxu0 %v4260
        %5335 = vmatprep.subr.mxu0 %v4263
        %5336 = vmatpush1.msra.mxu0 %v4262
        %5337 = vmatprep.subr.mxu0 %v4265
        %5338 = vmatpush1.msra.mxu0 %v4264
        %5339 = vmatprep.subr.mxu0 %v4267
        %5340 = vmatpush1.msra.mxu0 %v4266
        %5341 = vmatprep.subr.mxu0 %v4269
        %5342 = vmatpush1.msra.mxu0 %v4268
        %5343 = vmatprep.subr.mxu0 %v4271
        %5344 = vmatpush1.msra.mxu0 %v4270
        %5345 = vmatprep.subr.mxu0 %v4273
        %5346 = vmatpush1.msra.mxu0 %v4272
        %5347 = vmatprep.subr.mxu0 %v4275
        %5348 = vmatpush1.msra.mxu0 %v4274
        %5349 = vmatprep.subr.mxu0 %v4277
        %5350 = vmatpush1.msra.mxu0 %v4276
        %5351 = vmatprep.subr.mxu0 %v4279
        %5352 = vmatpush1.msra.mxu0 %v4278
        %5353 = vmatprep.subr.mxu0 %v4281
        %5354 = vmatpush1.msra.mxu0 %v4280
        %5355 = vmatprep.subr.mxu0 %v4283
        %5356 = vmatpush1.msra.mxu0 %v4282
        %5357 = vmatprep.subr.mxu0 %v4285
        %5358 = vmatpush1.msra.mxu0 %v4284
        %5359 = vmatprep.subr.mxu0 %v4287
        %5360 = vmatpush1.msra.mxu0 %v4286
        %5361 = vmatprep.subr.mxu0 %v4289
        %5362 = vmatpush1.msra.mxu0 %v4288
        %5363 = vmatprep.subr.mxu0 %v4291
        %5364 = vmatpush1.msra.mxu0 %v4290
        %5365 = vmatprep.subr.mxu0 %v4293
        %5366 = vmatpush1.msra.mxu0 %v4292
        %5367 = vmatprep.subr.mxu0 %v4295
        %5368 = vmatpush1.msra.mxu0 %v4294
        %5369 = vmatprep.subr.mxu0 %v4297
        %5370 = vmatpush1.msra.mxu0 %v4296
        %5371 = vmatprep.subr.mxu0 %v4299
        %5372 = vmatpush1.msra.mxu0 %v4298
        %5373 = vmatprep.subr.mxu0 %v4301
        %5374 = vmatpush1.msra.mxu0 %v4300
        %5375 = vmatprep.subr.mxu0 %v4303
        %5376 = vmatpush1.msra.mxu0 %v4302
        %5377 = vmatprep.subr.mxu0 %v4305
        %5378 = vmatpush1.msra.mxu0 %v4304
        %5379 = vmatprep.subr.mxu0 %v4307
        %5380 = vmatpush1.msra.mxu0 %v4306
        %5381 = vmatprep.subr.mxu0 %v4309
        %5382 = vmatpush1.msra.mxu0 %v4308
        %5383 = vmatprep.subr.mxu0 %v4311
        %5384 = vmatpush1.msra.mxu0 %v4310
        %5385 = vmatprep.subr.mxu0 %v4313
        %5386 = vmatpush1.msra.mxu0 %v4312
        %5387 = vmatprep.subr.mxu0 %v4315
        %5388 = vmatpush1.msra.mxu0 %v4314
        %5389 = vmatprep.subr.mxu0 %v4317
        %5390 = vmatpush1.msra.mxu0 %v4316
        %5391 = vmatprep.mubr.f32.mxu0 %v3789
        %5392 = vmatmul.mubr.f32.gmra.mrb[0].mxu0 %v3788
        %v5393 = vpop.f32.mrb[0].mxu0
        %v5394 = vadd.f32 %v5323, %v5393
        %v5395 = vpop.f32.mrb[0].mxu0
        %v5396 = vadd.f32 %v5325, %v5395
        %5397 = vdwg.mxu0
        %5398 = vmatprep.subr.mxu0 %v4319
        %5399 = vmatpush1.msra.mxu0 %v4318
        %5400 = vmatprep.subr.mxu0 %v4321
        %5401 = vmatpush1.msra.mxu0 %v4320
        %5402 = vmatprep.subr.mxu0 %v4323
        %5403 = vmatpush1.msra.mxu0 %v4322
        %5404 = vmatprep.subr.mxu0 %v4325
        %5405 = vmatpush1.msra.mxu0 %v4324
        %5406 = vmatprep.subr.mxu0 %v4327
        %5407 = vmatpush1.msra.mxu0 %v4326
        %5408 = vmatprep.subr.mxu0 %v4329
        %5409 = vmatpush1.msra.mxu0 %v4328
        %5410 = vmatprep.subr.mxu0 %v4331
        %5411 = vmatpush1.msra.mxu0 %v4330
        %5412 = vmatprep.subr.mxu0 %v4333
        %5413 = vmatpush1.msra.mxu0 %v4332
        %5414 = vmatprep.subr.mxu0 %v4335
        %5415 = vmatpush1.msra.mxu0 %v4334
        %5416 = vmatprep.subr.mxu0 %v4337
        %5417 = vmatpush1.msra.mxu0 %v4336
        %5418 = vmatprep.subr.mxu0 %v4339
        %5419 = vmatpush1.msra.mxu0 %v4338
        %5420 = vmatprep.subr.mxu0 %v4341
        %5421 = vmatpush1.msra.mxu0 %v4340
        %5422 = vmatprep.subr.mxu0 %v4343
        %5423 = vmatpush1.msra.mxu0 %v4342
        %5424 = vmatprep.subr.mxu0 %v4345
        %5425 = vmatpush1.msra.mxu0 %v4344
        %5426 = vmatprep.subr.mxu0 %v4347
        %5427 = vmatpush1.msra.mxu0 %v4346
        %5428 = vmatprep.subr.mxu0 %v4349
        %5429 = vmatpush1.msra.mxu0 %v4348
        %5430 = vmatprep.subr.mxu0 %v4351
        %5431 = vmatpush1.msra.mxu0 %v4350
        %5432 = vmatprep.subr.mxu0 %v4353
        %5433 = vmatpush1.msra.mxu0 %v4352
        %5434 = vmatprep.subr.mxu0 %v4355
        %5435 = vmatpush1.msra.mxu0 %v4354
        %5436 = vmatprep.subr.mxu0 %v4357
        %5437 = vmatpush1.msra.mxu0 %v4356
        %5438 = vmatprep.subr.mxu0 %v4359
        %5439 = vmatpush1.msra.mxu0 %v4358
        %5440 = vmatprep.subr.mxu0 %v4361
        %5441 = vmatpush1.msra.mxu0 %v4360
        %5442 = vmatprep.subr.mxu0 %v4363
        %5443 = vmatpush1.msra.mxu0 %v4362
        %5444 = vmatprep.subr.mxu0 %v4365
        %5445 = vmatpush1.msra.mxu0 %v4364
        %5446 = vmatprep.subr.mxu0 %v4367
        %5447 = vmatpush1.msra.mxu0 %v4366
        %5448 = vmatprep.subr.mxu0 %v4369
        %5449 = vmatpush1.msra.mxu0 %v4368
        %5450 = vmatprep.subr.mxu0 %v4371
        %5451 = vmatpush1.msra.mxu0 %v4370
        %5452 = vmatprep.subr.mxu0 %v4373
        %5453 = vmatpush1.msra.mxu0 %v4372
        %5454 = vmatprep.subr.mxu0 %v4375
        %5455 = vmatpush1.msra.mxu0 %v4374
        %5456 = vmatprep.subr.mxu0 %v4377
        %5457 = vmatpush1.msra.mxu0 %v4376
        %5458 = vmatprep.subr.mxu0 %v4379
        %5459 = vmatpush1.msra.mxu0 %v4378
        %5460 = vmatprep.subr.mxu0 %v4381
        %5461 = vmatpush1.msra.mxu0 %v4380
        %5462 = vmatprep.mubr.f32.mxu0 %v3791
        %5463 = vmatmul.mubr.f32.gmra.mrb[0].mxu0 %v3790
        %v5464 = vpop.f32.mrb[0].mxu0
        %v5465 = vadd.f32 %v5394, %v5464
        %v5466 = vpop.f32.mrb[0].mxu0
        %v5467 = vadd.f32 %v5396, %v5466
        %5468 = vdwg.mxu0
        %5469 = vmatprep.subr.mxu0 %v4383
        %5470 = vmatpush1.msra.mxu0 %v4382
        %5471 = vmatprep.subr.mxu0 %v4385
        %5472 = vmatpush1.msra.mxu0 %v4384
        %5473 = vmatprep.subr.mxu0 %v4387
        %5474 = vmatpush1.msra.mxu0 %v4386
        %5475 = vmatprep.subr.mxu0 %v4389
        %5476 = vmatpush1.msra.mxu0 %v4388
        %5477 = vmatprep.subr.mxu0 %v4391
        %5478 = vmatpush1.msra.mxu0 %v4390
        %5479 = vmatprep.subr.mxu0 %v4393
        %5480 = vmatpush1.msra.mxu0 %v4392
        %5481 = vmatprep.subr.mxu0 %v4395
        %5482 = vmatpush1.msra.mxu0 %v4394
        %5483 = vmatprep.subr.mxu0 %v4397
        %5484 = vmatpush1.msra.mxu0 %v4396
        %5485 = vmatprep.subr.mxu0 %v4399
        %5486 = vmatpush1.msra.mxu0 %v4398
        %5487 = vmatprep.subr.mxu0 %v4401
        %5488 = vmatpush1.msra.mxu0 %v4400
        %5489 = vmatprep.subr.mxu0 %v4403
        %5490 = vmatpush1.msra.mxu0 %v4402
        %5491 = vmatprep.subr.mxu0 %v4405
        %5492 = vmatpush1.msra.mxu0 %v4404
        %5493 = vmatprep.subr.mxu0 %v4407
        %5494 = vmatpush1.msra.mxu0 %v4406
        %5495 = vmatprep.subr.mxu0 %v4409
        %5496 = vmatpush1.msra.mxu0 %v4408
        %5497 = vmatprep.subr.mxu0 %v4411
        %5498 = vmatpush1.msra.mxu0 %v4410
        %5499 = vmatprep.subr.mxu0 %v4413
        %5500 = vmatpush1.msra.mxu0 %v4412
        %5501 = vmatprep.subr.mxu0 %v4415
        %5502 = vmatpush1.msra.mxu0 %v4414
        %5503 = vmatprep.subr.mxu0 %v4417
        %5504 = vmatpush1.msra.mxu0 %v4416
        %5505 = vmatprep.subr.mxu0 %v4419
        %5506 = vmatpush1.msra.mxu0 %v4418
        %5507 = vmatprep.subr.mxu0 %v4421
        %5508 = vmatpush1.msra.mxu0 %v4420
        %5509 = vmatprep.subr.mxu0 %v4423
        %5510 = vmatpush1.msra.mxu0 %v4422
        %5511 = vmatprep.subr.mxu0 %v4425
        %5512 = vmatpush1.msra.mxu0 %v4424
        %5513 = vmatprep.subr.mxu0 %v4427
        %5514 = vmatpush1.msra.mxu0 %v4426
        %5515 = vmatprep.subr.mxu0 %v4429
        %5516 = vmatpush1.msra.mxu0 %v4428
        %5517 = vmatprep.subr.mxu0 %v4431
        %5518 = vmatpush1.msra.mxu0 %v4430
        %5519 = vmatprep.subr.mxu0 %v4433
        %5520 = vmatpush1.msra.mxu0 %v4432
        %5521 = vmatprep.subr.mxu0 %v4435
        %5522 = vmatpush1.msra.mxu0 %v4434
        %5523 = vmatprep.subr.mxu0 %v4437
        %5524 = vmatpush1.msra.mxu0 %v4436
        %5525 = vmatprep.subr.mxu0 %v4439
        %5526 = vmatpush1.msra.mxu0 %v4438
        %5527 = vmatprep.subr.mxu0 %v4441
        %5528 = vmatpush1.msra.mxu0 %v4440
        %5529 = vmatprep.subr.mxu0 %v4443
        %5530 = vmatpush1.msra.mxu0 %v4442
        %5531 = vmatprep.subr.mxu0 %v4445
        %5532 = vmatpush1.msra.mxu0 %v4444
        %5533 = vmatprep.mubr.f32.mxu0 %v3793
        %5534 = vmatmul.mubr.f32.gmra.mrb[0].mxu0 %v3792
        %v5535 = vpop.f32.mrb[0].mxu0
        %v5536 = vadd.f32 %v5465, %v5535
        %v5537 = vpop.f32.mrb[0].mxu0
        %v5538 = vadd.f32 %v5467, %v5537
        %5539 = vdwg.mxu0
        %5540 = vmatprep.subr.mxu0 %v4447
        %5541 = vmatpush1.msra.mxu0 %v4446
        %5542 = vmatprep.subr.mxu0 %v4449
        %5543 = vmatpush1.msra.mxu0 %v4448
        %5544 = vmatprep.subr.mxu0 %v4451
        %5545 = vmatpush1.msra.mxu0 %v4450
        %5546 = vmatprep.subr.mxu0 %v4453
        %5547 = vmatpush1.msra.mxu0 %v4452
        %5548 = vmatprep.subr.mxu0 %v4455
        %5549 = vmatpush1.msra.mxu0 %v4454
        %5550 = vmatprep.subr.mxu0 %v4457
        %5551 = vmatpush1.msra.mxu0 %v4456
        %5552 = vmatprep.subr.mxu0 %v4459
        %5553 = vmatpush1.msra.mxu0 %v4458
        %5554 = vmatprep.subr.mxu0 %v4461
        %5555 = vmatpush1.msra.mxu0 %v4460
        %5556 = vmatprep.subr.mxu0 %v4463
        %5557 = vmatpush1.msra.mxu0 %v4462
        %5558 = vmatprep.subr.mxu0 %v4465
        %5559 = vmatpush1.msra.mxu0 %v4464
        %5560 = vmatprep.subr.mxu0 %v4467
        %5561 = vmatpush1.msra.mxu0 %v4466
        %5562 = vmatprep.subr.mxu0 %v4469
        %5563 = vmatpush1.msra.mxu0 %v4468
        %5564 = vmatprep.subr.mxu0 %v4471
        %5565 = vmatpush1.msra.mxu0 %v4470
        %5566 = vmatprep.subr.mxu0 %v4473
        %5567 = vmatpush1.msra.mxu0 %v4472
        %5568 = vmatprep.subr.mxu0 %v4475
        %5569 = vmatpush1.msra.mxu0 %v4474
        %5570 = vmatprep.subr.mxu0 %v4477
        %5571 = vmatpush1.msra.mxu0 %v4476
        %5572 = vmatprep.subr.mxu0 %v4479
        %5573 = vmatpush1.msra.mxu0 %v4478
        %5574 = vmatprep.subr.mxu0 %v4481
        %5575 = vmatpush1.msra.mxu0 %v4480
        %5576 = vmatprep.subr.mxu0 %v4483
        %5577 = vmatpush1.msra.mxu0 %v4482
        %5578 = vmatprep.subr.mxu0 %v4485
        %5579 = vmatpush1.msra.mxu0 %v4484
        %5580 = vmatprep.subr.mxu0 %v4487
        %5581 = vmatpush1.msra.mxu0 %v4486
        %5582 = vmatprep.subr.mxu0 %v4489
        %5583 = vmatpush1.msra.mxu0 %v4488
        %5584 = vmatprep.subr.mxu0 %v4491
        %5585 = vmatpush1.msra.mxu0 %v4490
        %5586 = vmatprep.subr.mxu0 %v4493
        %5587 = vmatpush1.msra.mxu0 %v4492
        %5588 = vmatprep.subr.mxu0 %v4495
        %5589 = vmatpush1.msra.mxu0 %v4494
        %5590 = vmatprep.subr.mxu0 %v4497
        %5591 = vmatpush1.msra.mxu0 %v4496
        %5592 = vmatprep.subr.mxu0 %v4499
        %5593 = vmatpush1.msra.mxu0 %v4498
        %5594 = vmatprep.subr.mxu0 %v4501
        %5595 = vmatpush1.msra.mxu0 %v4500
        %5596 = vmatprep.subr.mxu0 %v4503
        %5597 = vmatpush1.msra.mxu0 %v4502
        %5598 = vmatprep.subr.mxu0 %v4505
        %5599 = vmatpush1.msra.mxu0 %v4504
        %5600 = vmatprep.subr.mxu0 %v4507
        %5601 = vmatpush1.msra.mxu0 %v4506
        %5602 = vmatprep.subr.mxu0 %v4509
        %5603 = vmatpush1.msra.mxu0 %v4508
        %5604 = vmatprep.mubr.f32.mxu0 %v3795
        %5605 = vmatmul.mubr.f32.gmra.mrb[0].mxu0 %v3794
        %v5606 = vpop.f32.mrb[0].mxu0
        %v5607 = vadd.f32 %v5536, %v5606
        %v5608 = vpop.f32.mrb[0].mxu0
        %v5609 = vadd.f32 %v5538, %v5608
        %5610 = vdwg.mxu0
        %5611 = vmatprep.subr.mxu0 %v4511
        %5612 = vmatpush1.msra.mxu0 %v4510
        %5613 = vmatprep.subr.mxu0 %v4513
        %5614 = vmatpush1.msra.mxu0 %v4512
        %5615 = vmatprep.subr.mxu0 %v4515
        %5616 = vmatpush1.msra.mxu0 %v4514
        %5617 = vmatprep.subr.mxu0 %v4517
        %5618 = vmatpush1.msra.mxu0 %v4516
        %5619 = vmatprep.subr.mxu0 %v4519
        %5620 = vmatpush1.msra.mxu0 %v4518
        %5621 = vmatprep.subr.mxu0 %v4521
        %5622 = vmatpush1.msra.mxu0 %v4520
        %5623 = vmatprep.subr.mxu0 %v4523
        %5624 = vmatpush1.msra.mxu0 %v4522
        %5625 = vmatprep.subr.mxu0 %v4525
        %5626 = vmatpush1.msra.mxu0 %v4524
        %5627 = vmatprep.subr.mxu0 %v4527
        %5628 = vmatpush1.msra.mxu0 %v4526
        %5629 = vmatprep.subr.mxu0 %v4529
        %5630 = vmatpush1.msra.mxu0 %v4528
        %5631 = vmatprep.subr.mxu0 %v4531
        %5632 = vmatpush1.msra.mxu0 %v4530
        %5633 = vmatprep.subr.mxu0 %v4533
        %5634 = vmatpush1.msra.mxu0 %v4532
        %5635 = vmatprep.subr.mxu0 %v4535
        %5636 = vmatpush1.msra.mxu0 %v4534
        %5637 = vmatprep.subr.mxu0 %v4537
        %5638 = vmatpush1.msra.mxu0 %v4536
        %5639 = vmatprep.subr.mxu0 %v4539
        %5640 = vmatpush1.msra.mxu0 %v4538
        %5641 = vmatprep.subr.mxu0 %v4541
        %5642 = vmatpush1.msra.mxu0 %v4540
        %5643 = vmatprep.subr.mxu0 %v4543
        %5644 = vmatpush1.msra.mxu0 %v4542
        %5645 = vmatprep.subr.mxu0 %v4545
        %5646 = vmatpush1.msra.mxu0 %v4544
        %5647 = vmatprep.subr.mxu0 %v4547
        %5648 = vmatpush1.msra.mxu0 %v4546
        %5649 = vmatprep.subr.mxu0 %v4549
        %5650 = vmatpush1.msra.mxu0 %v4548
        %5651 = vmatprep.subr.mxu0 %v4551
        %5652 = vmatpush1.msra.mxu0 %v4550
        %5653 = vmatprep.subr.mxu0 %v4553
        %5654 = vmatpush1.msra.mxu0 %v4552
        %5655 = vmatprep.subr.mxu0 %v4555
        %5656 = vmatpush1.msra.mxu0 %v4554
        %5657 = vmatprep.subr.mxu0 %v4557
        %5658 = vmatpush1.msra.mxu0 %v4556
        %5659 = vmatprep.subr.mxu0 %v4559
        %5660 = vmatpush1.msra.mxu0 %v4558
        %5661 = vmatprep.subr.mxu0 %v4561
        %5662 = vmatpush1.msra.mxu0 %v4560
        %5663 = vmatprep.subr.mxu0 %v4563
        %5664 = vmatpush1.msra.mxu0 %v4562
        %5665 = vmatprep.subr.mxu0 %v4565
        %5666 = vmatpush1.msra.mxu0 %v4564
        %5667 = vmatprep.subr.mxu0 %v4567
        %5668 = vmatpush1.msra.mxu0 %v4566
        %5669 = vmatprep.subr.mxu0 %v4569
        %5670 = vmatpush1.msra.mxu0 %v4568
        %5671 = vmatprep.subr.mxu0 %v4571
        %5672 = vmatpush1.msra.mxu0 %v4570
        %5673 = vmatprep.subr.mxu0 %v4573
        %5674 = vmatpush1.msra.mxu0 %v4572
        %5675 = vmatprep.mubr.f32.mxu0 %v3797
        %5676 = vmatmul.mubr.f32.gmra.mrb[0].mxu0 %v3796
        %v5677 = vpop.f32.mrb[0].mxu0
        %v5678 = vadd.f32 %v5607, %v5677
        %v5679 = vpop.f32.mrb[0].mxu0
        %v5680 = vadd.f32 %v5609, %v5679
        %5681 = vdwg.mxu0
        %5682 = vmatprep.subr.mxu0 %v4575
        %5683 = vmatpush1.msra.mxu0 %v4574
        %5684 = vmatprep.subr.mxu0 %v4577
        %5685 = vmatpush1.msra.mxu0 %v4576
        %5686 = vmatprep.subr.mxu0 %v4579
        %5687 = vmatpush1.msra.mxu0 %v4578
        %5688 = vmatprep.subr.mxu0 %v4581
        %5689 = vmatpush1.msra.mxu0 %v4580
        %5690 = vmatprep.subr.mxu0 %v4583
        %5691 = vmatpush1.msra.mxu0 %v4582
        %5692 = vmatprep.subr.mxu0 %v4585
        %5693 = vmatpush1.msra.mxu0 %v4584
        %5694 = vmatprep.subr.mxu0 %v4587
        %5695 = vmatpush1.msra.mxu0 %v4586
        %5696 = vmatprep.subr.mxu0 %v4589
        %5697 = vmatpush1.msra.mxu0 %v4588
        %5698 = vmatprep.subr.mxu0 %v4591
        %5699 = vmatpush1.msra.mxu0 %v4590
        %5700 = vmatprep.subr.mxu0 %v4593
        %5701 = vmatpush1.msra.mxu0 %v4592
        %5702 = vmatprep.subr.mxu0 %v4595
        %5703 = vmatpush1.msra.mxu0 %v4594
        %5704 = vmatprep.subr.mxu0 %v4597
        %5705 = vmatpush1.msra.mxu0 %v4596
        %5706 = vmatprep.subr.mxu0 %v4599
        %5707 = vmatpush1.msra.mxu0 %v4598
        %5708 = vmatprep.subr.mxu0 %v4601
        %5709 = vmatpush1.msra.mxu0 %v4600
        %5710 = vmatprep.subr.mxu0 %v4603
        %5711 = vmatpush1.msra.mxu0 %v4602
        %5712 = vmatprep.subr.mxu0 %v4605
        %5713 = vmatpush1.msra.mxu0 %v4604
        %5714 = vmatprep.subr.mxu0 %v4607
        %5715 = vmatpush1.msra.mxu0 %v4606
        %5716 = vmatprep.subr.mxu0 %v4609
        %5717 = vmatpush1.msra.mxu0 %v4608
        %5718 = vmatprep.subr.mxu0 %v4611
        %5719 = vmatpush1.msra.mxu0 %v4610
        %5720 = vmatprep.subr.mxu0 %v4613
        %5721 = vmatpush1.msra.mxu0 %v4612
        %5722 = vmatprep.subr.mxu0 %v4615
        %5723 = vmatpush1.msra.mxu0 %v4614
        %5724 = vmatprep.subr.mxu0 %v4617
        %5725 = vmatpush1.msra.mxu0 %v4616
        %5726 = vmatprep.subr.mxu0 %v4619
        %5727 = vmatpush1.msra.mxu0 %v4618
        %5728 = vmatprep.subr.mxu0 %v4621
        %5729 = vmatpush1.msra.mxu0 %v4620
        %5730 = vmatprep.subr.mxu0 %v4623
        %5731 = vmatpush1.msra.mxu0 %v4622
        %5732 = vmatprep.subr.mxu0 %v4625
        %5733 = vmatpush1.msra.mxu0 %v4624
        %5734 = vmatprep.subr.mxu0 %v4627
        %5735 = vmatpush1.msra.mxu0 %v4626
        %5736 = vmatprep.subr.mxu0 %v4629
        %5737 = vmatpush1.msra.mxu0 %v4628
        %5738 = vmatprep.subr.mxu0 %v4631
        %5739 = vmatpush1.msra.mxu0 %v4630
        %5740 = vmatprep.subr.mxu0 %v4633
        %5741 = vmatpush1.msra.mxu0 %v4632
        %5742 = vmatprep.subr.mxu0 %v4635
        %5743 = vmatpush1.msra.mxu0 %v4634
        %5744 = vmatprep.subr.mxu0 %v4637
        %5745 = vmatpush1.msra.mxu0 %v4636
        %5746 = vmatprep.mubr.f32.mxu0 %v3799
        %5747 = vmatmul.mubr.f32.gmra.mrb[0].mxu0 %v3798
        %v5748 = vpop.f32.mrb[0].mxu0
        %v5749 = vadd.f32 %v5678, %v5748
        %v5750 = vpop.f32.mrb[0].mxu0
        %v5751 = vadd.f32 %v5680, %v5750
        %5752 = vdwg.mxu0
        %5753 = vmatprep.subr.mxu0 %v4639
        %5754 = vmatpush1.msra.mxu0 %v4638
        %5755 = vmatprep.subr.mxu0 %v4641
        %5756 = vmatpush1.msra.mxu0 %v4640
        %5757 = vmatprep.subr.mxu0 %v4643
        %5758 = vmatpush1.msra.mxu0 %v4642
        %5759 = vmatprep.subr.mxu0 %v4645
        %5760 = vmatpush1.msra.mxu0 %v4644
        %5761 = vmatprep.subr.mxu0 %v4647
        %5762 = vmatpush1.msra.mxu0 %v4646
        %5763 = vmatprep.subr.mxu0 %v4649
        %5764 = vmatpush1.msra.mxu0 %v4648
        %5765 = vmatprep.subr.mxu0 %v4651
        %5766 = vmatpush1.msra.mxu0 %v4650
        %5767 = vmatprep.subr.mxu0 %v4653
        %5768 = vmatpush1.msra.mxu0 %v4652
        %5769 = vmatprep.subr.mxu0 %v4655
        %5770 = vmatpush1.msra.mxu0 %v4654
        %5771 = vmatprep.subr.mxu0 %v4657
        %5772 = vmatpush1.msra.mxu0 %v4656
        %5773 = vmatprep.subr.mxu0 %v4659
        %5774 = vmatpush1.msra.mxu0 %v4658
        %5775 = vmatprep.subr.mxu0 %v4661
        %5776 = vmatpush1.msra.mxu0 %v4660
        %5777 = vmatprep.subr.mxu0 %v4663
        %5778 = vmatpush1.msra.mxu0 %v4662
        %5779 = vmatprep.subr.mxu0 %v4665
        %5780 = vmatpush1.msra.mxu0 %v4664
        %5781 = vmatprep.subr.mxu0 %v4667
        %5782 = vmatpush1.msra.mxu0 %v4666
        %5783 = vmatprep.subr.mxu0 %v4669
        %5784 = vmatpush1.msra.mxu0 %v4668
        %5785 = vmatprep.subr.mxu0 %v4671
        %5786 = vmatpush1.msra.mxu0 %v4670
        %5787 = vmatprep.subr.mxu0 %v4673
        %5788 = vmatpush1.msra.mxu0 %v4672
        %5789 = vmatprep.subr.mxu0 %v4675
        %5790 = vmatpush1.msra.mxu0 %v4674
        %5791 = vmatprep.subr.mxu0 %v4677
        %5792 = vmatpush1.msra.mxu0 %v4676
        %5793 = vmatprep.subr.mxu0 %v4679
        %5794 = vmatpush1.msra.mxu0 %v4678
        %5795 = vmatprep.subr.mxu0 %v4681
        %5796 = vmatpush1.msra.mxu0 %v4680
        %5797 = vmatprep.subr.mxu0 %v4683
        %5798 = vmatpush1.msra.mxu0 %v4682
        %5799 = vmatprep.subr.mxu0 %v4685
        %5800 = vmatpush1.msra.mxu0 %v4684
        %5801 = vmatprep.subr.mxu0 %v4687
        %5802 = vmatpush1.msra.mxu0 %v4686
        %5803 = vmatprep.subr.mxu0 %v4689
        %5804 = vmatpush1.msra.mxu0 %v4688
        %5805 = vmatprep.subr.mxu0 %v4691
        %5806 = vmatpush1.msra.mxu0 %v4690
        %5807 = vmatprep.subr.mxu0 %v4693
        %5808 = vmatpush1.msra.mxu0 %v4692
        %5809 = vmatprep.subr.mxu0 %v4695
        %5810 = vmatpush1.msra.mxu0 %v4694
        %5811 = vmatprep.subr.mxu0 %v4697
        %5812 = vmatpush1.msra.mxu0 %v4696
        %5813 = vmatprep.subr.mxu0 %v4699
        %5814 = vmatpush1.msra.mxu0 %v4698
        %5815 = vmatprep.subr.mxu0 %v4701
        %5816 = vmatpush1.msra.mxu0 %v4700
        %5817 = vmatprep.mubr.f32.mxu0 %v3801
        %5818 = vmatmul.mubr.f32.gmra.mrb[0].mxu0 %v3800
        %v5819 = vpop.f32.mrb[0].mxu0
        %v5820 = vadd.f32 %v5749, %v5819
        %v5821 = vpop.f32.mrb[0].mxu0
        %v5822 = vadd.f32 %v5751, %v5821
        %5823 = vdwg.mxu0
        %5824 = vmatprep.subr.mxu0 %v4703
        %5825 = vmatpush1.msra.mxu0 %v4702
        %5826 = vmatprep.subr.mxu0 %v4705
        %5827 = vmatpush1.msra.mxu0 %v4704
        %5828 = vmatprep.subr.mxu0 %v4707
        %5829 = vmatpush1.msra.mxu0 %v4706
        %5830 = vmatprep.subr.mxu0 %v4709
        %5831 = vmatpush1.msra.mxu0 %v4708
        %5832 = vmatprep.subr.mxu0 %v4711
        %5833 = vmatpush1.msra.mxu0 %v4710
        %5834 = vmatprep.subr.mxu0 %v4713
        %5835 = vmatpush1.msra.mxu0 %v4712
        %5836 = vmatprep.subr.mxu0 %v4715
        %5837 = vmatpush1.msra.mxu0 %v4714
        %5838 = vmatprep.subr.mxu0 %v4717
        %5839 = vmatpush1.msra.mxu0 %v4716
        %5840 = vmatprep.subr.mxu0 %v4719
        %5841 = vmatpush1.msra.mxu0 %v4718
        %5842 = vmatprep.subr.mxu0 %v4721
        %5843 = vmatpush1.msra.mxu0 %v4720
        %5844 = vmatprep.subr.mxu0 %v4723
        %5845 = vmatpush1.msra.mxu0 %v4722
        %5846 = vmatprep.subr.mxu0 %v4725
        %5847 = vmatpush1.msra.mxu0 %v4724
        %5848 = vmatprep.subr.mxu0 %v4727
        %5849 = vmatpush1.msra.mxu0 %v4726
        %5850 = vmatprep.subr.mxu0 %v4729
        %5851 = vmatpush1.msra.mxu0 %v4728
        %5852 = vmatprep.subr.mxu0 %v4731
        %5853 = vmatpush1.msra.mxu0 %v4730
        %5854 = vmatprep.subr.mxu0 %v4733
        %5855 = vmatpush1.msra.mxu0 %v4732
        %5856 = vmatprep.subr.mxu0 %v4735
        %5857 = vmatpush1.msra.mxu0 %v4734
        %5858 = vmatprep.subr.mxu0 %v4737
        %5859 = vmatpush1.msra.mxu0 %v4736
        %5860 = vmatprep.subr.mxu0 %v4739
        %5861 = vmatpush1.msra.mxu0 %v4738
        %5862 = vmatprep.subr.mxu0 %v4741
        %5863 = vmatpush1.msra.mxu0 %v4740
        %5864 = vmatprep.subr.mxu0 %v4743
        %5865 = vmatpush1.msra.mxu0 %v4742
        %5866 = vmatprep.subr.mxu0 %v4745
        %5867 = vmatpush1.msra.mxu0 %v4744
        %5868 = vmatprep.subr.mxu0 %v4747
        %5869 = vmatpush1.msra.mxu0 %v4746
        %5870 = vmatprep.subr.mxu0 %v4749
        %5871 = vmatpush1.msra.mxu0 %v4748
        %5872 = vmatprep.subr.mxu0 %v4751
        %5873 = vmatpush1.msra.mxu0 %v4750
        %5874 = vmatprep.subr.mxu0 %v4753
        %5875 = vmatpush1.msra.mxu0 %v4752
        %5876 = vmatprep.subr.mxu0 %v4755
        %5877 = vmatpush1.msra.mxu0 %v4754
        %5878 = vmatprep.subr.mxu0 %v4757
        %5879 = vmatpush1.msra.mxu0 %v4756
        %5880 = vmatprep.subr.mxu0 %v4759
        %5881 = vmatpush1.msra.mxu0 %v4758
        %5882 = vmatprep.subr.mxu0 %v4761
        %5883 = vmatpush1.msra.mxu0 %v4760
        %5884 = vmatprep.subr.mxu0 %v4763
        %5885 = vmatpush1.msra.mxu0 %v4762
        %5886 = vmatprep.subr.mxu0 %v4765
        %5887 = vmatpush1.msra.mxu0 %v4764
        %5888 = vmatprep.mubr.f32.mxu0 %v3803
        %5889 = vmatmul.mubr.f32.gmra.mrb[0].mxu0 %v3802
        %v5890 = vpop.f32.mrb[0].mxu0
        %v5891 = vadd.f32 %v5820, %v5890
        %v5892 = vpop.f32.mrb[0].mxu0
        %v5893 = vadd.f32 %v5822, %v5892
        %5894 = vdwg.mxu0
        %5895 = vmatprep.subr.mxu0 %v4767
        %5896 = vmatpush1.msra.mxu0 %v4766
        %5897 = vmatprep.subr.mxu0 %v4769
        %5898 = vmatpush1.msra.mxu0 %v4768
        %5899 = vmatprep.subr.mxu0 %v4771
        %5900 = vmatpush1.msra.mxu0 %v4770
        %5901 = vmatprep.subr.mxu0 %v4773
        %5902 = vmatpush1.msra.mxu0 %v4772
        %5903 = vmatprep.subr.mxu0 %v4775
        %5904 = vmatpush1.msra.mxu0 %v4774
        %5905 = vmatprep.subr.mxu0 %v4777
        %5906 = vmatpush1.msra.mxu0 %v4776
        %5907 = vmatprep.subr.mxu0 %v4779
        %5908 = vmatpush1.msra.mxu0 %v4778
        %5909 = vmatprep.subr.mxu0 %v4781
        %5910 = vmatpush1.msra.mxu0 %v4780
        %5911 = vmatprep.subr.mxu0 %v4783
        %5912 = vmatpush1.msra.mxu0 %v4782
        %5913 = vmatprep.subr.mxu0 %v4785
        %5914 = vmatpush1.msra.mxu0 %v4784
        %5915 = vmatprep.subr.mxu0 %v4787
        %5916 = vmatpush1.msra.mxu0 %v4786
        %5917 = vmatprep.subr.mxu0 %v4789
        %5918 = vmatpush1.msra.mxu0 %v4788
        %5919 = vmatprep.subr.mxu0 %v4791
        %5920 = vmatpush1.msra.mxu0 %v4790
        %5921 = vmatprep.subr.mxu0 %v4793
        %5922 = vmatpush1.msra.mxu0 %v4792
        %5923 = vmatprep.subr.mxu0 %v4795
        %5924 = vmatpush1.msra.mxu0 %v4794
        %5925 = vmatprep.subr.mxu0 %v4797
        %5926 = vmatpush1.msra.mxu0 %v4796
        %5927 = vmatprep.subr.mxu0 %v4799
        %5928 = vmatpush1.msra.mxu0 %v4798
        %5929 = vmatprep.subr.mxu0 %v4801
        %5930 = vmatpush1.msra.mxu0 %v4800
        %5931 = vmatprep.subr.mxu0 %v4803
        %5932 = vmatpush1.msra.mxu0 %v4802
        %5933 = vmatprep.subr.mxu0 %v4805
        %5934 = vmatpush1.msra.mxu0 %v4804
        %5935 = vmatprep.subr.mxu0 %v4807
        %5936 = vmatpush1.msra.mxu0 %v4806
        %5937 = vmatprep.subr.mxu0 %v4809
        %5938 = vmatpush1.msra.mxu0 %v4808
        %5939 = vmatprep.subr.mxu0 %v4811
        %5940 = vmatpush1.msra.mxu0 %v4810
        %5941 = vmatprep.subr.mxu0 %v4813
        %5942 = vmatpush1.msra.mxu0 %v4812
        %5943 = vmatprep.subr.mxu0 %v4815
        %5944 = vmatpush1.msra.mxu0 %v4814
        %5945 = vmatprep.subr.mxu0 %v4817
        %5946 = vmatpush1.msra.mxu0 %v4816
        %5947 = vmatprep.subr.mxu0 %v4819
        %5948 = vmatpush1.msra.mxu0 %v4818
        %5949 = vmatprep.subr.mxu0 %v4821
        %5950 = vmatpush1.msra.mxu0 %v4820
        %5951 = vmatprep.subr.mxu0 %v4823
        %5952 = vmatpush1.msra.mxu0 %v4822
        %5953 = vmatprep.subr.mxu0 %v4825
        %5954 = vmatpush1.msra.mxu0 %v4824
        %5955 = vmatprep.subr.mxu0 %v4827
        %5956 = vmatpush1.msra.mxu0 %v4826
        %5957 = vmatprep.subr.mxu0 %v4829
        %5958 = vmatpush1.msra.mxu0 %v4828
        %5959 = vmatprep.mubr.f32.mxu0 %v3805
        %5960 = vmatmul.mubr.f32.gmra.mrb[0].mxu0 %v3804
        %v5961 = vpop.f32.mrb[0].mxu0
        %v5962 = vadd.f32 %v5891, %v5961
        %v5963 = vpop.f32.mrb[0].mxu0
        %v5964 = vadd.f32 %v5893, %v5963
        %5965 = vdwg.mxu0
        %v5966 = vmax.f32 %v5962, 1.0
        %v5967 = vmax.f32 %v5964, 1.0
        %v5970 = vrot.slane %v5966, 1
        %v5971 = vrot.slane %v5967, 1
        %v5974 = vrcp.pop %v5970
        %v5975 = vmul.f32 %v5962, %v5974
        %v5976 = vrcp.pop %v5971
        %v5977 = vmul.f32 %v5964, %v5976
        %v5978 = vsel %vm3773, %v5975, inf
        %v5979 = vsel %vm3773, %v5977, inf
        %v5980 = vmin.f32 %v5978, %v5979
        %5981 = vmin.xlane.f32.xlu0 %v5980
        %v5982 = vpop.xlane.xlu0 %5981
        %v5983 = vrot.slane %v5982, 4
        %v5984 = vmin.f32 %v5982, %v5983
        %v5985 = vrot.slane %v5984, 2
        %v5986 = vmin.f32 %v5984, %v5985
        %v5987 = vrot.slane %v5986, 1
        %v5988 = vmin.f32 %v5986, %v5987
        %s5989 = vtos %v5988
        %v5990 = vsel %vm3773, %v5975, -inf
        %v5991 = vsel %vm3773, %v5977, -inf
        %v5992 = vmax.f32 %v5990, %v5991
        %5993 = vmax.xlane.f32.xlu0 %v5992
        %v5994 = vpop.xlane.xlu0 %5993
        %v5995 = vrot.slane %v5994, 4
        %v5996 = vmax.f32 %v5994, %v5995
        %v5997 = vrot.slane %v5996, 2
        %v5998 = vmax.f32 %v5996, %v5997
        %v5999 = vrot.slane %v5998, 1
        %v6000 = vmax.f32 %v5998, %v5999
        %s6001 = vtos %v6000
        %v6002 = vstv %s5989
        %v6003 = vsub.f32 %v5975, %v6002
        %v6004 = vsub.f32 %v5977, %v6002
        %s6005 = ssub.f32 %s6001, %s5989
        %s6006 = smax.f32 %s6005, 1e-10
        %v6007 = vstv %s6006
        %v6008 = vrcp.pop %v6007
        %v6009 = vmul.f32 %v6003, %v6008
        %v6010 = vmul.f32 %v6004, %v6008
        %v6011 = vld [vmem:[%s352] sm:$0x3]
        %v6014 = vcombine.low %v6009, %v6010
        %v6016 = vunpack.c.l.s4 1966171168
        %v6017 = vunpack.c.0.s8 %v6016
        %v6018 = vlaneseq
        %v6019 = vshrl.u32 %v6018, 7
        %v6020 = vsub.s32 %v6017, %v6019
        %v6021 = vrot.slane %v6014, %v6020
        %v6023 = vunpack.c.l.s4 1966171168
        %v6024 = vunpack.c.0.s8 %v6023
        %v6025 = vlaneseq
        %v6026 = vshrl.u32 %v6025, 7
        %v6027 = vsub.s32 %v6024, %v6026
        %v6028 = vrot.slane %v6021, %v6027
        %v6030 = vmul.f32 %v6011, %v6028
        %v6031 = vlaneseq
        %vm6032 = vcmp.ge.s32.totalorder %v6031, 0
        %vm6033 = vcmp.lt.s32.totalorder %v6031, 256
        %vm6034 = vmand %vm6032, %vm6033
        %6035 = vst.msk [vmem:[%s401] sm:$0x3] %vm6034, %v6030
        %s6036 = sand.u32 %s178, 1
        %s6037 = scalar_lea.sflag [#allocation4], %s6036
        %s6038 = sand.u32 %s178, 1
        %s6039 = smul.addr %s6038, 32
        %s6040 = scalar_lea.vmem [#allocation14], %s6039
        %s6041 = sand.u32 %s204, 1
        %s6042 = scalar_lea.sflag [#allocation16], %s6041
        %s6043 = sand.u32 %s204, 1
        %s6044 = smul.addr %s6043, 2
        %s6045 = scalar_lea.vmem [#allocation15], %s6044
        // Predicated region
        $region69: #{tpu_custom_call.1} parent=43 // pred_check
          %p6046 = pneg %p188
        $region70: #{tpu_custom_call.1} parent=43 // pred_check_branch
          %6048 = sbr.rel (%p6046) target = $region72
        $region71: #{tpu_custom_call.1} parent=43 // pred_region
          %s6050 = ssub.s32 512, 512
          %6051 = vsyncadd %s6037, %s6050
          %s6052 = smul.addr %s34, 4
          %s6053 = smul.addr %s6052, 128
          %s6054 = scalar_lea.hbm %s6, %s6053
          %s6055 = sshll.u32 %s6040, 4
          %s6056 = int_to_ptr.vmem [resolvable:$true] %s6055
          %6061 = dma.vmem_to_hbm [thread:$0]  %s6056, 512, %s6054, %s6037, 128, 128, 8
        $region72: #{tpu_custom_call.1} parent=43 // pred_fallthru
          _
        // Predicated region
        $region73: #{tpu_custom_call.1} parent=43 // pred_check
          %p6062 = pneg %p214
        $region74: #{tpu_custom_call.1} parent=43 // pred_check_branch
          %6064 = sbr.rel (%p6062) target = $region76
        $region75: #{tpu_custom_call.1} parent=43 // pred_region
          %s6066 = ssub.s32 32, 32
          %6067 = vsyncadd %s6042, %s6066
          %s6068 = smul.addr %s34, 2
          %s6069 = smul.addr %s6068, 16
          %s6070 = scalar_lea.hbm %s7, %s6069
          %s6072 = sshll.u32 %s6045, 4
          %s6073 = int_to_ptr.vmem [resolvable:$true] %s6072
          %6075 = dma.vmem_to_hbm [thread:$0]  %s6073, 32, %s6070, %s6042
        $region76: #{tpu_custom_call.1} parent=43 // pred_fallthru
          _
      $region44: #{tpu_custom_call.1} parent=5 // pred_fallthru
        _
      %p6076 = scmp.le.s32.totalorder 2, %s29
      // Predicated region
      $region77: #{tpu_custom_call.1} parent=5 // pred_check
        %p6077 = pneg %p6076
      $region78: #{tpu_custom_call.1} parent=5 // pred_check_branch
        %6079 = sbr.rel (%p6077) target = $region80
      $region79: #{tpu_custom_call.1} parent=5 // pred_region
        %s6080 = ssub.s32 %s29, 2
        // Predicated region
        $region81: #{tpu_custom_call.1} parent=79 // pred_check
          %p6081 = pneg %p194
        $region82: #{tpu_custom_call.1} parent=79 // pred_check_branch
          %6083 = sbr.rel (%p6081) target = $region84
        $region83: #{tpu_custom_call.1} parent=79 // pred_region
          %s6084 = sand.u32 %s179, 1
          %s6085 = scalar_lea.sflag [#allocation4], %s6084
          %s6086 = sand.u32 %s179, 1
          %s6087 = smul.addr %s6086, 32
          %s6088 = scalar_lea.vmem [#allocation14], %s6087
          %6089 = dma.done %s6085, 512
        $region84: #{tpu_custom_call.1} parent=79 // pred_fallthru
          _
        // Predicated region
        $region85: #{tpu_custom_call.1} parent=79 // pred_check
          %p6090 = pneg %p220
        $region86: #{tpu_custom_call.1} parent=79 // pred_check_branch
          %6092 = sbr.rel (%p6090) target = $region88
        $region87: #{tpu_custom_call.1} parent=79 // pred_region
          %s6093 = sand.u32 %s205, 1
          %s6094 = scalar_lea.sflag [#allocation16], %s6093
          %s6095 = sand.u32 %s205, 1
          %s6096 = smul.addr %s6095, 2
          %s6097 = scalar_lea.vmem [#allocation15], %s6096
          %6098 = dma.done %s6094, 32
        $region88: #{tpu_custom_call.1} parent=79 // pred_fallthru
          _
      $region80: #{tpu_custom_call.1} parent=5 // pred_fallthru
        _
    $region6: #{tpu_custom_call.1} parent=1 // loop_footer
      %s33 = sadd.s32 1, %s29
    $region7: #{tpu_custom_call.1} parent=1 // loop_footer_branch
      %28 = sbr.rel target = $region3
    $region8: #{tpu_custom_call.1} parent=1 // loop_exit
      _
    %6099 = vsyncpa [#allocation3], 1
    %s6100 = scalar_lea.sflag [#allocation3], 1
    %6101 = vsyncpa %s6100, 1
    %6102 = vsyncpa [#allocation10], 1
    %s6103 = scalar_lea.sflag [#allocation10], 1
    %6104 = vsyncpa %s6103, 1
    %6105 = vsyncpa [#allocation13], 1
    %6106 = vsyncpa [#allocation4], 1
    %s6107 = scalar_lea.sflag [#allocation4], 1
    %6108 = vsyncpa %s6107, 1
    %6109 = vsyncpa [#allocation16], 1
    %s6110 = scalar_lea.sflag [#allocation16], 1
    %6111 = vsyncpa %s6110, 1
    %6112 = vsyncpa [#allocation5], 1
    %s6113 = scalar_lea.sflag [#allocation5], 1
    %6114 = vsyncpa %s6113, 1
    %6115 = vsyncpa [#allocation7], 1

</llo_original>
